<compile_context>
chip_gen: v5e
topology: v5e:2x2
jax: 0.10.0
libtpu: 0.0.40
codegen_flags: <defaults>
</compile_context>

<pallas_src>
import functools

import jax
import jax.numpy as jnp
import numpy as np
from jax.experimental import pallas as pl
from jax.experimental.pallas import tpu as pltpu


def _nonsep_kernel(x_ref, t_ref, o_ref, *, C, H, W, KMAX, P):
    """One (batch, level) grid step.

    x_ref: VMEM (C, H+2P, W+2P) max-reflect-padded input planes for batch n.
    t_ref: VMEM (C, KMAX, W+2P, W) banded Toeplitz weights for this level.
    o_ref: VMEM (C, H, W) output planes for (n, level).
    """
    level = pl.program_id(1)

    @pl.when(level == 0)
    def _identity():
        # Level 0 of the concat is x itself: copy the unpadded centre (exact).
        o_ref[...] = x_ref[:, pl.ds(P, H), pl.ds(P, W)]

    @pl.when(level > 0)
    def _conv():
        # Depthwise KxK conv as KMAX MXU matmuls per channel.  The dj (lane)
        # contraction lives inside the banded (Wp, W) Toeplitz matrix, so
        # there are no per-tap lane shifts and no scalar weight broadcasts.
        for c in range(C):
            acc = jnp.zeros((H, W), jnp.float32)
            for di in range(KMAX):
                acc = acc + jnp.dot(
                    x_ref[c, pl.ds(di, H), :],          # (H, Wp) sublane slice
                    t_ref[c, di, :, :],                  # (Wp, W) banded weights
                    preferred_element_type=jnp.float32,
                    precision=jax.lax.Precision.HIGHEST,
                )
            o_ref[c, :, :] = acc.astype(o_ref.dtype)


def build_conv_kernel(param, pad):
    """Mirror of the PyTorch per-level kernel construction (pure JAX glue)."""
    # kernel + flip(rot90(kernel, 1, dims=[2,3]), dims=[2])
    ksym = param + jnp.flip(jnp.rot90(param, k=1, axes=(2, 3)), axis=2)
    # F.pad(..., [0, pad, 0, pad], mode='reflect') -> pad right/bottom only
    kpad = jnp.pad(ksym, ((0, 0), (0, 0), (0, pad), (0, pad)), mode="reflect")
    K = 2 * pad + 1
    ksoft = jax.nn.softmax(kpad.reshape(3, 1, K * K), axis=2)
    return ksoft.reshape(3, 1, K, K)


def build_banded_weights(kernels, paddings, C, W, P):
    """Build (L+1, C, KMAX, Wp, W) banded Toeplitz weights.

    T[l, c, di, j + dj, j] = w_full[l, c, di, dj], where w_full is the level's
    softmaxed KxK kernel zero-embedded at the centre of a KMAXxKMAX window.
    """
    KMAX = 2 * P + 1
    Wp = W + 2 * P
    # Level-0 placeholder (identity level is handled by a copy in the kernel).
    levels = [jnp.zeros((C, KMAX, KMAX), jnp.float32).at[:, P, P].set(1.0)]
    for k, pad in zip(kernels, paddings):
        K = 2 * pad + 1
        off = P - pad
        wf = jnp.zeros((C, KMAX, KMAX), jnp.float32)
        wf = wf.at[:, off:off + K, off:off + K].set(k)
        levels.append(wf)
    w_full = jnp.stack(levels)                       # (L+1, C, KMAX, KMAX)

    m = jnp.arange(Wp)[:, None]                      # padded-width index
    j = jnp.arange(W)[None, :]                       # output-width index
    dj = m - j
    valid = (dj >= 0) & (dj < KMAX)
    djc = jnp.clip(dj, 0, KMAX - 1)
    return jnp.where(valid[None, None, None], w_full[..., djc], 0.0)


@functools.partial(jax.jit, static_argnums=(2,))
def non_separable_forward(x, params, paddings):
    N, C, H, W = x.shape
    L = len(params)
    P = max(paddings)
    KMAX = 2 * P + 1
    Hp, Wp = H + 2 * P, W + 2 * P

    kernels = [build_conv_kernel(p, pad)[:, 0]       # (C, K, K) per level
               for p, pad in zip(params, paddings)]
    toe = build_banded_weights(kernels, paddings, C, W, P)

    # Reflect-pad x ONCE to the maximum padding.  Per-level reflect padding is
    # recovered exactly because each smaller kernel is zero-embedded at the
    # centre of the KMAX window (single-reflection range, since P <= H-1).
    x_pad = jnp.pad(x, ((0, 0), (0, 0), (P, P), (P, P)), mode="reflect")

    kern = functools.partial(_nonsep_kernel, C=C, H=H, W=W, KMAX=KMAX, P=P)
    out = pl.pallas_call(
        kern,
        out_shape=jax.ShapeDtypeStruct((N, L + 1, C, H, W), x.dtype),
        grid=(N, L + 1),
        in_specs=[
            # Same x block for every level (inner grid axis) -> DMA'd from HBM
            # once per batch element instead of once per level.
            pl.BlockSpec((None, C, Hp, Wp), lambda n, l: (n, 0, 0, 0)),
            # Per-level banded weights.
            pl.BlockSpec((None, C, KMAX, Wp, W), lambda n, l: (l, 0, 0, 0, 0)),
        ],
        out_specs=pl.BlockSpec((None, None, C, H, W),
                               lambda n, l: (n, l, 0, 0, 0)),
        compiler_params=pltpu.CompilerParams(
            dimension_semantics=("parallel", "arbitrary")),
    )(x_pad, toe)

    # (N, L+1, C, H, W) -> (N, (L+1)*C, H, W): free reshape; matches
    # torch.cat([x, conv_1, ..., conv_L], dim=1) channel order.
    return out.reshape(N, (L + 1) * C, H, W)


def make_params(key, num_blurred_version):
    """Deterministic stand-ins for the nn.Parameter list (torch.rand shapes)."""
    kernel_sizes = [i for i in range(3, 3 + num_blurred_version * 2, 2)]
    params = []
    for i, ks in enumerate(kernel_sizes):
        h = (ks + 1) // 2
        params.append(jax.random.uniform(jax.random.fold_in(key, i),
                                         (3, 1, h, h), jnp.float32))
    paddings = tuple((ks + 1) // 2 - 1 for ks in kernel_sizes)
    return tuple(params), paddings


if __name__ == "__main__":
    key = jax.random.PRNGKey(0)
    num_blurred_version = 4          # small demo size (module default is 21)
    N, C, H, W = 2, 3, 16, 16        # conv2d(groups=3) requires 3 channels

    x = jax.random.uniform(jax.random.fold_in(key, 1000), (N, C, H, W),
                           jnp.float32)
    params, paddings = make_params(key, num_blurred_version)

    out = non_separable_forward(x, params, paddings)
    out = jax.block_until_ready(out)
    assert out.shape == (N, 3 * (num_blurred_version + 1), H, W), out.shape

    # Pure-JAX reference (grouped conv via lax) mirroring the PyTorch forward.
    ref = [x]
    for param, pad in zip(params, paddings):
        ksoft = build_conv_kernel(param, pad)
        xp = jnp.pad(x, ((0, 0), (0, 0), (pad, pad), (pad, pad)),
                     mode="reflect")
        r = jax.lax.conv_general_dilated(
            xp, ksoft, window_strides=(1, 1), padding="VALID",
            dimension_numbers=("NCHW", "OIHW", "NCHW"), feature_group_count=3,
            precision=jax.lax.Precision.HIGHEST)
        ref.append(r)
    ref = jnp.concatenate(ref, axis=1)

    np.testing.assert_allclose(np.asarray(out), np.asarray(ref),
                               atol=1e-4, rtol=1e-4)
    print("KERNEL_OK")
</pallas_src>

<mosaic_0001>
module attributes {stable_mosaic.version = 11 : i64} {
  func.func @_nonsep_kernel(%arg0: i32, %arg1: i32, %arg2: memref<1x3x24x24xf32, #tpu.memory_space<vmem>>, %arg3: memref<1x3x9x24x16xf32, #tpu.memory_space<vmem>>, %arg4: memref<1x1x3x16x16xf32, #tpu.memory_space<vmem>>) attributes {dimension_semantics = [#tpu.dimension_semantics<parallel>, #tpu.dimension_semantics<arbitrary>], iteration_bounds = array<i64: 2, 5>, scalar_prefetch = 0 : i64, scratch_operands = 0 : i64, tpu.core_type = #tpu.core_type<tc>, window_params = [{transform_indices = @transform_0, window_bounds = array<i64: 1, 3, 24, 24>}, {transform_indices = @transform_1, window_bounds = array<i64: 1, 3, 9, 24, 16>}, {transform_indices = @transform_2, window_bounds = array<i64: 1, 1, 3, 16, 16>}]} {
    %c0_i32 = arith.constant 0 : i32
    %0 = arith.cmpi eq, %arg1, %c0_i32 : i32
    %1 = arith.extui %0 : i1 to i32
    %c0_i32_0 = arith.constant 0 : i32
    %2 = arith.cmpi ne, %1, %c0_i32_0 : i32
    scf.if %2 {
      %c0 = arith.constant 0 : index
      %c0_3 = arith.constant 0 : index
      %c4 = arith.constant 4 : index
      %c4_4 = arith.constant 4 : index
      %6 = vector.load %arg2[%c0, %c0_3, %c4, %c4_4] : memref<1x3x24x24xf32, #tpu.memory_space<vmem>>, vector<1x3x16x16xf32>
      %7 = vector.shape_cast %6 : vector<1x3x16x16xf32> to vector<3x16x16xf32>
      %c0_5 = arith.constant 0 : index
      %c0_6 = arith.constant 0 : index
      %c0_7 = arith.constant 0 : index
      %c0_8 = arith.constant 0 : index
      %c0_9 = arith.constant 0 : index
      %8 = vector.load %arg4[%c0_5, %c0_6, %c0_7, %c0_8, %c0_9] : memref<1x1x3x16x16xf32, #tpu.memory_space<vmem>>, vector<1x1x3x16x16xf32>
      %9 = vector.shape_cast %8 : vector<1x1x3x16x16xf32> to vector<3x16x16xf32>
      %10 = vector.shape_cast %7 : vector<3x16x16xf32> to vector<1x1x3x16x16xf32>
      tpu.vector_store %arg4[%c0_5, %c0_6, %c0_7, %c0_8, %c0_9], %10 {strides = array<i32>} : memref<1x1x3x16x16xf32, #tpu.memory_space<vmem>>, vector<1x1x3x16x16xf32>,
    } else {
    }
    %c0_i32_1 = arith.constant 0 : i32
    %3 = arith.cmpi sgt, %arg1, %c0_i32_1 : i32
    %4 = arith.extui %3 : i1 to i32
    %c0_i32_2 = arith.constant 0 : i32
    %5 = arith.cmpi ne, %4, %c0_i32_2 : i32
    scf.if %5 {
      %cst = arith.constant 0.000000e+00 : f32
      %6 = vector.broadcast %cst : f32 to vector<16x16xf32>
      %c0 = arith.constant 0 : index
      %c0_3 = arith.constant 0 : index
      %c0_4 = arith.constant 0 : index
      %c0_5 = arith.constant 0 : index
      %7 = vector.load %arg2[%c0, %c0_3, %c0_4, %c0_5] : memref<1x3x24x24xf32, #tpu.memory_space<vmem>>, vector<1x1x16x24xf32>
      %8 = vector.shape_cast %7 : vector<1x1x16x24xf32> to vector<16x24xf32>
      %c0_6 = arith.constant 0 : index
      %c0_7 = arith.constant 0 : index
      %c0_8 = arith.constant 0 : index
      %c0_9 = arith.constant 0 : index
      %c0_10 = arith.constant 0 : index
      %9 = vector.load %arg3[%c0_6, %c0_7, %c0_8, %c0_9, %c0_10] : memref<1x3x9x24x16xf32, #tpu.memory_space<vmem>>, vector<1x1x1x24x16xf32>
      %10 = vector.shape_cast %9 : vector<1x1x1x24x16xf32> to vector<24x16xf32>
      %cst_11 = arith.constant dense<0.000000e+00> : vector<16x16xf32>
      %11 = tpu.matmul %8, %10, %cst_11 {dimension_numbers = #tpu.dot_dimension_numbers<[1], [0], [0], [1], [0, 0, 1, 1], [], []>, precision = #tpu.contract_precision<fp32>} : vector<16x24xf32>, vector<24x16xf32>, vector<16x16xf32> -> vector<16x16xf32>
      %12 = arith.addf %6, %11 : vector<16x16xf32>
      %c0_12 = arith.constant 0 : index
      %c0_13 = arith.constant 0 : index
      %c1 = arith.constant 1 : index
      %c0_14 = arith.constant 0 : index
      %13 = vector.load %arg2[%c0_12, %c0_13, %c1, %c0_14] : memref<1x3x24x24xf32, #tpu.memory_space<vmem>>, vector<1x1x16x24xf32>
      %14 = vector.shape_cast %13 : vector<1x1x16x24xf32> to vector<16x24xf32>
      %c0_15 = arith.constant 0 : index
      %c0_16 = arith.constant 0 : index
      %c1_17 = arith.constant 1 : index
      %c0_18 = arith.constant 0 : index
      %c0_19 = arith.constant 0 : index
      %15 = vector.load %arg3[%c0_15, %c0_16, %c1_17, %c0_18, %c0_19] : memref<1x3x9x24x16xf32, #tpu.memory_space<vmem>>, vector<1x1x1x24x16xf32>
      %16 = vector.shape_cast %15 : vector<1x1x1x24x16xf32> to vector<24x16xf32>
      %cst_20 = arith.constant dense<0.000000e+00> : vector<16x16xf32>
      %17 = tpu.matmul %14, %16, %cst_20 {dimension_numbers = #tpu.dot_dimension_numbers<[1], [0], [0], [1], [0, 0, 1, 1], [], []>, precision = #tpu.contract_precision<fp32>} : vector<16x24xf32>, vector<24x16xf32>, vector<16x16xf32> -> vector<16x16xf32>
      %18 = arith.addf %12, %17 : vector<16x16xf32>
      %c0_21 = arith.constant 0 : index
      %c0_22 = arith.constant 0 : index
      %c2 = arith.constant 2 : index
      %c0_23 = arith.constant 0 : index
      %19 = vector.load %arg2[%c0_21, %c0_22, %c2, %c0_23] : memref<1x3x24x24xf32, #tpu.memory_space<vmem>>, vector<1x1x16x24xf32>
      %20 = vector.shape_cast %19 : vector<1x1x16x24xf32> to vector<16x24xf32>
      %c0_24 = arith.constant 0 : index
      %c0_25 = arith.constant 0 : index
      %c2_26 = arith.constant 2 : index
      %c0_27 = arith.constant 0 : index
      %c0_28 = arith.constant 0 : index
      %21 = vector.load %arg3[%c0_24, %c0_25, %c2_26, %c0_27, %c0_28] : memref<1x3x9x24x16xf32, #tpu.memory_space<vmem>>, vector<1x1x1x24x16xf32>
      %22 = vector.shape_cast %21 : vector<1x1x1x24x16xf32> to vector<24x16xf32>
      %cst_29 = arith.constant dense<0.000000e+00> : vector<16x16xf32>
      %23 = tpu.matmul %20, %22, %cst_29 {dimension_numbers = #tpu.dot_dimension_numbers<[1], [0], [0], [1], [0, 0, 1, 1], [], []>, precision = #tpu.contract_precision<fp32>} : vector<16x24xf32>, vector<24x16xf32>, vector<16x16xf32> -> vector<16x16xf32>
      %24 = arith.addf %18, %23 : vector<16x16xf32>
      %c0_30 = arith.constant 0 : index
      %c0_31 = arith.constant 0 : index
      %c3 = arith.constant 3 : index
      %c0_32 = arith.constant 0 : index
      %25 = vector.load %arg2[%c0_30, %c0_31, %c3, %c0_32] : memref<1x3x24x24xf32, #tpu.memory_space<vmem>>, vector<1x1x16x24xf32>
      %26 = vector.shape_cast %25 : vector<1x1x16x24xf32> to vector<16x24xf32>
      %c0_33 = arith.constant 0 : index
      %c0_34 = arith.constant 0 : index
      %c3_35 = arith.constant 3 : index
      %c0_36 = arith.constant 0 : index
      %c0_37 = arith.constant 0 : index
      %27 = vector.load %arg3[%c0_33, %c0_34, %c3_35, %c0_36, %c0_37] : memref<1x3x9x24x16xf32, #tpu.memory_space<vmem>>, vector<1x1x1x24x16xf32>
      %28 = vector.shape_cast %27 : vector<1x1x1x24x16xf32> to vector<24x16xf32>
      %cst_38 = arith.constant dense<0.000000e+00> : vector<16x16xf32>
      %29 = tpu.matmul %26, %28, %cst_38 {dimension_numbers = #tpu.dot_dimension_numbers<[1], [0], [0], [1], [0, 0, 1, 1], [], []>, precision = #tpu.contract_precision<fp32>} : vector<16x24xf32>, vector<24x16xf32>, vector<16x16xf32> -> vector<16x16xf32>
      %30 = arith.addf %24, %29 : vector<16x16xf32>
      %c0_39 = arith.constant 0 : index
      %c0_40 = arith.constant 0 : index
      %c4 = arith.constant 4 : index
      %c0_41 = arith.constant 0 : index
      %31 = vector.load %arg2[%c0_39, %c0_40, %c4, %c0_41] : memref<1x3x24x24xf32, #tpu.memory_space<vmem>>, vector<1x1x16x24xf32>
      %32 = vector.shape_cast %31 : vector<1x1x16x24xf32> to vector<16x24xf32>
      %c0_42 = arith.constant 0 : index
      %c0_43 = arith.constant 0 : index
      %c4_44 = arith.constant 4 : index
      %c0_45 = arith.constant 0 : index
      %c0_46 = arith.constant 0 : index
      %33 = vector.load %arg3[%c0_42, %c0_43, %c4_44, %c0_45, %c0_46] : memref<1x3x9x24x16xf32, #tpu.memory_space<vmem>>, vector<1x1x1x24x16xf32>
      %34 = vector.shape_cast %33 : vector<1x1x1x24x16xf32> to vector<24x16xf32>
      %cst_47 = arith.constant dense<0.000000e+00> : vector<16x16xf32>
      %35 = tpu.matmul %32, %34, %cst_47 {dimension_numbers = #tpu.dot_dimension_numbers<[1], [0], [0], [1], [0, 0, 1, 1], [], []>, precision = #tpu.contract_precision<fp32>} : vector<16x24xf32>, vector<24x16xf32>, vector<16x16xf32> -> vector<16x16xf32>
      %36 = arith.addf %30, %35 : vector<16x16xf32>
      %c0_48 = arith.constant 0 : index
      %c0_49 = arith.constant 0 : index
      %c5 = arith.constant 5 : index
      %c0_50 = arith.constant 0 : index
      %37 = vector.load %arg2[%c0_48, %c0_49, %c5, %c0_50] : memref<1x3x24x24xf32, #tpu.memory_space<vmem>>, vector<1x1x16x24xf32>
      %38 = vector.shape_cast %37 : vector<1x1x16x24xf32> to vector<16x24xf32>
      %c0_51 = arith.constant 0 : index
      %c0_52 = arith.constant 0 : index
      %c5_53 = arith.constant 5 : index
      %c0_54 = arith.constant 0 : index
      %c0_55 = arith.constant 0 : index
      %39 = vector.load %arg3[%c0_51, %c0_52, %c5_53, %c0_54, %c0_55] : memref<1x3x9x24x16xf32, #tpu.memory_space<vmem>>, vector<1x1x1x24x16xf32>
      %40 = vector.shape_cast %39 : vector<1x1x1x24x16xf32> to vector<24x16xf32>
      %cst_56 = arith.constant dense<0.000000e+00> : vector<16x16xf32>
      %41 = tpu.matmul %38, %40, %cst_56 {dimension_numbers = #tpu.dot_dimension_numbers<[1], [0], [0], [1], [0, 0, 1, 1], [], []>, precision = #tpu.contract_precision<fp32>} : vector<16x24xf32>, vector<24x16xf32>, vector<16x16xf32> -> vector<16x16xf32>
      %42 = arith.addf %36, %41 : vector<16x16xf32>
      %c0_57 = arith.constant 0 : index
      %c0_58 = arith.constant 0 : index
      %c6 = arith.constant 6 : index
      %c0_59 = arith.constant 0 : index
      %43 = vector.load %arg2[%c0_57, %c0_58, %c6, %c0_59] : memref<1x3x24x24xf32, #tpu.memory_space<vmem>>, vector<1x1x16x24xf32>
      %44 = vector.shape_cast %43 : vector<1x1x16x24xf32> to vector<16x24xf32>
      %c0_60 = arith.constant 0 : index
      %c0_61 = arith.constant 0 : index
      %c6_62 = arith.constant 6 : index
      %c0_63 = arith.constant 0 : index
      %c0_64 = arith.constant 0 : index
      %45 = vector.load %arg3[%c0_60, %c0_61, %c6_62, %c0_63, %c0_64] : memref<1x3x9x24x16xf32, #tpu.memory_space<vmem>>, vector<1x1x1x24x16xf32>
      %46 = vector.shape_cast %45 : vector<1x1x1x24x16xf32> to vector<24x16xf32>
      %cst_65 = arith.constant dense<0.000000e+00> : vector<16x16xf32>
      %47 = tpu.matmul %44, %46, %cst_65 {dimension_numbers = #tpu.dot_dimension_numbers<[1], [0], [0], [1], [0, 0, 1, 1], [], []>, precision = #tpu.contract_precision<fp32>} : vector<16x24xf32>, vector<24x16xf32>, vector<16x16xf32> -> vector<16x16xf32>
      %48 = arith.addf %42, %47 : vector<16x16xf32>
      %c0_66 = arith.constant 0 : index
      %c0_67 = arith.constant 0 : index
      %c7 = arith.constant 7 : index
      %c0_68 = arith.constant 0 : index
      %49 = vector.load %arg2[%c0_66, %c0_67, %c7, %c0_68] : memref<1x3x24x24xf32, #tpu.memory_space<vmem>>, vector<1x1x16x24xf32>
      %50 = vector.shape_cast %49 : vector<1x1x16x24xf32> to vector<16x24xf32>
      %c0_69 = arith.constant 0 : index
      %c0_70 = arith.constant 0 : index
      %c7_71 = arith.constant 7 : index
      %c0_72 = arith.constant 0 : index
      %c0_73 = arith.constant 0 : index
      %51 = vector.load %arg3[%c0_69, %c0_70, %c7_71, %c0_72, %c0_73] : memref<1x3x9x24x16xf32, #tpu.memory_space<vmem>>, vector<1x1x1x24x16xf32>
      %52 = vector.shape_cast %51 : vector<1x1x1x24x16xf32> to vector<24x16xf32>
      %cst_74 = arith.constant dense<0.000000e+00> : vector<16x16xf32>
      %53 = tpu.matmul %50, %52, %cst_74 {dimension_numbers = #tpu.dot_dimension_numbers<[1], [0], [0], [1], [0, 0, 1, 1], [], []>, precision = #tpu.contract_precision<fp32>} : vector<16x24xf32>, vector<24x16xf32>, vector<16x16xf32> -> vector<16x16xf32>
      %54 = arith.addf %48, %53 : vector<16x16xf32>
      %c0_75 = arith.constant 0 : index
      %c0_76 = arith.constant 0 : index
      %c8 = arith.constant 8 : index
      %c0_77 = arith.constant 0 : index
      %55 = vector.load %arg2[%c0_75, %c0_76, %c8, %c0_77] : memref<1x3x24x24xf32, #tpu.memory_space<vmem>>, vector<1x1x16x24xf32>
      %56 = vector.shape_cast %55 : vector<1x1x16x24xf32> to vector<16x24xf32>
      %c0_78 = arith.constant 0 : index
      %c0_79 = arith.constant 0 : index
      %c8_80 = arith.constant 8 : index
      %c0_81 = arith.constant 0 : index
      %c0_82 = arith.constant 0 : index
      %57 = vector.load %arg3[%c0_78, %c0_79, %c8_80, %c0_81, %c0_82] : memref<1x3x9x24x16xf32, #tpu.memory_space<vmem>>, vector<1x1x1x24x16xf32>
      %58 = vector.shape_cast %57 : vector<1x1x1x24x16xf32> to vector<24x16xf32>
      %cst_83 = arith.constant dense<0.000000e+00> : vector<16x16xf32>
      %59 = tpu.matmul %56, %58, %cst_83 {dimension_numbers = #tpu.dot_dimension_numbers<[1], [0], [0], [1], [0, 0, 1, 1], [], []>, precision = #tpu.contract_precision<fp32>} : vector<16x24xf32>, vector<24x16xf32>, vector<16x16xf32> -> vector<16x16xf32>
      %60 = arith.addf %54, %59 : vector<16x16xf32>
      %c0_84 = arith.constant 0 : index
      %c0_85 = arith.constant 0 : index
      %c0_86 = arith.constant 0 : index
      %c0_87 = arith.constant 0 : index
      %c0_88 = arith.constant 0 : index
      %61 = vector.load %arg4[%c0_84, %c0_85, %c0_86, %c0_87, %c0_88] : memref<1x1x3x16x16xf32, #tpu.memory_space<vmem>>, vector<1x1x1x16x16xf32>
      %62 = vector.shape_cast %61 : vector<1x1x1x16x16xf32> to vector<16x16xf32>
      %63 = vector.shape_cast %60 : vector<16x16xf32> to vector<1x1x1x16x16xf32>
      tpu.vector_store %arg4[%c0_84, %c0_85, %c0_86, %c0_87, %c0_88], %63 {strides = array<i32>} : memref<1x1x3x16x16xf32, #tpu.memory_space<vmem>>, vector<1x1x1x16x16xf32>,
      %cst_89 = arith.constant 0.000000e+00 : f32
      %64 = vector.broadcast %cst_89 : f32 to vector<16x16xf32>
      %c0_90 = arith.constant 0 : index
      %c1_91 = arith.constant 1 : index
      %c0_92 = arith.constant 0 : index
      %c0_93 = arith.constant 0 : index
      %65 = vector.load %arg2[%c0_90, %c1_91, %c0_92, %c0_93] : memref<1x3x24x24xf32, #tpu.memory_space<vmem>>, vector<1x1x16x24xf32>
      %66 = vector.shape_cast %65 : vector<1x1x16x24xf32> to vector<16x24xf32>
      %c0_94 = arith.constant 0 : index
      %c1_95 = arith.constant 1 : index
      %c0_96 = arith.constant 0 : index
      %c0_97 = arith.constant 0 : index
      %c0_98 = arith.constant 0 : index
      %67 = vector.load %arg3[%c0_94, %c1_95, %c0_96, %c0_97, %c0_98] : memref<1x3x9x24x16xf32, #tpu.memory_space<vmem>>, vector<1x1x1x24x16xf32>
      %68 = vector.shape_cast %67 : vector<1x1x1x24x16xf32> to vector<24x16xf32>
      %cst_99 = arith.constant dense<0.000000e+00> : vector<16x16xf32>
      %69 = tpu.matmul %66, %68, %cst_99 {dimension_numbers = #tpu.dot_dimension_numbers<[1], [0], [0], [1], [0, 0, 1, 1], [], []>, precision = #tpu.contract_precision<fp32>} : vector<16x24xf32>, vector<24x16xf32>, vector<16x16xf32> -> vector<16x16xf32>
      %70 = arith.addf %64, %69 : vector<16x16xf32>
      %c0_100 = arith.constant 0 : index
      %c1_101 = arith.constant 1 : index
      %c1_102 = arith.constant 1 : index
      %c0_103 = arith.constant 0 : index
      %71 = vector.load %arg2[%c0_100, %c1_101, %c1_102, %c0_103] : memref<1x3x24x24xf32, #tpu.memory_space<vmem>>, vector<1x1x16x24xf32>
      %72 = vector.shape_cast %71 : vector<1x1x16x24xf32> to vector<16x24xf32>
      %c0_104 = arith.constant 0 : index
      %c1_105 = arith.constant 1 : index
      %c1_106 = arith.constant 1 : index
      %c0_107 = arith.constant 0 : index
      %c0_108 = arith.constant 0 : index
      %73 = vector.load %arg3[%c0_104, %c1_105, %c1_106, %c0_107, %c0_108] : memref<1x3x9x24x16xf32, #tpu.memory_space<vmem>>, vector<1x1x1x24x16xf32>
      %74 = vector.shape_cast %73 : vector<1x1x1x24x16xf32> to vector<24x16xf32>
      %cst_109 = arith.constant dense<0.000000e+00> : vector<16x16xf32>
      %75 = tpu.matmul %72, %74, %cst_109 {dimension_numbers = #tpu.dot_dimension_numbers<[1], [0], [0], [1], [0, 0, 1, 1], [], []>, precision = #tpu.contract_precision<fp32>} : vector<16x24xf32>, vector<24x16xf32>, vector<16x16xf32> -> vector<16x16xf32>
      %76 = arith.addf %70, %75 : vector<16x16xf32>
      %c0_110 = arith.constant 0 : index
      %c1_111 = arith.constant 1 : index
      %c2_112 = arith.constant 2 : index
      %c0_113 = arith.constant 0 : index
      %77 = vector.load %arg2[%c0_110, %c1_111, %c2_112, %c0_113] : memref<1x3x24x24xf32, #tpu.memory_space<vmem>>, vector<1x1x16x24xf32>
      %78 = vector.shape_cast %77 : vector<1x1x16x24xf32> to vector<16x24xf32>
      %c0_114 = arith.constant 0 : index
      %c1_115 = arith.constant 1 : index
      %c2_116 = arith.constant 2 : index
      %c0_117 = arith.constant 0 : index
      %c0_118 = arith.constant 0 : index
      %79 = vector.load %arg3[%c0_114, %c1_115, %c2_116, %c0_117, %c0_118] : memref<1x3x9x24x16xf32, #tpu.memory_space<vmem>>, vector<1x1x1x24x16xf32>
      %80 = vector.shape_cast %79 : vector<1x1x1x24x16xf32> to vector<24x16xf32>
      %cst_119 = arith.constant dense<0.000000e+00> : vector<16x16xf32>
      %81 = tpu.matmul %78, %80, %cst_119 {dimension_numbers = #tpu.dot_dimension_numbers<[1], [0], [0], [1], [0, 0, 1, 1], [], []>, precision = #tpu.contract_precision<fp32>} : vector<16x24xf32>, vector<24x16xf32>, vector<16x16xf32> -> vector<16x16xf32>
      %82 = arith.addf %76, %81 : vector<16x16xf32>
      %c0_120 = arith.constant 0 : index
      %c1_121 = arith.constant 1 : index
      %c3_122 = arith.constant 3 : index
      %c0_123 = arith.constant 0 : index
      %83 = vector.load %arg2[%c0_120, %c1_121, %c3_122, %c0_123] : memref<1x3x24x24xf32, #tpu.memory_space<vmem>>, vector<1x1x16x24xf32>
      %84 = vector.shape_cast %83 : vector<1x1x16x24xf32> to vector<16x24xf32>
      %c0_124 = arith.constant 0 : index
      %c1_125 = arith.constant 1 : index
      %c3_126 = arith.constant 3 : index
      %c0_127 = arith.constant 0 : index
      %c0_128 = arith.constant 0 : index
      %85 = vector.load %arg3[%c0_124, %c1_125, %c3_126, %c0_127, %c0_128] : memref<1x3x9x24x16xf32, #tpu.memory_space<vmem>>, vector<1x1x1x24x16xf32>
      %86 = vector.shape_cast %85 : vector<1x1x1x24x16xf32> to vector<24x16xf32>
      %cst_129 = arith.constant dense<0.000000e+00> : vector<16x16xf32>
      %87 = tpu.matmul %84, %86, %cst_129 {dimension_numbers = #tpu.dot_dimension_numbers<[1], [0], [0], [1], [0, 0, 1, 1], [], []>, precision = #tpu.contract_precision<fp32>} : vector<16x24xf32>, vector<24x16xf32>, vector<16x16xf32> -> vector<16x16xf32>
      %88 = arith.addf %82, %87 : vector<16x16xf32>
      %c0_130 = arith.constant 0 : index
      %c1_131 = arith.constant 1 : index
      %c4_132 = arith.constant 4 : index
      %c0_133 = arith.constant 0 : index
      %89 = vector.load %arg2[%c0_130, %c1_131, %c4_132, %c0_133] : memref<1x3x24x24xf32, #tpu.memory_space<vmem>>, vector<1x1x16x24xf32>
      %90 = vector.shape_cast %89 : vector<1x1x16x24xf32> to vector<16x24xf32>
      %c0_134 = arith.constant 0 : index
      %c1_135 = arith.constant 1 : index
      %c4_136 = arith.constant 4 : index
      %c0_137 = arith.constant 0 : index
      %c0_138 = arith.constant 0 : index
      %91 = vector.load %arg3[%c0_134, %c1_135, %c4_136, %c0_137, %c0_138] : memref<1x3x9x24x16xf32, #tpu.memory_space<vmem>>, vector<1x1x1x24x16xf32>
      %92 = vector.shape_cast %91 : vector<1x1x1x24x16xf32> to vector<24x16xf32>
      %cst_139 = arith.constant dense<0.000000e+00> : vector<16x16xf32>
      %93 = tpu.matmul %90, %92, %cst_139 {dimension_numbers = #tpu.dot_dimension_numbers<[1], [0], [0], [1], [0, 0, 1, 1], [], []>, precision = #tpu.contract_precision<fp32>} : vector<16x24xf32>, vector<24x16xf32>, vector<16x16xf32> -> vector<16x16xf32>
      %94 = arith.addf %88, %93 : vector<16x16xf32>
      %c0_140 = arith.constant 0 : index
      %c1_141 = arith.constant 1 : index
      %c5_142 = arith.constant 5 : index
      %c0_143 = arith.constant 0 : index
      %95 = vector.load %arg2[%c0_140, %c1_141, %c5_142, %c0_143] : memref<1x3x24x24xf32, #tpu.memory_space<vmem>>, vector<1x1x16x24xf32>
      %96 = vector.shape_cast %95 : vector<1x1x16x24xf32> to vector<16x24xf32>
      %c0_144 = arith.constant 0 : index
      %c1_145 = arith.constant 1 : index
      %c5_146 = arith.constant 5 : index
      %c0_147 = arith.constant 0 : index
      %c0_148 = arith.constant 0 : index
      %97 = vector.load %arg3[%c0_144, %c1_145, %c5_146, %c0_147, %c0_148] : memref<1x3x9x24x16xf32, #tpu.memory_space<vmem>>, vector<1x1x1x24x16xf32>
      %98 = vector.shape_cast %97 : vector<1x1x1x24x16xf32> to vector<24x16xf32>
      %cst_149 = arith.constant dense<0.000000e+00> : vector<16x16xf32>
      %99 = tpu.matmul %96, %98, %cst_149 {dimension_numbers = #tpu.dot_dimension_numbers<[1], [0], [0], [1], [0, 0, 1, 1], [], []>, precision = #tpu.contract_precision<fp32>} : vector<16x24xf32>, vector<24x16xf32>, vector<16x16xf32> -> vector<16x16xf32>
      %100 = arith.addf %94, %99 : vector<16x16xf32>
      %c0_150 = arith.constant 0 : index
      %c1_151 = arith.constant 1 : index
      %c6_152 = arith.constant 6 : index
      %c0_153 = arith.constant 0 : index
      %101 = vector.load %arg2[%c0_150, %c1_151, %c6_152, %c0_153] : memref<1x3x24x24xf32, #tpu.memory_space<vmem>>, vector<1x1x16x24xf32>
      %102 = vector.shape_cast %101 : vector<1x1x16x24xf32> to vector<16x24xf32>
      %c0_154 = arith.constant 0 : index
      %c1_155 = arith.constant 1 : index
      %c6_156 = arith.constant 6 : index
      %c0_157 = arith.constant 0 : index
      %c0_158 = arith.constant 0 : index
      %103 = vector.load %arg3[%c0_154, %c1_155, %c6_156, %c0_157, %c0_158] : memref<1x3x9x24x16xf32, #tpu.memory_space<vmem>>, vector<1x1x1x24x16xf32>
      %104 = vector.shape_cast %103 : vector<1x1x1x24x16xf32> to vector<24x16xf32>
      %cst_159 = arith.constant dense<0.000000e+00> : vector<16x16xf32>
      %105 = tpu.matmul %102, %104, %cst_159 {dimension_numbers = #tpu.dot_dimension_numbers<[1], [0], [0], [1], [0, 0, 1, 1], [], []>, precision = #tpu.contract_precision<fp32>} : vector<16x24xf32>, vector<24x16xf32>, vector<16x16xf32> -> vector<16x16xf32>
      %106 = arith.addf %100, %105 : vector<16x16xf32>
      %c0_160 = arith.constant 0 : index
      %c1_161 = arith.constant 1 : index
      %c7_162 = arith.constant 7 : index
      %c0_163 = arith.constant 0 : index
      %107 = vector.load %arg2[%c0_160, %c1_161, %c7_162, %c0_163] : memref<1x3x24x24xf32, #tpu.memory_space<vmem>>, vector<1x1x16x24xf32>
      %108 = vector.shape_cast %107 : vector<1x1x16x24xf32> to vector<16x24xf32>
      %c0_164 = arith.constant 0 : index
      %c1_165 = arith.constant 1 : index
      %c7_166 = arith.constant 7 : index
      %c0_167 = arith.constant 0 : index
      %c0_168 = arith.constant 0 : index
      %109 = vector.load %arg3[%c0_164, %c1_165, %c7_166, %c0_167, %c0_168] : memref<1x3x9x24x16xf32, #tpu.memory_space<vmem>>, vector<1x1x1x24x16xf32>
      %110 = vector.shape_cast %109 : vector<1x1x1x24x16xf32> to vector<24x16xf32>
      %cst_169 = arith.constant dense<0.000000e+00> : vector<16x16xf32>
      %111 = tpu.matmul %108, %110, %cst_169 {dimension_numbers = #tpu.dot_dimension_numbers<[1], [0], [0], [1], [0, 0, 1, 1], [], []>, precision = #tpu.contract_precision<fp32>} : vector<16x24xf32>, vector<24x16xf32>, vector<16x16xf32> -> vector<16x16xf32>
      %112 = arith.addf %106, %111 : vector<16x16xf32>
      %c0_170 = arith.constant 0 : index
      %c1_171 = arith.constant 1 : index
      %c8_172 = arith.constant 8 : index
      %c0_173 = arith.constant 0 : index
      %113 = vector.load %arg2[%c0_170, %c1_171, %c8_172, %c0_173] : memref<1x3x24x24xf32, #tpu.memory_space<vmem>>, vector<1x1x16x24xf32>
      %114 = vector.shape_cast %113 : vector<1x1x16x24xf32> to vector<16x24xf32>
      %c0_174 = arith.constant 0 : index
      %c1_175 = arith.constant 1 : index
      %c8_176 = arith.constant 8 : index
      %c0_177 = arith.constant 0 : index
      %c0_178 = arith.constant 0 : index
      %115 = vector.load %arg3[%c0_174, %c1_175, %c8_176, %c0_177, %c0_178] : memref<1x3x9x24x16xf32, #tpu.memory_space<vmem>>, vector<1x1x1x24x16xf32>
      %116 = vector.shape_cast %115 : vector<1x1x1x24x16xf32> to vector<24x16xf32>
      %cst_179 = arith.constant dense<0.000000e+00> : vector<16x16xf32>
      %117 = tpu.matmul %114, %116, %cst_179 {dimension_numbers = #tpu.dot_dimension_numbers<[1], [0], [0], [1], [0, 0, 1, 1], [], []>, precision = #tpu.contract_precision<fp32>} : vector<16x24xf32>, vector<24x16xf32>, vector<16x16xf32> -> vector<16x16xf32>
      %118 = arith.addf %112, %117 : vector<16x16xf32>
      %c0_180 = arith.constant 0 : index
      %c0_181 = arith.constant 0 : index
      %c1_182 = arith.constant 1 : index
      %c0_183 = arith.constant 0 : index
      %c0_184 = arith.constant 0 : index
      %119 = vector.load %arg4[%c0_180, %c0_181, %c1_182, %c0_183, %c0_184] : memref<1x1x3x16x16xf32, #tpu.memory_space<vmem>>, vector<1x1x1x16x16xf32>
      %120 = vector.shape_cast %119 : vector<1x1x1x16x16xf32> to vector<16x16xf32>
      %121 = vector.shape_cast %118 : vector<16x16xf32> to vector<1x1x1x16x16xf32>
      tpu.vector_store %arg4[%c0_180, %c0_181, %c1_182, %c0_183, %c0_184], %121 {strides = array<i32>} : memref<1x1x3x16x16xf32, #tpu.memory_space<vmem>>, vector<1x1x1x16x16xf32>,
      %cst_185 = arith.constant 0.000000e+00 : f32
      %122 = vector.broadcast %cst_185 : f32 to vector<16x16xf32>
      %c0_186 = arith.constant 0 : index
      %c2_187 = arith.constant 2 : index
      %c0_188 = arith.constant 0 : index
      %c0_189 = arith.constant 0 : index
      %123 = vector.load %arg2[%c0_186, %c2_187, %c0_188, %c0_189] : memref<1x3x24x24xf32, #tpu.memory_space<vmem>>, vector<1x1x16x24xf32>
      %124 = vector.shape_cast %123 : vector<1x1x16x24xf32> to vector<16x24xf32>
      %c0_190 = arith.constant 0 : index
      %c2_191 = arith.constant 2 : index
      %c0_192 = arith.constant 0 : index
      %c0_193 = arith.constant 0 : index
      %c0_194 = arith.constant 0 : index
      %125 = vector.load %arg3[%c0_190, %c2_191, %c0_192, %c0_193, %c0_194] : memref<1x3x9x24x16xf32, #tpu.memory_space<vmem>>, vector<1x1x1x24x16xf32>
      %126 = vector.shape_cast %125 : vector<1x1x1x24x16xf32> to vector<24x16xf32>
      %cst_195 = arith.constant dense<0.000000e+00> : vector<16x16xf32>
      %127 = tpu.matmul %124, %126, %cst_195 {dimension_numbers = #tpu.dot_dimension_numbers<[1], [0], [0], [1], [0, 0, 1, 1], [], []>, precision = #tpu.contract_precision<fp32>} : vector<16x24xf32>, vector<24x16xf32>, vector<16x16xf32> -> vector<16x16xf32>
      %128 = arith.addf %122, %127 : vector<16x16xf32>
      %c0_196 = arith.constant 0 : index
      %c2_197 = arith.constant 2 : index
      %c1_198 = arith.constant 1 : index
      %c0_199 = arith.constant 0 : index
      %129 = vector.load %arg2[%c0_196, %c2_197, %c1_198, %c0_199] : memref<1x3x24x24xf32, #tpu.memory_space<vmem>>, vector<1x1x16x24xf32>
      %130 = vector.shape_cast %129 : vector<1x1x16x24xf32> to vector<16x24xf32>
      %c0_200 = arith.constant 0 : index
      %c2_201 = arith.constant 2 : index
      %c1_202 = arith.constant 1 : index
      %c0_203 = arith.constant 0 : index
      %c0_204 = arith.constant 0 : index
      %131 = vector.load %arg3[%c0_200, %c2_201, %c1_202, %c0_203, %c0_204] : memref<1x3x9x24x16xf32, #tpu.memory_space<vmem>>, vector<1x1x1x24x16xf32>
      %132 = vector.shape_cast %131 : vector<1x1x1x24x16xf32> to vector<24x16xf32>
      %cst_205 = arith.constant dense<0.000000e+00> : vector<16x16xf32>
      %133 = tpu.matmul %130, %132, %cst_205 {dimension_numbers = #tpu.dot_dimension_numbers<[1], [0], [0], [1], [0, 0, 1, 1], [], []>, precision = #tpu.contract_precision<fp32>} : vector<16x24xf32>, vector<24x16xf32>, vector<16x16xf32> -> vector<16x16xf32>
      %134 = arith.addf %128, %133 : vector<16x16xf32>
      %c0_206 = arith.constant 0 : index
      %c2_207 = arith.constant 2 : index
      %c2_208 = arith.constant 2 : index
      %c0_209 = arith.constant 0 : index
      %135 = vector.load %arg2[%c0_206, %c2_207, %c2_208, %c0_209] : memref<1x3x24x24xf32, #tpu.memory_space<vmem>>, vector<1x1x16x24xf32>
      %136 = vector.shape_cast %135 : vector<1x1x16x24xf32> to vector<16x24xf32>
      %c0_210 = arith.constant 0 : index
      %c2_211 = arith.constant 2 : index
      %c2_212 = arith.constant 2 : index
      %c0_213 = arith.constant 0 : index
      %c0_214 = arith.constant 0 : index
      %137 = vector.load %arg3[%c0_210, %c2_211, %c2_212, %c0_213, %c0_214] : memref<1x3x9x24x16xf32, #tpu.memory_space<vmem>>, vector<1x1x1x24x16xf32>
      %138 = vector.shape_cast %137 : vector<1x1x1x24x16xf32> to vector<24x16xf32>
      %cst_215 = arith.constant dense<0.000000e+00> : vector<16x16xf32>
      %139 = tpu.matmul %136, %138, %cst_215 {dimension_numbers = #tpu.dot_dimension_numbers<[1], [0], [0], [1], [0, 0, 1, 1], [], []>, precision = #tpu.contract_precision<fp32>} : vector<16x24xf32>, vector<24x16xf32>, vector<16x16xf32> -> vector<16x16xf32>
      %140 = arith.addf %134, %139 : vector<16x16xf32>
      %c0_216 = arith.constant 0 : index
      %c2_217 = arith.constant 2 : index
      %c3_218 = arith.constant 3 : index
      %c0_219 = arith.constant 0 : index
      %141 = vector.load %arg2[%c0_216, %c2_217, %c3_218, %c0_219] : memref<1x3x24x24xf32, #tpu.memory_space<vmem>>, vector<1x1x16x24xf32>
      %142 = vector.shape_cast %141 : vector<1x1x16x24xf32> to vector<16x24xf32>
      %c0_220 = arith.constant 0 : index
      %c2_221 = arith.constant 2 : index
      %c3_222 = arith.constant 3 : index
      %c0_223 = arith.constant 0 : index
      %c0_224 = arith.constant 0 : index
      %143 = vector.load %arg3[%c0_220, %c2_221, %c3_222, %c0_223, %c0_224] : memref<1x3x9x24x16xf32, #tpu.memory_space<vmem>>, vector<1x1x1x24x16xf32>
      %144 = vector.shape_cast %143 : vector<1x1x1x24x16xf32> to vector<24x16xf32>
      %cst_225 = arith.constant dense<0.000000e+00> : vector<16x16xf32>
      %145 = tpu.matmul %142, %144, %cst_225 {dimension_numbers = #tpu.dot_dimension_numbers<[1], [0], [0], [1], [0, 0, 1, 1], [], []>, precision = #tpu.contract_precision<fp32>} : vector<16x24xf32>, vector<24x16xf32>, vector<16x16xf32> -> vector<16x16xf32>
      %146 = arith.addf %140, %145 : vector<16x16xf32>
      %c0_226 = arith.constant 0 : index
      %c2_227 = arith.constant 2 : index
      %c4_228 = arith.constant 4 : index
      %c0_229 = arith.constant 0 : index
      %147 = vector.load %arg2[%c0_226, %c2_227, %c4_228, %c0_229] : memref<1x3x24x24xf32, #tpu.memory_space<vmem>>, vector<1x1x16x24xf32>
      %148 = vector.shape_cast %147 : vector<1x1x16x24xf32> to vector<16x24xf32>
      %c0_230 = arith.constant 0 : index
      %c2_231 = arith.constant 2 : index
      %c4_232 = arith.constant 4 : index
      %c0_233 = arith.constant 0 : index
      %c0_234 = arith.constant 0 : index
      %149 = vector.load %arg3[%c0_230, %c2_231, %c4_232, %c0_233, %c0_234] : memref<1x3x9x24x16xf32, #tpu.memory_space<vmem>>, vector<1x1x1x24x16xf32>
      %150 = vector.shape_cast %149 : vector<1x1x1x24x16xf32> to vector<24x16xf32>
      %cst_235 = arith.constant dense<0.000000e+00> : vector<16x16xf32>
      %151 = tpu.matmul %148, %150, %cst_235 {dimension_numbers = #tpu.dot_dimension_numbers<[1], [0], [0], [1], [0, 0, 1, 1], [], []>, precision = #tpu.contract_precision<fp32>} : vector<16x24xf32>, vector<24x16xf32>, vector<16x16xf32> -> vector<16x16xf32>
      %152 = arith.addf %146, %151 : vector<16x16xf32>
      %c0_236 = arith.constant 0 : index
      %c2_237 = arith.constant 2 : index
      %c5_238 = arith.constant 5 : index
      %c0_239 = arith.constant 0 : index
      %153 = vector.load %arg2[%c0_236, %c2_237, %c5_238, %c0_239] : memref<1x3x24x24xf32, #tpu.memory_space<vmem>>, vector<1x1x16x24xf32>
      %154 = vector.shape_cast %153 : vector<1x1x16x24xf32> to vector<16x24xf32>
      %c0_240 = arith.constant 0 : index
      %c2_241 = arith.constant 2 : index
      %c5_242 = arith.constant 5 : index
      %c0_243 = arith.constant 0 : index
      %c0_244 = arith.constant 0 : index
      %155 = vector.load %arg3[%c0_240, %c2_241, %c5_242, %c0_243, %c0_244] : memref<1x3x9x24x16xf32, #tpu.memory_space<vmem>>, vector<1x1x1x24x16xf32>
      %156 = vector.shape_cast %155 : vector<1x1x1x24x16xf32> to vector<24x16xf32>
      %cst_245 = arith.constant dense<0.000000e+00> : vector<16x16xf32>
      %157 = tpu.matmul %154, %156, %cst_245 {dimension_numbers = #tpu.dot_dimension_numbers<[1], [0], [0], [1], [0, 0, 1, 1], [], []>, precision = #tpu.contract_precision<fp32>} : vector<16x24xf32>, vector<24x16xf32>, vector<16x16xf32> -> vector<16x16xf32>
      %158 = arith.addf %152, %157 : vector<16x16xf32>
      %c0_246 = arith.constant 0 : index
      %c2_247 = arith.constant 2 : index
      %c6_248 = arith.constant 6 : index
      %c0_249 = arith.constant 0 : index
      %159 = vector.load %arg2[%c0_246, %c2_247, %c6_248, %c0_249] : memref<1x3x24x24xf32, #tpu.memory_space<vmem>>, vector<1x1x16x24xf32>
      %160 = vector.shape_cast %159 : vector<1x1x16x24xf32> to vector<16x24xf32>
      %c0_250 = arith.constant 0 : index
      %c2_251 = arith.constant 2 : index
      %c6_252 = arith.constant 6 : index
      %c0_253 = arith.constant 0 : index
      %c0_254 = arith.constant 0 : index
      %161 = vector.load %arg3[%c0_250, %c2_251, %c6_252, %c0_253, %c0_254] : memref<1x3x9x24x16xf32, #tpu.memory_space<vmem>>, vector<1x1x1x24x16xf32>
      %162 = vector.shape_cast %161 : vector<1x1x1x24x16xf32> to vector<24x16xf32>
      %cst_255 = arith.constant dense<0.000000e+00> : vector<16x16xf32>
      %163 = tpu.matmul %160, %162, %cst_255 {dimension_numbers = #tpu.dot_dimension_numbers<[1], [0], [0], [1], [0, 0, 1, 1], [], []>, precision = #tpu.contract_precision<fp32>} : vector<16x24xf32>, vector<24x16xf32>, vector<16x16xf32> -> vector<16x16xf32>
      %164 = arith.addf %158, %163 : vector<16x16xf32>
      %c0_256 = arith.constant 0 : index
      %c2_257 = arith.constant 2 : index
      %c7_258 = arith.constant 7 : index
      %c0_259 = arith.constant 0 : index
      %165 = vector.load %arg2[%c0_256, %c2_257, %c7_258, %c0_259] : memref<1x3x24x24xf32, #tpu.memory_space<vmem>>, vector<1x1x16x24xf32>
      %166 = vector.shape_cast %165 : vector<1x1x16x24xf32> to vector<16x24xf32>
      %c0_260 = arith.constant 0 : index
      %c2_261 = arith.constant 2 : index
      %c7_262 = arith.constant 7 : index
      %c0_263 = arith.constant 0 : index
      %c0_264 = arith.constant 0 : index
      %167 = vector.load %arg3[%c0_260, %c2_261, %c7_262, %c0_263, %c0_264] : memref<1x3x9x24x16xf32, #tpu.memory_space<vmem>>, vector<1x1x1x24x16xf32>
      %168 = vector.shape_cast %167 : vector<1x1x1x24x16xf32> to vector<24x16xf32>
      %cst_265 = arith.constant dense<0.000000e+00> : vector<16x16xf32>
      %169 = tpu.matmul %166, %168, %cst_265 {dimension_numbers = #tpu.dot_dimension_numbers<[1], [0], [0], [1], [0, 0, 1, 1], [], []>, precision = #tpu.contract_precision<fp32>} : vector<16x24xf32>, vector<24x16xf32>, vector<16x16xf32> -> vector<16x16xf32>
      %170 = arith.addf %164, %169 : vector<16x16xf32>
      %c0_266 = arith.constant 0 : index
      %c2_267 = arith.constant 2 : index
      %c8_268 = arith.constant 8 : index
      %c0_269 = arith.constant 0 : index
      %171 = vector.load %arg2[%c0_266, %c2_267, %c8_268, %c0_269] : memref<1x3x24x24xf32, #tpu.memory_space<vmem>>, vector<1x1x16x24xf32>
      %172 = vector.shape_cast %171 : vector<1x1x16x24xf32> to vector<16x24xf32>
      %c0_270 = arith.constant 0 : index
      %c2_271 = arith.constant 2 : index
      %c8_272 = arith.constant 8 : index
      %c0_273 = arith.constant 0 : index
      %c0_274 = arith.constant 0 : index
      %173 = vector.load %arg3[%c0_270, %c2_271, %c8_272, %c0_273, %c0_274] : memref<1x3x9x24x16xf32, #tpu.memory_space<vmem>>, vector<1x1x1x24x16xf32>
      %174 = vector.shape_cast %173 : vector<1x1x1x24x16xf32> to vector<24x16xf32>
      %cst_275 = arith.constant dense<0.000000e+00> : vector<16x16xf32>
      %175 = tpu.matmul %172, %174, %cst_275 {dimension_numbers = #tpu.dot_dimension_numbers<[1], [0], [0], [1], [0, 0, 1, 1], [], []>, precision = #tpu.contract_precision<fp32>} : vector<16x24xf32>, vector<24x16xf32>, vector<16x16xf32> -> vector<16x16xf32>
      %176 = arith.addf %170, %175 : vector<16x16xf32>
      %c0_276 = arith.constant 0 : index
      %c0_277 = arith.constant 0 : index
      %c2_278 = arith.constant 2 : index
      %c0_279 = arith.constant 0 : index
      %c0_280 = arith.constant 0 : index
      %177 = vector.load %arg4[%c0_276, %c0_277, %c2_278, %c0_279, %c0_280] : memref<1x1x3x16x16xf32, #tpu.memory_space<vmem>>, vector<1x1x1x16x16xf32>
      %178 = vector.shape_cast %177 : vector<1x1x1x16x16xf32> to vector<16x16xf32>
      %179 = vector.shape_cast %176 : vector<16x16xf32> to vector<1x1x1x16x16xf32>
      tpu.vector_store %arg4[%c0_276, %c0_277, %c2_278, %c0_279, %c0_280], %179 {strides = array<i32>} : memref<1x1x3x16x16xf32, #tpu.memory_space<vmem>>, vector<1x1x1x16x16xf32>,
    } else {
    }
    return
  }
  func.func @transform_0(%arg0: i32, %arg1: i32) -> (i32, i32, i32, i32) {
    %c0_i32 = arith.constant 0 : i32
    %c0_i32_0 = arith.constant 0 : i32
    %c0_i32_1 = arith.constant 0 : i32
    %c0_i32_2 = arith.constant 0 : i32
    return %arg0, %c0_i32, %c0_i32_0, %c0_i32_1 : i32, i32, i32, i32
  }
  func.func @transform_1(%arg0: i32, %arg1: i32) -> (i32, i32, i32, i32, i32) {
    %c0_i32 = arith.constant 0 : i32
    %c0_i32_0 = arith.constant 0 : i32
    %c0_i32_1 = arith.constant 0 : i32
    %c0_i32_2 = arith.constant 0 : i32
    %c0_i32_3 = arith.constant 0 : i32
    return %arg1, %c0_i32, %c0_i32_0, %c0_i32_1, %c0_i32_2 : i32, i32, i32, i32, i32
  }
  func.func @transform_2(%arg0: i32, %arg1: i32) -> (i32, i32, i32, i32, i32) {
    %c0_i32 = arith.constant 0 : i32
    %c0_i32_0 = arith.constant 0 : i32
    %c0_i32_1 = arith.constant 0 : i32
    %c0_i32_2 = arith.constant 0 : i32
    return %arg0, %arg1, %c0_i32, %c0_i32_0, %c0_i32_1 : i32, i32, i32, i32, i32
  }
}

</mosaic_0001>

<llo_original>
// kernel: non_separable_forward.1
$region0: #{non_separable_forward.1}
  #allocation0 [shape = 'u32[]', space=smem, size = 0x4, offset = 0x4, fixed_abs, tag = 'smem constant byte address 0x4 - core index']
  #allocation1 [shape = 'u32[72,128]{1,0:T(1,128)}', space=vmem, size = 0x9000, scoped, tag = 'internal scratch']
  %s0 = inlined_call_operand.vmem [shape: f32[2,3,24,24], index: 0, kind: input, shape index: {}]
  %s1 = inlined_call_operand.vmem [shape: f32[5,3,9,24,16], index: 1, kind: input, shape index: {}]
  %s2 = inlined_call_operand.hbm [shape: f32[2,5,3,16,16], index: 2, kind: output, shape index: {}]
  %s3 = sld [smem:[#allocation0]]
  $region49: #{non_separable_forward.1} parent=0
    _
  %s5 = ssub.s32 1, %s3
  %s6 = scalar_select 0, %s5, %s3
  $region1: #{non_separable_forward.1} parent=0
    #allocation2 [shape = 'u8[49152]{0}', space=vmem, size = 0xc000, scoped, tag = 'output window, operand 0']
    #allocation3 [shape = 's32[2]{0}', space=sflag, size = 0x8, scoped, tag = 'scoped memory for non_separable_forward.1']
    %7 = vsyncpa [#allocation3], 0
    %s8 = scalar_lea.sflag [#allocation3], 1
    %9 = vsyncpa %s8, 0
    loop: start=0, step=1, limit=12
    $region2: #{non_separable_forward.1} parent=1 // loop_pre_header
      _
    $region3: #{non_separable_forward.1} parent=1 // loop_header
      %s11 = sphi 0, %s15
      %p12 = scmp.ge.s32.totalorder %s11, 12
      %s18 = sphi 0, %s30
      %s19 = sphi 0, %s26
      %s20 = sphi 0, %s18
      %s21 = sphi 0, %s19
      %s22 = sphi 0, %s20
      %s23 = sphi 0, %s21
      %s33 = sphi 0, %s35
      %s36 = sphi 0, %s33
      %s37 = sphi 0, %s36
      %s53 = sphi 0, %s37
      %s59 = sphi 0, %s61
      %s62 = sphi 0, %s59
      %s63 = sphi 0, %s62
      %s79 = sphi 0, %s63
      %s87 = sphi 0, %s89
      %s90 = sphi 0, %s87
      %s91 = sphi 0, %s90
      %s107 = sphi 0, %s91
    $region4: #{non_separable_forward.1} parent=1 // loop_header_branch
      %14 = sbr.rel (%p12) target = $region8
    $region5: #{non_separable_forward.1} parent=1 // loop_body
      %s16 = ssub.s32 %s11, 1
      %s17 = ssub.s32 %s11, 2
      %s24 = sadd.s32 1, %s19
      %p25 = scmp.ge.s32.totalorder %s24, 5
      %s26 = scalar_select %p25, 0, %s24
      %s27 = sadd.s32 1, %s18
      %s28 = scalar_select %p25, %s27, %s18
      %p29 = scmp.ge.s32.totalorder %s28, 2
      %s30 = scalar_select %p29, 0, %s28
      %s31 = ssub.s32 %s18, %s30
      %p32 = scmp.eq.s32.totalorder %s31, 0
      %s34 = sadd.s32 %s33, 1
      %s35 = scalar_select %p32, %s33, %s34
      %p38 = pneg %p32
      %p39 = scmp.eq.s32.totalorder %s11, 9
      %p40 = por %p38, %p39
      %p41 = scmp.ne.s32.totalorder %s33, %s36
      %p42 = scmp.eq.s32.totalorder %s11, 0
      %p43 = por %p41, %p42
      %p44 = scmp.ne.s32.totalorder %s33, %s36
      %p45 = scmp.eq.s32.totalorder %s16, 9
      %p46 = por %p44, %p45
      %p47 = scmp.ne.s32.totalorder %s36, %s37
      %p48 = scmp.eq.s32.totalorder %s16, 0
      %p49 = por %p47, %p48
      %p50 = scmp.ne.s32.totalorder %s36, %s37
      %p51 = scmp.eq.s32.totalorder %s17, 9
      %p52 = por %p50, %p51
      %p54 = scmp.ne.s32.totalorder %s37, %s53
      %p55 = scmp.eq.s32.totalorder %s17, 0
      %p56 = por %p54, %p55
      %s57 = ssub.s32 %s19, %s26
      %p58 = scmp.eq.s32.totalorder %s57, 0
      %s60 = sadd.s32 %s59, 1
      %s61 = scalar_select %p58, %s59, %s60
      %p64 = pneg %p58
      %p65 = scmp.eq.s32.totalorder %s11, 9
      %p66 = por %p64, %p65
      %p67 = scmp.ne.s32.totalorder %s59, %s62
      %p68 = scmp.eq.s32.totalorder %s11, 0
      %p69 = por %p67, %p68
      %p70 = scmp.ne.s32.totalorder %s59, %s62
      %p71 = scmp.eq.s32.totalorder %s16, 9
      %p72 = por %p70, %p71
      %p73 = scmp.ne.s32.totalorder %s62, %s63
      %p74 = scmp.eq.s32.totalorder %s16, 0
      %p75 = por %p73, %p74
      %p76 = scmp.ne.s32.totalorder %s62, %s63
      %p77 = scmp.eq.s32.totalorder %s17, 9
      %p78 = por %p76, %p77
      %p80 = scmp.ne.s32.totalorder %s63, %s79
      %p81 = scmp.eq.s32.totalorder %s17, 0
      %p82 = por %p80, %p81
      %s83 = ssub.s32 %s18, %s30
      %s84 = ssub.s32 %s19, %s26
      %s85 = sor.u32 %s83, %s84
      %p86 = scmp.eq.s32.totalorder %s85, 0
      %s88 = sadd.s32 %s87, 1
      %s89 = scalar_select %p86, %s87, %s88
      %p92 = pneg %p86
      %p93 = scmp.eq.s32.totalorder %s11, 9
      %p94 = por %p92, %p93
      %p95 = scmp.ne.s32.totalorder %s87, %s90
      %p96 = scmp.eq.s32.totalorder %s11, 0
      %p97 = por %p95, %p96
      %p98 = scmp.ne.s32.totalorder %s87, %s90
      %p99 = scmp.eq.s32.totalorder %s16, 9
      %p100 = por %p98, %p99
      %p101 = scmp.ne.s32.totalorder %s90, %s91
      %p102 = scmp.eq.s32.totalorder %s16, 0
      %p103 = por %p101, %p102
      %p104 = scmp.ne.s32.totalorder %s90, %s91
      %p105 = scmp.eq.s32.totalorder %s17, 9
      %p106 = por %p104, %p105
      %p108 = scmp.ne.s32.totalorder %s91, %s107
      %p109 = scmp.eq.s32.totalorder %s17, 0
      %p110 = por %p108, %p109
      %p111 = scmp.le.s32.totalorder 1, %s11
      %p112 = scmp.lt.s32.totalorder %s11, 11
      %p113 = pnand %p111, %p112
      %p114 = pneg %p113
      // Predicated region
      $region9: #{non_separable_forward.1} parent=5 // pred_check
        _
      $region10: #{non_separable_forward.1} parent=5 // pred_check_branch
        %116 = sbr.rel (%p113) target = $region12
      $region11: #{non_separable_forward.1} parent=5 // pred_region
        %s117 = ssub.s32 %s11, 1
      $region12: #{non_separable_forward.1} parent=5 // pred_fallthru
        _
      %p118 = scmp.lt.s32.totalorder %s11, 10
      // Predicated region
      $region13: #{non_separable_forward.1} parent=5 // pred_check
        %p119 = pneg %p118
      $region14: #{non_separable_forward.1} parent=5 // pred_check_branch
        %121 = sbr.rel (%p119) target = $region16
      $region15: #{non_separable_forward.1} parent=5 // pred_region
        // Predicated region
        $region17: #{non_separable_forward.1} parent=15 // pred_check
          %p122 = pneg %p43
        $region18: #{non_separable_forward.1} parent=15 // pred_check_branch
          %124 = sbr.rel (%p122) target = $region20
        $region19: #{non_separable_forward.1} parent=15 // pred_region
          %p125 = scmp.lt.s32.totalorder %s18, 1
          %s126 = scalar_select %p125, %s18, 1
          %s127 = smul.addr %s126, 9
          %s128 = smul.addr %s127, 8
          %s129 = scalar_lea.vmem %s0, %s128
        $region20: #{non_separable_forward.1} parent=15 // pred_fallthru
          _
        // Predicated region
        $region21: #{non_separable_forward.1} parent=15 // pred_check
          %p130 = pneg %p69
        $region22: #{non_separable_forward.1} parent=15 // pred_check_branch
          %132 = sbr.rel (%p130) target = $region24
        $region23: #{non_separable_forward.1} parent=15 // pred_region
          %p133 = scmp.lt.s32.totalorder %s19, 4
          %s134 = scalar_select %p133, %s19, 4
          %s135 = smul.addr %s134, 81
          %s136 = smul.addr %s135, 8
          %s137 = scalar_lea.vmem %s1, %s136
        $region24: #{non_separable_forward.1} parent=15 // pred_fallthru
          _
      $region16: #{non_separable_forward.1} parent=5 // pred_fallthru
        _
      %p138 = scmp.le.s32.totalorder 1, %s11
      %p139 = scmp.lt.s32.totalorder %s11, 11
      %p140 = pnand %p138, %p139
      %p141 = pneg %p140
      // Predicated region
      $region25: #{non_separable_forward.1} parent=5 // pred_check
        _
      $region26: #{non_separable_forward.1} parent=5 // pred_check_branch
        %143 = sbr.rel (%p140) target = $region28
      $region27: #{non_separable_forward.1} parent=5 // pred_region
        %s144 = ssub.s32 %s11, 1
        %p145 = scmp.lt.s32.totalorder %s20, 1
        %s146 = scalar_select %p145, %s20, 1
        %s147 = smul.addr %s146, 9
        %s148 = smul.addr %s147, 8
        %s149 = scalar_lea.vmem %s0, %s148
        %p150 = pneg %p49
        %p151 = pneg %p46
        %p152 = scmp.lt.s32.totalorder %s21, 4
        %s153 = scalar_select %p152, %s21, 4
        %s154 = smul.addr %s153, 81
        %s155 = smul.addr %s154, 8
        %s156 = scalar_lea.vmem %s1, %s155
        %p157 = pneg %p75
        %p158 = pneg %p72
        %p159 = pneg %p103
        %p160 = pneg %p100
        %s161 = sand.u32 %s90, 1
        %s162 = scalar_lea.sflag [#allocation3], %s161
        %s163 = sand.u32 %s90, 1
        %s164 = smul.addr %s163, 48
        %s165 = scalar_lea.vmem [#allocation2], %s164
        %p166 = scmp.lt.s32.totalorder %s20, 1
        %s167 = scalar_select %p166, %s20, 1
        %s168 = smul.addr %s167, 9
        %s169 = smul.addr %s168, 8
        %s170 = scalar_lea.vmem %s0, %s169
        %p171 = scmp.lt.s32.totalorder %s21, 4
        %s172 = scalar_select %p171, %s21, 4
        %s173 = smul.addr %s172, 81
        %s174 = smul.addr %s173, 8
        %s175 = scalar_lea.vmem %s1, %s174
        %p176 = scmp.eq.s32.totalorder %s21, 0
        // Predicated region
        $region29: #{non_separable_forward.1} parent=27 // pred_check
          %p177 = pneg %p176
        $region30: #{non_separable_forward.1} parent=27 // pred_check_branch
          %179 = sbr.rel (%p177) target = $region32
        $region31: #{non_separable_forward.1} parent=27 // pred_region
          %v180 = vld [vmem:[%s170 + $0x4] sm:$0xff]
          %v181 = vld [vmem:[%s170 + $0xc] sm:$0xff]
          %v182 = vld [vmem:[%s170 + $0x1c] sm:$0xff]
          %v183 = vld [vmem:[%s170 + $0x24] sm:$0xff]
          %v184 = vld [vmem:[%s170 + $0x34] sm:$0xff]
          %v185 = vld [vmem:[%s170 + $0x3c] sm:$0xff]
          %192 = vrot.lane.b32.xlu0 %v180, 124
          %v193 = vpop.permute.xlu0 %192
          %194 = vrot.lane.b32.xlu0 %v181, 124
          %v195 = vpop.permute.xlu0 %194
          %196 = vrot.lane.b32.xlu0 %v182, 124
          %v197 = vpop.permute.xlu0 %196
          %198 = vrot.lane.b32.xlu0 %v183, 124
          %v199 = vpop.permute.xlu0 %198
          %200 = vrot.lane.b32.xlu0 %v184, 124
          %v201 = vpop.permute.xlu0 %200
          %202 = vrot.lane.b32.xlu0 %v185, 124
          %v203 = vpop.permute.xlu0 %202
          %vm210 = vcmask 130048
          %211 = vst.msk [vmem:[%s165] sm:$0xff] %vm210, %v193
          %212 = vst.msk [vmem:[%s165 + $0x8] sm:$0xff] %vm210, %v195
          %213 = vst.msk [vmem:[%s165 + $0x10] sm:$0xff] %vm210, %v197
          %214 = vst.msk [vmem:[%s165 + $0x18] sm:$0xff] %vm210, %v199
          %215 = vst.msk [vmem:[%s165 + $0x20] sm:$0xff] %vm210, %v201
          %216 = vst.msk [vmem:[%s165 + $0x28] sm:$0xff] %vm210, %v203
        $region32: #{non_separable_forward.1} parent=27 // pred_fallthru
          _
        %p217 = scmp.gt.s32.totalorder %s21, 0
        // Predicated region
        $region33: #{non_separable_forward.1} parent=27 // pred_check
          %p218 = pneg %p217
        $region34: #{non_separable_forward.1} parent=27 // pred_check_branch
          %220 = sbr.rel (%p218) target = $region36
        $region35: #{non_separable_forward.1} parent=27 // pred_region
          %v221 = vld [vmem:[%s170] sm:$0xff]
          %v222 = vld [vmem:[%s170 + $0x8] sm:$0xff]
          %v223 = vld [vmem:[%s175] sm:$0xff]
          %v224 = vld [vmem:[%s175 + $0x8] sm:$0xff]
          %v225 = vld [vmem:[%s175 + $0x10] sm:$0xff]
          %v226 = vld [vmem:[%s170 + $0x1] sm:$0xff]
          %v227 = vld [vmem:[%s170 + $0x9] sm:$0xff]
          %s228 = scalar_lea.vmem %s175, 24
          %v229 = vld [vmem:[%s228] sm:$0xff]
          %v230 = vld [vmem:[%s228 + $0x8] sm:$0xff]
          %v231 = vld [vmem:[%s228 + $0x10] sm:$0xff]
          %vm232 = vcmask 195584
          %v234 = vsel %vm232, %v226, 0
          %v237 = vsel %vm232, %v227, 0
          %239 = vmatpush.msra.mxu0 0.0
          %240 = vmatpush.msra.mxu0 0.0
          %241 = vmatpush.msra.mxu0 0.0
          %242 = vmatpush.msra.mxu0 0.0
          %243 = vmatpush.msra.mxu0 0.0
          %244 = vmatpush.msra.mxu0 0.0
          %245 = vmatpush.msra.mxu0 0.0
          %246 = vmatpush.msra.mxu0 0.0
          %247 = vmatpush.msra.mxu0 0.0
          %248 = vmatpush.msra.mxu0 0.0
          %249 = vmatpush.msra.mxu0 0.0
          %250 = vmatpush.msra.mxu0 0.0
          %251 = vmatpush.msra.mxu0 0.0
          %v252 = vand.u32 %v231, 4294901760
          %253 = vmatpush.msra.mxu0 %v252
          %v254 = vand.u32 %v230, 4294901760
          %255 = vmatpush.msra.mxu0 %v254
          %v256 = vand.u32 %v229, 4294901760
          %257 = vmatpush.msra.mxu0 %v256
          %v258 = vand.u32 %v234, 4294901760
          %v259 = vsub.f32 %v234, %v258
          %v260 = vand.u32 %v259, 4294901760
          %v261 = vsub.f32 %v259, %v260
          %v262 = vand.u32 %v261, 4294901760
          %263 = vmatmul.f32.gmra.mxu0 %v262
          %v264 = vpop.f32.mrf.mxu0
          %v265 = vadd.f32 0.0, %v264
          %v266 = vand.u32 %v237, 4294901760
          %v267 = vsub.f32 %v237, %v266
          %v268 = vand.u32 %v267, 4294901760
          %v269 = vsub.f32 %v267, %v268
          %v270 = vand.u32 %v269, 4294901760
          %271 = vmatmul.f32.gmra.mxu0 %v270
          %v272 = vpop.f32.mrf.mxu0
          %v273 = vadd.f32 0.0, %v272
          %274 = vdwg.mxu0
          %275 = vmatpush.msra.mxu0 0.0
          %276 = vmatpush.msra.mxu0 0.0
          %277 = vmatpush.msra.mxu0 0.0
          %278 = vmatpush.msra.mxu0 0.0
          %279 = vmatpush.msra.mxu0 0.0
          %280 = vmatpush.msra.mxu0 0.0
          %281 = vmatpush.msra.mxu0 0.0
          %282 = vmatpush.msra.mxu0 0.0
          %283 = vmatpush.msra.mxu0 0.0
          %284 = vmatpush.msra.mxu0 0.0
          %285 = vmatpush.msra.mxu0 0.0
          %286 = vmatpush.msra.mxu0 0.0
          %287 = vmatpush.msra.mxu0 0.0
          %v288 = vand.u32 %v231, 4294901760
          %v289 = vsub.f32 %v231, %v288
          %v290 = vand.u32 %v289, 4294901760
          %v291 = vsub.f32 %v289, %v290
          %v292 = vand.u32 %v291, 4294901760
          %293 = vmatpush.msra.mxu0 %v292
          %v294 = vand.u32 %v230, 4294901760
          %v295 = vsub.f32 %v230, %v294
          %v296 = vand.u32 %v295, 4294901760
          %v297 = vsub.f32 %v295, %v296
          %v298 = vand.u32 %v297, 4294901760
          %299 = vmatpush.msra.mxu0 %v298
          %v300 = vand.u32 %v229, 4294901760
          %v301 = vsub.f32 %v229, %v300
          %v302 = vand.u32 %v301, 4294901760
          %v303 = vsub.f32 %v301, %v302
          %v304 = vand.u32 %v303, 4294901760
          %305 = vmatpush.msra.mxu0 %v304
          %v306 = vand.u32 %v234, 4294901760
          %307 = vmatmul.f32.gmra.mxu0 %v306
          %v308 = vpop.f32.mrf.mxu0
          %v309 = vadd.f32 %v265, %v308
          %v310 = vand.u32 %v237, 4294901760
          %311 = vmatmul.f32.gmra.mxu0 %v310
          %v312 = vpop.f32.mrf.mxu0
          %v313 = vadd.f32 %v273, %v312
          %314 = vdwg.mxu0
          %315 = vmatpush.msra.mxu0 0.0
          %316 = vmatpush.msra.mxu0 0.0
          %317 = vmatpush.msra.mxu0 0.0
          %318 = vmatpush.msra.mxu0 0.0
          %319 = vmatpush.msra.mxu0 0.0
          %320 = vmatpush.msra.mxu0 0.0
          %321 = vmatpush.msra.mxu0 0.0
          %322 = vmatpush.msra.mxu0 0.0
          %323 = vmatpush.msra.mxu0 0.0
          %324 = vmatpush.msra.mxu0 0.0
          %325 = vmatpush.msra.mxu0 0.0
          %326 = vmatpush.msra.mxu0 0.0
          %327 = vmatpush.msra.mxu0 0.0
          %v328 = vand.u32 %v231, 4294901760
          %v329 = vsub.f32 %v231, %v328
          %330 = vmatpush.msra.mxu0 %v329
          %v331 = vand.u32 %v230, 4294901760
          %v332 = vsub.f32 %v230, %v331
          %333 = vmatpush.msra.mxu0 %v332
          %v334 = vand.u32 %v229, 4294901760
          %v335 = vsub.f32 %v229, %v334
          %336 = vmatpush.msra.mxu0 %v335
          %v337 = vand.u32 %v234, 4294901760
          %v338 = vsub.f32 %v234, %v337
          %339 = vmatmul.f32.gmra.mxu0 %v338
          %v340 = vpop.f32.mrf.mxu0
          %v341 = vadd.f32 %v309, %v340
          %v342 = vand.u32 %v237, 4294901760
          %v343 = vsub.f32 %v237, %v342
          %344 = vmatmul.f32.gmra.mxu0 %v343
          %v345 = vpop.f32.mrf.mxu0
          %v346 = vadd.f32 %v313, %v345
          %347 = vdwg.mxu0
          %348 = vmatpush.msra.mxu0 0.0
          %349 = vmatpush.msra.mxu0 0.0
          %350 = vmatpush.msra.mxu0 0.0
          %351 = vmatpush.msra.mxu0 0.0
          %352 = vmatpush.msra.mxu0 0.0
          %353 = vmatpush.msra.mxu0 0.0
          %354 = vmatpush.msra.mxu0 0.0
          %355 = vmatpush.msra.mxu0 0.0
          %356 = vmatpush.msra.mxu0 0.0
          %357 = vmatpush.msra.mxu0 0.0
          %358 = vmatpush.msra.mxu0 0.0
          %359 = vmatpush.msra.mxu0 0.0
          %360 = vmatpush.msra.mxu0 0.0
          %v361 = vand.u32 %v231, 4294901760
          %362 = vmatpush.msra.mxu0 %v361
          %v363 = vand.u32 %v230, 4294901760
          %364 = vmatpush.msra.mxu0 %v363
          %v365 = vand.u32 %v229, 4294901760
          %366 = vmatpush.msra.mxu0 %v365
          %v367 = vand.u32 %v234, 4294901760
          %v368 = vsub.f32 %v234, %v367
          %v369 = vand.u32 %v368, 4294901760
          %370 = vmatmul.f32.gmra.mxu0 %v369
          %v371 = vpop.f32.mrf.mxu0
          %v372 = vadd.f32 %v341, %v371
          %v373 = vand.u32 %v237, 4294901760
          %v374 = vsub.f32 %v237, %v373
          %v375 = vand.u32 %v374, 4294901760
          %376 = vmatmul.f32.gmra.mxu0 %v375
          %v377 = vpop.f32.mrf.mxu0
          %v378 = vadd.f32 %v346, %v377
          %379 = vdwg.mxu0
          %380 = vmatpush.msra.mxu0 0.0
          %381 = vmatpush.msra.mxu0 0.0
          %382 = vmatpush.msra.mxu0 0.0
          %383 = vmatpush.msra.mxu0 0.0
          %384 = vmatpush.msra.mxu0 0.0
          %385 = vmatpush.msra.mxu0 0.0
          %386 = vmatpush.msra.mxu0 0.0
          %387 = vmatpush.msra.mxu0 0.0
          %388 = vmatpush.msra.mxu0 0.0
          %389 = vmatpush.msra.mxu0 0.0
          %390 = vmatpush.msra.mxu0 0.0
          %391 = vmatpush.msra.mxu0 0.0
          %392 = vmatpush.msra.mxu0 0.0
          %v393 = vand.u32 %v231, 4294901760
          %v394 = vsub.f32 %v231, %v393
          %v395 = vand.u32 %v394, 4294901760
          %396 = vmatpush.msra.mxu0 %v395
          %v397 = vand.u32 %v230, 4294901760
          %v398 = vsub.f32 %v230, %v397
          %v399 = vand.u32 %v398, 4294901760
          %400 = vmatpush.msra.mxu0 %v399
          %v401 = vand.u32 %v229, 4294901760
          %v402 = vsub.f32 %v229, %v401
          %v403 = vand.u32 %v402, 4294901760
          %404 = vmatpush.msra.mxu0 %v403
          %v405 = vand.u32 %v234, 4294901760
          %406 = vmatmul.f32.gmra.mxu0 %v405
          %v407 = vpop.f32.mrf.mxu0
          %v408 = vadd.f32 %v372, %v407
          %v409 = vand.u32 %v237, 4294901760
          %410 = vmatmul.f32.gmra.mxu0 %v409
          %v411 = vpop.f32.mrf.mxu0
          %v412 = vadd.f32 %v378, %v411
          %413 = vdwg.mxu0
          %414 = vmatpush.msra.mxu0 0.0
          %415 = vmatpush.msra.mxu0 0.0
          %416 = vmatpush.msra.mxu0 0.0
          %417 = vmatpush.msra.mxu0 0.0
          %418 = vmatpush.msra.mxu0 0.0
          %419 = vmatpush.msra.mxu0 0.0
          %420 = vmatpush.msra.mxu0 0.0
          %421 = vmatpush.msra.mxu0 0.0
          %422 = vmatpush.msra.mxu0 0.0
          %423 = vmatpush.msra.mxu0 0.0
          %424 = vmatpush.msra.mxu0 0.0
          %425 = vmatpush.msra.mxu0 0.0
          %426 = vmatpush.msra.mxu0 0.0
          %v427 = vand.u32 %v231, 4294901760
          %428 = vmatpush.msra.mxu0 %v427
          %v429 = vand.u32 %v230, 4294901760
          %430 = vmatpush.msra.mxu0 %v429
          %v431 = vand.u32 %v229, 4294901760
          %432 = vmatpush.msra.mxu0 %v431
          %v433 = vand.u32 %v234, 4294901760
          %434 = vmatmul.f32.gmra.mxu0 %v433
          %v435 = vpop.f32.mrf.mxu0
          %v436 = vadd.f32 %v408, %v435
          %v437 = vand.u32 %v237, 4294901760
          %438 = vmatmul.f32.gmra.mxu0 %v437
          %v439 = vpop.f32.mrf.mxu0
          %v440 = vadd.f32 %v412, %v439
          %441 = vdwg.mxu0
          %v443 = vsel %vm232, %v221, 0
          %v446 = vsel %vm232, %v222, 0
          %448 = vmatpush.msra.mxu0 0.0
          %449 = vmatpush.msra.mxu0 0.0
          %450 = vmatpush.msra.mxu0 0.0
          %451 = vmatpush.msra.mxu0 0.0
          %452 = vmatpush.msra.mxu0 0.0
          %453 = vmatpush.msra.mxu0 0.0
          %454 = vmatpush.msra.mxu0 0.0
          %455 = vmatpush.msra.mxu0 0.0
          %456 = vmatpush.msra.mxu0 0.0
          %457 = vmatpush.msra.mxu0 0.0
          %458 = vmatpush.msra.mxu0 0.0
          %459 = vmatpush.msra.mxu0 0.0
          %460 = vmatpush.msra.mxu0 0.0
          %v461 = vand.u32 %v225, 4294901760
          %462 = vmatpush.msra.mxu0 %v461
          %v463 = vand.u32 %v224, 4294901760
          %464 = vmatpush.msra.mxu0 %v463
          %v465 = vand.u32 %v223, 4294901760
          %466 = vmatpush.msra.mxu0 %v465
          %v467 = vand.u32 %v443, 4294901760
          %v468 = vsub.f32 %v443, %v467
          %v469 = vand.u32 %v468, 4294901760
          %v470 = vsub.f32 %v468, %v469
          %v471 = vand.u32 %v470, 4294901760
          %472 = vmatmul.f32.gmra.mxu0 %v471
          %v473 = vpop.f32.mrf.mxu0
          %v474 = vadd.f32 %v436, %v473
          %v475 = vand.u32 %v446, 4294901760
          %v476 = vsub.f32 %v446, %v475
          %v477 = vand.u32 %v476, 4294901760
          %v478 = vsub.f32 %v476, %v477
          %v479 = vand.u32 %v478, 4294901760
          %480 = vmatmul.f32.gmra.mxu0 %v479
          %v481 = vpop.f32.mrf.mxu0
          %v482 = vadd.f32 %v440, %v481
          %483 = vdwg.mxu0
          %484 = vmatpush.msra.mxu0 0.0
          %485 = vmatpush.msra.mxu0 0.0
          %486 = vmatpush.msra.mxu0 0.0
          %487 = vmatpush.msra.mxu0 0.0
          %488 = vmatpush.msra.mxu0 0.0
          %489 = vmatpush.msra.mxu0 0.0
          %490 = vmatpush.msra.mxu0 0.0
          %491 = vmatpush.msra.mxu0 0.0
          %492 = vmatpush.msra.mxu0 0.0
          %493 = vmatpush.msra.mxu0 0.0
          %494 = vmatpush.msra.mxu0 0.0
          %495 = vmatpush.msra.mxu0 0.0
          %496 = vmatpush.msra.mxu0 0.0
          %v497 = vand.u32 %v225, 4294901760
          %v498 = vsub.f32 %v225, %v497
          %v499 = vand.u32 %v498, 4294901760
          %v500 = vsub.f32 %v498, %v499
          %v501 = vand.u32 %v500, 4294901760
          %502 = vmatpush.msra.mxu0 %v501
          %v503 = vand.u32 %v224, 4294901760
          %v504 = vsub.f32 %v224, %v503
          %v505 = vand.u32 %v504, 4294901760
          %v506 = vsub.f32 %v504, %v505
          %v507 = vand.u32 %v506, 4294901760
          %508 = vmatpush.msra.mxu0 %v507
          %v509 = vand.u32 %v223, 4294901760
          %v510 = vsub.f32 %v223, %v509
          %v511 = vand.u32 %v510, 4294901760
          %v512 = vsub.f32 %v510, %v511
          %v513 = vand.u32 %v512, 4294901760
          %514 = vmatpush.msra.mxu0 %v513
          %v515 = vand.u32 %v443, 4294901760
          %516 = vmatmul.f32.gmra.mxu0 %v515
          %v517 = vpop.f32.mrf.mxu0
          %v518 = vadd.f32 %v474, %v517
          %v519 = vand.u32 %v446, 4294901760
          %520 = vmatmul.f32.gmra.mxu0 %v519
          %v521 = vpop.f32.mrf.mxu0
          %v522 = vadd.f32 %v482, %v521
          %523 = vdwg.mxu0
          %524 = vmatpush.msra.mxu0 0.0
          %525 = vmatpush.msra.mxu0 0.0
          %526 = vmatpush.msra.mxu0 0.0
          %527 = vmatpush.msra.mxu0 0.0
          %528 = vmatpush.msra.mxu0 0.0
          %529 = vmatpush.msra.mxu0 0.0
          %530 = vmatpush.msra.mxu0 0.0
          %531 = vmatpush.msra.mxu0 0.0
          %532 = vmatpush.msra.mxu0 0.0
          %533 = vmatpush.msra.mxu0 0.0
          %534 = vmatpush.msra.mxu0 0.0
          %535 = vmatpush.msra.mxu0 0.0
          %536 = vmatpush.msra.mxu0 0.0
          %v537 = vand.u32 %v225, 4294901760
          %v538 = vsub.f32 %v225, %v537
          %539 = vmatpush.msra.mxu0 %v538
          %v540 = vand.u32 %v224, 4294901760
          %v541 = vsub.f32 %v224, %v540
          %542 = vmatpush.msra.mxu0 %v541
          %v543 = vand.u32 %v223, 4294901760
          %v544 = vsub.f32 %v223, %v543
          %545 = vmatpush.msra.mxu0 %v544
          %v546 = vand.u32 %v443, 4294901760
          %v547 = vsub.f32 %v443, %v546
          %548 = vmatmul.f32.gmra.mxu0 %v547
          %v549 = vpop.f32.mrf.mxu0
          %v550 = vadd.f32 %v518, %v549
          %v551 = vand.u32 %v446, 4294901760
          %v552 = vsub.f32 %v446, %v551
          %553 = vmatmul.f32.gmra.mxu0 %v552
          %v554 = vpop.f32.mrf.mxu0
          %v555 = vadd.f32 %v522, %v554
          %556 = vdwg.mxu0
          %557 = vmatpush.msra.mxu0 0.0
          %558 = vmatpush.msra.mxu0 0.0
          %559 = vmatpush.msra.mxu0 0.0
          %560 = vmatpush.msra.mxu0 0.0
          %561 = vmatpush.msra.mxu0 0.0
          %562 = vmatpush.msra.mxu0 0.0
          %563 = vmatpush.msra.mxu0 0.0
          %564 = vmatpush.msra.mxu0 0.0
          %565 = vmatpush.msra.mxu0 0.0
          %566 = vmatpush.msra.mxu0 0.0
          %567 = vmatpush.msra.mxu0 0.0
          %568 = vmatpush.msra.mxu0 0.0
          %569 = vmatpush.msra.mxu0 0.0
          %v570 = vand.u32 %v225, 4294901760
          %571 = vmatpush.msra.mxu0 %v570
          %v572 = vand.u32 %v224, 4294901760
          %573 = vmatpush.msra.mxu0 %v572
          %v574 = vand.u32 %v223, 4294901760
          %575 = vmatpush.msra.mxu0 %v574
          %v576 = vand.u32 %v443, 4294901760
          %v577 = vsub.f32 %v443, %v576
          %v578 = vand.u32 %v577, 4294901760
          %579 = vmatmul.f32.gmra.mxu0 %v578
          %v580 = vpop.f32.mrf.mxu0
          %v581 = vadd.f32 %v550, %v580
          %v582 = vand.u32 %v446, 4294901760
          %v583 = vsub.f32 %v446, %v582
          %v584 = vand.u32 %v583, 4294901760
          %585 = vmatmul.f32.gmra.mxu0 %v584
          %v586 = vpop.f32.mrf.mxu0
          %v587 = vadd.f32 %v555, %v586
          %588 = vdwg.mxu0
          %589 = vmatpush.msra.mxu0 0.0
          %590 = vmatpush.msra.mxu0 0.0
          %591 = vmatpush.msra.mxu0 0.0
          %592 = vmatpush.msra.mxu0 0.0
          %593 = vmatpush.msra.mxu0 0.0
          %594 = vmatpush.msra.mxu0 0.0
          %595 = vmatpush.msra.mxu0 0.0
          %596 = vmatpush.msra.mxu0 0.0
          %597 = vmatpush.msra.mxu0 0.0
          %598 = vmatpush.msra.mxu0 0.0
          %599 = vmatpush.msra.mxu0 0.0
          %600 = vmatpush.msra.mxu0 0.0
          %601 = vmatpush.msra.mxu0 0.0
          %v602 = vand.u32 %v225, 4294901760
          %v603 = vsub.f32 %v225, %v602
          %v604 = vand.u32 %v603, 4294901760
          %605 = vmatpush.msra.mxu0 %v604
          %v606 = vand.u32 %v224, 4294901760
          %v607 = vsub.f32 %v224, %v606
          %v608 = vand.u32 %v607, 4294901760
          %609 = vmatpush.msra.mxu0 %v608
          %v610 = vand.u32 %v223, 4294901760
          %v611 = vsub.f32 %v223, %v610
          %v612 = vand.u32 %v611, 4294901760
          %613 = vmatpush.msra.mxu0 %v612
          %v614 = vand.u32 %v443, 4294901760
          %615 = vmatmul.f32.gmra.mxu0 %v614
          %v616 = vpop.f32.mrf.mxu0
          %v617 = vadd.f32 %v581, %v616
          %v618 = vand.u32 %v446, 4294901760
          %619 = vmatmul.f32.gmra.mxu0 %v618
          %v620 = vpop.f32.mrf.mxu0
          %v621 = vadd.f32 %v587, %v620
          %622 = vdwg.mxu0
          %623 = vmatpush.msra.mxu0 0.0
          %624 = vmatpush.msra.mxu0 0.0
          %625 = vmatpush.msra.mxu0 0.0
          %626 = vmatpush.msra.mxu0 0.0
          %627 = vmatpush.msra.mxu0 0.0
          %628 = vmatpush.msra.mxu0 0.0
          %629 = vmatpush.msra.mxu0 0.0
          %630 = vmatpush.msra.mxu0 0.0
          %631 = vmatpush.msra.mxu0 0.0
          %632 = vmatpush.msra.mxu0 0.0
          %633 = vmatpush.msra.mxu0 0.0
          %634 = vmatpush.msra.mxu0 0.0
          %635 = vmatpush.msra.mxu0 0.0
          %v636 = vand.u32 %v225, 4294901760
          %637 = vmatpush.msra.mxu0 %v636
          %v638 = vand.u32 %v224, 4294901760
          %639 = vmatpush.msra.mxu0 %v638
          %v640 = vand.u32 %v223, 4294901760
          %641 = vmatpush.msra.mxu0 %v640
          %v642 = vand.u32 %v443, 4294901760
          %643 = vmatmul.f32.gmra.mxu0 %v642
          %v644 = vpop.f32.mrf.mxu0
          %v645 = vadd.f32 %v617, %v644
          %v646 = vand.u32 %v446, 4294901760
          %647 = vmatmul.f32.gmra.mxu0 %v646
          %v648 = vpop.f32.mrf.mxu0
          %v649 = vadd.f32 %v621, %v648
          %650 = vdwg.mxu0
          %v651 = vld [vmem:[%s170 + $0x2] sm:$0xff]
          %v652 = vld [vmem:[%s170 + $0xa] sm:$0xff]
          %s653 = scalar_lea.vmem %s175, 48
          %v654 = vld [vmem:[%s653] sm:$0xff]
          %v655 = vld [vmem:[%s653 + $0x8] sm:$0xff]
          %v656 = vld [vmem:[%s653 + $0x10] sm:$0xff]
          %v658 = vsel %vm232, %v651, 0
          %v661 = vsel %vm232, %v652, 0
          %663 = vmatpush.msra.mxu0 0.0
          %664 = vmatpush.msra.mxu0 0.0
          %665 = vmatpush.msra.mxu0 0.0
          %666 = vmatpush.msra.mxu0 0.0
          %667 = vmatpush.msra.mxu0 0.0
          %668 = vmatpush.msra.mxu0 0.0
          %669 = vmatpush.msra.mxu0 0.0
          %670 = vmatpush.msra.mxu0 0.0
          %671 = vmatpush.msra.mxu0 0.0
          %672 = vmatpush.msra.mxu0 0.0
          %673 = vmatpush.msra.mxu0 0.0
          %674 = vmatpush.msra.mxu0 0.0
          %675 = vmatpush.msra.mxu0 0.0
          %v676 = vand.u32 %v656, 4294901760
          %677 = vmatpush.msra.mxu0 %v676
          %v678 = vand.u32 %v655, 4294901760
          %679 = vmatpush.msra.mxu0 %v678
          %v680 = vand.u32 %v654, 4294901760
          %681 = vmatpush.msra.mxu0 %v680
          %v682 = vand.u32 %v658, 4294901760
          %v683 = vsub.f32 %v658, %v682
          %v684 = vand.u32 %v683, 4294901760
          %v685 = vsub.f32 %v683, %v684
          %v686 = vand.u32 %v685, 4294901760
          %687 = vmatmul.f32.gmra.mxu0 %v686
          %v688 = vpop.f32.mrf.mxu0
          %v689 = vadd.f32 0.0, %v688
          %v690 = vand.u32 %v661, 4294901760
          %v691 = vsub.f32 %v661, %v690
          %v692 = vand.u32 %v691, 4294901760
          %v693 = vsub.f32 %v691, %v692
          %v694 = vand.u32 %v693, 4294901760
          %695 = vmatmul.f32.gmra.mxu0 %v694
          %v696 = vpop.f32.mrf.mxu0
          %v697 = vadd.f32 0.0, %v696
          %698 = vdwg.mxu0
          %699 = vmatpush.msra.mxu0 0.0
          %700 = vmatpush.msra.mxu0 0.0
          %701 = vmatpush.msra.mxu0 0.0
          %702 = vmatpush.msra.mxu0 0.0
          %703 = vmatpush.msra.mxu0 0.0
          %704 = vmatpush.msra.mxu0 0.0
          %705 = vmatpush.msra.mxu0 0.0
          %706 = vmatpush.msra.mxu0 0.0
          %707 = vmatpush.msra.mxu0 0.0
          %708 = vmatpush.msra.mxu0 0.0
          %709 = vmatpush.msra.mxu0 0.0
          %710 = vmatpush.msra.mxu0 0.0
          %711 = vmatpush.msra.mxu0 0.0
          %v712 = vand.u32 %v656, 4294901760
          %v713 = vsub.f32 %v656, %v712
          %v714 = vand.u32 %v713, 4294901760
          %v715 = vsub.f32 %v713, %v714
          %v716 = vand.u32 %v715, 4294901760
          %717 = vmatpush.msra.mxu0 %v716
          %v718 = vand.u32 %v655, 4294901760
          %v719 = vsub.f32 %v655, %v718
          %v720 = vand.u32 %v719, 4294901760
          %v721 = vsub.f32 %v719, %v720
          %v722 = vand.u32 %v721, 4294901760
          %723 = vmatpush.msra.mxu0 %v722
          %v724 = vand.u32 %v654, 4294901760
          %v725 = vsub.f32 %v654, %v724
          %v726 = vand.u32 %v725, 4294901760
          %v727 = vsub.f32 %v725, %v726
          %v728 = vand.u32 %v727, 4294901760
          %729 = vmatpush.msra.mxu0 %v728
          %v730 = vand.u32 %v658, 4294901760
          %731 = vmatmul.f32.gmra.mxu0 %v730
          %v732 = vpop.f32.mrf.mxu0
          %v733 = vadd.f32 %v689, %v732
          %v734 = vand.u32 %v661, 4294901760
          %735 = vmatmul.f32.gmra.mxu0 %v734
          %v736 = vpop.f32.mrf.mxu0
          %v737 = vadd.f32 %v697, %v736
          %738 = vdwg.mxu0
          %739 = vmatpush.msra.mxu0 0.0
          %740 = vmatpush.msra.mxu0 0.0
          %741 = vmatpush.msra.mxu0 0.0
          %742 = vmatpush.msra.mxu0 0.0
          %743 = vmatpush.msra.mxu0 0.0
          %744 = vmatpush.msra.mxu0 0.0
          %745 = vmatpush.msra.mxu0 0.0
          %746 = vmatpush.msra.mxu0 0.0
          %747 = vmatpush.msra.mxu0 0.0
          %748 = vmatpush.msra.mxu0 0.0
          %749 = vmatpush.msra.mxu0 0.0
          %750 = vmatpush.msra.mxu0 0.0
          %751 = vmatpush.msra.mxu0 0.0
          %v752 = vand.u32 %v656, 4294901760
          %v753 = vsub.f32 %v656, %v752
          %754 = vmatpush.msra.mxu0 %v753
          %v755 = vand.u32 %v655, 4294901760
          %v756 = vsub.f32 %v655, %v755
          %757 = vmatpush.msra.mxu0 %v756
          %v758 = vand.u32 %v654, 4294901760
          %v759 = vsub.f32 %v654, %v758
          %760 = vmatpush.msra.mxu0 %v759
          %v761 = vand.u32 %v658, 4294901760
          %v762 = vsub.f32 %v658, %v761
          %763 = vmatmul.f32.gmra.mxu0 %v762
          %v764 = vpop.f32.mrf.mxu0
          %v765 = vadd.f32 %v733, %v764
          %v766 = vand.u32 %v661, 4294901760
          %v767 = vsub.f32 %v661, %v766
          %768 = vmatmul.f32.gmra.mxu0 %v767
          %v769 = vpop.f32.mrf.mxu0
          %v770 = vadd.f32 %v737, %v769
          %771 = vdwg.mxu0
          %772 = vmatpush.msra.mxu0 0.0
          %773 = vmatpush.msra.mxu0 0.0
          %774 = vmatpush.msra.mxu0 0.0
          %775 = vmatpush.msra.mxu0 0.0
          %776 = vmatpush.msra.mxu0 0.0
          %777 = vmatpush.msra.mxu0 0.0
          %778 = vmatpush.msra.mxu0 0.0
          %779 = vmatpush.msra.mxu0 0.0
          %780 = vmatpush.msra.mxu0 0.0
          %781 = vmatpush.msra.mxu0 0.0
          %782 = vmatpush.msra.mxu0 0.0
          %783 = vmatpush.msra.mxu0 0.0
          %784 = vmatpush.msra.mxu0 0.0
          %v785 = vand.u32 %v656, 4294901760
          %786 = vmatpush.msra.mxu0 %v785
          %v787 = vand.u32 %v655, 4294901760
          %788 = vmatpush.msra.mxu0 %v787
          %v789 = vand.u32 %v654, 4294901760
          %790 = vmatpush.msra.mxu0 %v789
          %v791 = vand.u32 %v658, 4294901760
          %v792 = vsub.f32 %v658, %v791
          %v793 = vand.u32 %v792, 4294901760
          %794 = vmatmul.f32.gmra.mxu0 %v793
          %v795 = vpop.f32.mrf.mxu0
          %v796 = vadd.f32 %v765, %v795
          %v797 = vand.u32 %v661, 4294901760
          %v798 = vsub.f32 %v661, %v797
          %v799 = vand.u32 %v798, 4294901760
          %800 = vmatmul.f32.gmra.mxu0 %v799
          %v801 = vpop.f32.mrf.mxu0
          %v802 = vadd.f32 %v770, %v801
          %803 = vdwg.mxu0
          %804 = vmatpush.msra.mxu0 0.0
          %805 = vmatpush.msra.mxu0 0.0
          %806 = vmatpush.msra.mxu0 0.0
          %807 = vmatpush.msra.mxu0 0.0
          %808 = vmatpush.msra.mxu0 0.0
          %809 = vmatpush.msra.mxu0 0.0
          %810 = vmatpush.msra.mxu0 0.0
          %811 = vmatpush.msra.mxu0 0.0
          %812 = vmatpush.msra.mxu0 0.0
          %813 = vmatpush.msra.mxu0 0.0
          %814 = vmatpush.msra.mxu0 0.0
          %815 = vmatpush.msra.mxu0 0.0
          %816 = vmatpush.msra.mxu0 0.0
          %v817 = vand.u32 %v656, 4294901760
          %v818 = vsub.f32 %v656, %v817
          %v819 = vand.u32 %v818, 4294901760
          %820 = vmatpush.msra.mxu0 %v819
          %v821 = vand.u32 %v655, 4294901760
          %v822 = vsub.f32 %v655, %v821
          %v823 = vand.u32 %v822, 4294901760
          %824 = vmatpush.msra.mxu0 %v823
          %v825 = vand.u32 %v654, 4294901760
          %v826 = vsub.f32 %v654, %v825
          %v827 = vand.u32 %v826, 4294901760
          %828 = vmatpush.msra.mxu0 %v827
          %v829 = vand.u32 %v658, 4294901760
          %830 = vmatmul.f32.gmra.mxu0 %v829
          %v831 = vpop.f32.mrf.mxu0
          %v832 = vadd.f32 %v796, %v831
          %v833 = vand.u32 %v661, 4294901760
          %834 = vmatmul.f32.gmra.mxu0 %v833
          %v835 = vpop.f32.mrf.mxu0
          %v836 = vadd.f32 %v802, %v835
          %837 = vdwg.mxu0
          %838 = vmatpush.msra.mxu0 0.0
          %839 = vmatpush.msra.mxu0 0.0
          %840 = vmatpush.msra.mxu0 0.0
          %841 = vmatpush.msra.mxu0 0.0
          %842 = vmatpush.msra.mxu0 0.0
          %843 = vmatpush.msra.mxu0 0.0
          %844 = vmatpush.msra.mxu0 0.0
          %845 = vmatpush.msra.mxu0 0.0
          %846 = vmatpush.msra.mxu0 0.0
          %847 = vmatpush.msra.mxu0 0.0
          %848 = vmatpush.msra.mxu0 0.0
          %849 = vmatpush.msra.mxu0 0.0
          %850 = vmatpush.msra.mxu0 0.0
          %v851 = vand.u32 %v656, 4294901760
          %852 = vmatpush.msra.mxu0 %v851
          %v853 = vand.u32 %v655, 4294901760
          %854 = vmatpush.msra.mxu0 %v853
          %v855 = vand.u32 %v654, 4294901760
          %856 = vmatpush.msra.mxu0 %v855
          %v857 = vand.u32 %v658, 4294901760
          %858 = vmatmul.f32.gmra.mxu0 %v857
          %v859 = vpop.f32.mrf.mxu0
          %v860 = vadd.f32 %v832, %v859
          %v861 = vand.u32 %v661, 4294901760
          %862 = vmatmul.f32.gmra.mxu0 %v861
          %v863 = vpop.f32.mrf.mxu0
          %v864 = vadd.f32 %v836, %v863
          %865 = vdwg.mxu0
          %v866 = vadd.f32 %v645, %v860
          %v867 = vadd.f32 %v649, %v864
          %v868 = vld [vmem:[%s170 + $0x3] sm:$0xff]
          %v869 = vld [vmem:[%s170 + $0xb] sm:$0xff]
          %s870 = scalar_lea.vmem %s175, 72
          %v871 = vld [vmem:[%s870] sm:$0xff]
          %v872 = vld [vmem:[%s870 + $0x8] sm:$0xff]
          %v873 = vld [vmem:[%s870 + $0x10] sm:$0xff]
          %v875 = vsel %vm232, %v868, 0
          %v878 = vsel %vm232, %v869, 0
          %880 = vmatpush.msra.mxu0 0.0
          %881 = vmatpush.msra.mxu0 0.0
          %882 = vmatpush.msra.mxu0 0.0
          %883 = vmatpush.msra.mxu0 0.0
          %884 = vmatpush.msra.mxu0 0.0
          %885 = vmatpush.msra.mxu0 0.0
          %886 = vmatpush.msra.mxu0 0.0
          %887 = vmatpush.msra.mxu0 0.0
          %888 = vmatpush.msra.mxu0 0.0
          %889 = vmatpush.msra.mxu0 0.0
          %890 = vmatpush.msra.mxu0 0.0
          %891 = vmatpush.msra.mxu0 0.0
          %892 = vmatpush.msra.mxu0 0.0
          %v893 = vand.u32 %v873, 4294901760
          %894 = vmatpush.msra.mxu0 %v893
          %v895 = vand.u32 %v872, 4294901760
          %896 = vmatpush.msra.mxu0 %v895
          %v897 = vand.u32 %v871, 4294901760
          %898 = vmatpush.msra.mxu0 %v897
          %v899 = vand.u32 %v875, 4294901760
          %v900 = vsub.f32 %v875, %v899
          %v901 = vand.u32 %v900, 4294901760
          %v902 = vsub.f32 %v900, %v901
          %v903 = vand.u32 %v902, 4294901760
          %904 = vmatmul.f32.gmra.mxu0 %v903
          %v905 = vpop.f32.mrf.mxu0
          %v906 = vadd.f32 0.0, %v905
          %v907 = vand.u32 %v878, 4294901760
          %v908 = vsub.f32 %v878, %v907
          %v909 = vand.u32 %v908, 4294901760
          %v910 = vsub.f32 %v908, %v909
          %v911 = vand.u32 %v910, 4294901760
          %912 = vmatmul.f32.gmra.mxu0 %v911
          %v913 = vpop.f32.mrf.mxu0
          %v914 = vadd.f32 0.0, %v913
          %915 = vdwg.mxu0
          %916 = vmatpush.msra.mxu0 0.0
          %917 = vmatpush.msra.mxu0 0.0
          %918 = vmatpush.msra.mxu0 0.0
          %919 = vmatpush.msra.mxu0 0.0
          %920 = vmatpush.msra.mxu0 0.0
          %921 = vmatpush.msra.mxu0 0.0
          %922 = vmatpush.msra.mxu0 0.0
          %923 = vmatpush.msra.mxu0 0.0
          %924 = vmatpush.msra.mxu0 0.0
          %925 = vmatpush.msra.mxu0 0.0
          %926 = vmatpush.msra.mxu0 0.0
          %927 = vmatpush.msra.mxu0 0.0
          %928 = vmatpush.msra.mxu0 0.0
          %v929 = vand.u32 %v873, 4294901760
          %v930 = vsub.f32 %v873, %v929
          %v931 = vand.u32 %v930, 4294901760
          %v932 = vsub.f32 %v930, %v931
          %v933 = vand.u32 %v932, 4294901760
          %934 = vmatpush.msra.mxu0 %v933
          %v935 = vand.u32 %v872, 4294901760
          %v936 = vsub.f32 %v872, %v935
          %v937 = vand.u32 %v936, 4294901760
          %v938 = vsub.f32 %v936, %v937
          %v939 = vand.u32 %v938, 4294901760
          %940 = vmatpush.msra.mxu0 %v939
          %v941 = vand.u32 %v871, 4294901760
          %v942 = vsub.f32 %v871, %v941
          %v943 = vand.u32 %v942, 4294901760
          %v944 = vsub.f32 %v942, %v943
          %v945 = vand.u32 %v944, 4294901760
          %946 = vmatpush.msra.mxu0 %v945
          %v947 = vand.u32 %v875, 4294901760
          %948 = vmatmul.f32.gmra.mxu0 %v947
          %v949 = vpop.f32.mrf.mxu0
          %v950 = vadd.f32 %v906, %v949
          %v951 = vand.u32 %v878, 4294901760
          %952 = vmatmul.f32.gmra.mxu0 %v951
          %v953 = vpop.f32.mrf.mxu0
          %v954 = vadd.f32 %v914, %v953
          %955 = vdwg.mxu0
          %956 = vmatpush.msra.mxu0 0.0
          %957 = vmatpush.msra.mxu0 0.0
          %958 = vmatpush.msra.mxu0 0.0
          %959 = vmatpush.msra.mxu0 0.0
          %960 = vmatpush.msra.mxu0 0.0
          %961 = vmatpush.msra.mxu0 0.0
          %962 = vmatpush.msra.mxu0 0.0
          %963 = vmatpush.msra.mxu0 0.0
          %964 = vmatpush.msra.mxu0 0.0
          %965 = vmatpush.msra.mxu0 0.0
          %966 = vmatpush.msra.mxu0 0.0
          %967 = vmatpush.msra.mxu0 0.0
          %968 = vmatpush.msra.mxu0 0.0
          %v969 = vand.u32 %v873, 4294901760
          %v970 = vsub.f32 %v873, %v969
          %971 = vmatpush.msra.mxu0 %v970
          %v972 = vand.u32 %v872, 4294901760
          %v973 = vsub.f32 %v872, %v972
          %974 = vmatpush.msra.mxu0 %v973
          %v975 = vand.u32 %v871, 4294901760
          %v976 = vsub.f32 %v871, %v975
          %977 = vmatpush.msra.mxu0 %v976
          %v978 = vand.u32 %v875, 4294901760
          %v979 = vsub.f32 %v875, %v978
          %980 = vmatmul.f32.gmra.mxu0 %v979
          %v981 = vpop.f32.mrf.mxu0
          %v982 = vadd.f32 %v950, %v981
          %v983 = vand.u32 %v878, 4294901760
          %v984 = vsub.f32 %v878, %v983
          %985 = vmatmul.f32.gmra.mxu0 %v984
          %v986 = vpop.f32.mrf.mxu0
          %v987 = vadd.f32 %v954, %v986
          %988 = vdwg.mxu0
          %989 = vmatpush.msra.mxu0 0.0
          %990 = vmatpush.msra.mxu0 0.0
          %991 = vmatpush.msra.mxu0 0.0
          %992 = vmatpush.msra.mxu0 0.0
          %993 = vmatpush.msra.mxu0 0.0
          %994 = vmatpush.msra.mxu0 0.0
          %995 = vmatpush.msra.mxu0 0.0
          %996 = vmatpush.msra.mxu0 0.0
          %997 = vmatpush.msra.mxu0 0.0
          %998 = vmatpush.msra.mxu0 0.0
          %999 = vmatpush.msra.mxu0 0.0
          %1000 = vmatpush.msra.mxu0 0.0
          %1001 = vmatpush.msra.mxu0 0.0
          %v1002 = vand.u32 %v873, 4294901760
          %1003 = vmatpush.msra.mxu0 %v1002
          %v1004 = vand.u32 %v872, 4294901760
          %1005 = vmatpush.msra.mxu0 %v1004
          %v1006 = vand.u32 %v871, 4294901760
          %1007 = vmatpush.msra.mxu0 %v1006
          %v1008 = vand.u32 %v875, 4294901760
          %v1009 = vsub.f32 %v875, %v1008
          %v1010 = vand.u32 %v1009, 4294901760
          %1011 = vmatmul.f32.gmra.mxu0 %v1010
          %v1012 = vpop.f32.mrf.mxu0
          %v1013 = vadd.f32 %v982, %v1012
          %v1014 = vand.u32 %v878, 4294901760
          %v1015 = vsub.f32 %v878, %v1014
          %v1016 = vand.u32 %v1015, 4294901760
          %1017 = vmatmul.f32.gmra.mxu0 %v1016
          %v1018 = vpop.f32.mrf.mxu0
          %v1019 = vadd.f32 %v987, %v1018
          %1020 = vdwg.mxu0
          %1021 = vmatpush.msra.mxu0 0.0
          %1022 = vmatpush.msra.mxu0 0.0
          %1023 = vmatpush.msra.mxu0 0.0
          %1024 = vmatpush.msra.mxu0 0.0
          %1025 = vmatpush.msra.mxu0 0.0
          %1026 = vmatpush.msra.mxu0 0.0
          %1027 = vmatpush.msra.mxu0 0.0
          %1028 = vmatpush.msra.mxu0 0.0
          %1029 = vmatpush.msra.mxu0 0.0
          %1030 = vmatpush.msra.mxu0 0.0
          %1031 = vmatpush.msra.mxu0 0.0
          %1032 = vmatpush.msra.mxu0 0.0
          %1033 = vmatpush.msra.mxu0 0.0
          %v1034 = vand.u32 %v873, 4294901760
          %v1035 = vsub.f32 %v873, %v1034
          %v1036 = vand.u32 %v1035, 4294901760
          %1037 = vmatpush.msra.mxu0 %v1036
          %v1038 = vand.u32 %v872, 4294901760
          %v1039 = vsub.f32 %v872, %v1038
          %v1040 = vand.u32 %v1039, 4294901760
          %1041 = vmatpush.msra.mxu0 %v1040
          %v1042 = vand.u32 %v871, 4294901760
          %v1043 = vsub.f32 %v871, %v1042
          %v1044 = vand.u32 %v1043, 4294901760
          %1045 = vmatpush.msra.mxu0 %v1044
          %v1046 = vand.u32 %v875, 4294901760
          %1047 = vmatmul.f32.gmra.mxu0 %v1046
          %v1048 = vpop.f32.mrf.mxu0
          %v1049 = vadd.f32 %v1013, %v1048
          %v1050 = vand.u32 %v878, 4294901760
          %1051 = vmatmul.f32.gmra.mxu0 %v1050
          %v1052 = vpop.f32.mrf.mxu0
          %v1053 = vadd.f32 %v1019, %v1052
          %1054 = vdwg.mxu0
          %1055 = vmatpush.msra.mxu0 0.0
          %1056 = vmatpush.msra.mxu0 0.0
          %1057 = vmatpush.msra.mxu0 0.0
          %1058 = vmatpush.msra.mxu0 0.0
          %1059 = vmatpush.msra.mxu0 0.0
          %1060 = vmatpush.msra.mxu0 0.0
          %1061 = vmatpush.msra.mxu0 0.0
          %1062 = vmatpush.msra.mxu0 0.0
          %1063 = vmatpush.msra.mxu0 0.0
          %1064 = vmatpush.msra.mxu0 0.0
          %1065 = vmatpush.msra.mxu0 0.0
          %1066 = vmatpush.msra.mxu0 0.0
          %1067 = vmatpush.msra.mxu0 0.0
          %v1068 = vand.u32 %v873, 4294901760
          %1069 = vmatpush.msra.mxu0 %v1068
          %v1070 = vand.u32 %v872, 4294901760
          %1071 = vmatpush.msra.mxu0 %v1070
          %v1072 = vand.u32 %v871, 4294901760
          %1073 = vmatpush.msra.mxu0 %v1072
          %v1074 = vand.u32 %v875, 4294901760
          %1075 = vmatmul.f32.gmra.mxu0 %v1074
          %v1076 = vpop.f32.mrf.mxu0
          %v1077 = vadd.f32 %v1049, %v1076
          %v1078 = vand.u32 %v878, 4294901760
          %1079 = vmatmul.f32.gmra.mxu0 %v1078
          %v1080 = vpop.f32.mrf.mxu0
          %v1081 = vadd.f32 %v1053, %v1080
          %1082 = vdwg.mxu0
          %v1083 = vadd.f32 %v866, %v1077
          %v1084 = vadd.f32 %v867, %v1081
          %v1085 = vld [vmem:[%s170 + $0x4] sm:$0xff]
          %v1086 = vld [vmem:[%s170 + $0xc] sm:$0xff]
          %s1087 = scalar_lea.vmem %s175, 96
          %v1088 = vld [vmem:[%s1087] sm:$0xff]
          %v1089 = vld [vmem:[%s1087 + $0x8] sm:$0xff]
          %v1090 = vld [vmem:[%s1087 + $0x10] sm:$0xff]
          %v1092 = vsel %vm232, %v1085, 0
          %v1095 = vsel %vm232, %v1086, 0
          %1097 = vmatpush.msra.mxu0 0.0
          %1098 = vmatpush.msra.mxu0 0.0
          %1099 = vmatpush.msra.mxu0 0.0
          %1100 = vmatpush.msra.mxu0 0.0
          %1101 = vmatpush.msra.mxu0 0.0
          %1102 = vmatpush.msra.mxu0 0.0
          %1103 = vmatpush.msra.mxu0 0.0
          %1104 = vmatpush.msra.mxu0 0.0
          %1105 = vmatpush.msra.mxu0 0.0
          %1106 = vmatpush.msra.mxu0 0.0
          %1107 = vmatpush.msra.mxu0 0.0
          %1108 = vmatpush.msra.mxu0 0.0
          %1109 = vmatpush.msra.mxu0 0.0
          %v1110 = vand.u32 %v1090, 4294901760
          %1111 = vmatpush.msra.mxu0 %v1110
          %v1112 = vand.u32 %v1089, 4294901760
          %1113 = vmatpush.msra.mxu0 %v1112
          %v1114 = vand.u32 %v1088, 4294901760
          %1115 = vmatpush.msra.mxu0 %v1114
          %v1116 = vand.u32 %v1092, 4294901760
          %v1117 = vsub.f32 %v1092, %v1116
          %v1118 = vand.u32 %v1117, 4294901760
          %v1119 = vsub.f32 %v1117, %v1118
          %v1120 = vand.u32 %v1119, 4294901760
          %1121 = vmatmul.f32.gmra.mxu0 %v1120
          %v1122 = vpop.f32.mrf.mxu0
          %v1123 = vadd.f32 0.0, %v1122
          %v1124 = vand.u32 %v1095, 4294901760
          %v1125 = vsub.f32 %v1095, %v1124
          %v1126 = vand.u32 %v1125, 4294901760
          %v1127 = vsub.f32 %v1125, %v1126
          %v1128 = vand.u32 %v1127, 4294901760
          %1129 = vmatmul.f32.gmra.mxu0 %v1128
          %v1130 = vpop.f32.mrf.mxu0
          %v1131 = vadd.f32 0.0, %v1130
          %1132 = vdwg.mxu0
          %1133 = vmatpush.msra.mxu0 0.0
          %1134 = vmatpush.msra.mxu0 0.0
          %1135 = vmatpush.msra.mxu0 0.0
          %1136 = vmatpush.msra.mxu0 0.0
          %1137 = vmatpush.msra.mxu0 0.0
          %1138 = vmatpush.msra.mxu0 0.0
          %1139 = vmatpush.msra.mxu0 0.0
          %1140 = vmatpush.msra.mxu0 0.0
          %1141 = vmatpush.msra.mxu0 0.0
          %1142 = vmatpush.msra.mxu0 0.0
          %1143 = vmatpush.msra.mxu0 0.0
          %1144 = vmatpush.msra.mxu0 0.0
          %1145 = vmatpush.msra.mxu0 0.0
          %v1146 = vand.u32 %v1090, 4294901760
          %v1147 = vsub.f32 %v1090, %v1146
          %v1148 = vand.u32 %v1147, 4294901760
          %v1149 = vsub.f32 %v1147, %v1148
          %v1150 = vand.u32 %v1149, 4294901760
          %1151 = vmatpush.msra.mxu0 %v1150
          %v1152 = vand.u32 %v1089, 4294901760
          %v1153 = vsub.f32 %v1089, %v1152
          %v1154 = vand.u32 %v1153, 4294901760
          %v1155 = vsub.f32 %v1153, %v1154
          %v1156 = vand.u32 %v1155, 4294901760
          %1157 = vmatpush.msra.mxu0 %v1156
          %v1158 = vand.u32 %v1088, 4294901760
          %v1159 = vsub.f32 %v1088, %v1158
          %v1160 = vand.u32 %v1159, 4294901760
          %v1161 = vsub.f32 %v1159, %v1160
          %v1162 = vand.u32 %v1161, 4294901760
          %1163 = vmatpush.msra.mxu0 %v1162
          %v1164 = vand.u32 %v1092, 4294901760
          %1165 = vmatmul.f32.gmra.mxu0 %v1164
          %v1166 = vpop.f32.mrf.mxu0
          %v1167 = vadd.f32 %v1123, %v1166
          %v1168 = vand.u32 %v1095, 4294901760
          %1169 = vmatmul.f32.gmra.mxu0 %v1168
          %v1170 = vpop.f32.mrf.mxu0
          %v1171 = vadd.f32 %v1131, %v1170
          %1172 = vdwg.mxu0
          %1173 = vmatpush.msra.mxu0 0.0
          %1174 = vmatpush.msra.mxu0 0.0
          %1175 = vmatpush.msra.mxu0 0.0
          %1176 = vmatpush.msra.mxu0 0.0
          %1177 = vmatpush.msra.mxu0 0.0
          %1178 = vmatpush.msra.mxu0 0.0
          %1179 = vmatpush.msra.mxu0 0.0
          %1180 = vmatpush.msra.mxu0 0.0
          %1181 = vmatpush.msra.mxu0 0.0
          %1182 = vmatpush.msra.mxu0 0.0
          %1183 = vmatpush.msra.mxu0 0.0
          %1184 = vmatpush.msra.mxu0 0.0
          %1185 = vmatpush.msra.mxu0 0.0
          %v1186 = vand.u32 %v1090, 4294901760
          %v1187 = vsub.f32 %v1090, %v1186
          %1188 = vmatpush.msra.mxu0 %v1187
          %v1189 = vand.u32 %v1089, 4294901760
          %v1190 = vsub.f32 %v1089, %v1189
          %1191 = vmatpush.msra.mxu0 %v1190
          %v1192 = vand.u32 %v1088, 4294901760
          %v1193 = vsub.f32 %v1088, %v1192
          %1194 = vmatpush.msra.mxu0 %v1193
          %v1195 = vand.u32 %v1092, 4294901760
          %v1196 = vsub.f32 %v1092, %v1195
          %1197 = vmatmul.f32.gmra.mxu0 %v1196
          %v1198 = vpop.f32.mrf.mxu0
          %v1199 = vadd.f32 %v1167, %v1198
          %v1200 = vand.u32 %v1095, 4294901760
          %v1201 = vsub.f32 %v1095, %v1200
          %1202 = vmatmul.f32.gmra.mxu0 %v1201
          %v1203 = vpop.f32.mrf.mxu0
          %v1204 = vadd.f32 %v1171, %v1203
          %1205 = vdwg.mxu0
          %1206 = vmatpush.msra.mxu0 0.0
          %1207 = vmatpush.msra.mxu0 0.0
          %1208 = vmatpush.msra.mxu0 0.0
          %1209 = vmatpush.msra.mxu0 0.0
          %1210 = vmatpush.msra.mxu0 0.0
          %1211 = vmatpush.msra.mxu0 0.0
          %1212 = vmatpush.msra.mxu0 0.0
          %1213 = vmatpush.msra.mxu0 0.0
          %1214 = vmatpush.msra.mxu0 0.0
          %1215 = vmatpush.msra.mxu0 0.0
          %1216 = vmatpush.msra.mxu0 0.0
          %1217 = vmatpush.msra.mxu0 0.0
          %1218 = vmatpush.msra.mxu0 0.0
          %v1219 = vand.u32 %v1090, 4294901760
          %1220 = vmatpush.msra.mxu0 %v1219
          %v1221 = vand.u32 %v1089, 4294901760
          %1222 = vmatpush.msra.mxu0 %v1221
          %v1223 = vand.u32 %v1088, 4294901760
          %1224 = vmatpush.msra.mxu0 %v1223
          %v1225 = vand.u32 %v1092, 4294901760
          %v1226 = vsub.f32 %v1092, %v1225
          %v1227 = vand.u32 %v1226, 4294901760
          %1228 = vmatmul.f32.gmra.mxu0 %v1227
          %v1229 = vpop.f32.mrf.mxu0
          %v1230 = vadd.f32 %v1199, %v1229
          %v1231 = vand.u32 %v1095, 4294901760
          %v1232 = vsub.f32 %v1095, %v1231
          %v1233 = vand.u32 %v1232, 4294901760
          %1234 = vmatmul.f32.gmra.mxu0 %v1233
          %v1235 = vpop.f32.mrf.mxu0
          %v1236 = vadd.f32 %v1204, %v1235
          %1237 = vdwg.mxu0
          %1238 = vmatpush.msra.mxu0 0.0
          %1239 = vmatpush.msra.mxu0 0.0
          %1240 = vmatpush.msra.mxu0 0.0
          %1241 = vmatpush.msra.mxu0 0.0
          %1242 = vmatpush.msra.mxu0 0.0
          %1243 = vmatpush.msra.mxu0 0.0
          %1244 = vmatpush.msra.mxu0 0.0
          %1245 = vmatpush.msra.mxu0 0.0
          %1246 = vmatpush.msra.mxu0 0.0
          %1247 = vmatpush.msra.mxu0 0.0
          %1248 = vmatpush.msra.mxu0 0.0
          %1249 = vmatpush.msra.mxu0 0.0
          %1250 = vmatpush.msra.mxu0 0.0
          %v1251 = vand.u32 %v1090, 4294901760
          %v1252 = vsub.f32 %v1090, %v1251
          %v1253 = vand.u32 %v1252, 4294901760
          %1254 = vmatpush.msra.mxu0 %v1253
          %v1255 = vand.u32 %v1089, 4294901760
          %v1256 = vsub.f32 %v1089, %v1255
          %v1257 = vand.u32 %v1256, 4294901760
          %1258 = vmatpush.msra.mxu0 %v1257
          %v1259 = vand.u32 %v1088, 4294901760
          %v1260 = vsub.f32 %v1088, %v1259
          %v1261 = vand.u32 %v1260, 4294901760
          %1262 = vmatpush.msra.mxu0 %v1261
          %v1263 = vand.u32 %v1092, 4294901760
          %1264 = vmatmul.f32.gmra.mxu0 %v1263
          %v1265 = vpop.f32.mrf.mxu0
          %v1266 = vadd.f32 %v1230, %v1265
          %v1267 = vand.u32 %v1095, 4294901760
          %1268 = vmatmul.f32.gmra.mxu0 %v1267
          %v1269 = vpop.f32.mrf.mxu0
          %v1270 = vadd.f32 %v1236, %v1269
          %1271 = vdwg.mxu0
          %1272 = vmatpush.msra.mxu0 0.0
          %1273 = vmatpush.msra.mxu0 0.0
          %1274 = vmatpush.msra.mxu0 0.0
          %1275 = vmatpush.msra.mxu0 0.0
          %1276 = vmatpush.msra.mxu0 0.0
          %1277 = vmatpush.msra.mxu0 0.0
          %1278 = vmatpush.msra.mxu0 0.0
          %1279 = vmatpush.msra.mxu0 0.0
          %1280 = vmatpush.msra.mxu0 0.0
          %1281 = vmatpush.msra.mxu0 0.0
          %1282 = vmatpush.msra.mxu0 0.0
          %1283 = vmatpush.msra.mxu0 0.0
          %1284 = vmatpush.msra.mxu0 0.0
          %v1285 = vand.u32 %v1090, 4294901760
          %1286 = vmatpush.msra.mxu0 %v1285
          %v1287 = vand.u32 %v1089, 4294901760
          %1288 = vmatpush.msra.mxu0 %v1287
          %v1289 = vand.u32 %v1088, 4294901760
          %1290 = vmatpush.msra.mxu0 %v1289
          %v1291 = vand.u32 %v1092, 4294901760
          %1292 = vmatmul.f32.gmra.mxu0 %v1291
          %v1293 = vpop.f32.mrf.mxu0
          %v1294 = vadd.f32 %v1266, %v1293
          %v1295 = vand.u32 %v1095, 4294901760
          %1296 = vmatmul.f32.gmra.mxu0 %v1295
          %v1297 = vpop.f32.mrf.mxu0
          %v1298 = vadd.f32 %v1270, %v1297
          %1299 = vdwg.mxu0
          %v1300 = vadd.f32 %v1083, %v1294
          %v1301 = vadd.f32 %v1084, %v1298
          %v1302 = vld [vmem:[%s170 + $0x5] sm:$0xff]
          %v1303 = vld [vmem:[%s170 + $0xd] sm:$0xff]
          %s1304 = scalar_lea.vmem %s175, 120
          %v1305 = vld [vmem:[%s1304] sm:$0xff]
          %v1306 = vld [vmem:[%s1304 + $0x8] sm:$0xff]
          %v1307 = vld [vmem:[%s1304 + $0x10] sm:$0xff]
          %v1309 = vsel %vm232, %v1302, 0
          %v1312 = vsel %vm232, %v1303, 0
          %1314 = vmatpush.msra.mxu0 0.0
          %1315 = vmatpush.msra.mxu0 0.0
          %1316 = vmatpush.msra.mxu0 0.0
          %1317 = vmatpush.msra.mxu0 0.0
          %1318 = vmatpush.msra.mxu0 0.0
          %1319 = vmatpush.msra.mxu0 0.0
          %1320 = vmatpush.msra.mxu0 0.0
          %1321 = vmatpush.msra.mxu0 0.0
          %1322 = vmatpush.msra.mxu0 0.0
          %1323 = vmatpush.msra.mxu0 0.0
          %1324 = vmatpush.msra.mxu0 0.0
          %1325 = vmatpush.msra.mxu0 0.0
          %1326 = vmatpush.msra.mxu0 0.0
          %v1327 = vand.u32 %v1307, 4294901760
          %1328 = vmatpush.msra.mxu0 %v1327
          %v1329 = vand.u32 %v1306, 4294901760
          %1330 = vmatpush.msra.mxu0 %v1329
          %v1331 = vand.u32 %v1305, 4294901760
          %1332 = vmatpush.msra.mxu0 %v1331
          %v1333 = vand.u32 %v1309, 4294901760
          %v1334 = vsub.f32 %v1309, %v1333
          %v1335 = vand.u32 %v1334, 4294901760
          %v1336 = vsub.f32 %v1334, %v1335
          %v1337 = vand.u32 %v1336, 4294901760
          %1338 = vmatmul.f32.gmra.mxu0 %v1337
          %v1339 = vpop.f32.mrf.mxu0
          %v1340 = vadd.f32 0.0, %v1339
          %v1341 = vand.u32 %v1312, 4294901760
          %v1342 = vsub.f32 %v1312, %v1341
          %v1343 = vand.u32 %v1342, 4294901760
          %v1344 = vsub.f32 %v1342, %v1343
          %v1345 = vand.u32 %v1344, 4294901760
          %1346 = vmatmul.f32.gmra.mxu0 %v1345
          %v1347 = vpop.f32.mrf.mxu0
          %v1348 = vadd.f32 0.0, %v1347
          %1349 = vdwg.mxu0
          %1350 = vmatpush.msra.mxu0 0.0
          %1351 = vmatpush.msra.mxu0 0.0
          %1352 = vmatpush.msra.mxu0 0.0
          %1353 = vmatpush.msra.mxu0 0.0
          %1354 = vmatpush.msra.mxu0 0.0
          %1355 = vmatpush.msra.mxu0 0.0
          %1356 = vmatpush.msra.mxu0 0.0
          %1357 = vmatpush.msra.mxu0 0.0
          %1358 = vmatpush.msra.mxu0 0.0
          %1359 = vmatpush.msra.mxu0 0.0
          %1360 = vmatpush.msra.mxu0 0.0
          %1361 = vmatpush.msra.mxu0 0.0
          %1362 = vmatpush.msra.mxu0 0.0
          %v1363 = vand.u32 %v1307, 4294901760
          %v1364 = vsub.f32 %v1307, %v1363
          %v1365 = vand.u32 %v1364, 4294901760
          %v1366 = vsub.f32 %v1364, %v1365
          %v1367 = vand.u32 %v1366, 4294901760
          %1368 = vmatpush.msra.mxu0 %v1367
          %v1369 = vand.u32 %v1306, 4294901760
          %v1370 = vsub.f32 %v1306, %v1369
          %v1371 = vand.u32 %v1370, 4294901760
          %v1372 = vsub.f32 %v1370, %v1371
          %v1373 = vand.u32 %v1372, 4294901760
          %1374 = vmatpush.msra.mxu0 %v1373
          %v1375 = vand.u32 %v1305, 4294901760
          %v1376 = vsub.f32 %v1305, %v1375
          %v1377 = vand.u32 %v1376, 4294901760
          %v1378 = vsub.f32 %v1376, %v1377
          %v1379 = vand.u32 %v1378, 4294901760
          %1380 = vmatpush.msra.mxu0 %v1379
          %v1381 = vand.u32 %v1309, 4294901760
          %1382 = vmatmul.f32.gmra.mxu0 %v1381
          %v1383 = vpop.f32.mrf.mxu0
          %v1384 = vadd.f32 %v1340, %v1383
          %v1385 = vand.u32 %v1312, 4294901760
          %1386 = vmatmul.f32.gmra.mxu0 %v1385
          %v1387 = vpop.f32.mrf.mxu0
          %v1388 = vadd.f32 %v1348, %v1387
          %1389 = vdwg.mxu0
          %1390 = vmatpush.msra.mxu0 0.0
          %1391 = vmatpush.msra.mxu0 0.0
          %1392 = vmatpush.msra.mxu0 0.0
          %1393 = vmatpush.msra.mxu0 0.0
          %1394 = vmatpush.msra.mxu0 0.0
          %1395 = vmatpush.msra.mxu0 0.0
          %1396 = vmatpush.msra.mxu0 0.0
          %1397 = vmatpush.msra.mxu0 0.0
          %1398 = vmatpush.msra.mxu0 0.0
          %1399 = vmatpush.msra.mxu0 0.0
          %1400 = vmatpush.msra.mxu0 0.0
          %1401 = vmatpush.msra.mxu0 0.0
          %1402 = vmatpush.msra.mxu0 0.0
          %v1403 = vand.u32 %v1307, 4294901760
          %v1404 = vsub.f32 %v1307, %v1403
          %1405 = vmatpush.msra.mxu0 %v1404
          %v1406 = vand.u32 %v1306, 4294901760
          %v1407 = vsub.f32 %v1306, %v1406
          %1408 = vmatpush.msra.mxu0 %v1407
          %v1409 = vand.u32 %v1305, 4294901760
          %v1410 = vsub.f32 %v1305, %v1409
          %1411 = vmatpush.msra.mxu0 %v1410
          %v1412 = vand.u32 %v1309, 4294901760
          %v1413 = vsub.f32 %v1309, %v1412
          %1414 = vmatmul.f32.gmra.mxu0 %v1413
          %v1415 = vpop.f32.mrf.mxu0
          %v1416 = vadd.f32 %v1384, %v1415
          %v1417 = vand.u32 %v1312, 4294901760
          %v1418 = vsub.f32 %v1312, %v1417
          %1419 = vmatmul.f32.gmra.mxu0 %v1418
          %v1420 = vpop.f32.mrf.mxu0
          %v1421 = vadd.f32 %v1388, %v1420
          %1422 = vdwg.mxu0
          %1423 = vmatpush.msra.mxu0 0.0
          %1424 = vmatpush.msra.mxu0 0.0
          %1425 = vmatpush.msra.mxu0 0.0
          %1426 = vmatpush.msra.mxu0 0.0
          %1427 = vmatpush.msra.mxu0 0.0
          %1428 = vmatpush.msra.mxu0 0.0
          %1429 = vmatpush.msra.mxu0 0.0
          %1430 = vmatpush.msra.mxu0 0.0
          %1431 = vmatpush.msra.mxu0 0.0
          %1432 = vmatpush.msra.mxu0 0.0
          %1433 = vmatpush.msra.mxu0 0.0
          %1434 = vmatpush.msra.mxu0 0.0
          %1435 = vmatpush.msra.mxu0 0.0
          %v1436 = vand.u32 %v1307, 4294901760
          %1437 = vmatpush.msra.mxu0 %v1436
          %v1438 = vand.u32 %v1306, 4294901760
          %1439 = vmatpush.msra.mxu0 %v1438
          %v1440 = vand.u32 %v1305, 4294901760
          %1441 = vmatpush.msra.mxu0 %v1440
          %v1442 = vand.u32 %v1309, 4294901760
          %v1443 = vsub.f32 %v1309, %v1442
          %v1444 = vand.u32 %v1443, 4294901760
          %1445 = vmatmul.f32.gmra.mxu0 %v1444
          %v1446 = vpop.f32.mrf.mxu0
          %v1447 = vadd.f32 %v1416, %v1446
          %v1448 = vand.u32 %v1312, 4294901760
          %v1449 = vsub.f32 %v1312, %v1448
          %v1450 = vand.u32 %v1449, 4294901760
          %1451 = vmatmul.f32.gmra.mxu0 %v1450
          %v1452 = vpop.f32.mrf.mxu0
          %v1453 = vadd.f32 %v1421, %v1452
          %1454 = vdwg.mxu0
          %1455 = vmatpush.msra.mxu0 0.0
          %1456 = vmatpush.msra.mxu0 0.0
          %1457 = vmatpush.msra.mxu0 0.0
          %1458 = vmatpush.msra.mxu0 0.0
          %1459 = vmatpush.msra.mxu0 0.0
          %1460 = vmatpush.msra.mxu0 0.0
          %1461 = vmatpush.msra.mxu0 0.0
          %1462 = vmatpush.msra.mxu0 0.0
          %1463 = vmatpush.msra.mxu0 0.0
          %1464 = vmatpush.msra.mxu0 0.0
          %1465 = vmatpush.msra.mxu0 0.0
          %1466 = vmatpush.msra.mxu0 0.0
          %1467 = vmatpush.msra.mxu0 0.0
          %v1468 = vand.u32 %v1307, 4294901760
          %v1469 = vsub.f32 %v1307, %v1468
          %v1470 = vand.u32 %v1469, 4294901760
          %1471 = vmatpush.msra.mxu0 %v1470
          %v1472 = vand.u32 %v1306, 4294901760
          %v1473 = vsub.f32 %v1306, %v1472
          %v1474 = vand.u32 %v1473, 4294901760
          %1475 = vmatpush.msra.mxu0 %v1474
          %v1476 = vand.u32 %v1305, 4294901760
          %v1477 = vsub.f32 %v1305, %v1476
          %v1478 = vand.u32 %v1477, 4294901760
          %1479 = vmatpush.msra.mxu0 %v1478
          %v1480 = vand.u32 %v1309, 4294901760
          %1481 = vmatmul.f32.gmra.mxu0 %v1480
          %v1482 = vpop.f32.mrf.mxu0
          %v1483 = vadd.f32 %v1447, %v1482
          %v1484 = vand.u32 %v1312, 4294901760
          %1485 = vmatmul.f32.gmra.mxu0 %v1484
          %v1486 = vpop.f32.mrf.mxu0
          %v1487 = vadd.f32 %v1453, %v1486
          %1488 = vdwg.mxu0
          %1489 = vmatpush.msra.mxu0 0.0
          %1490 = vmatpush.msra.mxu0 0.0
          %1491 = vmatpush.msra.mxu0 0.0
          %1492 = vmatpush.msra.mxu0 0.0
          %1493 = vmatpush.msra.mxu0 0.0
          %1494 = vmatpush.msra.mxu0 0.0
          %1495 = vmatpush.msra.mxu0 0.0
          %1496 = vmatpush.msra.mxu0 0.0
          %1497 = vmatpush.msra.mxu0 0.0
          %1498 = vmatpush.msra.mxu0 0.0
          %1499 = vmatpush.msra.mxu0 0.0
          %1500 = vmatpush.msra.mxu0 0.0
          %1501 = vmatpush.msra.mxu0 0.0
          %v1502 = vand.u32 %v1307, 4294901760
          %1503 = vmatpush.msra.mxu0 %v1502
          %v1504 = vand.u32 %v1306, 4294901760
          %1505 = vmatpush.msra.mxu0 %v1504
          %v1506 = vand.u32 %v1305, 4294901760
          %1507 = vmatpush.msra.mxu0 %v1506
          %v1508 = vand.u32 %v1309, 4294901760
          %1509 = vmatmul.f32.gmra.mxu0 %v1508
          %v1510 = vpop.f32.mrf.mxu0
          %v1511 = vadd.f32 %v1483, %v1510
          %v1512 = vand.u32 %v1312, 4294901760
          %1513 = vmatmul.f32.gmra.mxu0 %v1512
          %v1514 = vpop.f32.mrf.mxu0
          %v1515 = vadd.f32 %v1487, %v1514
          %1516 = vdwg.mxu0
          %v1517 = vadd.f32 %v1300, %v1511
          %v1518 = vadd.f32 %v1301, %v1515
          %v1519 = vld [vmem:[%s170 + $0x6] sm:$0xff]
          %v1520 = vld [vmem:[%s170 + $0xe] sm:$0xff]
          %s1521 = scalar_lea.vmem %s175, 144
          %v1522 = vld [vmem:[%s1521] sm:$0xff]
          %v1523 = vld [vmem:[%s1521 + $0x8] sm:$0xff]
          %v1524 = vld [vmem:[%s1521 + $0x10] sm:$0xff]
          %v1526 = vsel %vm232, %v1519, 0
          %v1529 = vsel %vm232, %v1520, 0
          %1531 = vmatpush.msra.mxu0 0.0
          %1532 = vmatpush.msra.mxu0 0.0
          %1533 = vmatpush.msra.mxu0 0.0
          %1534 = vmatpush.msra.mxu0 0.0
          %1535 = vmatpush.msra.mxu0 0.0
          %1536 = vmatpush.msra.mxu0 0.0
          %1537 = vmatpush.msra.mxu0 0.0
          %1538 = vmatpush.msra.mxu0 0.0
          %1539 = vmatpush.msra.mxu0 0.0
          %1540 = vmatpush.msra.mxu0 0.0
          %1541 = vmatpush.msra.mxu0 0.0
          %1542 = vmatpush.msra.mxu0 0.0
          %1543 = vmatpush.msra.mxu0 0.0
          %v1544 = vand.u32 %v1524, 4294901760
          %1545 = vmatpush.msra.mxu0 %v1544
          %v1546 = vand.u32 %v1523, 4294901760
          %1547 = vmatpush.msra.mxu0 %v1546
          %v1548 = vand.u32 %v1522, 4294901760
          %1549 = vmatpush.msra.mxu0 %v1548
          %v1550 = vand.u32 %v1526, 4294901760
          %v1551 = vsub.f32 %v1526, %v1550
          %v1552 = vand.u32 %v1551, 4294901760
          %v1553 = vsub.f32 %v1551, %v1552
          %v1554 = vand.u32 %v1553, 4294901760
          %1555 = vmatmul.f32.gmra.mxu0 %v1554
          %v1556 = vpop.f32.mrf.mxu0
          %v1557 = vadd.f32 0.0, %v1556
          %v1558 = vand.u32 %v1529, 4294901760
          %v1559 = vsub.f32 %v1529, %v1558
          %v1560 = vand.u32 %v1559, 4294901760
          %v1561 = vsub.f32 %v1559, %v1560
          %v1562 = vand.u32 %v1561, 4294901760
          %1563 = vmatmul.f32.gmra.mxu0 %v1562
          %v1564 = vpop.f32.mrf.mxu0
          %v1565 = vadd.f32 0.0, %v1564
          %1566 = vdwg.mxu0
          %1567 = vmatpush.msra.mxu0 0.0
          %1568 = vmatpush.msra.mxu0 0.0
          %1569 = vmatpush.msra.mxu0 0.0
          %1570 = vmatpush.msra.mxu0 0.0
          %1571 = vmatpush.msra.mxu0 0.0
          %1572 = vmatpush.msra.mxu0 0.0
          %1573 = vmatpush.msra.mxu0 0.0
          %1574 = vmatpush.msra.mxu0 0.0
          %1575 = vmatpush.msra.mxu0 0.0
          %1576 = vmatpush.msra.mxu0 0.0
          %1577 = vmatpush.msra.mxu0 0.0
          %1578 = vmatpush.msra.mxu0 0.0
          %1579 = vmatpush.msra.mxu0 0.0
          %v1580 = vand.u32 %v1524, 4294901760
          %v1581 = vsub.f32 %v1524, %v1580
          %v1582 = vand.u32 %v1581, 4294901760
          %v1583 = vsub.f32 %v1581, %v1582
          %v1584 = vand.u32 %v1583, 4294901760
          %1585 = vmatpush.msra.mxu0 %v1584
          %v1586 = vand.u32 %v1523, 4294901760
          %v1587 = vsub.f32 %v1523, %v1586
          %v1588 = vand.u32 %v1587, 4294901760
          %v1589 = vsub.f32 %v1587, %v1588
          %v1590 = vand.u32 %v1589, 4294901760
          %1591 = vmatpush.msra.mxu0 %v1590
          %v1592 = vand.u32 %v1522, 4294901760
          %v1593 = vsub.f32 %v1522, %v1592
          %v1594 = vand.u32 %v1593, 4294901760
          %v1595 = vsub.f32 %v1593, %v1594
          %v1596 = vand.u32 %v1595, 4294901760
          %1597 = vmatpush.msra.mxu0 %v1596
          %v1598 = vand.u32 %v1526, 4294901760
          %1599 = vmatmul.f32.gmra.mxu0 %v1598
          %v1600 = vpop.f32.mrf.mxu0
          %v1601 = vadd.f32 %v1557, %v1600
          %v1602 = vand.u32 %v1529, 4294901760
          %1603 = vmatmul.f32.gmra.mxu0 %v1602
          %v1604 = vpop.f32.mrf.mxu0
          %v1605 = vadd.f32 %v1565, %v1604
          %1606 = vdwg.mxu0
          %1607 = vmatpush.msra.mxu0 0.0
          %1608 = vmatpush.msra.mxu0 0.0
          %1609 = vmatpush.msra.mxu0 0.0
          %1610 = vmatpush.msra.mxu0 0.0
          %1611 = vmatpush.msra.mxu0 0.0
          %1612 = vmatpush.msra.mxu0 0.0
          %1613 = vmatpush.msra.mxu0 0.0
          %1614 = vmatpush.msra.mxu0 0.0
          %1615 = vmatpush.msra.mxu0 0.0
          %1616 = vmatpush.msra.mxu0 0.0
          %1617 = vmatpush.msra.mxu0 0.0
          %1618 = vmatpush.msra.mxu0 0.0
          %1619 = vmatpush.msra.mxu0 0.0
          %v1620 = vand.u32 %v1524, 4294901760
          %v1621 = vsub.f32 %v1524, %v1620
          %1622 = vmatpush.msra.mxu0 %v1621
          %v1623 = vand.u32 %v1523, 4294901760
          %v1624 = vsub.f32 %v1523, %v1623
          %1625 = vmatpush.msra.mxu0 %v1624
          %v1626 = vand.u32 %v1522, 4294901760
          %v1627 = vsub.f32 %v1522, %v1626
          %1628 = vmatpush.msra.mxu0 %v1627
          %v1629 = vand.u32 %v1526, 4294901760
          %v1630 = vsub.f32 %v1526, %v1629
          %1631 = vmatmul.f32.gmra.mxu0 %v1630
          %v1632 = vpop.f32.mrf.mxu0
          %v1633 = vadd.f32 %v1601, %v1632
          %v1634 = vand.u32 %v1529, 4294901760
          %v1635 = vsub.f32 %v1529, %v1634
          %1636 = vmatmul.f32.gmra.mxu0 %v1635
          %v1637 = vpop.f32.mrf.mxu0
          %v1638 = vadd.f32 %v1605, %v1637
          %1639 = vdwg.mxu0
          %1640 = vmatpush.msra.mxu0 0.0
          %1641 = vmatpush.msra.mxu0 0.0
          %1642 = vmatpush.msra.mxu0 0.0
          %1643 = vmatpush.msra.mxu0 0.0
          %1644 = vmatpush.msra.mxu0 0.0
          %1645 = vmatpush.msra.mxu0 0.0
          %1646 = vmatpush.msra.mxu0 0.0
          %1647 = vmatpush.msra.mxu0 0.0
          %1648 = vmatpush.msra.mxu0 0.0
          %1649 = vmatpush.msra.mxu0 0.0
          %1650 = vmatpush.msra.mxu0 0.0
          %1651 = vmatpush.msra.mxu0 0.0
          %1652 = vmatpush.msra.mxu0 0.0
          %v1653 = vand.u32 %v1524, 4294901760
          %1654 = vmatpush.msra.mxu0 %v1653
          %v1655 = vand.u32 %v1523, 4294901760
          %1656 = vmatpush.msra.mxu0 %v1655
          %v1657 = vand.u32 %v1522, 4294901760
          %1658 = vmatpush.msra.mxu0 %v1657
          %v1659 = vand.u32 %v1526, 4294901760
          %v1660 = vsub.f32 %v1526, %v1659
          %v1661 = vand.u32 %v1660, 4294901760
          %1662 = vmatmul.f32.gmra.mxu0 %v1661
          %v1663 = vpop.f32.mrf.mxu0
          %v1664 = vadd.f32 %v1633, %v1663
          %v1665 = vand.u32 %v1529, 4294901760
          %v1666 = vsub.f32 %v1529, %v1665
          %v1667 = vand.u32 %v1666, 4294901760
          %1668 = vmatmul.f32.gmra.mxu0 %v1667
          %v1669 = vpop.f32.mrf.mxu0
          %v1670 = vadd.f32 %v1638, %v1669
          %1671 = vdwg.mxu0
          %1672 = vmatpush.msra.mxu0 0.0
          %1673 = vmatpush.msra.mxu0 0.0
          %1674 = vmatpush.msra.mxu0 0.0
          %1675 = vmatpush.msra.mxu0 0.0
          %1676 = vmatpush.msra.mxu0 0.0
          %1677 = vmatpush.msra.mxu0 0.0
          %1678 = vmatpush.msra.mxu0 0.0
          %1679 = vmatpush.msra.mxu0 0.0
          %1680 = vmatpush.msra.mxu0 0.0
          %1681 = vmatpush.msra.mxu0 0.0
          %1682 = vmatpush.msra.mxu0 0.0
          %1683 = vmatpush.msra.mxu0 0.0
          %1684 = vmatpush.msra.mxu0 0.0
          %v1685 = vand.u32 %v1524, 4294901760
          %v1686 = vsub.f32 %v1524, %v1685
          %v1687 = vand.u32 %v1686, 4294901760
          %1688 = vmatpush.msra.mxu0 %v1687
          %v1689 = vand.u32 %v1523, 4294901760
          %v1690 = vsub.f32 %v1523, %v1689
          %v1691 = vand.u32 %v1690, 4294901760
          %1692 = vmatpush.msra.mxu0 %v1691
          %v1693 = vand.u32 %v1522, 4294901760
          %v1694 = vsub.f32 %v1522, %v1693
          %v1695 = vand.u32 %v1694, 4294901760
          %1696 = vmatpush.msra.mxu0 %v1695
          %v1697 = vand.u32 %v1526, 4294901760
          %1698 = vmatmul.f32.gmra.mxu0 %v1697
          %v1699 = vpop.f32.mrf.mxu0
          %v1700 = vadd.f32 %v1664, %v1699
          %v1701 = vand.u32 %v1529, 4294901760
          %1702 = vmatmul.f32.gmra.mxu0 %v1701
          %v1703 = vpop.f32.mrf.mxu0
          %v1704 = vadd.f32 %v1670, %v1703
          %1705 = vdwg.mxu0
          %1706 = vmatpush.msra.mxu0 0.0
          %1707 = vmatpush.msra.mxu0 0.0
          %1708 = vmatpush.msra.mxu0 0.0
          %1709 = vmatpush.msra.mxu0 0.0
          %1710 = vmatpush.msra.mxu0 0.0
          %1711 = vmatpush.msra.mxu0 0.0
          %1712 = vmatpush.msra.mxu0 0.0
          %1713 = vmatpush.msra.mxu0 0.0
          %1714 = vmatpush.msra.mxu0 0.0
          %1715 = vmatpush.msra.mxu0 0.0
          %1716 = vmatpush.msra.mxu0 0.0
          %1717 = vmatpush.msra.mxu0 0.0
          %1718 = vmatpush.msra.mxu0 0.0
          %v1719 = vand.u32 %v1524, 4294901760
          %1720 = vmatpush.msra.mxu0 %v1719
          %v1721 = vand.u32 %v1523, 4294901760
          %1722 = vmatpush.msra.mxu0 %v1721
          %v1723 = vand.u32 %v1522, 4294901760
          %1724 = vmatpush.msra.mxu0 %v1723
          %v1725 = vand.u32 %v1526, 4294901760
          %1726 = vmatmul.f32.gmra.mxu0 %v1725
          %v1727 = vpop.f32.mrf.mxu0
          %v1728 = vadd.f32 %v1700, %v1727
          %v1729 = vand.u32 %v1529, 4294901760
          %1730 = vmatmul.f32.gmra.mxu0 %v1729
          %v1731 = vpop.f32.mrf.mxu0
          %v1732 = vadd.f32 %v1704, %v1731
          %1733 = vdwg.mxu0
          %v1734 = vadd.f32 %v1517, %v1728
          %v1735 = vadd.f32 %v1518, %v1732
          %v1736 = vld [vmem:[%s170 + $0x7] sm:$0xff]
          %v1737 = vld [vmem:[%s170 + $0xf] sm:$0xff]
          %s1738 = scalar_lea.vmem %s175, 168
          %v1739 = vld [vmem:[%s1738] sm:$0xff]
          %v1740 = vld [vmem:[%s1738 + $0x8] sm:$0xff]
          %v1741 = vld [vmem:[%s1738 + $0x10] sm:$0xff]
          %v1743 = vsel %vm232, %v1736, 0
          %v1746 = vsel %vm232, %v1737, 0
          %1748 = vmatpush.msra.mxu0 0.0
          %1749 = vmatpush.msra.mxu0 0.0
          %1750 = vmatpush.msra.mxu0 0.0
          %1751 = vmatpush.msra.mxu0 0.0
          %1752 = vmatpush.msra.mxu0 0.0
          %1753 = vmatpush.msra.mxu0 0.0
          %1754 = vmatpush.msra.mxu0 0.0
          %1755 = vmatpush.msra.mxu0 0.0
          %1756 = vmatpush.msra.mxu0 0.0
          %1757 = vmatpush.msra.mxu0 0.0
          %1758 = vmatpush.msra.mxu0 0.0
          %1759 = vmatpush.msra.mxu0 0.0
          %1760 = vmatpush.msra.mxu0 0.0
          %v1761 = vand.u32 %v1741, 4294901760
          %1762 = vmatpush.msra.mxu0 %v1761
          %v1763 = vand.u32 %v1740, 4294901760
          %1764 = vmatpush.msra.mxu0 %v1763
          %v1765 = vand.u32 %v1739, 4294901760
          %1766 = vmatpush.msra.mxu0 %v1765
          %v1767 = vand.u32 %v1743, 4294901760
          %v1768 = vsub.f32 %v1743, %v1767
          %v1769 = vand.u32 %v1768, 4294901760
          %v1770 = vsub.f32 %v1768, %v1769
          %v1771 = vand.u32 %v1770, 4294901760
          %1772 = vmatmul.f32.gmra.mxu0 %v1771
          %v1773 = vpop.f32.mrf.mxu0
          %v1774 = vadd.f32 0.0, %v1773
          %v1775 = vand.u32 %v1746, 4294901760
          %v1776 = vsub.f32 %v1746, %v1775
          %v1777 = vand.u32 %v1776, 4294901760
          %v1778 = vsub.f32 %v1776, %v1777
          %v1779 = vand.u32 %v1778, 4294901760
          %1780 = vmatmul.f32.gmra.mxu0 %v1779
          %v1781 = vpop.f32.mrf.mxu0
          %v1782 = vadd.f32 0.0, %v1781
          %1783 = vdwg.mxu0
          %1784 = vmatpush.msra.mxu0 0.0
          %1785 = vmatpush.msra.mxu0 0.0
          %1786 = vmatpush.msra.mxu0 0.0
          %1787 = vmatpush.msra.mxu0 0.0
          %1788 = vmatpush.msra.mxu0 0.0
          %1789 = vmatpush.msra.mxu0 0.0
          %1790 = vmatpush.msra.mxu0 0.0
          %1791 = vmatpush.msra.mxu0 0.0
          %1792 = vmatpush.msra.mxu0 0.0
          %1793 = vmatpush.msra.mxu0 0.0
          %1794 = vmatpush.msra.mxu0 0.0
          %1795 = vmatpush.msra.mxu0 0.0
          %1796 = vmatpush.msra.mxu0 0.0
          %v1797 = vand.u32 %v1741, 4294901760
          %v1798 = vsub.f32 %v1741, %v1797
          %v1799 = vand.u32 %v1798, 4294901760
          %v1800 = vsub.f32 %v1798, %v1799
          %v1801 = vand.u32 %v1800, 4294901760
          %1802 = vmatpush.msra.mxu0 %v1801
          %v1803 = vand.u32 %v1740, 4294901760
          %v1804 = vsub.f32 %v1740, %v1803
          %v1805 = vand.u32 %v1804, 4294901760
          %v1806 = vsub.f32 %v1804, %v1805
          %v1807 = vand.u32 %v1806, 4294901760
          %1808 = vmatpush.msra.mxu0 %v1807
          %v1809 = vand.u32 %v1739, 4294901760
          %v1810 = vsub.f32 %v1739, %v1809
          %v1811 = vand.u32 %v1810, 4294901760
          %v1812 = vsub.f32 %v1810, %v1811
          %v1813 = vand.u32 %v1812, 4294901760
          %1814 = vmatpush.msra.mxu0 %v1813
          %v1815 = vand.u32 %v1743, 4294901760
          %1816 = vmatmul.f32.gmra.mxu0 %v1815
          %v1817 = vpop.f32.mrf.mxu0
          %v1818 = vadd.f32 %v1774, %v1817
          %v1819 = vand.u32 %v1746, 4294901760
          %1820 = vmatmul.f32.gmra.mxu0 %v1819
          %v1821 = vpop.f32.mrf.mxu0
          %v1822 = vadd.f32 %v1782, %v1821
          %1823 = vdwg.mxu0
          %1824 = vmatpush.msra.mxu0 0.0
          %1825 = vmatpush.msra.mxu0 0.0
          %1826 = vmatpush.msra.mxu0 0.0
          %1827 = vmatpush.msra.mxu0 0.0
          %1828 = vmatpush.msra.mxu0 0.0
          %1829 = vmatpush.msra.mxu0 0.0
          %1830 = vmatpush.msra.mxu0 0.0
          %1831 = vmatpush.msra.mxu0 0.0
          %1832 = vmatpush.msra.mxu0 0.0
          %1833 = vmatpush.msra.mxu0 0.0
          %1834 = vmatpush.msra.mxu0 0.0
          %1835 = vmatpush.msra.mxu0 0.0
          %1836 = vmatpush.msra.mxu0 0.0
          %v1837 = vand.u32 %v1741, 4294901760
          %v1838 = vsub.f32 %v1741, %v1837
          %1839 = vmatpush.msra.mxu0 %v1838
          %v1840 = vand.u32 %v1740, 4294901760
          %v1841 = vsub.f32 %v1740, %v1840
          %1842 = vmatpush.msra.mxu0 %v1841
          %v1843 = vand.u32 %v1739, 4294901760
          %v1844 = vsub.f32 %v1739, %v1843
          %1845 = vmatpush.msra.mxu0 %v1844
          %v1846 = vand.u32 %v1743, 4294901760
          %v1847 = vsub.f32 %v1743, %v1846
          %1848 = vmatmul.f32.gmra.mxu0 %v1847
          %v1849 = vpop.f32.mrf.mxu0
          %v1850 = vadd.f32 %v1818, %v1849
          %v1851 = vand.u32 %v1746, 4294901760
          %v1852 = vsub.f32 %v1746, %v1851
          %1853 = vmatmul.f32.gmra.mxu0 %v1852
          %v1854 = vpop.f32.mrf.mxu0
          %v1855 = vadd.f32 %v1822, %v1854
          %1856 = vdwg.mxu0
          %1857 = vmatpush.msra.mxu0 0.0
          %1858 = vmatpush.msra.mxu0 0.0
          %1859 = vmatpush.msra.mxu0 0.0
          %1860 = vmatpush.msra.mxu0 0.0
          %1861 = vmatpush.msra.mxu0 0.0
          %1862 = vmatpush.msra.mxu0 0.0
          %1863 = vmatpush.msra.mxu0 0.0
          %1864 = vmatpush.msra.mxu0 0.0
          %1865 = vmatpush.msra.mxu0 0.0
          %1866 = vmatpush.msra.mxu0 0.0
          %1867 = vmatpush.msra.mxu0 0.0
          %1868 = vmatpush.msra.mxu0 0.0
          %1869 = vmatpush.msra.mxu0 0.0
          %v1870 = vand.u32 %v1741, 4294901760
          %1871 = vmatpush.msra.mxu0 %v1870
          %v1872 = vand.u32 %v1740, 4294901760
          %1873 = vmatpush.msra.mxu0 %v1872
          %v1874 = vand.u32 %v1739, 4294901760
          %1875 = vmatpush.msra.mxu0 %v1874
          %v1876 = vand.u32 %v1743, 4294901760
          %v1877 = vsub.f32 %v1743, %v1876
          %v1878 = vand.u32 %v1877, 4294901760
          %1879 = vmatmul.f32.gmra.mxu0 %v1878
          %v1880 = vpop.f32.mrf.mxu0
          %v1881 = vadd.f32 %v1850, %v1880
          %v1882 = vand.u32 %v1746, 4294901760
          %v1883 = vsub.f32 %v1746, %v1882
          %v1884 = vand.u32 %v1883, 4294901760
          %1885 = vmatmul.f32.gmra.mxu0 %v1884
          %v1886 = vpop.f32.mrf.mxu0
          %v1887 = vadd.f32 %v1855, %v1886
          %1888 = vdwg.mxu0
          %1889 = vmatpush.msra.mxu0 0.0
          %1890 = vmatpush.msra.mxu0 0.0
          %1891 = vmatpush.msra.mxu0 0.0
          %1892 = vmatpush.msra.mxu0 0.0
          %1893 = vmatpush.msra.mxu0 0.0
          %1894 = vmatpush.msra.mxu0 0.0
          %1895 = vmatpush.msra.mxu0 0.0
          %1896 = vmatpush.msra.mxu0 0.0
          %1897 = vmatpush.msra.mxu0 0.0
          %1898 = vmatpush.msra.mxu0 0.0
          %1899 = vmatpush.msra.mxu0 0.0
          %1900 = vmatpush.msra.mxu0 0.0
          %1901 = vmatpush.msra.mxu0 0.0
          %v1902 = vand.u32 %v1741, 4294901760
          %v1903 = vsub.f32 %v1741, %v1902
          %v1904 = vand.u32 %v1903, 4294901760
          %1905 = vmatpush.msra.mxu0 %v1904
          %v1906 = vand.u32 %v1740, 4294901760
          %v1907 = vsub.f32 %v1740, %v1906
          %v1908 = vand.u32 %v1907, 4294901760
          %1909 = vmatpush.msra.mxu0 %v1908
          %v1910 = vand.u32 %v1739, 4294901760
          %v1911 = vsub.f32 %v1739, %v1910
          %v1912 = vand.u32 %v1911, 4294901760
          %1913 = vmatpush.msra.mxu0 %v1912
          %v1914 = vand.u32 %v1743, 4294901760
          %1915 = vmatmul.f32.gmra.mxu0 %v1914
          %v1916 = vpop.f32.mrf.mxu0
          %v1917 = vadd.f32 %v1881, %v1916
          %v1918 = vand.u32 %v1746, 4294901760
          %1919 = vmatmul.f32.gmra.mxu0 %v1918
          %v1920 = vpop.f32.mrf.mxu0
          %v1921 = vadd.f32 %v1887, %v1920
          %1922 = vdwg.mxu0
          %1923 = vmatpush.msra.mxu0 0.0
          %1924 = vmatpush.msra.mxu0 0.0
          %1925 = vmatpush.msra.mxu0 0.0
          %1926 = vmatpush.msra.mxu0 0.0
          %1927 = vmatpush.msra.mxu0 0.0
          %1928 = vmatpush.msra.mxu0 0.0
          %1929 = vmatpush.msra.mxu0 0.0
          %1930 = vmatpush.msra.mxu0 0.0
          %1931 = vmatpush.msra.mxu0 0.0
          %1932 = vmatpush.msra.mxu0 0.0
          %1933 = vmatpush.msra.mxu0 0.0
          %1934 = vmatpush.msra.mxu0 0.0
          %1935 = vmatpush.msra.mxu0 0.0
          %v1936 = vand.u32 %v1741, 4294901760
          %1937 = vmatpush.msra.mxu0 %v1936
          %v1938 = vand.u32 %v1740, 4294901760
          %1939 = vmatpush.msra.mxu0 %v1938
          %v1940 = vand.u32 %v1739, 4294901760
          %1941 = vmatpush.msra.mxu0 %v1940
          %v1942 = vand.u32 %v1743, 4294901760
          %1943 = vmatmul.f32.gmra.mxu0 %v1942
          %v1944 = vpop.f32.mrf.mxu0
          %v1945 = vadd.f32 %v1917, %v1944
          %v1946 = vand.u32 %v1746, 4294901760
          %1947 = vmatmul.f32.gmra.mxu0 %v1946
          %v1948 = vpop.f32.mrf.mxu0
          %v1949 = vadd.f32 %v1921, %v1948
          %1950 = vdwg.mxu0
          %v1951 = vadd.f32 %v1734, %v1945
          %v1952 = vadd.f32 %v1735, %v1949
          %v1953 = vld [vmem:[%s170 + $0x8] sm:$0xff]
          %v1954 = vld [vmem:[%s170 + $0x10] sm:$0xff]
          %s1955 = scalar_lea.vmem %s175, 192
          %v1956 = vld [vmem:[%s1955] sm:$0xff]
          %v1957 = vld [vmem:[%s1955 + $0x8] sm:$0xff]
          %v1958 = vld [vmem:[%s1955 + $0x10] sm:$0xff]
          %v1960 = vsel %vm232, %v1953, 0
          %v1963 = vsel %vm232, %v1954, 0
          %1965 = vmatpush.msra.mxu0 0.0
          %1966 = vmatpush.msra.mxu0 0.0
          %1967 = vmatpush.msra.mxu0 0.0
          %1968 = vmatpush.msra.mxu0 0.0
          %1969 = vmatpush.msra.mxu0 0.0
          %1970 = vmatpush.msra.mxu0 0.0
          %1971 = vmatpush.msra.mxu0 0.0
          %1972 = vmatpush.msra.mxu0 0.0
          %1973 = vmatpush.msra.mxu0 0.0
          %1974 = vmatpush.msra.mxu0 0.0
          %1975 = vmatpush.msra.mxu0 0.0
          %1976 = vmatpush.msra.mxu0 0.0
          %1977 = vmatpush.msra.mxu0 0.0
          %v1978 = vand.u32 %v1958, 4294901760
          %1979 = vmatpush.msra.mxu0 %v1978
          %v1980 = vand.u32 %v1957, 4294901760
          %1981 = vmatpush.msra.mxu0 %v1980
          %v1982 = vand.u32 %v1956, 4294901760
          %1983 = vmatpush.msra.mxu0 %v1982
          %v1984 = vand.u32 %v1960, 4294901760
          %v1985 = vsub.f32 %v1960, %v1984
          %v1986 = vand.u32 %v1985, 4294901760
          %v1987 = vsub.f32 %v1985, %v1986
          %v1988 = vand.u32 %v1987, 4294901760
          %1989 = vmatmul.f32.gmra.mxu0 %v1988
          %v1990 = vpop.f32.mrf.mxu0
          %v1991 = vadd.f32 0.0, %v1990
          %v1992 = vand.u32 %v1963, 4294901760
          %v1993 = vsub.f32 %v1963, %v1992
          %v1994 = vand.u32 %v1993, 4294901760
          %v1995 = vsub.f32 %v1993, %v1994
          %v1996 = vand.u32 %v1995, 4294901760
          %1997 = vmatmul.f32.gmra.mxu0 %v1996
          %v1998 = vpop.f32.mrf.mxu0
          %v1999 = vadd.f32 0.0, %v1998
          %2000 = vdwg.mxu0
          %2001 = vmatpush.msra.mxu0 0.0
          %2002 = vmatpush.msra.mxu0 0.0
          %2003 = vmatpush.msra.mxu0 0.0
          %2004 = vmatpush.msra.mxu0 0.0
          %2005 = vmatpush.msra.mxu0 0.0
          %2006 = vmatpush.msra.mxu0 0.0
          %2007 = vmatpush.msra.mxu0 0.0
          %2008 = vmatpush.msra.mxu0 0.0
          %2009 = vmatpush.msra.mxu0 0.0
          %2010 = vmatpush.msra.mxu0 0.0
          %2011 = vmatpush.msra.mxu0 0.0
          %2012 = vmatpush.msra.mxu0 0.0
          %2013 = vmatpush.msra.mxu0 0.0
          %v2014 = vand.u32 %v1958, 4294901760
          %v2015 = vsub.f32 %v1958, %v2014
          %v2016 = vand.u32 %v2015, 4294901760
          %v2017 = vsub.f32 %v2015, %v2016
          %v2018 = vand.u32 %v2017, 4294901760
          %2019 = vmatpush.msra.mxu0 %v2018
          %v2020 = vand.u32 %v1957, 4294901760
          %v2021 = vsub.f32 %v1957, %v2020
          %v2022 = vand.u32 %v2021, 4294901760
          %v2023 = vsub.f32 %v2021, %v2022
          %v2024 = vand.u32 %v2023, 4294901760
          %2025 = vmatpush.msra.mxu0 %v2024
          %v2026 = vand.u32 %v1956, 4294901760
          %v2027 = vsub.f32 %v1956, %v2026
          %v2028 = vand.u32 %v2027, 4294901760
          %v2029 = vsub.f32 %v2027, %v2028
          %v2030 = vand.u32 %v2029, 4294901760
          %2031 = vmatpush.msra.mxu0 %v2030
          %v2032 = vand.u32 %v1960, 4294901760
          %2033 = vmatmul.f32.gmra.mxu0 %v2032
          %v2034 = vpop.f32.mrf.mxu0
          %v2035 = vadd.f32 %v1991, %v2034
          %v2036 = vand.u32 %v1963, 4294901760
          %2037 = vmatmul.f32.gmra.mxu0 %v2036
          %v2038 = vpop.f32.mrf.mxu0
          %v2039 = vadd.f32 %v1999, %v2038
          %2040 = vdwg.mxu0
          %2041 = vmatpush.msra.mxu0 0.0
          %2042 = vmatpush.msra.mxu0 0.0
          %2043 = vmatpush.msra.mxu0 0.0
          %2044 = vmatpush.msra.mxu0 0.0
          %2045 = vmatpush.msra.mxu0 0.0
          %2046 = vmatpush.msra.mxu0 0.0
          %2047 = vmatpush.msra.mxu0 0.0
          %2048 = vmatpush.msra.mxu0 0.0
          %2049 = vmatpush.msra.mxu0 0.0
          %2050 = vmatpush.msra.mxu0 0.0
          %2051 = vmatpush.msra.mxu0 0.0
          %2052 = vmatpush.msra.mxu0 0.0
          %2053 = vmatpush.msra.mxu0 0.0
          %v2054 = vand.u32 %v1958, 4294901760
          %v2055 = vsub.f32 %v1958, %v2054
          %2056 = vmatpush.msra.mxu0 %v2055
          %v2057 = vand.u32 %v1957, 4294901760
          %v2058 = vsub.f32 %v1957, %v2057
          %2059 = vmatpush.msra.mxu0 %v2058
          %v2060 = vand.u32 %v1956, 4294901760
          %v2061 = vsub.f32 %v1956, %v2060
          %2062 = vmatpush.msra.mxu0 %v2061
          %v2063 = vand.u32 %v1960, 4294901760
          %v2064 = vsub.f32 %v1960, %v2063
          %2065 = vmatmul.f32.gmra.mxu0 %v2064
          %v2066 = vpop.f32.mrf.mxu0
          %v2067 = vadd.f32 %v2035, %v2066
          %v2068 = vand.u32 %v1963, 4294901760
          %v2069 = vsub.f32 %v1963, %v2068
          %2070 = vmatmul.f32.gmra.mxu0 %v2069
          %v2071 = vpop.f32.mrf.mxu0
          %v2072 = vadd.f32 %v2039, %v2071
          %2073 = vdwg.mxu0
          %2074 = vmatpush.msra.mxu0 0.0
          %2075 = vmatpush.msra.mxu0 0.0
          %2076 = vmatpush.msra.mxu0 0.0
          %2077 = vmatpush.msra.mxu0 0.0
          %2078 = vmatpush.msra.mxu0 0.0
          %2079 = vmatpush.msra.mxu0 0.0
          %2080 = vmatpush.msra.mxu0 0.0
          %2081 = vmatpush.msra.mxu0 0.0
          %2082 = vmatpush.msra.mxu0 0.0
          %2083 = vmatpush.msra.mxu0 0.0
          %2084 = vmatpush.msra.mxu0 0.0
          %2085 = vmatpush.msra.mxu0 0.0
          %2086 = vmatpush.msra.mxu0 0.0
          %v2087 = vand.u32 %v1958, 4294901760
          %2088 = vmatpush.msra.mxu0 %v2087
          %v2089 = vand.u32 %v1957, 4294901760
          %2090 = vmatpush.msra.mxu0 %v2089
          %v2091 = vand.u32 %v1956, 4294901760
          %2092 = vmatpush.msra.mxu0 %v2091
          %v2093 = vand.u32 %v1960, 4294901760
          %v2094 = vsub.f32 %v1960, %v2093
          %v2095 = vand.u32 %v2094, 4294901760
          %2096 = vmatmul.f32.gmra.mxu0 %v2095
          %v2097 = vpop.f32.mrf.mxu0
          %v2098 = vadd.f32 %v2067, %v2097
          %v2099 = vand.u32 %v1963, 4294901760
          %v2100 = vsub.f32 %v1963, %v2099
          %v2101 = vand.u32 %v2100, 4294901760
          %2102 = vmatmul.f32.gmra.mxu0 %v2101
          %v2103 = vpop.f32.mrf.mxu0
          %v2104 = vadd.f32 %v2072, %v2103
          %2105 = vdwg.mxu0
          %2106 = vmatpush.msra.mxu0 0.0
          %2107 = vmatpush.msra.mxu0 0.0
          %2108 = vmatpush.msra.mxu0 0.0
          %2109 = vmatpush.msra.mxu0 0.0
          %2110 = vmatpush.msra.mxu0 0.0
          %2111 = vmatpush.msra.mxu0 0.0
          %2112 = vmatpush.msra.mxu0 0.0
          %2113 = vmatpush.msra.mxu0 0.0
          %2114 = vmatpush.msra.mxu0 0.0
          %2115 = vmatpush.msra.mxu0 0.0
          %2116 = vmatpush.msra.mxu0 0.0
          %2117 = vmatpush.msra.mxu0 0.0
          %2118 = vmatpush.msra.mxu0 0.0
          %v2119 = vand.u32 %v1958, 4294901760
          %v2120 = vsub.f32 %v1958, %v2119
          %v2121 = vand.u32 %v2120, 4294901760
          %2122 = vmatpush.msra.mxu0 %v2121
          %v2123 = vand.u32 %v1957, 4294901760
          %v2124 = vsub.f32 %v1957, %v2123
          %v2125 = vand.u32 %v2124, 4294901760
          %2126 = vmatpush.msra.mxu0 %v2125
          %v2127 = vand.u32 %v1956, 4294901760
          %v2128 = vsub.f32 %v1956, %v2127
          %v2129 = vand.u32 %v2128, 4294901760
          %2130 = vmatpush.msra.mxu0 %v2129
          %v2131 = vand.u32 %v1960, 4294901760
          %2132 = vmatmul.f32.gmra.mxu0 %v2131
          %v2133 = vpop.f32.mrf.mxu0
          %v2134 = vadd.f32 %v2098, %v2133
          %v2135 = vand.u32 %v1963, 4294901760
          %2136 = vmatmul.f32.gmra.mxu0 %v2135
          %v2137 = vpop.f32.mrf.mxu0
          %v2138 = vadd.f32 %v2104, %v2137
          %2139 = vdwg.mxu0
          %2140 = vmatpush.msra.mxu0 0.0
          %2141 = vmatpush.msra.mxu0 0.0
          %2142 = vmatpush.msra.mxu0 0.0
          %2143 = vmatpush.msra.mxu0 0.0
          %2144 = vmatpush.msra.mxu0 0.0
          %2145 = vmatpush.msra.mxu0 0.0
          %2146 = vmatpush.msra.mxu0 0.0
          %2147 = vmatpush.msra.mxu0 0.0
          %2148 = vmatpush.msra.mxu0 0.0
          %2149 = vmatpush.msra.mxu0 0.0
          %2150 = vmatpush.msra.mxu0 0.0
          %2151 = vmatpush.msra.mxu0 0.0
          %2152 = vmatpush.msra.mxu0 0.0
          %v2153 = vand.u32 %v1958, 4294901760
          %2154 = vmatpush.msra.mxu0 %v2153
          %v2155 = vand.u32 %v1957, 4294901760
          %2156 = vmatpush.msra.mxu0 %v2155
          %v2157 = vand.u32 %v1956, 4294901760
          %2158 = vmatpush.msra.mxu0 %v2157
          %v2159 = vand.u32 %v1960, 4294901760
          %2160 = vmatmul.f32.gmra.mxu0 %v2159
          %v2161 = vpop.f32.mrf.mxu0
          %v2162 = vadd.f32 %v2134, %v2161
          %v2163 = vand.u32 %v1963, 4294901760
          %2164 = vmatmul.f32.gmra.mxu0 %v2163
          %v2165 = vpop.f32.mrf.mxu0
          %v2166 = vadd.f32 %v2138, %v2165
          %2167 = vdwg.mxu0
          %v2168 = vadd.f32 %v1951, %v2162
          %v2169 = vadd.f32 %v1952, %v2166
          %vm2170 = vcmask 130048
          %2171 = vst.msk [vmem:[%s165] sm:$0xff] %vm2170, %v2168
          %2172 = vst.msk [vmem:[%s165 + $0x8] sm:$0xff] %vm2170, %v2169
          %s2173 = scalar_lea.vmem %s170, 24
          %v2174 = vld [vmem:[%s2173] sm:$0xff]
          %v2175 = vld [vmem:[%s2173 + $0x8] sm:$0xff]
          %s2176 = scalar_lea.vmem %s175, 216
          %v2177 = vld [vmem:[%s2176] sm:$0xff]
          %v2178 = vld [vmem:[%s2176 + $0x8] sm:$0xff]
          %v2179 = vld [vmem:[%s2176 + $0x10] sm:$0xff]
          %v2180 = vld [vmem:[%s2173 + $0x1] sm:$0xff]
          %v2181 = vld [vmem:[%s2173 + $0x9] sm:$0xff]
          %s2182 = scalar_lea.vmem %s175, 240
          %v2183 = vld [vmem:[%s2182] sm:$0xff]
          %v2184 = vld [vmem:[%s2182 + $0x8] sm:$0xff]
          %v2185 = vld [vmem:[%s2182 + $0x10] sm:$0xff]
          %v2187 = vsel %vm232, %v2180, 0
          %v2190 = vsel %vm232, %v2181, 0
          %2192 = vmatpush.msra.mxu0 0.0
          %2193 = vmatpush.msra.mxu0 0.0
          %2194 = vmatpush.msra.mxu0 0.0
          %2195 = vmatpush.msra.mxu0 0.0
          %2196 = vmatpush.msra.mxu0 0.0
          %2197 = vmatpush.msra.mxu0 0.0
          %2198 = vmatpush.msra.mxu0 0.0
          %2199 = vmatpush.msra.mxu0 0.0
          %2200 = vmatpush.msra.mxu0 0.0
          %2201 = vmatpush.msra.mxu0 0.0
          %2202 = vmatpush.msra.mxu0 0.0
          %2203 = vmatpush.msra.mxu0 0.0
          %2204 = vmatpush.msra.mxu0 0.0
          %v2205 = vand.u32 %v2185, 4294901760
          %2206 = vmatpush.msra.mxu0 %v2205
          %v2207 = vand.u32 %v2184, 4294901760
          %2208 = vmatpush.msra.mxu0 %v2207
          %v2209 = vand.u32 %v2183, 4294901760
          %2210 = vmatpush.msra.mxu0 %v2209
          %v2211 = vand.u32 %v2187, 4294901760
          %v2212 = vsub.f32 %v2187, %v2211
          %v2213 = vand.u32 %v2212, 4294901760
          %v2214 = vsub.f32 %v2212, %v2213
          %v2215 = vand.u32 %v2214, 4294901760
          %2216 = vmatmul.f32.gmra.mxu0 %v2215
          %v2217 = vpop.f32.mrf.mxu0
          %v2218 = vadd.f32 0.0, %v2217
          %v2219 = vand.u32 %v2190, 4294901760
          %v2220 = vsub.f32 %v2190, %v2219
          %v2221 = vand.u32 %v2220, 4294901760
          %v2222 = vsub.f32 %v2220, %v2221
          %v2223 = vand.u32 %v2222, 4294901760
          %2224 = vmatmul.f32.gmra.mxu0 %v2223
          %v2225 = vpop.f32.mrf.mxu0
          %v2226 = vadd.f32 0.0, %v2225
          %2227 = vdwg.mxu0
          %2228 = vmatpush.msra.mxu0 0.0
          %2229 = vmatpush.msra.mxu0 0.0
          %2230 = vmatpush.msra.mxu0 0.0
          %2231 = vmatpush.msra.mxu0 0.0
          %2232 = vmatpush.msra.mxu0 0.0
          %2233 = vmatpush.msra.mxu0 0.0
          %2234 = vmatpush.msra.mxu0 0.0
          %2235 = vmatpush.msra.mxu0 0.0
          %2236 = vmatpush.msra.mxu0 0.0
          %2237 = vmatpush.msra.mxu0 0.0
          %2238 = vmatpush.msra.mxu0 0.0
          %2239 = vmatpush.msra.mxu0 0.0
          %2240 = vmatpush.msra.mxu0 0.0
          %v2241 = vand.u32 %v2185, 4294901760
          %v2242 = vsub.f32 %v2185, %v2241
          %v2243 = vand.u32 %v2242, 4294901760
          %v2244 = vsub.f32 %v2242, %v2243
          %v2245 = vand.u32 %v2244, 4294901760
          %2246 = vmatpush.msra.mxu0 %v2245
          %v2247 = vand.u32 %v2184, 4294901760
          %v2248 = vsub.f32 %v2184, %v2247
          %v2249 = vand.u32 %v2248, 4294901760
          %v2250 = vsub.f32 %v2248, %v2249
          %v2251 = vand.u32 %v2250, 4294901760
          %2252 = vmatpush.msra.mxu0 %v2251
          %v2253 = vand.u32 %v2183, 4294901760
          %v2254 = vsub.f32 %v2183, %v2253
          %v2255 = vand.u32 %v2254, 4294901760
          %v2256 = vsub.f32 %v2254, %v2255
          %v2257 = vand.u32 %v2256, 4294901760
          %2258 = vmatpush.msra.mxu0 %v2257
          %v2259 = vand.u32 %v2187, 4294901760
          %2260 = vmatmul.f32.gmra.mxu0 %v2259
          %v2261 = vpop.f32.mrf.mxu0
          %v2262 = vadd.f32 %v2218, %v2261
          %v2263 = vand.u32 %v2190, 4294901760
          %2264 = vmatmul.f32.gmra.mxu0 %v2263
          %v2265 = vpop.f32.mrf.mxu0
          %v2266 = vadd.f32 %v2226, %v2265
          %2267 = vdwg.mxu0
          %2268 = vmatpush.msra.mxu0 0.0
          %2269 = vmatpush.msra.mxu0 0.0
          %2270 = vmatpush.msra.mxu0 0.0
          %2271 = vmatpush.msra.mxu0 0.0
          %2272 = vmatpush.msra.mxu0 0.0
          %2273 = vmatpush.msra.mxu0 0.0
          %2274 = vmatpush.msra.mxu0 0.0
          %2275 = vmatpush.msra.mxu0 0.0
          %2276 = vmatpush.msra.mxu0 0.0
          %2277 = vmatpush.msra.mxu0 0.0
          %2278 = vmatpush.msra.mxu0 0.0
          %2279 = vmatpush.msra.mxu0 0.0
          %2280 = vmatpush.msra.mxu0 0.0
          %v2281 = vand.u32 %v2185, 4294901760
          %v2282 = vsub.f32 %v2185, %v2281
          %2283 = vmatpush.msra.mxu0 %v2282
          %v2284 = vand.u32 %v2184, 4294901760
          %v2285 = vsub.f32 %v2184, %v2284
          %2286 = vmatpush.msra.mxu0 %v2285
          %v2287 = vand.u32 %v2183, 4294901760
          %v2288 = vsub.f32 %v2183, %v2287
          %2289 = vmatpush.msra.mxu0 %v2288
          %v2290 = vand.u32 %v2187, 4294901760
          %v2291 = vsub.f32 %v2187, %v2290
          %2292 = vmatmul.f32.gmra.mxu0 %v2291
          %v2293 = vpop.f32.mrf.mxu0
          %v2294 = vadd.f32 %v2262, %v2293
          %v2295 = vand.u32 %v2190, 4294901760
          %v2296 = vsub.f32 %v2190, %v2295
          %2297 = vmatmul.f32.gmra.mxu0 %v2296
          %v2298 = vpop.f32.mrf.mxu0
          %v2299 = vadd.f32 %v2266, %v2298
          %2300 = vdwg.mxu0
          %2301 = vmatpush.msra.mxu0 0.0
          %2302 = vmatpush.msra.mxu0 0.0
          %2303 = vmatpush.msra.mxu0 0.0
          %2304 = vmatpush.msra.mxu0 0.0
          %2305 = vmatpush.msra.mxu0 0.0
          %2306 = vmatpush.msra.mxu0 0.0
          %2307 = vmatpush.msra.mxu0 0.0
          %2308 = vmatpush.msra.mxu0 0.0
          %2309 = vmatpush.msra.mxu0 0.0
          %2310 = vmatpush.msra.mxu0 0.0
          %2311 = vmatpush.msra.mxu0 0.0
          %2312 = vmatpush.msra.mxu0 0.0
          %2313 = vmatpush.msra.mxu0 0.0
          %v2314 = vand.u32 %v2185, 4294901760
          %2315 = vmatpush.msra.mxu0 %v2314
          %v2316 = vand.u32 %v2184, 4294901760
          %2317 = vmatpush.msra.mxu0 %v2316
          %v2318 = vand.u32 %v2183, 4294901760
          %2319 = vmatpush.msra.mxu0 %v2318
          %v2320 = vand.u32 %v2187, 4294901760
          %v2321 = vsub.f32 %v2187, %v2320
          %v2322 = vand.u32 %v2321, 4294901760
          %2323 = vmatmul.f32.gmra.mxu0 %v2322
          %v2324 = vpop.f32.mrf.mxu0
          %v2325 = vadd.f32 %v2294, %v2324
          %v2326 = vand.u32 %v2190, 4294901760
          %v2327 = vsub.f32 %v2190, %v2326
          %v2328 = vand.u32 %v2327, 4294901760
          %2329 = vmatmul.f32.gmra.mxu0 %v2328
          %v2330 = vpop.f32.mrf.mxu0
          %v2331 = vadd.f32 %v2299, %v2330
          %2332 = vdwg.mxu0
          %2333 = vmatpush.msra.mxu0 0.0
          %2334 = vmatpush.msra.mxu0 0.0
          %2335 = vmatpush.msra.mxu0 0.0
          %2336 = vmatpush.msra.mxu0 0.0
          %2337 = vmatpush.msra.mxu0 0.0
          %2338 = vmatpush.msra.mxu0 0.0
          %2339 = vmatpush.msra.mxu0 0.0
          %2340 = vmatpush.msra.mxu0 0.0
          %2341 = vmatpush.msra.mxu0 0.0
          %2342 = vmatpush.msra.mxu0 0.0
          %2343 = vmatpush.msra.mxu0 0.0
          %2344 = vmatpush.msra.mxu0 0.0
          %2345 = vmatpush.msra.mxu0 0.0
          %v2346 = vand.u32 %v2185, 4294901760
          %v2347 = vsub.f32 %v2185, %v2346
          %v2348 = vand.u32 %v2347, 4294901760
          %2349 = vmatpush.msra.mxu0 %v2348
          %v2350 = vand.u32 %v2184, 4294901760
          %v2351 = vsub.f32 %v2184, %v2350
          %v2352 = vand.u32 %v2351, 4294901760
          %2353 = vmatpush.msra.mxu0 %v2352
          %v2354 = vand.u32 %v2183, 4294901760
          %v2355 = vsub.f32 %v2183, %v2354
          %v2356 = vand.u32 %v2355, 4294901760
          %2357 = vmatpush.msra.mxu0 %v2356
          %v2358 = vand.u32 %v2187, 4294901760
          %2359 = vmatmul.f32.gmra.mxu0 %v2358
          %v2360 = vpop.f32.mrf.mxu0
          %v2361 = vadd.f32 %v2325, %v2360
          %v2362 = vand.u32 %v2190, 4294901760
          %2363 = vmatmul.f32.gmra.mxu0 %v2362
          %v2364 = vpop.f32.mrf.mxu0
          %v2365 = vadd.f32 %v2331, %v2364
          %2366 = vdwg.mxu0
          %2367 = vmatpush.msra.mxu0 0.0
          %2368 = vmatpush.msra.mxu0 0.0
          %2369 = vmatpush.msra.mxu0 0.0
          %2370 = vmatpush.msra.mxu0 0.0
          %2371 = vmatpush.msra.mxu0 0.0
          %2372 = vmatpush.msra.mxu0 0.0
          %2373 = vmatpush.msra.mxu0 0.0
          %2374 = vmatpush.msra.mxu0 0.0
          %2375 = vmatpush.msra.mxu0 0.0
          %2376 = vmatpush.msra.mxu0 0.0
          %2377 = vmatpush.msra.mxu0 0.0
          %2378 = vmatpush.msra.mxu0 0.0
          %2379 = vmatpush.msra.mxu0 0.0
          %v2380 = vand.u32 %v2185, 4294901760
          %2381 = vmatpush.msra.mxu0 %v2380
          %v2382 = vand.u32 %v2184, 4294901760
          %2383 = vmatpush.msra.mxu0 %v2382
          %v2384 = vand.u32 %v2183, 4294901760
          %2385 = vmatpush.msra.mxu0 %v2384
          %v2386 = vand.u32 %v2187, 4294901760
          %2387 = vmatmul.f32.gmra.mxu0 %v2386
          %v2388 = vpop.f32.mrf.mxu0
          %v2389 = vadd.f32 %v2361, %v2388
          %v2390 = vand.u32 %v2190, 4294901760
          %2391 = vmatmul.f32.gmra.mxu0 %v2390
          %v2392 = vpop.f32.mrf.mxu0
          %v2393 = vadd.f32 %v2365, %v2392
          %2394 = vdwg.mxu0
          %v2396 = vsel %vm232, %v2174, 0
          %v2399 = vsel %vm232, %v2175, 0
          %2401 = vmatpush.msra.mxu0 0.0
          %2402 = vmatpush.msra.mxu0 0.0
          %2403 = vmatpush.msra.mxu0 0.0
          %2404 = vmatpush.msra.mxu0 0.0
          %2405 = vmatpush.msra.mxu0 0.0
          %2406 = vmatpush.msra.mxu0 0.0
          %2407 = vmatpush.msra.mxu0 0.0
          %2408 = vmatpush.msra.mxu0 0.0
          %2409 = vmatpush.msra.mxu0 0.0
          %2410 = vmatpush.msra.mxu0 0.0
          %2411 = vmatpush.msra.mxu0 0.0
          %2412 = vmatpush.msra.mxu0 0.0
          %2413 = vmatpush.msra.mxu0 0.0
          %v2414 = vand.u32 %v2179, 4294901760
          %2415 = vmatpush.msra.mxu0 %v2414
          %v2416 = vand.u32 %v2178, 4294901760
          %2417 = vmatpush.msra.mxu0 %v2416
          %v2418 = vand.u32 %v2177, 4294901760
          %2419 = vmatpush.msra.mxu0 %v2418
          %v2420 = vand.u32 %v2396, 4294901760
          %v2421 = vsub.f32 %v2396, %v2420
          %v2422 = vand.u32 %v2421, 4294901760
          %v2423 = vsub.f32 %v2421, %v2422
          %v2424 = vand.u32 %v2423, 4294901760
          %2425 = vmatmul.f32.gmra.mxu0 %v2424
          %v2426 = vpop.f32.mrf.mxu0
          %v2427 = vadd.f32 %v2389, %v2426
          %v2428 = vand.u32 %v2399, 4294901760
          %v2429 = vsub.f32 %v2399, %v2428
          %v2430 = vand.u32 %v2429, 4294901760
          %v2431 = vsub.f32 %v2429, %v2430
          %v2432 = vand.u32 %v2431, 4294901760
          %2433 = vmatmul.f32.gmra.mxu0 %v2432
          %v2434 = vpop.f32.mrf.mxu0
          %v2435 = vadd.f32 %v2393, %v2434
          %2436 = vdwg.mxu0
          %2437 = vmatpush.msra.mxu0 0.0
          %2438 = vmatpush.msra.mxu0 0.0
          %2439 = vmatpush.msra.mxu0 0.0
          %2440 = vmatpush.msra.mxu0 0.0
          %2441 = vmatpush.msra.mxu0 0.0
          %2442 = vmatpush.msra.mxu0 0.0
          %2443 = vmatpush.msra.mxu0 0.0
          %2444 = vmatpush.msra.mxu0 0.0
          %2445 = vmatpush.msra.mxu0 0.0
          %2446 = vmatpush.msra.mxu0 0.0
          %2447 = vmatpush.msra.mxu0 0.0
          %2448 = vmatpush.msra.mxu0 0.0
          %2449 = vmatpush.msra.mxu0 0.0
          %v2450 = vand.u32 %v2179, 4294901760
          %v2451 = vsub.f32 %v2179, %v2450
          %v2452 = vand.u32 %v2451, 4294901760
          %v2453 = vsub.f32 %v2451, %v2452
          %v2454 = vand.u32 %v2453, 4294901760
          %2455 = vmatpush.msra.mxu0 %v2454
          %v2456 = vand.u32 %v2178, 4294901760
          %v2457 = vsub.f32 %v2178, %v2456
          %v2458 = vand.u32 %v2457, 4294901760
          %v2459 = vsub.f32 %v2457, %v2458
          %v2460 = vand.u32 %v2459, 4294901760
          %2461 = vmatpush.msra.mxu0 %v2460
          %v2462 = vand.u32 %v2177, 4294901760
          %v2463 = vsub.f32 %v2177, %v2462
          %v2464 = vand.u32 %v2463, 4294901760
          %v2465 = vsub.f32 %v2463, %v2464
          %v2466 = vand.u32 %v2465, 4294901760
          %2467 = vmatpush.msra.mxu0 %v2466
          %v2468 = vand.u32 %v2396, 4294901760
          %2469 = vmatmul.f32.gmra.mxu0 %v2468
          %v2470 = vpop.f32.mrf.mxu0
          %v2471 = vadd.f32 %v2427, %v2470
          %v2472 = vand.u32 %v2399, 4294901760
          %2473 = vmatmul.f32.gmra.mxu0 %v2472
          %v2474 = vpop.f32.mrf.mxu0
          %v2475 = vadd.f32 %v2435, %v2474
          %2476 = vdwg.mxu0
          %2477 = vmatpush.msra.mxu0 0.0
          %2478 = vmatpush.msra.mxu0 0.0
          %2479 = vmatpush.msra.mxu0 0.0
          %2480 = vmatpush.msra.mxu0 0.0
          %2481 = vmatpush.msra.mxu0 0.0
          %2482 = vmatpush.msra.mxu0 0.0
          %2483 = vmatpush.msra.mxu0 0.0
          %2484 = vmatpush.msra.mxu0 0.0
          %2485 = vmatpush.msra.mxu0 0.0
          %2486 = vmatpush.msra.mxu0 0.0
          %2487 = vmatpush.msra.mxu0 0.0
          %2488 = vmatpush.msra.mxu0 0.0
          %2489 = vmatpush.msra.mxu0 0.0
          %v2490 = vand.u32 %v2179, 4294901760
          %v2491 = vsub.f32 %v2179, %v2490
          %2492 = vmatpush.msra.mxu0 %v2491
          %v2493 = vand.u32 %v2178, 4294901760
          %v2494 = vsub.f32 %v2178, %v2493
          %2495 = vmatpush.msra.mxu0 %v2494
          %v2496 = vand.u32 %v2177, 4294901760
          %v2497 = vsub.f32 %v2177, %v2496
          %2498 = vmatpush.msra.mxu0 %v2497
          %v2499 = vand.u32 %v2396, 4294901760
          %v2500 = vsub.f32 %v2396, %v2499
          %2501 = vmatmul.f32.gmra.mxu0 %v2500
          %v2502 = vpop.f32.mrf.mxu0
          %v2503 = vadd.f32 %v2471, %v2502
          %v2504 = vand.u32 %v2399, 4294901760
          %v2505 = vsub.f32 %v2399, %v2504
          %2506 = vmatmul.f32.gmra.mxu0 %v2505
          %v2507 = vpop.f32.mrf.mxu0
          %v2508 = vadd.f32 %v2475, %v2507
          %2509 = vdwg.mxu0
          %2510 = vmatpush.msra.mxu0 0.0
          %2511 = vmatpush.msra.mxu0 0.0
          %2512 = vmatpush.msra.mxu0 0.0
          %2513 = vmatpush.msra.mxu0 0.0
          %2514 = vmatpush.msra.mxu0 0.0
          %2515 = vmatpush.msra.mxu0 0.0
          %2516 = vmatpush.msra.mxu0 0.0
          %2517 = vmatpush.msra.mxu0 0.0
          %2518 = vmatpush.msra.mxu0 0.0
          %2519 = vmatpush.msra.mxu0 0.0
          %2520 = vmatpush.msra.mxu0 0.0
          %2521 = vmatpush.msra.mxu0 0.0
          %2522 = vmatpush.msra.mxu0 0.0
          %v2523 = vand.u32 %v2179, 4294901760
          %2524 = vmatpush.msra.mxu0 %v2523
          %v2525 = vand.u32 %v2178, 4294901760
          %2526 = vmatpush.msra.mxu0 %v2525
          %v2527 = vand.u32 %v2177, 4294901760
          %2528 = vmatpush.msra.mxu0 %v2527
          %v2529 = vand.u32 %v2396, 4294901760
          %v2530 = vsub.f32 %v2396, %v2529
          %v2531 = vand.u32 %v2530, 4294901760
          %2532 = vmatmul.f32.gmra.mxu0 %v2531
          %v2533 = vpop.f32.mrf.mxu0
          %v2534 = vadd.f32 %v2503, %v2533
          %v2535 = vand.u32 %v2399, 4294901760
          %v2536 = vsub.f32 %v2399, %v2535
          %v2537 = vand.u32 %v2536, 4294901760
          %2538 = vmatmul.f32.gmra.mxu0 %v2537
          %v2539 = vpop.f32.mrf.mxu0
          %v2540 = vadd.f32 %v2508, %v2539
          %2541 = vdwg.mxu0
          %2542 = vmatpush.msra.mxu0 0.0
          %2543 = vmatpush.msra.mxu0 0.0
          %2544 = vmatpush.msra.mxu0 0.0
          %2545 = vmatpush.msra.mxu0 0.0
          %2546 = vmatpush.msra.mxu0 0.0
          %2547 = vmatpush.msra.mxu0 0.0
          %2548 = vmatpush.msra.mxu0 0.0
          %2549 = vmatpush.msra.mxu0 0.0
          %2550 = vmatpush.msra.mxu0 0.0
          %2551 = vmatpush.msra.mxu0 0.0
          %2552 = vmatpush.msra.mxu0 0.0
          %2553 = vmatpush.msra.mxu0 0.0
          %2554 = vmatpush.msra.mxu0 0.0
          %v2555 = vand.u32 %v2179, 4294901760
          %v2556 = vsub.f32 %v2179, %v2555
          %v2557 = vand.u32 %v2556, 4294901760
          %2558 = vmatpush.msra.mxu0 %v2557
          %v2559 = vand.u32 %v2178, 4294901760
          %v2560 = vsub.f32 %v2178, %v2559
          %v2561 = vand.u32 %v2560, 4294901760
          %2562 = vmatpush.msra.mxu0 %v2561
          %v2563 = vand.u32 %v2177, 4294901760
          %v2564 = vsub.f32 %v2177, %v2563
          %v2565 = vand.u32 %v2564, 4294901760
          %2566 = vmatpush.msra.mxu0 %v2565
          %v2567 = vand.u32 %v2396, 4294901760
          %2568 = vmatmul.f32.gmra.mxu0 %v2567
          %v2569 = vpop.f32.mrf.mxu0
          %v2570 = vadd.f32 %v2534, %v2569
          %v2571 = vand.u32 %v2399, 4294901760
          %2572 = vmatmul.f32.gmra.mxu0 %v2571
          %v2573 = vpop.f32.mrf.mxu0
          %v2574 = vadd.f32 %v2540, %v2573
          %2575 = vdwg.mxu0
          %2576 = vmatpush.msra.mxu0 0.0
          %2577 = vmatpush.msra.mxu0 0.0
          %2578 = vmatpush.msra.mxu0 0.0
          %2579 = vmatpush.msra.mxu0 0.0
          %2580 = vmatpush.msra.mxu0 0.0
          %2581 = vmatpush.msra.mxu0 0.0
          %2582 = vmatpush.msra.mxu0 0.0
          %2583 = vmatpush.msra.mxu0 0.0
          %2584 = vmatpush.msra.mxu0 0.0
          %2585 = vmatpush.msra.mxu0 0.0
          %2586 = vmatpush.msra.mxu0 0.0
          %2587 = vmatpush.msra.mxu0 0.0
          %2588 = vmatpush.msra.mxu0 0.0
          %v2589 = vand.u32 %v2179, 4294901760
          %2590 = vmatpush.msra.mxu0 %v2589
          %v2591 = vand.u32 %v2178, 4294901760
          %2592 = vmatpush.msra.mxu0 %v2591
          %v2593 = vand.u32 %v2177, 4294901760
          %2594 = vmatpush.msra.mxu0 %v2593
          %v2595 = vand.u32 %v2396, 4294901760
          %2596 = vmatmul.f32.gmra.mxu0 %v2595
          %v2597 = vpop.f32.mrf.mxu0
          %v2598 = vadd.f32 %v2570, %v2597
          %v2599 = vand.u32 %v2399, 4294901760
          %2600 = vmatmul.f32.gmra.mxu0 %v2599
          %v2601 = vpop.f32.mrf.mxu0
          %v2602 = vadd.f32 %v2574, %v2601
          %2603 = vdwg.mxu0
          %v2604 = vld [vmem:[%s2173 + $0x2] sm:$0xff]
          %v2605 = vld [vmem:[%s2173 + $0xa] sm:$0xff]
          %s2606 = scalar_lea.vmem %s175, 264
          %v2607 = vld [vmem:[%s2606] sm:$0xff]
          %v2608 = vld [vmem:[%s2606 + $0x8] sm:$0xff]
          %v2609 = vld [vmem:[%s2606 + $0x10] sm:$0xff]
          %v2611 = vsel %vm232, %v2604, 0
          %v2614 = vsel %vm232, %v2605, 0
          %2616 = vmatpush.msra.mxu0 0.0
          %2617 = vmatpush.msra.mxu0 0.0
          %2618 = vmatpush.msra.mxu0 0.0
          %2619 = vmatpush.msra.mxu0 0.0
          %2620 = vmatpush.msra.mxu0 0.0
          %2621 = vmatpush.msra.mxu0 0.0
          %2622 = vmatpush.msra.mxu0 0.0
          %2623 = vmatpush.msra.mxu0 0.0
          %2624 = vmatpush.msra.mxu0 0.0
          %2625 = vmatpush.msra.mxu0 0.0
          %2626 = vmatpush.msra.mxu0 0.0
          %2627 = vmatpush.msra.mxu0 0.0
          %2628 = vmatpush.msra.mxu0 0.0
          %v2629 = vand.u32 %v2609, 4294901760
          %2630 = vmatpush.msra.mxu0 %v2629
          %v2631 = vand.u32 %v2608, 4294901760
          %2632 = vmatpush.msra.mxu0 %v2631
          %v2633 = vand.u32 %v2607, 4294901760
          %2634 = vmatpush.msra.mxu0 %v2633
          %v2635 = vand.u32 %v2611, 4294901760
          %v2636 = vsub.f32 %v2611, %v2635
          %v2637 = vand.u32 %v2636, 4294901760
          %v2638 = vsub.f32 %v2636, %v2637
          %v2639 = vand.u32 %v2638, 4294901760
          %2640 = vmatmul.f32.gmra.mxu0 %v2639
          %v2641 = vpop.f32.mrf.mxu0
          %v2642 = vadd.f32 0.0, %v2641
          %v2643 = vand.u32 %v2614, 4294901760
          %v2644 = vsub.f32 %v2614, %v2643
          %v2645 = vand.u32 %v2644, 4294901760
          %v2646 = vsub.f32 %v2644, %v2645
          %v2647 = vand.u32 %v2646, 4294901760
          %2648 = vmatmul.f32.gmra.mxu0 %v2647
          %v2649 = vpop.f32.mrf.mxu0
          %v2650 = vadd.f32 0.0, %v2649
          %2651 = vdwg.mxu0
          %2652 = vmatpush.msra.mxu0 0.0
          %2653 = vmatpush.msra.mxu0 0.0
          %2654 = vmatpush.msra.mxu0 0.0
          %2655 = vmatpush.msra.mxu0 0.0
          %2656 = vmatpush.msra.mxu0 0.0
          %2657 = vmatpush.msra.mxu0 0.0
          %2658 = vmatpush.msra.mxu0 0.0
          %2659 = vmatpush.msra.mxu0 0.0
          %2660 = vmatpush.msra.mxu0 0.0
          %2661 = vmatpush.msra.mxu0 0.0
          %2662 = vmatpush.msra.mxu0 0.0
          %2663 = vmatpush.msra.mxu0 0.0
          %2664 = vmatpush.msra.mxu0 0.0
          %v2665 = vand.u32 %v2609, 4294901760
          %v2666 = vsub.f32 %v2609, %v2665
          %v2667 = vand.u32 %v2666, 4294901760
          %v2668 = vsub.f32 %v2666, %v2667
          %v2669 = vand.u32 %v2668, 4294901760
          %2670 = vmatpush.msra.mxu0 %v2669
          %v2671 = vand.u32 %v2608, 4294901760
          %v2672 = vsub.f32 %v2608, %v2671
          %v2673 = vand.u32 %v2672, 4294901760
          %v2674 = vsub.f32 %v2672, %v2673
          %v2675 = vand.u32 %v2674, 4294901760
          %2676 = vmatpush.msra.mxu0 %v2675
          %v2677 = vand.u32 %v2607, 4294901760
          %v2678 = vsub.f32 %v2607, %v2677
          %v2679 = vand.u32 %v2678, 4294901760
          %v2680 = vsub.f32 %v2678, %v2679
          %v2681 = vand.u32 %v2680, 4294901760
          %2682 = vmatpush.msra.mxu0 %v2681
          %v2683 = vand.u32 %v2611, 4294901760
          %2684 = vmatmul.f32.gmra.mxu0 %v2683
          %v2685 = vpop.f32.mrf.mxu0
          %v2686 = vadd.f32 %v2642, %v2685
          %v2687 = vand.u32 %v2614, 4294901760
          %2688 = vmatmul.f32.gmra.mxu0 %v2687
          %v2689 = vpop.f32.mrf.mxu0
          %v2690 = vadd.f32 %v2650, %v2689
          %2691 = vdwg.mxu0
          %2692 = vmatpush.msra.mxu0 0.0
          %2693 = vmatpush.msra.mxu0 0.0
          %2694 = vmatpush.msra.mxu0 0.0
          %2695 = vmatpush.msra.mxu0 0.0
          %2696 = vmatpush.msra.mxu0 0.0
          %2697 = vmatpush.msra.mxu0 0.0
          %2698 = vmatpush.msra.mxu0 0.0
          %2699 = vmatpush.msra.mxu0 0.0
          %2700 = vmatpush.msra.mxu0 0.0
          %2701 = vmatpush.msra.mxu0 0.0
          %2702 = vmatpush.msra.mxu0 0.0
          %2703 = vmatpush.msra.mxu0 0.0
          %2704 = vmatpush.msra.mxu0 0.0
          %v2705 = vand.u32 %v2609, 4294901760
          %v2706 = vsub.f32 %v2609, %v2705
          %2707 = vmatpush.msra.mxu0 %v2706
          %v2708 = vand.u32 %v2608, 4294901760
          %v2709 = vsub.f32 %v2608, %v2708
          %2710 = vmatpush.msra.mxu0 %v2709
          %v2711 = vand.u32 %v2607, 4294901760
          %v2712 = vsub.f32 %v2607, %v2711
          %2713 = vmatpush.msra.mxu0 %v2712
          %v2714 = vand.u32 %v2611, 4294901760
          %v2715 = vsub.f32 %v2611, %v2714
          %2716 = vmatmul.f32.gmra.mxu0 %v2715
          %v2717 = vpop.f32.mrf.mxu0
          %v2718 = vadd.f32 %v2686, %v2717
          %v2719 = vand.u32 %v2614, 4294901760
          %v2720 = vsub.f32 %v2614, %v2719
          %2721 = vmatmul.f32.gmra.mxu0 %v2720
          %v2722 = vpop.f32.mrf.mxu0
          %v2723 = vadd.f32 %v2690, %v2722
          %2724 = vdwg.mxu0
          %2725 = vmatpush.msra.mxu0 0.0
          %2726 = vmatpush.msra.mxu0 0.0
          %2727 = vmatpush.msra.mxu0 0.0
          %2728 = vmatpush.msra.mxu0 0.0
          %2729 = vmatpush.msra.mxu0 0.0
          %2730 = vmatpush.msra.mxu0 0.0
          %2731 = vmatpush.msra.mxu0 0.0
          %2732 = vmatpush.msra.mxu0 0.0
          %2733 = vmatpush.msra.mxu0 0.0
          %2734 = vmatpush.msra.mxu0 0.0
          %2735 = vmatpush.msra.mxu0 0.0
          %2736 = vmatpush.msra.mxu0 0.0
          %2737 = vmatpush.msra.mxu0 0.0
          %v2738 = vand.u32 %v2609, 4294901760
          %2739 = vmatpush.msra.mxu0 %v2738
          %v2740 = vand.u32 %v2608, 4294901760
          %2741 = vmatpush.msra.mxu0 %v2740
          %v2742 = vand.u32 %v2607, 4294901760
          %2743 = vmatpush.msra.mxu0 %v2742
          %v2744 = vand.u32 %v2611, 4294901760
          %v2745 = vsub.f32 %v2611, %v2744
          %v2746 = vand.u32 %v2745, 4294901760
          %2747 = vmatmul.f32.gmra.mxu0 %v2746
          %v2748 = vpop.f32.mrf.mxu0
          %v2749 = vadd.f32 %v2718, %v2748
          %v2750 = vand.u32 %v2614, 4294901760
          %v2751 = vsub.f32 %v2614, %v2750
          %v2752 = vand.u32 %v2751, 4294901760
          %2753 = vmatmul.f32.gmra.mxu0 %v2752
          %v2754 = vpop.f32.mrf.mxu0
          %v2755 = vadd.f32 %v2723, %v2754
          %2756 = vdwg.mxu0
          %2757 = vmatpush.msra.mxu0 0.0
          %2758 = vmatpush.msra.mxu0 0.0
          %2759 = vmatpush.msra.mxu0 0.0
          %2760 = vmatpush.msra.mxu0 0.0
          %2761 = vmatpush.msra.mxu0 0.0
          %2762 = vmatpush.msra.mxu0 0.0
          %2763 = vmatpush.msra.mxu0 0.0
          %2764 = vmatpush.msra.mxu0 0.0
          %2765 = vmatpush.msra.mxu0 0.0
          %2766 = vmatpush.msra.mxu0 0.0
          %2767 = vmatpush.msra.mxu0 0.0
          %2768 = vmatpush.msra.mxu0 0.0
          %2769 = vmatpush.msra.mxu0 0.0
          %v2770 = vand.u32 %v2609, 4294901760
          %v2771 = vsub.f32 %v2609, %v2770
          %v2772 = vand.u32 %v2771, 4294901760
          %2773 = vmatpush.msra.mxu0 %v2772
          %v2774 = vand.u32 %v2608, 4294901760
          %v2775 = vsub.f32 %v2608, %v2774
          %v2776 = vand.u32 %v2775, 4294901760
          %2777 = vmatpush.msra.mxu0 %v2776
          %v2778 = vand.u32 %v2607, 4294901760
          %v2779 = vsub.f32 %v2607, %v2778
          %v2780 = vand.u32 %v2779, 4294901760
          %2781 = vmatpush.msra.mxu0 %v2780
          %v2782 = vand.u32 %v2611, 4294901760
          %2783 = vmatmul.f32.gmra.mxu0 %v2782
          %v2784 = vpop.f32.mrf.mxu0
          %v2785 = vadd.f32 %v2749, %v2784
          %v2786 = vand.u32 %v2614, 4294901760
          %2787 = vmatmul.f32.gmra.mxu0 %v2786
          %v2788 = vpop.f32.mrf.mxu0
          %v2789 = vadd.f32 %v2755, %v2788
          %2790 = vdwg.mxu0
          %2791 = vmatpush.msra.mxu0 0.0
          %2792 = vmatpush.msra.mxu0 0.0
          %2793 = vmatpush.msra.mxu0 0.0
          %2794 = vmatpush.msra.mxu0 0.0
          %2795 = vmatpush.msra.mxu0 0.0
          %2796 = vmatpush.msra.mxu0 0.0
          %2797 = vmatpush.msra.mxu0 0.0
          %2798 = vmatpush.msra.mxu0 0.0
          %2799 = vmatpush.msra.mxu0 0.0
          %2800 = vmatpush.msra.mxu0 0.0
          %2801 = vmatpush.msra.mxu0 0.0
          %2802 = vmatpush.msra.mxu0 0.0
          %2803 = vmatpush.msra.mxu0 0.0
          %v2804 = vand.u32 %v2609, 4294901760
          %2805 = vmatpush.msra.mxu0 %v2804
          %v2806 = vand.u32 %v2608, 4294901760
          %2807 = vmatpush.msra.mxu0 %v2806
          %v2808 = vand.u32 %v2607, 4294901760
          %2809 = vmatpush.msra.mxu0 %v2808
          %v2810 = vand.u32 %v2611, 4294901760
          %2811 = vmatmul.f32.gmra.mxu0 %v2810
          %v2812 = vpop.f32.mrf.mxu0
          %v2813 = vadd.f32 %v2785, %v2812
          %v2814 = vand.u32 %v2614, 4294901760
          %2815 = vmatmul.f32.gmra.mxu0 %v2814
          %v2816 = vpop.f32.mrf.mxu0
          %v2817 = vadd.f32 %v2789, %v2816
          %2818 = vdwg.mxu0
          %v2819 = vadd.f32 %v2598, %v2813
          %v2820 = vadd.f32 %v2602, %v2817
          %v2821 = vld [vmem:[%s2173 + $0x3] sm:$0xff]
          %v2822 = vld [vmem:[%s2173 + $0xb] sm:$0xff]
          %s2823 = scalar_lea.vmem %s175, 288
          %v2824 = vld [vmem:[%s2823] sm:$0xff]
          %v2825 = vld [vmem:[%s2823 + $0x8] sm:$0xff]
          %v2826 = vld [vmem:[%s2823 + $0x10] sm:$0xff]
          %v2828 = vsel %vm232, %v2821, 0
          %v2831 = vsel %vm232, %v2822, 0
          %2833 = vmatpush.msra.mxu0 0.0
          %2834 = vmatpush.msra.mxu0 0.0
          %2835 = vmatpush.msra.mxu0 0.0
          %2836 = vmatpush.msra.mxu0 0.0
          %2837 = vmatpush.msra.mxu0 0.0
          %2838 = vmatpush.msra.mxu0 0.0
          %2839 = vmatpush.msra.mxu0 0.0
          %2840 = vmatpush.msra.mxu0 0.0
          %2841 = vmatpush.msra.mxu0 0.0
          %2842 = vmatpush.msra.mxu0 0.0
          %2843 = vmatpush.msra.mxu0 0.0
          %2844 = vmatpush.msra.mxu0 0.0
          %2845 = vmatpush.msra.mxu0 0.0
          %v2846 = vand.u32 %v2826, 4294901760
          %2847 = vmatpush.msra.mxu0 %v2846
          %v2848 = vand.u32 %v2825, 4294901760
          %2849 = vmatpush.msra.mxu0 %v2848
          %v2850 = vand.u32 %v2824, 4294901760
          %2851 = vmatpush.msra.mxu0 %v2850
          %v2852 = vand.u32 %v2828, 4294901760
          %v2853 = vsub.f32 %v2828, %v2852
          %v2854 = vand.u32 %v2853, 4294901760
          %v2855 = vsub.f32 %v2853, %v2854
          %v2856 = vand.u32 %v2855, 4294901760
          %2857 = vmatmul.f32.gmra.mxu0 %v2856
          %v2858 = vpop.f32.mrf.mxu0
          %v2859 = vadd.f32 0.0, %v2858
          %v2860 = vand.u32 %v2831, 4294901760
          %v2861 = vsub.f32 %v2831, %v2860
          %v2862 = vand.u32 %v2861, 4294901760
          %v2863 = vsub.f32 %v2861, %v2862
          %v2864 = vand.u32 %v2863, 4294901760
          %2865 = vmatmul.f32.gmra.mxu0 %v2864
          %v2866 = vpop.f32.mrf.mxu0
          %v2867 = vadd.f32 0.0, %v2866
          %2868 = vdwg.mxu0
          %2869 = vmatpush.msra.mxu0 0.0
          %2870 = vmatpush.msra.mxu0 0.0
          %2871 = vmatpush.msra.mxu0 0.0
          %2872 = vmatpush.msra.mxu0 0.0
          %2873 = vmatpush.msra.mxu0 0.0
          %2874 = vmatpush.msra.mxu0 0.0
          %2875 = vmatpush.msra.mxu0 0.0
          %2876 = vmatpush.msra.mxu0 0.0
          %2877 = vmatpush.msra.mxu0 0.0
          %2878 = vmatpush.msra.mxu0 0.0
          %2879 = vmatpush.msra.mxu0 0.0
          %2880 = vmatpush.msra.mxu0 0.0
          %2881 = vmatpush.msra.mxu0 0.0
          %v2882 = vand.u32 %v2826, 4294901760
          %v2883 = vsub.f32 %v2826, %v2882
          %v2884 = vand.u32 %v2883, 4294901760
          %v2885 = vsub.f32 %v2883, %v2884
          %v2886 = vand.u32 %v2885, 4294901760
          %2887 = vmatpush.msra.mxu0 %v2886
          %v2888 = vand.u32 %v2825, 4294901760
          %v2889 = vsub.f32 %v2825, %v2888
          %v2890 = vand.u32 %v2889, 4294901760
          %v2891 = vsub.f32 %v2889, %v2890
          %v2892 = vand.u32 %v2891, 4294901760
          %2893 = vmatpush.msra.mxu0 %v2892
          %v2894 = vand.u32 %v2824, 4294901760
          %v2895 = vsub.f32 %v2824, %v2894
          %v2896 = vand.u32 %v2895, 4294901760
          %v2897 = vsub.f32 %v2895, %v2896
          %v2898 = vand.u32 %v2897, 4294901760
          %2899 = vmatpush.msra.mxu0 %v2898
          %v2900 = vand.u32 %v2828, 4294901760
          %2901 = vmatmul.f32.gmra.mxu0 %v2900
          %v2902 = vpop.f32.mrf.mxu0
          %v2903 = vadd.f32 %v2859, %v2902
          %v2904 = vand.u32 %v2831, 4294901760
          %2905 = vmatmul.f32.gmra.mxu0 %v2904
          %v2906 = vpop.f32.mrf.mxu0
          %v2907 = vadd.f32 %v2867, %v2906
          %2908 = vdwg.mxu0
          %2909 = vmatpush.msra.mxu0 0.0
          %2910 = vmatpush.msra.mxu0 0.0
          %2911 = vmatpush.msra.mxu0 0.0
          %2912 = vmatpush.msra.mxu0 0.0
          %2913 = vmatpush.msra.mxu0 0.0
          %2914 = vmatpush.msra.mxu0 0.0
          %2915 = vmatpush.msra.mxu0 0.0
          %2916 = vmatpush.msra.mxu0 0.0
          %2917 = vmatpush.msra.mxu0 0.0
          %2918 = vmatpush.msra.mxu0 0.0
          %2919 = vmatpush.msra.mxu0 0.0
          %2920 = vmatpush.msra.mxu0 0.0
          %2921 = vmatpush.msra.mxu0 0.0
          %v2922 = vand.u32 %v2826, 4294901760
          %v2923 = vsub.f32 %v2826, %v2922
          %2924 = vmatpush.msra.mxu0 %v2923
          %v2925 = vand.u32 %v2825, 4294901760
          %v2926 = vsub.f32 %v2825, %v2925
          %2927 = vmatpush.msra.mxu0 %v2926
          %v2928 = vand.u32 %v2824, 4294901760
          %v2929 = vsub.f32 %v2824, %v2928
          %2930 = vmatpush.msra.mxu0 %v2929
          %v2931 = vand.u32 %v2828, 4294901760
          %v2932 = vsub.f32 %v2828, %v2931
          %2933 = vmatmul.f32.gmra.mxu0 %v2932
          %v2934 = vpop.f32.mrf.mxu0
          %v2935 = vadd.f32 %v2903, %v2934
          %v2936 = vand.u32 %v2831, 4294901760
          %v2937 = vsub.f32 %v2831, %v2936
          %2938 = vmatmul.f32.gmra.mxu0 %v2937
          %v2939 = vpop.f32.mrf.mxu0
          %v2940 = vadd.f32 %v2907, %v2939
          %2941 = vdwg.mxu0
          %2942 = vmatpush.msra.mxu0 0.0
          %2943 = vmatpush.msra.mxu0 0.0
          %2944 = vmatpush.msra.mxu0 0.0
          %2945 = vmatpush.msra.mxu0 0.0
          %2946 = vmatpush.msra.mxu0 0.0
          %2947 = vmatpush.msra.mxu0 0.0
          %2948 = vmatpush.msra.mxu0 0.0
          %2949 = vmatpush.msra.mxu0 0.0
          %2950 = vmatpush.msra.mxu0 0.0
          %2951 = vmatpush.msra.mxu0 0.0
          %2952 = vmatpush.msra.mxu0 0.0
          %2953 = vmatpush.msra.mxu0 0.0
          %2954 = vmatpush.msra.mxu0 0.0
          %v2955 = vand.u32 %v2826, 4294901760
          %2956 = vmatpush.msra.mxu0 %v2955
          %v2957 = vand.u32 %v2825, 4294901760
          %2958 = vmatpush.msra.mxu0 %v2957
          %v2959 = vand.u32 %v2824, 4294901760
          %2960 = vmatpush.msra.mxu0 %v2959
          %v2961 = vand.u32 %v2828, 4294901760
          %v2962 = vsub.f32 %v2828, %v2961
          %v2963 = vand.u32 %v2962, 4294901760
          %2964 = vmatmul.f32.gmra.mxu0 %v2963
          %v2965 = vpop.f32.mrf.mxu0
          %v2966 = vadd.f32 %v2935, %v2965
          %v2967 = vand.u32 %v2831, 4294901760
          %v2968 = vsub.f32 %v2831, %v2967
          %v2969 = vand.u32 %v2968, 4294901760
          %2970 = vmatmul.f32.gmra.mxu0 %v2969
          %v2971 = vpop.f32.mrf.mxu0
          %v2972 = vadd.f32 %v2940, %v2971
          %2973 = vdwg.mxu0
          %2974 = vmatpush.msra.mxu0 0.0
          %2975 = vmatpush.msra.mxu0 0.0
          %2976 = vmatpush.msra.mxu0 0.0
          %2977 = vmatpush.msra.mxu0 0.0
          %2978 = vmatpush.msra.mxu0 0.0
          %2979 = vmatpush.msra.mxu0 0.0
          %2980 = vmatpush.msra.mxu0 0.0
          %2981 = vmatpush.msra.mxu0 0.0
          %2982 = vmatpush.msra.mxu0 0.0
          %2983 = vmatpush.msra.mxu0 0.0
          %2984 = vmatpush.msra.mxu0 0.0
          %2985 = vmatpush.msra.mxu0 0.0
          %2986 = vmatpush.msra.mxu0 0.0
          %v2987 = vand.u32 %v2826, 4294901760
          %v2988 = vsub.f32 %v2826, %v2987
          %v2989 = vand.u32 %v2988, 4294901760
          %2990 = vmatpush.msra.mxu0 %v2989
          %v2991 = vand.u32 %v2825, 4294901760
          %v2992 = vsub.f32 %v2825, %v2991
          %v2993 = vand.u32 %v2992, 4294901760
          %2994 = vmatpush.msra.mxu0 %v2993
          %v2995 = vand.u32 %v2824, 4294901760
          %v2996 = vsub.f32 %v2824, %v2995
          %v2997 = vand.u32 %v2996, 4294901760
          %2998 = vmatpush.msra.mxu0 %v2997
          %v2999 = vand.u32 %v2828, 4294901760
          %3000 = vmatmul.f32.gmra.mxu0 %v2999
          %v3001 = vpop.f32.mrf.mxu0
          %v3002 = vadd.f32 %v2966, %v3001
          %v3003 = vand.u32 %v2831, 4294901760
          %3004 = vmatmul.f32.gmra.mxu0 %v3003
          %v3005 = vpop.f32.mrf.mxu0
          %v3006 = vadd.f32 %v2972, %v3005
          %3007 = vdwg.mxu0
          %3008 = vmatpush.msra.mxu0 0.0
          %3009 = vmatpush.msra.mxu0 0.0
          %3010 = vmatpush.msra.mxu0 0.0
          %3011 = vmatpush.msra.mxu0 0.0
          %3012 = vmatpush.msra.mxu0 0.0
          %3013 = vmatpush.msra.mxu0 0.0
          %3014 = vmatpush.msra.mxu0 0.0
          %3015 = vmatpush.msra.mxu0 0.0
          %3016 = vmatpush.msra.mxu0 0.0
          %3017 = vmatpush.msra.mxu0 0.0
          %3018 = vmatpush.msra.mxu0 0.0
          %3019 = vmatpush.msra.mxu0 0.0
          %3020 = vmatpush.msra.mxu0 0.0
          %v3021 = vand.u32 %v2826, 4294901760
          %3022 = vmatpush.msra.mxu0 %v3021
          %v3023 = vand.u32 %v2825, 4294901760
          %3024 = vmatpush.msra.mxu0 %v3023
          %v3025 = vand.u32 %v2824, 4294901760
          %3026 = vmatpush.msra.mxu0 %v3025
          %v3027 = vand.u32 %v2828, 4294901760
          %3028 = vmatmul.f32.gmra.mxu0 %v3027
          %v3029 = vpop.f32.mrf.mxu0
          %v3030 = vadd.f32 %v3002, %v3029
          %v3031 = vand.u32 %v2831, 4294901760
          %3032 = vmatmul.f32.gmra.mxu0 %v3031
          %v3033 = vpop.f32.mrf.mxu0
          %v3034 = vadd.f32 %v3006, %v3033
          %3035 = vdwg.mxu0
          %v3036 = vadd.f32 %v2819, %v3030
          %v3037 = vadd.f32 %v2820, %v3034
          %v3038 = vld [vmem:[%s2173 + $0x4] sm:$0xff]
          %v3039 = vld [vmem:[%s2173 + $0xc] sm:$0xff]
          %s3040 = scalar_lea.vmem %s175, 312
          %v3041 = vld [vmem:[%s3040] sm:$0xff]
          %v3042 = vld [vmem:[%s3040 + $0x8] sm:$0xff]
          %v3043 = vld [vmem:[%s3040 + $0x10] sm:$0xff]
          %v3045 = vsel %vm232, %v3038, 0
          %v3048 = vsel %vm232, %v3039, 0
          %3050 = vmatpush.msra.mxu0 0.0
          %3051 = vmatpush.msra.mxu0 0.0
          %3052 = vmatpush.msra.mxu0 0.0
          %3053 = vmatpush.msra.mxu0 0.0
          %3054 = vmatpush.msra.mxu0 0.0
          %3055 = vmatpush.msra.mxu0 0.0
          %3056 = vmatpush.msra.mxu0 0.0
          %3057 = vmatpush.msra.mxu0 0.0
          %3058 = vmatpush.msra.mxu0 0.0
          %3059 = vmatpush.msra.mxu0 0.0
          %3060 = vmatpush.msra.mxu0 0.0
          %3061 = vmatpush.msra.mxu0 0.0
          %3062 = vmatpush.msra.mxu0 0.0
          %v3063 = vand.u32 %v3043, 4294901760
          %3064 = vmatpush.msra.mxu0 %v3063
          %v3065 = vand.u32 %v3042, 4294901760
          %3066 = vmatpush.msra.mxu0 %v3065
          %v3067 = vand.u32 %v3041, 4294901760
          %3068 = vmatpush.msra.mxu0 %v3067
          %v3069 = vand.u32 %v3045, 4294901760
          %v3070 = vsub.f32 %v3045, %v3069
          %v3071 = vand.u32 %v3070, 4294901760
          %v3072 = vsub.f32 %v3070, %v3071
          %v3073 = vand.u32 %v3072, 4294901760
          %3074 = vmatmul.f32.gmra.mxu0 %v3073
          %v3075 = vpop.f32.mrf.mxu0
          %v3076 = vadd.f32 0.0, %v3075
          %v3077 = vand.u32 %v3048, 4294901760
          %v3078 = vsub.f32 %v3048, %v3077
          %v3079 = vand.u32 %v3078, 4294901760
          %v3080 = vsub.f32 %v3078, %v3079
          %v3081 = vand.u32 %v3080, 4294901760
          %3082 = vmatmul.f32.gmra.mxu0 %v3081
          %v3083 = vpop.f32.mrf.mxu0
          %v3084 = vadd.f32 0.0, %v3083
          %3085 = vdwg.mxu0
          %3086 = vmatpush.msra.mxu0 0.0
          %3087 = vmatpush.msra.mxu0 0.0
          %3088 = vmatpush.msra.mxu0 0.0
          %3089 = vmatpush.msra.mxu0 0.0
          %3090 = vmatpush.msra.mxu0 0.0
          %3091 = vmatpush.msra.mxu0 0.0
          %3092 = vmatpush.msra.mxu0 0.0
          %3093 = vmatpush.msra.mxu0 0.0
          %3094 = vmatpush.msra.mxu0 0.0
          %3095 = vmatpush.msra.mxu0 0.0
          %3096 = vmatpush.msra.mxu0 0.0
          %3097 = vmatpush.msra.mxu0 0.0
          %3098 = vmatpush.msra.mxu0 0.0
          %v3099 = vand.u32 %v3043, 4294901760
          %v3100 = vsub.f32 %v3043, %v3099
          %v3101 = vand.u32 %v3100, 4294901760
          %v3102 = vsub.f32 %v3100, %v3101
          %v3103 = vand.u32 %v3102, 4294901760
          %3104 = vmatpush.msra.mxu0 %v3103
          %v3105 = vand.u32 %v3042, 4294901760
          %v3106 = vsub.f32 %v3042, %v3105
          %v3107 = vand.u32 %v3106, 4294901760
          %v3108 = vsub.f32 %v3106, %v3107
          %v3109 = vand.u32 %v3108, 4294901760
          %3110 = vmatpush.msra.mxu0 %v3109
          %v3111 = vand.u32 %v3041, 4294901760
          %v3112 = vsub.f32 %v3041, %v3111
          %v3113 = vand.u32 %v3112, 4294901760
          %v3114 = vsub.f32 %v3112, %v3113
          %v3115 = vand.u32 %v3114, 4294901760
          %3116 = vmatpush.msra.mxu0 %v3115
          %v3117 = vand.u32 %v3045, 4294901760
          %3118 = vmatmul.f32.gmra.mxu0 %v3117
          %v3119 = vpop.f32.mrf.mxu0
          %v3120 = vadd.f32 %v3076, %v3119
          %v3121 = vand.u32 %v3048, 4294901760
          %3122 = vmatmul.f32.gmra.mxu0 %v3121
          %v3123 = vpop.f32.mrf.mxu0
          %v3124 = vadd.f32 %v3084, %v3123
          %3125 = vdwg.mxu0
          %3126 = vmatpush.msra.mxu0 0.0
          %3127 = vmatpush.msra.mxu0 0.0
          %3128 = vmatpush.msra.mxu0 0.0
          %3129 = vmatpush.msra.mxu0 0.0
          %3130 = vmatpush.msra.mxu0 0.0
          %3131 = vmatpush.msra.mxu0 0.0
          %3132 = vmatpush.msra.mxu0 0.0
          %3133 = vmatpush.msra.mxu0 0.0
          %3134 = vmatpush.msra.mxu0 0.0
          %3135 = vmatpush.msra.mxu0 0.0
          %3136 = vmatpush.msra.mxu0 0.0
          %3137 = vmatpush.msra.mxu0 0.0
          %3138 = vmatpush.msra.mxu0 0.0
          %v3139 = vand.u32 %v3043, 4294901760
          %v3140 = vsub.f32 %v3043, %v3139
          %3141 = vmatpush.msra.mxu0 %v3140
          %v3142 = vand.u32 %v3042, 4294901760
          %v3143 = vsub.f32 %v3042, %v3142
          %3144 = vmatpush.msra.mxu0 %v3143
          %v3145 = vand.u32 %v3041, 4294901760
          %v3146 = vsub.f32 %v3041, %v3145
          %3147 = vmatpush.msra.mxu0 %v3146
          %v3148 = vand.u32 %v3045, 4294901760
          %v3149 = vsub.f32 %v3045, %v3148
          %3150 = vmatmul.f32.gmra.mxu0 %v3149
          %v3151 = vpop.f32.mrf.mxu0
          %v3152 = vadd.f32 %v3120, %v3151
          %v3153 = vand.u32 %v3048, 4294901760
          %v3154 = vsub.f32 %v3048, %v3153
          %3155 = vmatmul.f32.gmra.mxu0 %v3154
          %v3156 = vpop.f32.mrf.mxu0
          %v3157 = vadd.f32 %v3124, %v3156
          %3158 = vdwg.mxu0
          %3159 = vmatpush.msra.mxu0 0.0
          %3160 = vmatpush.msra.mxu0 0.0
          %3161 = vmatpush.msra.mxu0 0.0
          %3162 = vmatpush.msra.mxu0 0.0
          %3163 = vmatpush.msra.mxu0 0.0
          %3164 = vmatpush.msra.mxu0 0.0
          %3165 = vmatpush.msra.mxu0 0.0
          %3166 = vmatpush.msra.mxu0 0.0
          %3167 = vmatpush.msra.mxu0 0.0
          %3168 = vmatpush.msra.mxu0 0.0
          %3169 = vmatpush.msra.mxu0 0.0
          %3170 = vmatpush.msra.mxu0 0.0
          %3171 = vmatpush.msra.mxu0 0.0
          %v3172 = vand.u32 %v3043, 4294901760
          %3173 = vmatpush.msra.mxu0 %v3172
          %v3174 = vand.u32 %v3042, 4294901760
          %3175 = vmatpush.msra.mxu0 %v3174
          %v3176 = vand.u32 %v3041, 4294901760
          %3177 = vmatpush.msra.mxu0 %v3176
          %v3178 = vand.u32 %v3045, 4294901760
          %v3179 = vsub.f32 %v3045, %v3178
          %v3180 = vand.u32 %v3179, 4294901760
          %3181 = vmatmul.f32.gmra.mxu0 %v3180
          %v3182 = vpop.f32.mrf.mxu0
          %v3183 = vadd.f32 %v3152, %v3182
          %v3184 = vand.u32 %v3048, 4294901760
          %v3185 = vsub.f32 %v3048, %v3184
          %v3186 = vand.u32 %v3185, 4294901760
          %3187 = vmatmul.f32.gmra.mxu0 %v3186
          %v3188 = vpop.f32.mrf.mxu0
          %v3189 = vadd.f32 %v3157, %v3188
          %3190 = vdwg.mxu0
          %3191 = vmatpush.msra.mxu0 0.0
          %3192 = vmatpush.msra.mxu0 0.0
          %3193 = vmatpush.msra.mxu0 0.0
          %3194 = vmatpush.msra.mxu0 0.0
          %3195 = vmatpush.msra.mxu0 0.0
          %3196 = vmatpush.msra.mxu0 0.0
          %3197 = vmatpush.msra.mxu0 0.0
          %3198 = vmatpush.msra.mxu0 0.0
          %3199 = vmatpush.msra.mxu0 0.0
          %3200 = vmatpush.msra.mxu0 0.0
          %3201 = vmatpush.msra.mxu0 0.0
          %3202 = vmatpush.msra.mxu0 0.0
          %3203 = vmatpush.msra.mxu0 0.0
          %v3204 = vand.u32 %v3043, 4294901760
          %v3205 = vsub.f32 %v3043, %v3204
          %v3206 = vand.u32 %v3205, 4294901760
          %3207 = vmatpush.msra.mxu0 %v3206
          %v3208 = vand.u32 %v3042, 4294901760
          %v3209 = vsub.f32 %v3042, %v3208
          %v3210 = vand.u32 %v3209, 4294901760
          %3211 = vmatpush.msra.mxu0 %v3210
          %v3212 = vand.u32 %v3041, 4294901760
          %v3213 = vsub.f32 %v3041, %v3212
          %v3214 = vand.u32 %v3213, 4294901760
          %3215 = vmatpush.msra.mxu0 %v3214
          %v3216 = vand.u32 %v3045, 4294901760
          %3217 = vmatmul.f32.gmra.mxu0 %v3216
          %v3218 = vpop.f32.mrf.mxu0
          %v3219 = vadd.f32 %v3183, %v3218
          %v3220 = vand.u32 %v3048, 4294901760
          %3221 = vmatmul.f32.gmra.mxu0 %v3220
          %v3222 = vpop.f32.mrf.mxu0
          %v3223 = vadd.f32 %v3189, %v3222
          %3224 = vdwg.mxu0
          %3225 = vmatpush.msra.mxu0 0.0
          %3226 = vmatpush.msra.mxu0 0.0
          %3227 = vmatpush.msra.mxu0 0.0
          %3228 = vmatpush.msra.mxu0 0.0
          %3229 = vmatpush.msra.mxu0 0.0
          %3230 = vmatpush.msra.mxu0 0.0
          %3231 = vmatpush.msra.mxu0 0.0
          %3232 = vmatpush.msra.mxu0 0.0
          %3233 = vmatpush.msra.mxu0 0.0
          %3234 = vmatpush.msra.mxu0 0.0
          %3235 = vmatpush.msra.mxu0 0.0
          %3236 = vmatpush.msra.mxu0 0.0
          %3237 = vmatpush.msra.mxu0 0.0
          %v3238 = vand.u32 %v3043, 4294901760
          %3239 = vmatpush.msra.mxu0 %v3238
          %v3240 = vand.u32 %v3042, 4294901760
          %3241 = vmatpush.msra.mxu0 %v3240
          %v3242 = vand.u32 %v3041, 4294901760
          %3243 = vmatpush.msra.mxu0 %v3242
          %v3244 = vand.u32 %v3045, 4294901760
          %3245 = vmatmul.f32.gmra.mxu0 %v3244
          %v3246 = vpop.f32.mrf.mxu0
          %v3247 = vadd.f32 %v3219, %v3246
          %v3248 = vand.u32 %v3048, 4294901760
          %3249 = vmatmul.f32.gmra.mxu0 %v3248
          %v3250 = vpop.f32.mrf.mxu0
          %v3251 = vadd.f32 %v3223, %v3250
          %3252 = vdwg.mxu0
          %v3253 = vadd.f32 %v3036, %v3247
          %v3254 = vadd.f32 %v3037, %v3251
          %v3255 = vld [vmem:[%s2173 + $0x5] sm:$0xff]
          %v3256 = vld [vmem:[%s2173 + $0xd] sm:$0xff]
          %s3257 = scalar_lea.vmem %s175, 336
          %v3258 = vld [vmem:[%s3257] sm:$0xff]
          %v3259 = vld [vmem:[%s3257 + $0x8] sm:$0xff]
          %v3260 = vld [vmem:[%s3257 + $0x10] sm:$0xff]
          %v3262 = vsel %vm232, %v3255, 0
          %v3265 = vsel %vm232, %v3256, 0
          %3267 = vmatpush.msra.mxu0 0.0
          %3268 = vmatpush.msra.mxu0 0.0
          %3269 = vmatpush.msra.mxu0 0.0
          %3270 = vmatpush.msra.mxu0 0.0
          %3271 = vmatpush.msra.mxu0 0.0
          %3272 = vmatpush.msra.mxu0 0.0
          %3273 = vmatpush.msra.mxu0 0.0
          %3274 = vmatpush.msra.mxu0 0.0
          %3275 = vmatpush.msra.mxu0 0.0
          %3276 = vmatpush.msra.mxu0 0.0
          %3277 = vmatpush.msra.mxu0 0.0
          %3278 = vmatpush.msra.mxu0 0.0
          %3279 = vmatpush.msra.mxu0 0.0
          %v3280 = vand.u32 %v3260, 4294901760
          %3281 = vmatpush.msra.mxu0 %v3280
          %v3282 = vand.u32 %v3259, 4294901760
          %3283 = vmatpush.msra.mxu0 %v3282
          %v3284 = vand.u32 %v3258, 4294901760
          %3285 = vmatpush.msra.mxu0 %v3284
          %v3286 = vand.u32 %v3262, 4294901760
          %v3287 = vsub.f32 %v3262, %v3286
          %v3288 = vand.u32 %v3287, 4294901760
          %v3289 = vsub.f32 %v3287, %v3288
          %v3290 = vand.u32 %v3289, 4294901760
          %3291 = vmatmul.f32.gmra.mxu0 %v3290
          %v3292 = vpop.f32.mrf.mxu0
          %v3293 = vadd.f32 0.0, %v3292
          %v3294 = vand.u32 %v3265, 4294901760
          %v3295 = vsub.f32 %v3265, %v3294
          %v3296 = vand.u32 %v3295, 4294901760
          %v3297 = vsub.f32 %v3295, %v3296
          %v3298 = vand.u32 %v3297, 4294901760
          %3299 = vmatmul.f32.gmra.mxu0 %v3298
          %v3300 = vpop.f32.mrf.mxu0
          %v3301 = vadd.f32 0.0, %v3300
          %3302 = vdwg.mxu0
          %3303 = vmatpush.msra.mxu0 0.0
          %3304 = vmatpush.msra.mxu0 0.0
          %3305 = vmatpush.msra.mxu0 0.0
          %3306 = vmatpush.msra.mxu0 0.0
          %3307 = vmatpush.msra.mxu0 0.0
          %3308 = vmatpush.msra.mxu0 0.0
          %3309 = vmatpush.msra.mxu0 0.0
          %3310 = vmatpush.msra.mxu0 0.0
          %3311 = vmatpush.msra.mxu0 0.0
          %3312 = vmatpush.msra.mxu0 0.0
          %3313 = vmatpush.msra.mxu0 0.0
          %3314 = vmatpush.msra.mxu0 0.0
          %3315 = vmatpush.msra.mxu0 0.0
          %v3316 = vand.u32 %v3260, 4294901760
          %v3317 = vsub.f32 %v3260, %v3316
          %v3318 = vand.u32 %v3317, 4294901760
          %v3319 = vsub.f32 %v3317, %v3318
          %v3320 = vand.u32 %v3319, 4294901760
          %3321 = vmatpush.msra.mxu0 %v3320
          %v3322 = vand.u32 %v3259, 4294901760
          %v3323 = vsub.f32 %v3259, %v3322
          %v3324 = vand.u32 %v3323, 4294901760
          %v3325 = vsub.f32 %v3323, %v3324
          %v3326 = vand.u32 %v3325, 4294901760
          %3327 = vmatpush.msra.mxu0 %v3326
          %v3328 = vand.u32 %v3258, 4294901760
          %v3329 = vsub.f32 %v3258, %v3328
          %v3330 = vand.u32 %v3329, 4294901760
          %v3331 = vsub.f32 %v3329, %v3330
          %v3332 = vand.u32 %v3331, 4294901760
          %3333 = vmatpush.msra.mxu0 %v3332
          %v3334 = vand.u32 %v3262, 4294901760
          %3335 = vmatmul.f32.gmra.mxu0 %v3334
          %v3336 = vpop.f32.mrf.mxu0
          %v3337 = vadd.f32 %v3293, %v3336
          %v3338 = vand.u32 %v3265, 4294901760
          %3339 = vmatmul.f32.gmra.mxu0 %v3338
          %v3340 = vpop.f32.mrf.mxu0
          %v3341 = vadd.f32 %v3301, %v3340
          %3342 = vdwg.mxu0
          %3343 = vmatpush.msra.mxu0 0.0
          %3344 = vmatpush.msra.mxu0 0.0
          %3345 = vmatpush.msra.mxu0 0.0
          %3346 = vmatpush.msra.mxu0 0.0
          %3347 = vmatpush.msra.mxu0 0.0
          %3348 = vmatpush.msra.mxu0 0.0
          %3349 = vmatpush.msra.mxu0 0.0
          %3350 = vmatpush.msra.mxu0 0.0
          %3351 = vmatpush.msra.mxu0 0.0
          %3352 = vmatpush.msra.mxu0 0.0
          %3353 = vmatpush.msra.mxu0 0.0
          %3354 = vmatpush.msra.mxu0 0.0
          %3355 = vmatpush.msra.mxu0 0.0
          %v3356 = vand.u32 %v3260, 4294901760
          %v3357 = vsub.f32 %v3260, %v3356
          %3358 = vmatpush.msra.mxu0 %v3357
          %v3359 = vand.u32 %v3259, 4294901760
          %v3360 = vsub.f32 %v3259, %v3359
          %3361 = vmatpush.msra.mxu0 %v3360
          %v3362 = vand.u32 %v3258, 4294901760
          %v3363 = vsub.f32 %v3258, %v3362
          %3364 = vmatpush.msra.mxu0 %v3363
          %v3365 = vand.u32 %v3262, 4294901760
          %v3366 = vsub.f32 %v3262, %v3365
          %3367 = vmatmul.f32.gmra.mxu0 %v3366
          %v3368 = vpop.f32.mrf.mxu0
          %v3369 = vadd.f32 %v3337, %v3368
          %v3370 = vand.u32 %v3265, 4294901760
          %v3371 = vsub.f32 %v3265, %v3370
          %3372 = vmatmul.f32.gmra.mxu0 %v3371
          %v3373 = vpop.f32.mrf.mxu0
          %v3374 = vadd.f32 %v3341, %v3373
          %3375 = vdwg.mxu0
          %3376 = vmatpush.msra.mxu0 0.0
          %3377 = vmatpush.msra.mxu0 0.0
          %3378 = vmatpush.msra.mxu0 0.0
          %3379 = vmatpush.msra.mxu0 0.0
          %3380 = vmatpush.msra.mxu0 0.0
          %3381 = vmatpush.msra.mxu0 0.0
          %3382 = vmatpush.msra.mxu0 0.0
          %3383 = vmatpush.msra.mxu0 0.0
          %3384 = vmatpush.msra.mxu0 0.0
          %3385 = vmatpush.msra.mxu0 0.0
          %3386 = vmatpush.msra.mxu0 0.0
          %3387 = vmatpush.msra.mxu0 0.0
          %3388 = vmatpush.msra.mxu0 0.0
          %v3389 = vand.u32 %v3260, 4294901760
          %3390 = vmatpush.msra.mxu0 %v3389
          %v3391 = vand.u32 %v3259, 4294901760
          %3392 = vmatpush.msra.mxu0 %v3391
          %v3393 = vand.u32 %v3258, 4294901760
          %3394 = vmatpush.msra.mxu0 %v3393
          %v3395 = vand.u32 %v3262, 4294901760
          %v3396 = vsub.f32 %v3262, %v3395
          %v3397 = vand.u32 %v3396, 4294901760
          %3398 = vmatmul.f32.gmra.mxu0 %v3397
          %v3399 = vpop.f32.mrf.mxu0
          %v3400 = vadd.f32 %v3369, %v3399
          %v3401 = vand.u32 %v3265, 4294901760
          %v3402 = vsub.f32 %v3265, %v3401
          %v3403 = vand.u32 %v3402, 4294901760
          %3404 = vmatmul.f32.gmra.mxu0 %v3403
          %v3405 = vpop.f32.mrf.mxu0
          %v3406 = vadd.f32 %v3374, %v3405
          %3407 = vdwg.mxu0
          %3408 = vmatpush.msra.mxu0 0.0
          %3409 = vmatpush.msra.mxu0 0.0
          %3410 = vmatpush.msra.mxu0 0.0
          %3411 = vmatpush.msra.mxu0 0.0
          %3412 = vmatpush.msra.mxu0 0.0
          %3413 = vmatpush.msra.mxu0 0.0
          %3414 = vmatpush.msra.mxu0 0.0
          %3415 = vmatpush.msra.mxu0 0.0
          %3416 = vmatpush.msra.mxu0 0.0
          %3417 = vmatpush.msra.mxu0 0.0
          %3418 = vmatpush.msra.mxu0 0.0
          %3419 = vmatpush.msra.mxu0 0.0
          %3420 = vmatpush.msra.mxu0 0.0
          %v3421 = vand.u32 %v3260, 4294901760
          %v3422 = vsub.f32 %v3260, %v3421
          %v3423 = vand.u32 %v3422, 4294901760
          %3424 = vmatpush.msra.mxu0 %v3423
          %v3425 = vand.u32 %v3259, 4294901760
          %v3426 = vsub.f32 %v3259, %v3425
          %v3427 = vand.u32 %v3426, 4294901760
          %3428 = vmatpush.msra.mxu0 %v3427
          %v3429 = vand.u32 %v3258, 4294901760
          %v3430 = vsub.f32 %v3258, %v3429
          %v3431 = vand.u32 %v3430, 4294901760
          %3432 = vmatpush.msra.mxu0 %v3431
          %v3433 = vand.u32 %v3262, 4294901760
          %3434 = vmatmul.f32.gmra.mxu0 %v3433
          %v3435 = vpop.f32.mrf.mxu0
          %v3436 = vadd.f32 %v3400, %v3435
          %v3437 = vand.u32 %v3265, 4294901760
          %3438 = vmatmul.f32.gmra.mxu0 %v3437
          %v3439 = vpop.f32.mrf.mxu0
          %v3440 = vadd.f32 %v3406, %v3439
          %3441 = vdwg.mxu0
          %3442 = vmatpush.msra.mxu0 0.0
          %3443 = vmatpush.msra.mxu0 0.0
          %3444 = vmatpush.msra.mxu0 0.0
          %3445 = vmatpush.msra.mxu0 0.0
          %3446 = vmatpush.msra.mxu0 0.0
          %3447 = vmatpush.msra.mxu0 0.0
          %3448 = vmatpush.msra.mxu0 0.0
          %3449 = vmatpush.msra.mxu0 0.0
          %3450 = vmatpush.msra.mxu0 0.0
          %3451 = vmatpush.msra.mxu0 0.0
          %3452 = vmatpush.msra.mxu0 0.0
          %3453 = vmatpush.msra.mxu0 0.0
          %3454 = vmatpush.msra.mxu0 0.0
          %v3455 = vand.u32 %v3260, 4294901760
          %3456 = vmatpush.msra.mxu0 %v3455
          %v3457 = vand.u32 %v3259, 4294901760
          %3458 = vmatpush.msra.mxu0 %v3457
          %v3459 = vand.u32 %v3258, 4294901760
          %3460 = vmatpush.msra.mxu0 %v3459
          %v3461 = vand.u32 %v3262, 4294901760
          %3462 = vmatmul.f32.gmra.mxu0 %v3461
          %v3463 = vpop.f32.mrf.mxu0
          %v3464 = vadd.f32 %v3436, %v3463
          %v3465 = vand.u32 %v3265, 4294901760
          %3466 = vmatmul.f32.gmra.mxu0 %v3465
          %v3467 = vpop.f32.mrf.mxu0
          %v3468 = vadd.f32 %v3440, %v3467
          %3469 = vdwg.mxu0
          %v3470 = vadd.f32 %v3253, %v3464
          %v3471 = vadd.f32 %v3254, %v3468
          %v3472 = vld [vmem:[%s2173 + $0x6] sm:$0xff]
          %v3473 = vld [vmem:[%s2173 + $0xe] sm:$0xff]
          %s3474 = scalar_lea.vmem %s175, 360
          %v3475 = vld [vmem:[%s3474] sm:$0xff]
          %v3476 = vld [vmem:[%s3474 + $0x8] sm:$0xff]
          %v3477 = vld [vmem:[%s3474 + $0x10] sm:$0xff]
          %v3479 = vsel %vm232, %v3472, 0
          %v3482 = vsel %vm232, %v3473, 0
          %3484 = vmatpush.msra.mxu0 0.0
          %3485 = vmatpush.msra.mxu0 0.0
          %3486 = vmatpush.msra.mxu0 0.0
          %3487 = vmatpush.msra.mxu0 0.0
          %3488 = vmatpush.msra.mxu0 0.0
          %3489 = vmatpush.msra.mxu0 0.0
          %3490 = vmatpush.msra.mxu0 0.0
          %3491 = vmatpush.msra.mxu0 0.0
          %3492 = vmatpush.msra.mxu0 0.0
          %3493 = vmatpush.msra.mxu0 0.0
          %3494 = vmatpush.msra.mxu0 0.0
          %3495 = vmatpush.msra.mxu0 0.0
          %3496 = vmatpush.msra.mxu0 0.0
          %v3497 = vand.u32 %v3477, 4294901760
          %3498 = vmatpush.msra.mxu0 %v3497
          %v3499 = vand.u32 %v3476, 4294901760
          %3500 = vmatpush.msra.mxu0 %v3499
          %v3501 = vand.u32 %v3475, 4294901760
          %3502 = vmatpush.msra.mxu0 %v3501
          %v3503 = vand.u32 %v3479, 4294901760
          %v3504 = vsub.f32 %v3479, %v3503
          %v3505 = vand.u32 %v3504, 4294901760
          %v3506 = vsub.f32 %v3504, %v3505
          %v3507 = vand.u32 %v3506, 4294901760
          %3508 = vmatmul.f32.gmra.mxu0 %v3507
          %v3509 = vpop.f32.mrf.mxu0
          %v3510 = vadd.f32 0.0, %v3509
          %v3511 = vand.u32 %v3482, 4294901760
          %v3512 = vsub.f32 %v3482, %v3511
          %v3513 = vand.u32 %v3512, 4294901760
          %v3514 = vsub.f32 %v3512, %v3513
          %v3515 = vand.u32 %v3514, 4294901760
          %3516 = vmatmul.f32.gmra.mxu0 %v3515
          %v3517 = vpop.f32.mrf.mxu0
          %v3518 = vadd.f32 0.0, %v3517
          %3519 = vdwg.mxu0
          %3520 = vmatpush.msra.mxu0 0.0
          %3521 = vmatpush.msra.mxu0 0.0
          %3522 = vmatpush.msra.mxu0 0.0
          %3523 = vmatpush.msra.mxu0 0.0
          %3524 = vmatpush.msra.mxu0 0.0
          %3525 = vmatpush.msra.mxu0 0.0
          %3526 = vmatpush.msra.mxu0 0.0
          %3527 = vmatpush.msra.mxu0 0.0
          %3528 = vmatpush.msra.mxu0 0.0
          %3529 = vmatpush.msra.mxu0 0.0
          %3530 = vmatpush.msra.mxu0 0.0
          %3531 = vmatpush.msra.mxu0 0.0
          %3532 = vmatpush.msra.mxu0 0.0
          %v3533 = vand.u32 %v3477, 4294901760
          %v3534 = vsub.f32 %v3477, %v3533
          %v3535 = vand.u32 %v3534, 4294901760
          %v3536 = vsub.f32 %v3534, %v3535
          %v3537 = vand.u32 %v3536, 4294901760
          %3538 = vmatpush.msra.mxu0 %v3537
          %v3539 = vand.u32 %v3476, 4294901760
          %v3540 = vsub.f32 %v3476, %v3539
          %v3541 = vand.u32 %v3540, 4294901760
          %v3542 = vsub.f32 %v3540, %v3541
          %v3543 = vand.u32 %v3542, 4294901760
          %3544 = vmatpush.msra.mxu0 %v3543
          %v3545 = vand.u32 %v3475, 4294901760
          %v3546 = vsub.f32 %v3475, %v3545
          %v3547 = vand.u32 %v3546, 4294901760
          %v3548 = vsub.f32 %v3546, %v3547
          %v3549 = vand.u32 %v3548, 4294901760
          %3550 = vmatpush.msra.mxu0 %v3549
          %v3551 = vand.u32 %v3479, 4294901760
          %3552 = vmatmul.f32.gmra.mxu0 %v3551
          %v3553 = vpop.f32.mrf.mxu0
          %v3554 = vadd.f32 %v3510, %v3553
          %v3555 = vand.u32 %v3482, 4294901760
          %3556 = vmatmul.f32.gmra.mxu0 %v3555
          %v3557 = vpop.f32.mrf.mxu0
          %v3558 = vadd.f32 %v3518, %v3557
          %3559 = vdwg.mxu0
          %3560 = vmatpush.msra.mxu0 0.0
          %3561 = vmatpush.msra.mxu0 0.0
          %3562 = vmatpush.msra.mxu0 0.0
          %3563 = vmatpush.msra.mxu0 0.0
          %3564 = vmatpush.msra.mxu0 0.0
          %3565 = vmatpush.msra.mxu0 0.0
          %3566 = vmatpush.msra.mxu0 0.0
          %3567 = vmatpush.msra.mxu0 0.0
          %3568 = vmatpush.msra.mxu0 0.0
          %3569 = vmatpush.msra.mxu0 0.0
          %3570 = vmatpush.msra.mxu0 0.0
          %3571 = vmatpush.msra.mxu0 0.0
          %3572 = vmatpush.msra.mxu0 0.0
          %v3573 = vand.u32 %v3477, 4294901760
          %v3574 = vsub.f32 %v3477, %v3573
          %3575 = vmatpush.msra.mxu0 %v3574
          %v3576 = vand.u32 %v3476, 4294901760
          %v3577 = vsub.f32 %v3476, %v3576
          %3578 = vmatpush.msra.mxu0 %v3577
          %v3579 = vand.u32 %v3475, 4294901760
          %v3580 = vsub.f32 %v3475, %v3579
          %3581 = vmatpush.msra.mxu0 %v3580
          %v3582 = vand.u32 %v3479, 4294901760
          %v3583 = vsub.f32 %v3479, %v3582
          %3584 = vmatmul.f32.gmra.mxu0 %v3583
          %v3585 = vpop.f32.mrf.mxu0
          %v3586 = vadd.f32 %v3554, %v3585
          %v3587 = vand.u32 %v3482, 4294901760
          %v3588 = vsub.f32 %v3482, %v3587
          %3589 = vmatmul.f32.gmra.mxu0 %v3588
          %v3590 = vpop.f32.mrf.mxu0
          %v3591 = vadd.f32 %v3558, %v3590
          %3592 = vdwg.mxu0
          %3593 = vmatpush.msra.mxu0 0.0
          %3594 = vmatpush.msra.mxu0 0.0
          %3595 = vmatpush.msra.mxu0 0.0
          %3596 = vmatpush.msra.mxu0 0.0
          %3597 = vmatpush.msra.mxu0 0.0
          %3598 = vmatpush.msra.mxu0 0.0
          %3599 = vmatpush.msra.mxu0 0.0
          %3600 = vmatpush.msra.mxu0 0.0
          %3601 = vmatpush.msra.mxu0 0.0
          %3602 = vmatpush.msra.mxu0 0.0
          %3603 = vmatpush.msra.mxu0 0.0
          %3604 = vmatpush.msra.mxu0 0.0
          %3605 = vmatpush.msra.mxu0 0.0
          %v3606 = vand.u32 %v3477, 4294901760
          %3607 = vmatpush.msra.mxu0 %v3606
          %v3608 = vand.u32 %v3476, 4294901760
          %3609 = vmatpush.msra.mxu0 %v3608
          %v3610 = vand.u32 %v3475, 4294901760
          %3611 = vmatpush.msra.mxu0 %v3610
          %v3612 = vand.u32 %v3479, 4294901760
          %v3613 = vsub.f32 %v3479, %v3612
          %v3614 = vand.u32 %v3613, 4294901760
          %3615 = vmatmul.f32.gmra.mxu0 %v3614
          %v3616 = vpop.f32.mrf.mxu0
          %v3617 = vadd.f32 %v3586, %v3616
          %v3618 = vand.u32 %v3482, 4294901760
          %v3619 = vsub.f32 %v3482, %v3618
          %v3620 = vand.u32 %v3619, 4294901760
          %3621 = vmatmul.f32.gmra.mxu0 %v3620
          %v3622 = vpop.f32.mrf.mxu0
          %v3623 = vadd.f32 %v3591, %v3622
          %3624 = vdwg.mxu0
          %3625 = vmatpush.msra.mxu0 0.0
          %3626 = vmatpush.msra.mxu0 0.0
          %3627 = vmatpush.msra.mxu0 0.0
          %3628 = vmatpush.msra.mxu0 0.0
          %3629 = vmatpush.msra.mxu0 0.0
          %3630 = vmatpush.msra.mxu0 0.0
          %3631 = vmatpush.msra.mxu0 0.0
          %3632 = vmatpush.msra.mxu0 0.0
          %3633 = vmatpush.msra.mxu0 0.0
          %3634 = vmatpush.msra.mxu0 0.0
          %3635 = vmatpush.msra.mxu0 0.0
          %3636 = vmatpush.msra.mxu0 0.0
          %3637 = vmatpush.msra.mxu0 0.0
          %v3638 = vand.u32 %v3477, 4294901760
          %v3639 = vsub.f32 %v3477, %v3638
          %v3640 = vand.u32 %v3639, 4294901760
          %3641 = vmatpush.msra.mxu0 %v3640
          %v3642 = vand.u32 %v3476, 4294901760
          %v3643 = vsub.f32 %v3476, %v3642
          %v3644 = vand.u32 %v3643, 4294901760
          %3645 = vmatpush.msra.mxu0 %v3644
          %v3646 = vand.u32 %v3475, 4294901760
          %v3647 = vsub.f32 %v3475, %v3646
          %v3648 = vand.u32 %v3647, 4294901760
          %3649 = vmatpush.msra.mxu0 %v3648
          %v3650 = vand.u32 %v3479, 4294901760
          %3651 = vmatmul.f32.gmra.mxu0 %v3650
          %v3652 = vpop.f32.mrf.mxu0
          %v3653 = vadd.f32 %v3617, %v3652
          %v3654 = vand.u32 %v3482, 4294901760
          %3655 = vmatmul.f32.gmra.mxu0 %v3654
          %v3656 = vpop.f32.mrf.mxu0
          %v3657 = vadd.f32 %v3623, %v3656
          %3658 = vdwg.mxu0
          %3659 = vmatpush.msra.mxu0 0.0
          %3660 = vmatpush.msra.mxu0 0.0
          %3661 = vmatpush.msra.mxu0 0.0
          %3662 = vmatpush.msra.mxu0 0.0
          %3663 = vmatpush.msra.mxu0 0.0
          %3664 = vmatpush.msra.mxu0 0.0
          %3665 = vmatpush.msra.mxu0 0.0
          %3666 = vmatpush.msra.mxu0 0.0
          %3667 = vmatpush.msra.mxu0 0.0
          %3668 = vmatpush.msra.mxu0 0.0
          %3669 = vmatpush.msra.mxu0 0.0
          %3670 = vmatpush.msra.mxu0 0.0
          %3671 = vmatpush.msra.mxu0 0.0
          %v3672 = vand.u32 %v3477, 4294901760
          %3673 = vmatpush.msra.mxu0 %v3672
          %v3674 = vand.u32 %v3476, 4294901760
          %3675 = vmatpush.msra.mxu0 %v3674
          %v3676 = vand.u32 %v3475, 4294901760
          %3677 = vmatpush.msra.mxu0 %v3676
          %v3678 = vand.u32 %v3479, 4294901760
          %3679 = vmatmul.f32.gmra.mxu0 %v3678
          %v3680 = vpop.f32.mrf.mxu0
          %v3681 = vadd.f32 %v3653, %v3680
          %v3682 = vand.u32 %v3482, 4294901760
          %3683 = vmatmul.f32.gmra.mxu0 %v3682
          %v3684 = vpop.f32.mrf.mxu0
          %v3685 = vadd.f32 %v3657, %v3684
          %3686 = vdwg.mxu0
          %v3687 = vadd.f32 %v3470, %v3681
          %v3688 = vadd.f32 %v3471, %v3685
          %v3689 = vld [vmem:[%s2173 + $0x7] sm:$0xff]
          %v3690 = vld [vmem:[%s2173 + $0xf] sm:$0xff]
          %s3691 = scalar_lea.vmem %s175, 384
          %v3692 = vld [vmem:[%s3691] sm:$0xff]
          %v3693 = vld [vmem:[%s3691 + $0x8] sm:$0xff]
          %v3694 = vld [vmem:[%s3691 + $0x10] sm:$0xff]
          %v3696 = vsel %vm232, %v3689, 0
          %v3699 = vsel %vm232, %v3690, 0
          %3701 = vmatpush.msra.mxu0 0.0
          %3702 = vmatpush.msra.mxu0 0.0
          %3703 = vmatpush.msra.mxu0 0.0
          %3704 = vmatpush.msra.mxu0 0.0
          %3705 = vmatpush.msra.mxu0 0.0
          %3706 = vmatpush.msra.mxu0 0.0
          %3707 = vmatpush.msra.mxu0 0.0
          %3708 = vmatpush.msra.mxu0 0.0
          %3709 = vmatpush.msra.mxu0 0.0
          %3710 = vmatpush.msra.mxu0 0.0
          %3711 = vmatpush.msra.mxu0 0.0
          %3712 = vmatpush.msra.mxu0 0.0
          %3713 = vmatpush.msra.mxu0 0.0
          %v3714 = vand.u32 %v3694, 4294901760
          %3715 = vmatpush.msra.mxu0 %v3714
          %v3716 = vand.u32 %v3693, 4294901760
          %3717 = vmatpush.msra.mxu0 %v3716
          %v3718 = vand.u32 %v3692, 4294901760
          %3719 = vmatpush.msra.mxu0 %v3718
          %v3720 = vand.u32 %v3696, 4294901760
          %v3721 = vsub.f32 %v3696, %v3720
          %v3722 = vand.u32 %v3721, 4294901760
          %v3723 = vsub.f32 %v3721, %v3722
          %v3724 = vand.u32 %v3723, 4294901760
          %3725 = vmatmul.f32.gmra.mxu0 %v3724
          %v3726 = vpop.f32.mrf.mxu0
          %v3727 = vadd.f32 0.0, %v3726
          %v3728 = vand.u32 %v3699, 4294901760
          %v3729 = vsub.f32 %v3699, %v3728
          %v3730 = vand.u32 %v3729, 4294901760
          %v3731 = vsub.f32 %v3729, %v3730
          %v3732 = vand.u32 %v3731, 4294901760
          %3733 = vmatmul.f32.gmra.mxu0 %v3732
          %v3734 = vpop.f32.mrf.mxu0
          %v3735 = vadd.f32 0.0, %v3734
          %3736 = vdwg.mxu0
          %3737 = vmatpush.msra.mxu0 0.0
          %3738 = vmatpush.msra.mxu0 0.0
          %3739 = vmatpush.msra.mxu0 0.0
          %3740 = vmatpush.msra.mxu0 0.0
          %3741 = vmatpush.msra.mxu0 0.0
          %3742 = vmatpush.msra.mxu0 0.0
          %3743 = vmatpush.msra.mxu0 0.0
          %3744 = vmatpush.msra.mxu0 0.0
          %3745 = vmatpush.msra.mxu0 0.0
          %3746 = vmatpush.msra.mxu0 0.0
          %3747 = vmatpush.msra.mxu0 0.0
          %3748 = vmatpush.msra.mxu0 0.0
          %3749 = vmatpush.msra.mxu0 0.0
          %v3750 = vand.u32 %v3694, 4294901760
          %v3751 = vsub.f32 %v3694, %v3750
          %v3752 = vand.u32 %v3751, 4294901760
          %v3753 = vsub.f32 %v3751, %v3752
          %v3754 = vand.u32 %v3753, 4294901760
          %3755 = vmatpush.msra.mxu0 %v3754
          %v3756 = vand.u32 %v3693, 4294901760
          %v3757 = vsub.f32 %v3693, %v3756
          %v3758 = vand.u32 %v3757, 4294901760
          %v3759 = vsub.f32 %v3757, %v3758
          %v3760 = vand.u32 %v3759, 4294901760
          %3761 = vmatpush.msra.mxu0 %v3760
          %v3762 = vand.u32 %v3692, 4294901760
          %v3763 = vsub.f32 %v3692, %v3762
          %v3764 = vand.u32 %v3763, 4294901760
          %v3765 = vsub.f32 %v3763, %v3764
          %v3766 = vand.u32 %v3765, 4294901760
          %3767 = vmatpush.msra.mxu0 %v3766
          %v3768 = vand.u32 %v3696, 4294901760
          %3769 = vmatmul.f32.gmra.mxu0 %v3768
          %v3770 = vpop.f32.mrf.mxu0
          %v3771 = vadd.f32 %v3727, %v3770
          %v3772 = vand.u32 %v3699, 4294901760
          %3773 = vmatmul.f32.gmra.mxu0 %v3772
          %v3774 = vpop.f32.mrf.mxu0
          %v3775 = vadd.f32 %v3735, %v3774
          %3776 = vdwg.mxu0
          %3777 = vmatpush.msra.mxu0 0.0
          %3778 = vmatpush.msra.mxu0 0.0
          %3779 = vmatpush.msra.mxu0 0.0
          %3780 = vmatpush.msra.mxu0 0.0
          %3781 = vmatpush.msra.mxu0 0.0
          %3782 = vmatpush.msra.mxu0 0.0
          %3783 = vmatpush.msra.mxu0 0.0
          %3784 = vmatpush.msra.mxu0 0.0
          %3785 = vmatpush.msra.mxu0 0.0
          %3786 = vmatpush.msra.mxu0 0.0
          %3787 = vmatpush.msra.mxu0 0.0
          %3788 = vmatpush.msra.mxu0 0.0
          %3789 = vmatpush.msra.mxu0 0.0
          %v3790 = vand.u32 %v3694, 4294901760
          %v3791 = vsub.f32 %v3694, %v3790
          %3792 = vmatpush.msra.mxu0 %v3791
          %v3793 = vand.u32 %v3693, 4294901760
          %v3794 = vsub.f32 %v3693, %v3793
          %3795 = vmatpush.msra.mxu0 %v3794
          %v3796 = vand.u32 %v3692, 4294901760
          %v3797 = vsub.f32 %v3692, %v3796
          %3798 = vmatpush.msra.mxu0 %v3797
          %v3799 = vand.u32 %v3696, 4294901760
          %v3800 = vsub.f32 %v3696, %v3799
          %3801 = vmatmul.f32.gmra.mxu0 %v3800
          %v3802 = vpop.f32.mrf.mxu0
          %v3803 = vadd.f32 %v3771, %v3802
          %v3804 = vand.u32 %v3699, 4294901760
          %v3805 = vsub.f32 %v3699, %v3804
          %3806 = vmatmul.f32.gmra.mxu0 %v3805
          %v3807 = vpop.f32.mrf.mxu0
          %v3808 = vadd.f32 %v3775, %v3807
          %3809 = vdwg.mxu0
          %3810 = vmatpush.msra.mxu0 0.0
          %3811 = vmatpush.msra.mxu0 0.0
          %3812 = vmatpush.msra.mxu0 0.0
          %3813 = vmatpush.msra.mxu0 0.0
          %3814 = vmatpush.msra.mxu0 0.0
          %3815 = vmatpush.msra.mxu0 0.0
          %3816 = vmatpush.msra.mxu0 0.0
          %3817 = vmatpush.msra.mxu0 0.0
          %3818 = vmatpush.msra.mxu0 0.0
          %3819 = vmatpush.msra.mxu0 0.0
          %3820 = vmatpush.msra.mxu0 0.0
          %3821 = vmatpush.msra.mxu0 0.0
          %3822 = vmatpush.msra.mxu0 0.0
          %v3823 = vand.u32 %v3694, 4294901760
          %3824 = vmatpush.msra.mxu0 %v3823
          %v3825 = vand.u32 %v3693, 4294901760
          %3826 = vmatpush.msra.mxu0 %v3825
          %v3827 = vand.u32 %v3692, 4294901760
          %3828 = vmatpush.msra.mxu0 %v3827
          %v3829 = vand.u32 %v3696, 4294901760
          %v3830 = vsub.f32 %v3696, %v3829
          %v3831 = vand.u32 %v3830, 4294901760
          %3832 = vmatmul.f32.gmra.mxu0 %v3831
          %v3833 = vpop.f32.mrf.mxu0
          %v3834 = vadd.f32 %v3803, %v3833
          %v3835 = vand.u32 %v3699, 4294901760
          %v3836 = vsub.f32 %v3699, %v3835
          %v3837 = vand.u32 %v3836, 4294901760
          %3838 = vmatmul.f32.gmra.mxu0 %v3837
          %v3839 = vpop.f32.mrf.mxu0
          %v3840 = vadd.f32 %v3808, %v3839
          %3841 = vdwg.mxu0
          %3842 = vmatpush.msra.mxu0 0.0
          %3843 = vmatpush.msra.mxu0 0.0
          %3844 = vmatpush.msra.mxu0 0.0
          %3845 = vmatpush.msra.mxu0 0.0
          %3846 = vmatpush.msra.mxu0 0.0
          %3847 = vmatpush.msra.mxu0 0.0
          %3848 = vmatpush.msra.mxu0 0.0
          %3849 = vmatpush.msra.mxu0 0.0
          %3850 = vmatpush.msra.mxu0 0.0
          %3851 = vmatpush.msra.mxu0 0.0
          %3852 = vmatpush.msra.mxu0 0.0
          %3853 = vmatpush.msra.mxu0 0.0
          %3854 = vmatpush.msra.mxu0 0.0
          %v3855 = vand.u32 %v3694, 4294901760
          %v3856 = vsub.f32 %v3694, %v3855
          %v3857 = vand.u32 %v3856, 4294901760
          %3858 = vmatpush.msra.mxu0 %v3857
          %v3859 = vand.u32 %v3693, 4294901760
          %v3860 = vsub.f32 %v3693, %v3859
          %v3861 = vand.u32 %v3860, 4294901760
          %3862 = vmatpush.msra.mxu0 %v3861
          %v3863 = vand.u32 %v3692, 4294901760
          %v3864 = vsub.f32 %v3692, %v3863
          %v3865 = vand.u32 %v3864, 4294901760
          %3866 = vmatpush.msra.mxu0 %v3865
          %v3867 = vand.u32 %v3696, 4294901760
          %3868 = vmatmul.f32.gmra.mxu0 %v3867
          %v3869 = vpop.f32.mrf.mxu0
          %v3870 = vadd.f32 %v3834, %v3869
          %v3871 = vand.u32 %v3699, 4294901760
          %3872 = vmatmul.f32.gmra.mxu0 %v3871
          %v3873 = vpop.f32.mrf.mxu0
          %v3874 = vadd.f32 %v3840, %v3873
          %3875 = vdwg.mxu0
          %3876 = vmatpush.msra.mxu0 0.0
          %3877 = vmatpush.msra.mxu0 0.0
          %3878 = vmatpush.msra.mxu0 0.0
          %3879 = vmatpush.msra.mxu0 0.0
          %3880 = vmatpush.msra.mxu0 0.0
          %3881 = vmatpush.msra.mxu0 0.0
          %3882 = vmatpush.msra.mxu0 0.0
          %3883 = vmatpush.msra.mxu0 0.0
          %3884 = vmatpush.msra.mxu0 0.0
          %3885 = vmatpush.msra.mxu0 0.0
          %3886 = vmatpush.msra.mxu0 0.0
          %3887 = vmatpush.msra.mxu0 0.0
          %3888 = vmatpush.msra.mxu0 0.0
          %v3889 = vand.u32 %v3694, 4294901760
          %3890 = vmatpush.msra.mxu0 %v3889
          %v3891 = vand.u32 %v3693, 4294901760
          %3892 = vmatpush.msra.mxu0 %v3891
          %v3893 = vand.u32 %v3692, 4294901760
          %3894 = vmatpush.msra.mxu0 %v3893
          %v3895 = vand.u32 %v3696, 4294901760
          %3896 = vmatmul.f32.gmra.mxu0 %v3895
          %v3897 = vpop.f32.mrf.mxu0
          %v3898 = vadd.f32 %v3870, %v3897
          %v3899 = vand.u32 %v3699, 4294901760
          %3900 = vmatmul.f32.gmra.mxu0 %v3899
          %v3901 = vpop.f32.mrf.mxu0
          %v3902 = vadd.f32 %v3874, %v3901
          %3903 = vdwg.mxu0
          %v3904 = vadd.f32 %v3687, %v3898
          %v3905 = vadd.f32 %v3688, %v3902
          %v3906 = vld [vmem:[%s2173 + $0x8] sm:$0xff]
          %v3907 = vld [vmem:[%s2173 + $0x10] sm:$0xff]
          %s3908 = scalar_lea.vmem %s175, 408
          %v3909 = vld [vmem:[%s3908] sm:$0xff]
          %v3910 = vld [vmem:[%s3908 + $0x8] sm:$0xff]
          %v3911 = vld [vmem:[%s3908 + $0x10] sm:$0xff]
          %v3913 = vsel %vm232, %v3906, 0
          %v3916 = vsel %vm232, %v3907, 0
          %3918 = vmatpush.msra.mxu0 0.0
          %3919 = vmatpush.msra.mxu0 0.0
          %3920 = vmatpush.msra.mxu0 0.0
          %3921 = vmatpush.msra.mxu0 0.0
          %3922 = vmatpush.msra.mxu0 0.0
          %3923 = vmatpush.msra.mxu0 0.0
          %3924 = vmatpush.msra.mxu0 0.0
          %3925 = vmatpush.msra.mxu0 0.0
          %3926 = vmatpush.msra.mxu0 0.0
          %3927 = vmatpush.msra.mxu0 0.0
          %3928 = vmatpush.msra.mxu0 0.0
          %3929 = vmatpush.msra.mxu0 0.0
          %3930 = vmatpush.msra.mxu0 0.0
          %v3931 = vand.u32 %v3911, 4294901760
          %3932 = vmatpush.msra.mxu0 %v3931
          %v3933 = vand.u32 %v3910, 4294901760
          %3934 = vmatpush.msra.mxu0 %v3933
          %v3935 = vand.u32 %v3909, 4294901760
          %3936 = vmatpush.msra.mxu0 %v3935
          %v3937 = vand.u32 %v3913, 4294901760
          %v3938 = vsub.f32 %v3913, %v3937
          %v3939 = vand.u32 %v3938, 4294901760
          %v3940 = vsub.f32 %v3938, %v3939
          %v3941 = vand.u32 %v3940, 4294901760
          %3942 = vmatmul.f32.gmra.mxu0 %v3941
          %v3943 = vpop.f32.mrf.mxu0
          %v3944 = vadd.f32 0.0, %v3943
          %v3945 = vand.u32 %v3916, 4294901760
          %v3946 = vsub.f32 %v3916, %v3945
          %v3947 = vand.u32 %v3946, 4294901760
          %v3948 = vsub.f32 %v3946, %v3947
          %v3949 = vand.u32 %v3948, 4294901760
          %3950 = vmatmul.f32.gmra.mxu0 %v3949
          %v3951 = vpop.f32.mrf.mxu0
          %v3952 = vadd.f32 0.0, %v3951
          %3953 = vdwg.mxu0
          %3954 = vmatpush.msra.mxu0 0.0
          %3955 = vmatpush.msra.mxu0 0.0
          %3956 = vmatpush.msra.mxu0 0.0
          %3957 = vmatpush.msra.mxu0 0.0
          %3958 = vmatpush.msra.mxu0 0.0
          %3959 = vmatpush.msra.mxu0 0.0
          %3960 = vmatpush.msra.mxu0 0.0
          %3961 = vmatpush.msra.mxu0 0.0
          %3962 = vmatpush.msra.mxu0 0.0
          %3963 = vmatpush.msra.mxu0 0.0
          %3964 = vmatpush.msra.mxu0 0.0
          %3965 = vmatpush.msra.mxu0 0.0
          %3966 = vmatpush.msra.mxu0 0.0
          %v3967 = vand.u32 %v3911, 4294901760
          %v3968 = vsub.f32 %v3911, %v3967
          %v3969 = vand.u32 %v3968, 4294901760
          %v3970 = vsub.f32 %v3968, %v3969
          %v3971 = vand.u32 %v3970, 4294901760
          %3972 = vmatpush.msra.mxu0 %v3971
          %v3973 = vand.u32 %v3910, 4294901760
          %v3974 = vsub.f32 %v3910, %v3973
          %v3975 = vand.u32 %v3974, 4294901760
          %v3976 = vsub.f32 %v3974, %v3975
          %v3977 = vand.u32 %v3976, 4294901760
          %3978 = vmatpush.msra.mxu0 %v3977
          %v3979 = vand.u32 %v3909, 4294901760
          %v3980 = vsub.f32 %v3909, %v3979
          %v3981 = vand.u32 %v3980, 4294901760
          %v3982 = vsub.f32 %v3980, %v3981
          %v3983 = vand.u32 %v3982, 4294901760
          %3984 = vmatpush.msra.mxu0 %v3983
          %v3985 = vand.u32 %v3913, 4294901760
          %3986 = vmatmul.f32.gmra.mxu0 %v3985
          %v3987 = vpop.f32.mrf.mxu0
          %v3988 = vadd.f32 %v3944, %v3987
          %v3989 = vand.u32 %v3916, 4294901760
          %3990 = vmatmul.f32.gmra.mxu0 %v3989
          %v3991 = vpop.f32.mrf.mxu0
          %v3992 = vadd.f32 %v3952, %v3991
          %3993 = vdwg.mxu0
          %3994 = vmatpush.msra.mxu0 0.0
          %3995 = vmatpush.msra.mxu0 0.0
          %3996 = vmatpush.msra.mxu0 0.0
          %3997 = vmatpush.msra.mxu0 0.0
          %3998 = vmatpush.msra.mxu0 0.0
          %3999 = vmatpush.msra.mxu0 0.0
          %4000 = vmatpush.msra.mxu0 0.0
          %4001 = vmatpush.msra.mxu0 0.0
          %4002 = vmatpush.msra.mxu0 0.0
          %4003 = vmatpush.msra.mxu0 0.0
          %4004 = vmatpush.msra.mxu0 0.0
          %4005 = vmatpush.msra.mxu0 0.0
          %4006 = vmatpush.msra.mxu0 0.0
          %v4007 = vand.u32 %v3911, 4294901760
          %v4008 = vsub.f32 %v3911, %v4007
          %4009 = vmatpush.msra.mxu0 %v4008
          %v4010 = vand.u32 %v3910, 4294901760
          %v4011 = vsub.f32 %v3910, %v4010
          %4012 = vmatpush.msra.mxu0 %v4011
          %v4013 = vand.u32 %v3909, 4294901760
          %v4014 = vsub.f32 %v3909, %v4013
          %4015 = vmatpush.msra.mxu0 %v4014
          %v4016 = vand.u32 %v3913, 4294901760
          %v4017 = vsub.f32 %v3913, %v4016
          %4018 = vmatmul.f32.gmra.mxu0 %v4017
          %v4019 = vpop.f32.mrf.mxu0
          %v4020 = vadd.f32 %v3988, %v4019
          %v4021 = vand.u32 %v3916, 4294901760
          %v4022 = vsub.f32 %v3916, %v4021
          %4023 = vmatmul.f32.gmra.mxu0 %v4022
          %v4024 = vpop.f32.mrf.mxu0
          %v4025 = vadd.f32 %v3992, %v4024
          %4026 = vdwg.mxu0
          %4027 = vmatpush.msra.mxu0 0.0
          %4028 = vmatpush.msra.mxu0 0.0
          %4029 = vmatpush.msra.mxu0 0.0
          %4030 = vmatpush.msra.mxu0 0.0
          %4031 = vmatpush.msra.mxu0 0.0
          %4032 = vmatpush.msra.mxu0 0.0
          %4033 = vmatpush.msra.mxu0 0.0
          %4034 = vmatpush.msra.mxu0 0.0
          %4035 = vmatpush.msra.mxu0 0.0
          %4036 = vmatpush.msra.mxu0 0.0
          %4037 = vmatpush.msra.mxu0 0.0
          %4038 = vmatpush.msra.mxu0 0.0
          %4039 = vmatpush.msra.mxu0 0.0
          %v4040 = vand.u32 %v3911, 4294901760
          %4041 = vmatpush.msra.mxu0 %v4040
          %v4042 = vand.u32 %v3910, 4294901760
          %4043 = vmatpush.msra.mxu0 %v4042
          %v4044 = vand.u32 %v3909, 4294901760
          %4045 = vmatpush.msra.mxu0 %v4044
          %v4046 = vand.u32 %v3913, 4294901760
          %v4047 = vsub.f32 %v3913, %v4046
          %v4048 = vand.u32 %v4047, 4294901760
          %4049 = vmatmul.f32.gmra.mxu0 %v4048
          %v4050 = vpop.f32.mrf.mxu0
          %v4051 = vadd.f32 %v4020, %v4050
          %v4052 = vand.u32 %v3916, 4294901760
          %v4053 = vsub.f32 %v3916, %v4052
          %v4054 = vand.u32 %v4053, 4294901760
          %4055 = vmatmul.f32.gmra.mxu0 %v4054
          %v4056 = vpop.f32.mrf.mxu0
          %v4057 = vadd.f32 %v4025, %v4056
          %4058 = vdwg.mxu0
          %4059 = vmatpush.msra.mxu0 0.0
          %4060 = vmatpush.msra.mxu0 0.0
          %4061 = vmatpush.msra.mxu0 0.0
          %4062 = vmatpush.msra.mxu0 0.0
          %4063 = vmatpush.msra.mxu0 0.0
          %4064 = vmatpush.msra.mxu0 0.0
          %4065 = vmatpush.msra.mxu0 0.0
          %4066 = vmatpush.msra.mxu0 0.0
          %4067 = vmatpush.msra.mxu0 0.0
          %4068 = vmatpush.msra.mxu0 0.0
          %4069 = vmatpush.msra.mxu0 0.0
          %4070 = vmatpush.msra.mxu0 0.0
          %4071 = vmatpush.msra.mxu0 0.0
          %v4072 = vand.u32 %v3911, 4294901760
          %v4073 = vsub.f32 %v3911, %v4072
          %v4074 = vand.u32 %v4073, 4294901760
          %4075 = vmatpush.msra.mxu0 %v4074
          %v4076 = vand.u32 %v3910, 4294901760
          %v4077 = vsub.f32 %v3910, %v4076
          %v4078 = vand.u32 %v4077, 4294901760
          %4079 = vmatpush.msra.mxu0 %v4078
          %v4080 = vand.u32 %v3909, 4294901760
          %v4081 = vsub.f32 %v3909, %v4080
          %v4082 = vand.u32 %v4081, 4294901760
          %4083 = vmatpush.msra.mxu0 %v4082
          %v4084 = vand.u32 %v3913, 4294901760
          %4085 = vmatmul.f32.gmra.mxu0 %v4084
          %v4086 = vpop.f32.mrf.mxu0
          %v4087 = vadd.f32 %v4051, %v4086
          %v4088 = vand.u32 %v3916, 4294901760
          %4089 = vmatmul.f32.gmra.mxu0 %v4088
          %v4090 = vpop.f32.mrf.mxu0
          %v4091 = vadd.f32 %v4057, %v4090
          %4092 = vdwg.mxu0
          %4093 = vmatpush.msra.mxu0 0.0
          %4094 = vmatpush.msra.mxu0 0.0
          %4095 = vmatpush.msra.mxu0 0.0
          %4096 = vmatpush.msra.mxu0 0.0
          %4097 = vmatpush.msra.mxu0 0.0
          %4098 = vmatpush.msra.mxu0 0.0
          %4099 = vmatpush.msra.mxu0 0.0
          %4100 = vmatpush.msra.mxu0 0.0
          %4101 = vmatpush.msra.mxu0 0.0
          %4102 = vmatpush.msra.mxu0 0.0
          %4103 = vmatpush.msra.mxu0 0.0
          %4104 = vmatpush.msra.mxu0 0.0
          %4105 = vmatpush.msra.mxu0 0.0
          %v4106 = vand.u32 %v3911, 4294901760
          %4107 = vmatpush.msra.mxu0 %v4106
          %v4108 = vand.u32 %v3910, 4294901760
          %4109 = vmatpush.msra.mxu0 %v4108
          %v4110 = vand.u32 %v3909, 4294901760
          %4111 = vmatpush.msra.mxu0 %v4110
          %v4112 = vand.u32 %v3913, 4294901760
          %4113 = vmatmul.f32.gmra.mxu0 %v4112
          %v4114 = vpop.f32.mrf.mxu0
          %v4115 = vadd.f32 %v4087, %v4114
          %v4116 = vand.u32 %v3916, 4294901760
          %4117 = vmatmul.f32.gmra.mxu0 %v4116
          %v4118 = vpop.f32.mrf.mxu0
          %v4119 = vadd.f32 %v4091, %v4118
          %4120 = vdwg.mxu0
          %v4121 = vadd.f32 %v3904, %v4115
          %v4122 = vadd.f32 %v3905, %v4119
          %s4123 = scalar_lea.vmem %s165, 16 [#allocation2]
          %4124 = vst.msk [vmem:[%s4123] sm:$0xff] %vm2170, %v4121
          %4125 = vst.msk [vmem:[%s4123 + $0x8] sm:$0xff] %vm2170, %v4122
          %s4126 = scalar_lea.vmem %s170, 48
          %v4127 = vld [vmem:[%s4126] sm:$0xff]
          %v4128 = vld [vmem:[%s4126 + $0x8] sm:$0xff]
          %s4129 = scalar_lea.vmem %s175, 432
          %v4130 = vld [vmem:[%s4129] sm:$0xff]
          %v4131 = vld [vmem:[%s4129 + $0x8] sm:$0xff]
          %v4132 = vld [vmem:[%s4129 + $0x10] sm:$0xff]
          %v4133 = vld [vmem:[%s4126 + $0x1] sm:$0xff]
          %v4134 = vld [vmem:[%s4126 + $0x9] sm:$0xff]
          %s4135 = scalar_lea.vmem %s175, 456
          %v4136 = vld [vmem:[%s4135] sm:$0xff]
          %v4137 = vld [vmem:[%s4135 + $0x8] sm:$0xff]
          %v4138 = vld [vmem:[%s4135 + $0x10] sm:$0xff]
          %v4140 = vsel %vm232, %v4133, 0
          %v4143 = vsel %vm232, %v4134, 0
          %4145 = vmatpush.msra.mxu0 0.0
          %4146 = vmatpush.msra.mxu0 0.0
          %4147 = vmatpush.msra.mxu0 0.0
          %4148 = vmatpush.msra.mxu0 0.0
          %4149 = vmatpush.msra.mxu0 0.0
          %4150 = vmatpush.msra.mxu0 0.0
          %4151 = vmatpush.msra.mxu0 0.0
          %4152 = vmatpush.msra.mxu0 0.0
          %4153 = vmatpush.msra.mxu0 0.0
          %4154 = vmatpush.msra.mxu0 0.0
          %4155 = vmatpush.msra.mxu0 0.0
          %4156 = vmatpush.msra.mxu0 0.0
          %4157 = vmatpush.msra.mxu0 0.0
          %v4158 = vand.u32 %v4138, 4294901760
          %4159 = vmatpush.msra.mxu0 %v4158
          %v4160 = vand.u32 %v4137, 4294901760
          %4161 = vmatpush.msra.mxu0 %v4160
          %v4162 = vand.u32 %v4136, 4294901760
          %4163 = vmatpush.msra.mxu0 %v4162
          %v4164 = vand.u32 %v4140, 4294901760
          %v4165 = vsub.f32 %v4140, %v4164
          %v4166 = vand.u32 %v4165, 4294901760
          %v4167 = vsub.f32 %v4165, %v4166
          %v4168 = vand.u32 %v4167, 4294901760
          %4169 = vmatmul.f32.gmra.mxu0 %v4168
          %v4170 = vpop.f32.mrf.mxu0
          %v4171 = vadd.f32 0.0, %v4170
          %v4172 = vand.u32 %v4143, 4294901760
          %v4173 = vsub.f32 %v4143, %v4172
          %v4174 = vand.u32 %v4173, 4294901760
          %v4175 = vsub.f32 %v4173, %v4174
          %v4176 = vand.u32 %v4175, 4294901760
          %4177 = vmatmul.f32.gmra.mxu0 %v4176
          %v4178 = vpop.f32.mrf.mxu0
          %v4179 = vadd.f32 0.0, %v4178
          %4180 = vdwg.mxu0
          %4181 = vmatpush.msra.mxu0 0.0
          %4182 = vmatpush.msra.mxu0 0.0
          %4183 = vmatpush.msra.mxu0 0.0
          %4184 = vmatpush.msra.mxu0 0.0
          %4185 = vmatpush.msra.mxu0 0.0
          %4186 = vmatpush.msra.mxu0 0.0
          %4187 = vmatpush.msra.mxu0 0.0
          %4188 = vmatpush.msra.mxu0 0.0
          %4189 = vmatpush.msra.mxu0 0.0
          %4190 = vmatpush.msra.mxu0 0.0
          %4191 = vmatpush.msra.mxu0 0.0
          %4192 = vmatpush.msra.mxu0 0.0
          %4193 = vmatpush.msra.mxu0 0.0
          %v4194 = vand.u32 %v4138, 4294901760
          %v4195 = vsub.f32 %v4138, %v4194
          %v4196 = vand.u32 %v4195, 4294901760
          %v4197 = vsub.f32 %v4195, %v4196
          %v4198 = vand.u32 %v4197, 4294901760
          %4199 = vmatpush.msra.mxu0 %v4198
          %v4200 = vand.u32 %v4137, 4294901760
          %v4201 = vsub.f32 %v4137, %v4200
          %v4202 = vand.u32 %v4201, 4294901760
          %v4203 = vsub.f32 %v4201, %v4202
          %v4204 = vand.u32 %v4203, 4294901760
          %4205 = vmatpush.msra.mxu0 %v4204
          %v4206 = vand.u32 %v4136, 4294901760
          %v4207 = vsub.f32 %v4136, %v4206
          %v4208 = vand.u32 %v4207, 4294901760
          %v4209 = vsub.f32 %v4207, %v4208
          %v4210 = vand.u32 %v4209, 4294901760
          %4211 = vmatpush.msra.mxu0 %v4210
          %v4212 = vand.u32 %v4140, 4294901760
          %4213 = vmatmul.f32.gmra.mxu0 %v4212
          %v4214 = vpop.f32.mrf.mxu0
          %v4215 = vadd.f32 %v4171, %v4214
          %v4216 = vand.u32 %v4143, 4294901760
          %4217 = vmatmul.f32.gmra.mxu0 %v4216
          %v4218 = vpop.f32.mrf.mxu0
          %v4219 = vadd.f32 %v4179, %v4218
          %4220 = vdwg.mxu0
          %4221 = vmatpush.msra.mxu0 0.0
          %4222 = vmatpush.msra.mxu0 0.0
          %4223 = vmatpush.msra.mxu0 0.0
          %4224 = vmatpush.msra.mxu0 0.0
          %4225 = vmatpush.msra.mxu0 0.0
          %4226 = vmatpush.msra.mxu0 0.0
          %4227 = vmatpush.msra.mxu0 0.0
          %4228 = vmatpush.msra.mxu0 0.0
          %4229 = vmatpush.msra.mxu0 0.0
          %4230 = vmatpush.msra.mxu0 0.0
          %4231 = vmatpush.msra.mxu0 0.0
          %4232 = vmatpush.msra.mxu0 0.0
          %4233 = vmatpush.msra.mxu0 0.0
          %v4234 = vand.u32 %v4138, 4294901760
          %v4235 = vsub.f32 %v4138, %v4234
          %4236 = vmatpush.msra.mxu0 %v4235
          %v4237 = vand.u32 %v4137, 4294901760
          %v4238 = vsub.f32 %v4137, %v4237
          %4239 = vmatpush.msra.mxu0 %v4238
          %v4240 = vand.u32 %v4136, 4294901760
          %v4241 = vsub.f32 %v4136, %v4240
          %4242 = vmatpush.msra.mxu0 %v4241
          %v4243 = vand.u32 %v4140, 4294901760
          %v4244 = vsub.f32 %v4140, %v4243
          %4245 = vmatmul.f32.gmra.mxu0 %v4244
          %v4246 = vpop.f32.mrf.mxu0
          %v4247 = vadd.f32 %v4215, %v4246
          %v4248 = vand.u32 %v4143, 4294901760
          %v4249 = vsub.f32 %v4143, %v4248
          %4250 = vmatmul.f32.gmra.mxu0 %v4249
          %v4251 = vpop.f32.mrf.mxu0
          %v4252 = vadd.f32 %v4219, %v4251
          %4253 = vdwg.mxu0
          %4254 = vmatpush.msra.mxu0 0.0
          %4255 = vmatpush.msra.mxu0 0.0
          %4256 = vmatpush.msra.mxu0 0.0
          %4257 = vmatpush.msra.mxu0 0.0
          %4258 = vmatpush.msra.mxu0 0.0
          %4259 = vmatpush.msra.mxu0 0.0
          %4260 = vmatpush.msra.mxu0 0.0
          %4261 = vmatpush.msra.mxu0 0.0
          %4262 = vmatpush.msra.mxu0 0.0
          %4263 = vmatpush.msra.mxu0 0.0
          %4264 = vmatpush.msra.mxu0 0.0
          %4265 = vmatpush.msra.mxu0 0.0
          %4266 = vmatpush.msra.mxu0 0.0
          %v4267 = vand.u32 %v4138, 4294901760
          %4268 = vmatpush.msra.mxu0 %v4267
          %v4269 = vand.u32 %v4137, 4294901760
          %4270 = vmatpush.msra.mxu0 %v4269
          %v4271 = vand.u32 %v4136, 4294901760
          %4272 = vmatpush.msra.mxu0 %v4271
          %v4273 = vand.u32 %v4140, 4294901760
          %v4274 = vsub.f32 %v4140, %v4273
          %v4275 = vand.u32 %v4274, 4294901760
          %4276 = vmatmul.f32.gmra.mxu0 %v4275
          %v4277 = vpop.f32.mrf.mxu0
          %v4278 = vadd.f32 %v4247, %v4277
          %v4279 = vand.u32 %v4143, 4294901760
          %v4280 = vsub.f32 %v4143, %v4279
          %v4281 = vand.u32 %v4280, 4294901760
          %4282 = vmatmul.f32.gmra.mxu0 %v4281
          %v4283 = vpop.f32.mrf.mxu0
          %v4284 = vadd.f32 %v4252, %v4283
          %4285 = vdwg.mxu0
          %4286 = vmatpush.msra.mxu0 0.0
          %4287 = vmatpush.msra.mxu0 0.0
          %4288 = vmatpush.msra.mxu0 0.0
          %4289 = vmatpush.msra.mxu0 0.0
          %4290 = vmatpush.msra.mxu0 0.0
          %4291 = vmatpush.msra.mxu0 0.0
          %4292 = vmatpush.msra.mxu0 0.0
          %4293 = vmatpush.msra.mxu0 0.0
          %4294 = vmatpush.msra.mxu0 0.0
          %4295 = vmatpush.msra.mxu0 0.0
          %4296 = vmatpush.msra.mxu0 0.0
          %4297 = vmatpush.msra.mxu0 0.0
          %4298 = vmatpush.msra.mxu0 0.0
          %v4299 = vand.u32 %v4138, 4294901760
          %v4300 = vsub.f32 %v4138, %v4299
          %v4301 = vand.u32 %v4300, 4294901760
          %4302 = vmatpush.msra.mxu0 %v4301
          %v4303 = vand.u32 %v4137, 4294901760
          %v4304 = vsub.f32 %v4137, %v4303
          %v4305 = vand.u32 %v4304, 4294901760
          %4306 = vmatpush.msra.mxu0 %v4305
          %v4307 = vand.u32 %v4136, 4294901760
          %v4308 = vsub.f32 %v4136, %v4307
          %v4309 = vand.u32 %v4308, 4294901760
          %4310 = vmatpush.msra.mxu0 %v4309
          %v4311 = vand.u32 %v4140, 4294901760
          %4312 = vmatmul.f32.gmra.mxu0 %v4311
          %v4313 = vpop.f32.mrf.mxu0
          %v4314 = vadd.f32 %v4278, %v4313
          %v4315 = vand.u32 %v4143, 4294901760
          %4316 = vmatmul.f32.gmra.mxu0 %v4315
          %v4317 = vpop.f32.mrf.mxu0
          %v4318 = vadd.f32 %v4284, %v4317
          %4319 = vdwg.mxu0
          %4320 = vmatpush.msra.mxu0 0.0
          %4321 = vmatpush.msra.mxu0 0.0
          %4322 = vmatpush.msra.mxu0 0.0
          %4323 = vmatpush.msra.mxu0 0.0
          %4324 = vmatpush.msra.mxu0 0.0
          %4325 = vmatpush.msra.mxu0 0.0
          %4326 = vmatpush.msra.mxu0 0.0
          %4327 = vmatpush.msra.mxu0 0.0
          %4328 = vmatpush.msra.mxu0 0.0
          %4329 = vmatpush.msra.mxu0 0.0
          %4330 = vmatpush.msra.mxu0 0.0
          %4331 = vmatpush.msra.mxu0 0.0
          %4332 = vmatpush.msra.mxu0 0.0
          %v4333 = vand.u32 %v4138, 4294901760
          %4334 = vmatpush.msra.mxu0 %v4333
          %v4335 = vand.u32 %v4137, 4294901760
          %4336 = vmatpush.msra.mxu0 %v4335
          %v4337 = vand.u32 %v4136, 4294901760
          %4338 = vmatpush.msra.mxu0 %v4337
          %v4339 = vand.u32 %v4140, 4294901760
          %4340 = vmatmul.f32.gmra.mxu0 %v4339
          %v4341 = vpop.f32.mrf.mxu0
          %v4342 = vadd.f32 %v4314, %v4341
          %v4343 = vand.u32 %v4143, 4294901760
          %4344 = vmatmul.f32.gmra.mxu0 %v4343
          %v4345 = vpop.f32.mrf.mxu0
          %v4346 = vadd.f32 %v4318, %v4345
          %4347 = vdwg.mxu0
          %v4349 = vsel %vm232, %v4127, 0
          %v4352 = vsel %vm232, %v4128, 0
          %4354 = vmatpush.msra.mxu0 0.0
          %4355 = vmatpush.msra.mxu0 0.0
          %4356 = vmatpush.msra.mxu0 0.0
          %4357 = vmatpush.msra.mxu0 0.0
          %4358 = vmatpush.msra.mxu0 0.0
          %4359 = vmatpush.msra.mxu0 0.0
          %4360 = vmatpush.msra.mxu0 0.0
          %4361 = vmatpush.msra.mxu0 0.0
          %4362 = vmatpush.msra.mxu0 0.0
          %4363 = vmatpush.msra.mxu0 0.0
          %4364 = vmatpush.msra.mxu0 0.0
          %4365 = vmatpush.msra.mxu0 0.0
          %4366 = vmatpush.msra.mxu0 0.0
          %v4367 = vand.u32 %v4132, 4294901760
          %4368 = vmatpush.msra.mxu0 %v4367
          %v4369 = vand.u32 %v4131, 4294901760
          %4370 = vmatpush.msra.mxu0 %v4369
          %v4371 = vand.u32 %v4130, 4294901760
          %4372 = vmatpush.msra.mxu0 %v4371
          %v4373 = vand.u32 %v4349, 4294901760
          %v4374 = vsub.f32 %v4349, %v4373
          %v4375 = vand.u32 %v4374, 4294901760
          %v4376 = vsub.f32 %v4374, %v4375
          %v4377 = vand.u32 %v4376, 4294901760
          %4378 = vmatmul.f32.gmra.mxu0 %v4377
          %v4379 = vpop.f32.mrf.mxu0
          %v4380 = vadd.f32 %v4342, %v4379
          %v4381 = vand.u32 %v4352, 4294901760
          %v4382 = vsub.f32 %v4352, %v4381
          %v4383 = vand.u32 %v4382, 4294901760
          %v4384 = vsub.f32 %v4382, %v4383
          %v4385 = vand.u32 %v4384, 4294901760
          %4386 = vmatmul.f32.gmra.mxu0 %v4385
          %v4387 = vpop.f32.mrf.mxu0
          %v4388 = vadd.f32 %v4346, %v4387
          %4389 = vdwg.mxu0
          %4390 = vmatpush.msra.mxu0 0.0
          %4391 = vmatpush.msra.mxu0 0.0
          %4392 = vmatpush.msra.mxu0 0.0
          %4393 = vmatpush.msra.mxu0 0.0
          %4394 = vmatpush.msra.mxu0 0.0
          %4395 = vmatpush.msra.mxu0 0.0
          %4396 = vmatpush.msra.mxu0 0.0
          %4397 = vmatpush.msra.mxu0 0.0
          %4398 = vmatpush.msra.mxu0 0.0
          %4399 = vmatpush.msra.mxu0 0.0
          %4400 = vmatpush.msra.mxu0 0.0
          %4401 = vmatpush.msra.mxu0 0.0
          %4402 = vmatpush.msra.mxu0 0.0
          %v4403 = vand.u32 %v4132, 4294901760
          %v4404 = vsub.f32 %v4132, %v4403
          %v4405 = vand.u32 %v4404, 4294901760
          %v4406 = vsub.f32 %v4404, %v4405
          %v4407 = vand.u32 %v4406, 4294901760
          %4408 = vmatpush.msra.mxu0 %v4407
          %v4409 = vand.u32 %v4131, 4294901760
          %v4410 = vsub.f32 %v4131, %v4409
          %v4411 = vand.u32 %v4410, 4294901760
          %v4412 = vsub.f32 %v4410, %v4411
          %v4413 = vand.u32 %v4412, 4294901760
          %4414 = vmatpush.msra.mxu0 %v4413
          %v4415 = vand.u32 %v4130, 4294901760
          %v4416 = vsub.f32 %v4130, %v4415
          %v4417 = vand.u32 %v4416, 4294901760
          %v4418 = vsub.f32 %v4416, %v4417
          %v4419 = vand.u32 %v4418, 4294901760
          %4420 = vmatpush.msra.mxu0 %v4419
          %v4421 = vand.u32 %v4349, 4294901760
          %4422 = vmatmul.f32.gmra.mxu0 %v4421
          %v4423 = vpop.f32.mrf.mxu0
          %v4424 = vadd.f32 %v4380, %v4423
          %v4425 = vand.u32 %v4352, 4294901760
          %4426 = vmatmul.f32.gmra.mxu0 %v4425
          %v4427 = vpop.f32.mrf.mxu0
          %v4428 = vadd.f32 %v4388, %v4427
          %4429 = vdwg.mxu0
          %4430 = vmatpush.msra.mxu0 0.0
          %4431 = vmatpush.msra.mxu0 0.0
          %4432 = vmatpush.msra.mxu0 0.0
          %4433 = vmatpush.msra.mxu0 0.0
          %4434 = vmatpush.msra.mxu0 0.0
          %4435 = vmatpush.msra.mxu0 0.0
          %4436 = vmatpush.msra.mxu0 0.0
          %4437 = vmatpush.msra.mxu0 0.0
          %4438 = vmatpush.msra.mxu0 0.0
          %4439 = vmatpush.msra.mxu0 0.0
          %4440 = vmatpush.msra.mxu0 0.0
          %4441 = vmatpush.msra.mxu0 0.0
          %4442 = vmatpush.msra.mxu0 0.0
          %v4443 = vand.u32 %v4132, 4294901760
          %v4444 = vsub.f32 %v4132, %v4443
          %4445 = vmatpush.msra.mxu0 %v4444
          %v4446 = vand.u32 %v4131, 4294901760
          %v4447 = vsub.f32 %v4131, %v4446
          %4448 = vmatpush.msra.mxu0 %v4447
          %v4449 = vand.u32 %v4130, 4294901760
          %v4450 = vsub.f32 %v4130, %v4449
          %4451 = vmatpush.msra.mxu0 %v4450
          %v4452 = vand.u32 %v4349, 4294901760
          %v4453 = vsub.f32 %v4349, %v4452
          %4454 = vmatmul.f32.gmra.mxu0 %v4453
          %v4455 = vpop.f32.mrf.mxu0
          %v4456 = vadd.f32 %v4424, %v4455
          %v4457 = vand.u32 %v4352, 4294901760
          %v4458 = vsub.f32 %v4352, %v4457
          %4459 = vmatmul.f32.gmra.mxu0 %v4458
          %v4460 = vpop.f32.mrf.mxu0
          %v4461 = vadd.f32 %v4428, %v4460
          %4462 = vdwg.mxu0
          %4463 = vmatpush.msra.mxu0 0.0
          %4464 = vmatpush.msra.mxu0 0.0
          %4465 = vmatpush.msra.mxu0 0.0
          %4466 = vmatpush.msra.mxu0 0.0
          %4467 = vmatpush.msra.mxu0 0.0
          %4468 = vmatpush.msra.mxu0 0.0
          %4469 = vmatpush.msra.mxu0 0.0
          %4470 = vmatpush.msra.mxu0 0.0
          %4471 = vmatpush.msra.mxu0 0.0
          %4472 = vmatpush.msra.mxu0 0.0
          %4473 = vmatpush.msra.mxu0 0.0
          %4474 = vmatpush.msra.mxu0 0.0
          %4475 = vmatpush.msra.mxu0 0.0
          %v4476 = vand.u32 %v4132, 4294901760
          %4477 = vmatpush.msra.mxu0 %v4476
          %v4478 = vand.u32 %v4131, 4294901760
          %4479 = vmatpush.msra.mxu0 %v4478
          %v4480 = vand.u32 %v4130, 4294901760
          %4481 = vmatpush.msra.mxu0 %v4480
          %v4482 = vand.u32 %v4349, 4294901760
          %v4483 = vsub.f32 %v4349, %v4482
          %v4484 = vand.u32 %v4483, 4294901760
          %4485 = vmatmul.f32.gmra.mxu0 %v4484
          %v4486 = vpop.f32.mrf.mxu0
          %v4487 = vadd.f32 %v4456, %v4486
          %v4488 = vand.u32 %v4352, 4294901760
          %v4489 = vsub.f32 %v4352, %v4488
          %v4490 = vand.u32 %v4489, 4294901760
          %4491 = vmatmul.f32.gmra.mxu0 %v4490
          %v4492 = vpop.f32.mrf.mxu0
          %v4493 = vadd.f32 %v4461, %v4492
          %4494 = vdwg.mxu0
          %4495 = vmatpush.msra.mxu0 0.0
          %4496 = vmatpush.msra.mxu0 0.0
          %4497 = vmatpush.msra.mxu0 0.0
          %4498 = vmatpush.msra.mxu0 0.0
          %4499 = vmatpush.msra.mxu0 0.0
          %4500 = vmatpush.msra.mxu0 0.0
          %4501 = vmatpush.msra.mxu0 0.0
          %4502 = vmatpush.msra.mxu0 0.0
          %4503 = vmatpush.msra.mxu0 0.0
          %4504 = vmatpush.msra.mxu0 0.0
          %4505 = vmatpush.msra.mxu0 0.0
          %4506 = vmatpush.msra.mxu0 0.0
          %4507 = vmatpush.msra.mxu0 0.0
          %v4508 = vand.u32 %v4132, 4294901760
          %v4509 = vsub.f32 %v4132, %v4508
          %v4510 = vand.u32 %v4509, 4294901760
          %4511 = vmatpush.msra.mxu0 %v4510
          %v4512 = vand.u32 %v4131, 4294901760
          %v4513 = vsub.f32 %v4131, %v4512
          %v4514 = vand.u32 %v4513, 4294901760
          %4515 = vmatpush.msra.mxu0 %v4514
          %v4516 = vand.u32 %v4130, 4294901760
          %v4517 = vsub.f32 %v4130, %v4516
          %v4518 = vand.u32 %v4517, 4294901760
          %4519 = vmatpush.msra.mxu0 %v4518
          %v4520 = vand.u32 %v4349, 4294901760
          %4521 = vmatmul.f32.gmra.mxu0 %v4520
          %v4522 = vpop.f32.mrf.mxu0
          %v4523 = vadd.f32 %v4487, %v4522
          %v4524 = vand.u32 %v4352, 4294901760
          %4525 = vmatmul.f32.gmra.mxu0 %v4524
          %v4526 = vpop.f32.mrf.mxu0
          %v4527 = vadd.f32 %v4493, %v4526
          %4528 = vdwg.mxu0
          %4529 = vmatpush.msra.mxu0 0.0
          %4530 = vmatpush.msra.mxu0 0.0
          %4531 = vmatpush.msra.mxu0 0.0
          %4532 = vmatpush.msra.mxu0 0.0
          %4533 = vmatpush.msra.mxu0 0.0
          %4534 = vmatpush.msra.mxu0 0.0
          %4535 = vmatpush.msra.mxu0 0.0
          %4536 = vmatpush.msra.mxu0 0.0
          %4537 = vmatpush.msra.mxu0 0.0
          %4538 = vmatpush.msra.mxu0 0.0
          %4539 = vmatpush.msra.mxu0 0.0
          %4540 = vmatpush.msra.mxu0 0.0
          %4541 = vmatpush.msra.mxu0 0.0
          %v4542 = vand.u32 %v4132, 4294901760
          %4543 = vmatpush.msra.mxu0 %v4542
          %v4544 = vand.u32 %v4131, 4294901760
          %4545 = vmatpush.msra.mxu0 %v4544
          %v4546 = vand.u32 %v4130, 4294901760
          %4547 = vmatpush.msra.mxu0 %v4546
          %v4548 = vand.u32 %v4349, 4294901760
          %4549 = vmatmul.f32.gmra.mxu0 %v4548
          %v4550 = vpop.f32.mrf.mxu0
          %v4551 = vadd.f32 %v4523, %v4550
          %v4552 = vand.u32 %v4352, 4294901760
          %4553 = vmatmul.f32.gmra.mxu0 %v4552
          %v4554 = vpop.f32.mrf.mxu0
          %v4555 = vadd.f32 %v4527, %v4554
          %4556 = vdwg.mxu0
          %v4557 = vld [vmem:[%s4126 + $0x2] sm:$0xff]
          %v4558 = vld [vmem:[%s4126 + $0xa] sm:$0xff]
          %s4559 = scalar_lea.vmem %s175, 480
          %v4560 = vld [vmem:[%s4559] sm:$0xff]
          %v4561 = vld [vmem:[%s4559 + $0x8] sm:$0xff]
          %v4562 = vld [vmem:[%s4559 + $0x10] sm:$0xff]
          %v4564 = vsel %vm232, %v4557, 0
          %v4567 = vsel %vm232, %v4558, 0
          %4569 = vmatpush.msra.mxu0 0.0
          %4570 = vmatpush.msra.mxu0 0.0
          %4571 = vmatpush.msra.mxu0 0.0
          %4572 = vmatpush.msra.mxu0 0.0
          %4573 = vmatpush.msra.mxu0 0.0
          %4574 = vmatpush.msra.mxu0 0.0
          %4575 = vmatpush.msra.mxu0 0.0
          %4576 = vmatpush.msra.mxu0 0.0
          %4577 = vmatpush.msra.mxu0 0.0
          %4578 = vmatpush.msra.mxu0 0.0
          %4579 = vmatpush.msra.mxu0 0.0
          %4580 = vmatpush.msra.mxu0 0.0
          %4581 = vmatpush.msra.mxu0 0.0
          %v4582 = vand.u32 %v4562, 4294901760
          %4583 = vmatpush.msra.mxu0 %v4582
          %v4584 = vand.u32 %v4561, 4294901760
          %4585 = vmatpush.msra.mxu0 %v4584
          %v4586 = vand.u32 %v4560, 4294901760
          %4587 = vmatpush.msra.mxu0 %v4586
          %v4588 = vand.u32 %v4564, 4294901760
          %v4589 = vsub.f32 %v4564, %v4588
          %v4590 = vand.u32 %v4589, 4294901760
          %v4591 = vsub.f32 %v4589, %v4590
          %v4592 = vand.u32 %v4591, 4294901760
          %4593 = vmatmul.f32.gmra.mxu0 %v4592
          %v4594 = vpop.f32.mrf.mxu0
          %v4595 = vadd.f32 0.0, %v4594
          %v4596 = vand.u32 %v4567, 4294901760
          %v4597 = vsub.f32 %v4567, %v4596
          %v4598 = vand.u32 %v4597, 4294901760
          %v4599 = vsub.f32 %v4597, %v4598
          %v4600 = vand.u32 %v4599, 4294901760
          %4601 = vmatmul.f32.gmra.mxu0 %v4600
          %v4602 = vpop.f32.mrf.mxu0
          %v4603 = vadd.f32 0.0, %v4602
          %4604 = vdwg.mxu0
          %4605 = vmatpush.msra.mxu0 0.0
          %4606 = vmatpush.msra.mxu0 0.0
          %4607 = vmatpush.msra.mxu0 0.0
          %4608 = vmatpush.msra.mxu0 0.0
          %4609 = vmatpush.msra.mxu0 0.0
          %4610 = vmatpush.msra.mxu0 0.0
          %4611 = vmatpush.msra.mxu0 0.0
          %4612 = vmatpush.msra.mxu0 0.0
          %4613 = vmatpush.msra.mxu0 0.0
          %4614 = vmatpush.msra.mxu0 0.0
          %4615 = vmatpush.msra.mxu0 0.0
          %4616 = vmatpush.msra.mxu0 0.0
          %4617 = vmatpush.msra.mxu0 0.0
          %v4618 = vand.u32 %v4562, 4294901760
          %v4619 = vsub.f32 %v4562, %v4618
          %v4620 = vand.u32 %v4619, 4294901760
          %v4621 = vsub.f32 %v4619, %v4620
          %v4622 = vand.u32 %v4621, 4294901760
          %4623 = vmatpush.msra.mxu0 %v4622
          %v4624 = vand.u32 %v4561, 4294901760
          %v4625 = vsub.f32 %v4561, %v4624
          %v4626 = vand.u32 %v4625, 4294901760
          %v4627 = vsub.f32 %v4625, %v4626
          %v4628 = vand.u32 %v4627, 4294901760
          %4629 = vmatpush.msra.mxu0 %v4628
          %v4630 = vand.u32 %v4560, 4294901760
          %v4631 = vsub.f32 %v4560, %v4630
          %v4632 = vand.u32 %v4631, 4294901760
          %v4633 = vsub.f32 %v4631, %v4632
          %v4634 = vand.u32 %v4633, 4294901760
          %4635 = vmatpush.msra.mxu0 %v4634
          %v4636 = vand.u32 %v4564, 4294901760
          %4637 = vmatmul.f32.gmra.mxu0 %v4636
          %v4638 = vpop.f32.mrf.mxu0
          %v4639 = vadd.f32 %v4595, %v4638
          %v4640 = vand.u32 %v4567, 4294901760
          %4641 = vmatmul.f32.gmra.mxu0 %v4640
          %v4642 = vpop.f32.mrf.mxu0
          %v4643 = vadd.f32 %v4603, %v4642
          %4644 = vdwg.mxu0
          %4645 = vmatpush.msra.mxu0 0.0
          %4646 = vmatpush.msra.mxu0 0.0
          %4647 = vmatpush.msra.mxu0 0.0
          %4648 = vmatpush.msra.mxu0 0.0
          %4649 = vmatpush.msra.mxu0 0.0
          %4650 = vmatpush.msra.mxu0 0.0
          %4651 = vmatpush.msra.mxu0 0.0
          %4652 = vmatpush.msra.mxu0 0.0
          %4653 = vmatpush.msra.mxu0 0.0
          %4654 = vmatpush.msra.mxu0 0.0
          %4655 = vmatpush.msra.mxu0 0.0
          %4656 = vmatpush.msra.mxu0 0.0
          %4657 = vmatpush.msra.mxu0 0.0
          %v4658 = vand.u32 %v4562, 4294901760
          %v4659 = vsub.f32 %v4562, %v4658
          %4660 = vmatpush.msra.mxu0 %v4659
          %v4661 = vand.u32 %v4561, 4294901760
          %v4662 = vsub.f32 %v4561, %v4661
          %4663 = vmatpush.msra.mxu0 %v4662
          %v4664 = vand.u32 %v4560, 4294901760
          %v4665 = vsub.f32 %v4560, %v4664
          %4666 = vmatpush.msra.mxu0 %v4665
          %v4667 = vand.u32 %v4564, 4294901760
          %v4668 = vsub.f32 %v4564, %v4667
          %4669 = vmatmul.f32.gmra.mxu0 %v4668
          %v4670 = vpop.f32.mrf.mxu0
          %v4671 = vadd.f32 %v4639, %v4670
          %v4672 = vand.u32 %v4567, 4294901760
          %v4673 = vsub.f32 %v4567, %v4672
          %4674 = vmatmul.f32.gmra.mxu0 %v4673
          %v4675 = vpop.f32.mrf.mxu0
          %v4676 = vadd.f32 %v4643, %v4675
          %4677 = vdwg.mxu0
          %4678 = vmatpush.msra.mxu0 0.0
          %4679 = vmatpush.msra.mxu0 0.0
          %4680 = vmatpush.msra.mxu0 0.0
          %4681 = vmatpush.msra.mxu0 0.0
          %4682 = vmatpush.msra.mxu0 0.0
          %4683 = vmatpush.msra.mxu0 0.0
          %4684 = vmatpush.msra.mxu0 0.0
          %4685 = vmatpush.msra.mxu0 0.0
          %4686 = vmatpush.msra.mxu0 0.0
          %4687 = vmatpush.msra.mxu0 0.0
          %4688 = vmatpush.msra.mxu0 0.0
          %4689 = vmatpush.msra.mxu0 0.0
          %4690 = vmatpush.msra.mxu0 0.0
          %v4691 = vand.u32 %v4562, 4294901760
          %4692 = vmatpush.msra.mxu0 %v4691
          %v4693 = vand.u32 %v4561, 4294901760
          %4694 = vmatpush.msra.mxu0 %v4693
          %v4695 = vand.u32 %v4560, 4294901760
          %4696 = vmatpush.msra.mxu0 %v4695
          %v4697 = vand.u32 %v4564, 4294901760
          %v4698 = vsub.f32 %v4564, %v4697
          %v4699 = vand.u32 %v4698, 4294901760
          %4700 = vmatmul.f32.gmra.mxu0 %v4699
          %v4701 = vpop.f32.mrf.mxu0
          %v4702 = vadd.f32 %v4671, %v4701
          %v4703 = vand.u32 %v4567, 4294901760
          %v4704 = vsub.f32 %v4567, %v4703
          %v4705 = vand.u32 %v4704, 4294901760
          %4706 = vmatmul.f32.gmra.mxu0 %v4705
          %v4707 = vpop.f32.mrf.mxu0
          %v4708 = vadd.f32 %v4676, %v4707
          %4709 = vdwg.mxu0
          %4710 = vmatpush.msra.mxu0 0.0
          %4711 = vmatpush.msra.mxu0 0.0
          %4712 = vmatpush.msra.mxu0 0.0
          %4713 = vmatpush.msra.mxu0 0.0
          %4714 = vmatpush.msra.mxu0 0.0
          %4715 = vmatpush.msra.mxu0 0.0
          %4716 = vmatpush.msra.mxu0 0.0
          %4717 = vmatpush.msra.mxu0 0.0
          %4718 = vmatpush.msra.mxu0 0.0
          %4719 = vmatpush.msra.mxu0 0.0
          %4720 = vmatpush.msra.mxu0 0.0
          %4721 = vmatpush.msra.mxu0 0.0
          %4722 = vmatpush.msra.mxu0 0.0
          %v4723 = vand.u32 %v4562, 4294901760
          %v4724 = vsub.f32 %v4562, %v4723
          %v4725 = vand.u32 %v4724, 4294901760
          %4726 = vmatpush.msra.mxu0 %v4725
          %v4727 = vand.u32 %v4561, 4294901760
          %v4728 = vsub.f32 %v4561, %v4727
          %v4729 = vand.u32 %v4728, 4294901760
          %4730 = vmatpush.msra.mxu0 %v4729
          %v4731 = vand.u32 %v4560, 4294901760
          %v4732 = vsub.f32 %v4560, %v4731
          %v4733 = vand.u32 %v4732, 4294901760
          %4734 = vmatpush.msra.mxu0 %v4733
          %v4735 = vand.u32 %v4564, 4294901760
          %4736 = vmatmul.f32.gmra.mxu0 %v4735
          %v4737 = vpop.f32.mrf.mxu0
          %v4738 = vadd.f32 %v4702, %v4737
          %v4739 = vand.u32 %v4567, 4294901760
          %4740 = vmatmul.f32.gmra.mxu0 %v4739
          %v4741 = vpop.f32.mrf.mxu0
          %v4742 = vadd.f32 %v4708, %v4741
          %4743 = vdwg.mxu0
          %4744 = vmatpush.msra.mxu0 0.0
          %4745 = vmatpush.msra.mxu0 0.0
          %4746 = vmatpush.msra.mxu0 0.0
          %4747 = vmatpush.msra.mxu0 0.0
          %4748 = vmatpush.msra.mxu0 0.0
          %4749 = vmatpush.msra.mxu0 0.0
          %4750 = vmatpush.msra.mxu0 0.0
          %4751 = vmatpush.msra.mxu0 0.0
          %4752 = vmatpush.msra.mxu0 0.0
          %4753 = vmatpush.msra.mxu0 0.0
          %4754 = vmatpush.msra.mxu0 0.0
          %4755 = vmatpush.msra.mxu0 0.0
          %4756 = vmatpush.msra.mxu0 0.0
          %v4757 = vand.u32 %v4562, 4294901760
          %4758 = vmatpush.msra.mxu0 %v4757
          %v4759 = vand.u32 %v4561, 4294901760
          %4760 = vmatpush.msra.mxu0 %v4759
          %v4761 = vand.u32 %v4560, 4294901760
          %4762 = vmatpush.msra.mxu0 %v4761
          %v4763 = vand.u32 %v4564, 4294901760
          %4764 = vmatmul.f32.gmra.mxu0 %v4763
          %v4765 = vpop.f32.mrf.mxu0
          %v4766 = vadd.f32 %v4738, %v4765
          %v4767 = vand.u32 %v4567, 4294901760
          %4768 = vmatmul.f32.gmra.mxu0 %v4767
          %v4769 = vpop.f32.mrf.mxu0
          %v4770 = vadd.f32 %v4742, %v4769
          %4771 = vdwg.mxu0
          %v4772 = vadd.f32 %v4551, %v4766
          %v4773 = vadd.f32 %v4555, %v4770
          %v4774 = vld [vmem:[%s4126 + $0x3] sm:$0xff]
          %v4775 = vld [vmem:[%s4126 + $0xb] sm:$0xff]
          %s4776 = scalar_lea.vmem %s175, 504
          %v4777 = vld [vmem:[%s4776] sm:$0xff]
          %v4778 = vld [vmem:[%s4776 + $0x8] sm:$0xff]
          %v4779 = vld [vmem:[%s4776 + $0x10] sm:$0xff]
          %v4781 = vsel %vm232, %v4774, 0
          %v4784 = vsel %vm232, %v4775, 0
          %4786 = vmatpush.msra.mxu0 0.0
          %4787 = vmatpush.msra.mxu0 0.0
          %4788 = vmatpush.msra.mxu0 0.0
          %4789 = vmatpush.msra.mxu0 0.0
          %4790 = vmatpush.msra.mxu0 0.0
          %4791 = vmatpush.msra.mxu0 0.0
          %4792 = vmatpush.msra.mxu0 0.0
          %4793 = vmatpush.msra.mxu0 0.0
          %4794 = vmatpush.msra.mxu0 0.0
          %4795 = vmatpush.msra.mxu0 0.0
          %4796 = vmatpush.msra.mxu0 0.0
          %4797 = vmatpush.msra.mxu0 0.0
          %4798 = vmatpush.msra.mxu0 0.0
          %v4799 = vand.u32 %v4779, 4294901760
          %4800 = vmatpush.msra.mxu0 %v4799
          %v4801 = vand.u32 %v4778, 4294901760
          %4802 = vmatpush.msra.mxu0 %v4801
          %v4803 = vand.u32 %v4777, 4294901760
          %4804 = vmatpush.msra.mxu0 %v4803
          %v4805 = vand.u32 %v4781, 4294901760
          %v4806 = vsub.f32 %v4781, %v4805
          %v4807 = vand.u32 %v4806, 4294901760
          %v4808 = vsub.f32 %v4806, %v4807
          %v4809 = vand.u32 %v4808, 4294901760
          %4810 = vmatmul.f32.gmra.mxu0 %v4809
          %v4811 = vpop.f32.mrf.mxu0
          %v4812 = vadd.f32 0.0, %v4811
          %v4813 = vand.u32 %v4784, 4294901760
          %v4814 = vsub.f32 %v4784, %v4813
          %v4815 = vand.u32 %v4814, 4294901760
          %v4816 = vsub.f32 %v4814, %v4815
          %v4817 = vand.u32 %v4816, 4294901760
          %4818 = vmatmul.f32.gmra.mxu0 %v4817
          %v4819 = vpop.f32.mrf.mxu0
          %v4820 = vadd.f32 0.0, %v4819
          %4821 = vdwg.mxu0
          %4822 = vmatpush.msra.mxu0 0.0
          %4823 = vmatpush.msra.mxu0 0.0
          %4824 = vmatpush.msra.mxu0 0.0
          %4825 = vmatpush.msra.mxu0 0.0
          %4826 = vmatpush.msra.mxu0 0.0
          %4827 = vmatpush.msra.mxu0 0.0
          %4828 = vmatpush.msra.mxu0 0.0
          %4829 = vmatpush.msra.mxu0 0.0
          %4830 = vmatpush.msra.mxu0 0.0
          %4831 = vmatpush.msra.mxu0 0.0
          %4832 = vmatpush.msra.mxu0 0.0
          %4833 = vmatpush.msra.mxu0 0.0
          %4834 = vmatpush.msra.mxu0 0.0
          %v4835 = vand.u32 %v4779, 4294901760
          %v4836 = vsub.f32 %v4779, %v4835
          %v4837 = vand.u32 %v4836, 4294901760
          %v4838 = vsub.f32 %v4836, %v4837
          %v4839 = vand.u32 %v4838, 4294901760
          %4840 = vmatpush.msra.mxu0 %v4839
          %v4841 = vand.u32 %v4778, 4294901760
          %v4842 = vsub.f32 %v4778, %v4841
          %v4843 = vand.u32 %v4842, 4294901760
          %v4844 = vsub.f32 %v4842, %v4843
          %v4845 = vand.u32 %v4844, 4294901760
          %4846 = vmatpush.msra.mxu0 %v4845
          %v4847 = vand.u32 %v4777, 4294901760
          %v4848 = vsub.f32 %v4777, %v4847
          %v4849 = vand.u32 %v4848, 4294901760
          %v4850 = vsub.f32 %v4848, %v4849
          %v4851 = vand.u32 %v4850, 4294901760
          %4852 = vmatpush.msra.mxu0 %v4851
          %v4853 = vand.u32 %v4781, 4294901760
          %4854 = vmatmul.f32.gmra.mxu0 %v4853
          %v4855 = vpop.f32.mrf.mxu0
          %v4856 = vadd.f32 %v4812, %v4855
          %v4857 = vand.u32 %v4784, 4294901760
          %4858 = vmatmul.f32.gmra.mxu0 %v4857
          %v4859 = vpop.f32.mrf.mxu0
          %v4860 = vadd.f32 %v4820, %v4859
          %4861 = vdwg.mxu0
          %4862 = vmatpush.msra.mxu0 0.0
          %4863 = vmatpush.msra.mxu0 0.0
          %4864 = vmatpush.msra.mxu0 0.0
          %4865 = vmatpush.msra.mxu0 0.0
          %4866 = vmatpush.msra.mxu0 0.0
          %4867 = vmatpush.msra.mxu0 0.0
          %4868 = vmatpush.msra.mxu0 0.0
          %4869 = vmatpush.msra.mxu0 0.0
          %4870 = vmatpush.msra.mxu0 0.0
          %4871 = vmatpush.msra.mxu0 0.0
          %4872 = vmatpush.msra.mxu0 0.0
          %4873 = vmatpush.msra.mxu0 0.0
          %4874 = vmatpush.msra.mxu0 0.0
          %v4875 = vand.u32 %v4779, 4294901760
          %v4876 = vsub.f32 %v4779, %v4875
          %4877 = vmatpush.msra.mxu0 %v4876
          %v4878 = vand.u32 %v4778, 4294901760
          %v4879 = vsub.f32 %v4778, %v4878
          %4880 = vmatpush.msra.mxu0 %v4879
          %v4881 = vand.u32 %v4777, 4294901760
          %v4882 = vsub.f32 %v4777, %v4881
          %4883 = vmatpush.msra.mxu0 %v4882
          %v4884 = vand.u32 %v4781, 4294901760
          %v4885 = vsub.f32 %v4781, %v4884
          %4886 = vmatmul.f32.gmra.mxu0 %v4885
          %v4887 = vpop.f32.mrf.mxu0
          %v4888 = vadd.f32 %v4856, %v4887
          %v4889 = vand.u32 %v4784, 4294901760
          %v4890 = vsub.f32 %v4784, %v4889
          %4891 = vmatmul.f32.gmra.mxu0 %v4890
          %v4892 = vpop.f32.mrf.mxu0
          %v4893 = vadd.f32 %v4860, %v4892
          %4894 = vdwg.mxu0
          %4895 = vmatpush.msra.mxu0 0.0
          %4896 = vmatpush.msra.mxu0 0.0
          %4897 = vmatpush.msra.mxu0 0.0
          %4898 = vmatpush.msra.mxu0 0.0
          %4899 = vmatpush.msra.mxu0 0.0
          %4900 = vmatpush.msra.mxu0 0.0
          %4901 = vmatpush.msra.mxu0 0.0
          %4902 = vmatpush.msra.mxu0 0.0
          %4903 = vmatpush.msra.mxu0 0.0
          %4904 = vmatpush.msra.mxu0 0.0
          %4905 = vmatpush.msra.mxu0 0.0
          %4906 = vmatpush.msra.mxu0 0.0
          %4907 = vmatpush.msra.mxu0 0.0
          %v4908 = vand.u32 %v4779, 4294901760
          %4909 = vmatpush.msra.mxu0 %v4908
          %v4910 = vand.u32 %v4778, 4294901760
          %4911 = vmatpush.msra.mxu0 %v4910
          %v4912 = vand.u32 %v4777, 4294901760
          %4913 = vmatpush.msra.mxu0 %v4912
          %v4914 = vand.u32 %v4781, 4294901760
          %v4915 = vsub.f32 %v4781, %v4914
          %v4916 = vand.u32 %v4915, 4294901760
          %4917 = vmatmul.f32.gmra.mxu0 %v4916
          %v4918 = vpop.f32.mrf.mxu0
          %v4919 = vadd.f32 %v4888, %v4918
          %v4920 = vand.u32 %v4784, 4294901760
          %v4921 = vsub.f32 %v4784, %v4920
          %v4922 = vand.u32 %v4921, 4294901760
          %4923 = vmatmul.f32.gmra.mxu0 %v4922
          %v4924 = vpop.f32.mrf.mxu0
          %v4925 = vadd.f32 %v4893, %v4924
          %4926 = vdwg.mxu0
          %4927 = vmatpush.msra.mxu0 0.0
          %4928 = vmatpush.msra.mxu0 0.0
          %4929 = vmatpush.msra.mxu0 0.0
          %4930 = vmatpush.msra.mxu0 0.0
          %4931 = vmatpush.msra.mxu0 0.0
          %4932 = vmatpush.msra.mxu0 0.0
          %4933 = vmatpush.msra.mxu0 0.0
          %4934 = vmatpush.msra.mxu0 0.0
          %4935 = vmatpush.msra.mxu0 0.0
          %4936 = vmatpush.msra.mxu0 0.0
          %4937 = vmatpush.msra.mxu0 0.0
          %4938 = vmatpush.msra.mxu0 0.0
          %4939 = vmatpush.msra.mxu0 0.0
          %v4940 = vand.u32 %v4779, 4294901760
          %v4941 = vsub.f32 %v4779, %v4940
          %v4942 = vand.u32 %v4941, 4294901760
          %4943 = vmatpush.msra.mxu0 %v4942
          %v4944 = vand.u32 %v4778, 4294901760
          %v4945 = vsub.f32 %v4778, %v4944
          %v4946 = vand.u32 %v4945, 4294901760
          %4947 = vmatpush.msra.mxu0 %v4946
          %v4948 = vand.u32 %v4777, 4294901760
          %v4949 = vsub.f32 %v4777, %v4948
          %v4950 = vand.u32 %v4949, 4294901760
          %4951 = vmatpush.msra.mxu0 %v4950
          %v4952 = vand.u32 %v4781, 4294901760
          %4953 = vmatmul.f32.gmra.mxu0 %v4952
          %v4954 = vpop.f32.mrf.mxu0
          %v4955 = vadd.f32 %v4919, %v4954
          %v4956 = vand.u32 %v4784, 4294901760
          %4957 = vmatmul.f32.gmra.mxu0 %v4956
          %v4958 = vpop.f32.mrf.mxu0
          %v4959 = vadd.f32 %v4925, %v4958
          %4960 = vdwg.mxu0
          %4961 = vmatpush.msra.mxu0 0.0
          %4962 = vmatpush.msra.mxu0 0.0
          %4963 = vmatpush.msra.mxu0 0.0
          %4964 = vmatpush.msra.mxu0 0.0
          %4965 = vmatpush.msra.mxu0 0.0
          %4966 = vmatpush.msra.mxu0 0.0
          %4967 = vmatpush.msra.mxu0 0.0
          %4968 = vmatpush.msra.mxu0 0.0
          %4969 = vmatpush.msra.mxu0 0.0
          %4970 = vmatpush.msra.mxu0 0.0
          %4971 = vmatpush.msra.mxu0 0.0
          %4972 = vmatpush.msra.mxu0 0.0
          %4973 = vmatpush.msra.mxu0 0.0
          %v4974 = vand.u32 %v4779, 4294901760
          %4975 = vmatpush.msra.mxu0 %v4974
          %v4976 = vand.u32 %v4778, 4294901760
          %4977 = vmatpush.msra.mxu0 %v4976
          %v4978 = vand.u32 %v4777, 4294901760
          %4979 = vmatpush.msra.mxu0 %v4978
          %v4980 = vand.u32 %v4781, 4294901760
          %4981 = vmatmul.f32.gmra.mxu0 %v4980
          %v4982 = vpop.f32.mrf.mxu0
          %v4983 = vadd.f32 %v4955, %v4982
          %v4984 = vand.u32 %v4784, 4294901760
          %4985 = vmatmul.f32.gmra.mxu0 %v4984
          %v4986 = vpop.f32.mrf.mxu0
          %v4987 = vadd.f32 %v4959, %v4986
          %4988 = vdwg.mxu0
          %v4989 = vadd.f32 %v4772, %v4983
          %v4990 = vadd.f32 %v4773, %v4987
          %v4991 = vld [vmem:[%s4126 + $0x4] sm:$0xff]
          %v4992 = vld [vmem:[%s4126 + $0xc] sm:$0xff]
          %s4993 = scalar_lea.vmem %s175, 528
          %v4994 = vld [vmem:[%s4993] sm:$0xff]
          %v4995 = vld [vmem:[%s4993 + $0x8] sm:$0xff]
          %v4996 = vld [vmem:[%s4993 + $0x10] sm:$0xff]
          %v4998 = vsel %vm232, %v4991, 0
          %v5001 = vsel %vm232, %v4992, 0
          %5003 = vmatpush.msra.mxu0 0.0
          %5004 = vmatpush.msra.mxu0 0.0
          %5005 = vmatpush.msra.mxu0 0.0
          %5006 = vmatpush.msra.mxu0 0.0
          %5007 = vmatpush.msra.mxu0 0.0
          %5008 = vmatpush.msra.mxu0 0.0
          %5009 = vmatpush.msra.mxu0 0.0
          %5010 = vmatpush.msra.mxu0 0.0
          %5011 = vmatpush.msra.mxu0 0.0
          %5012 = vmatpush.msra.mxu0 0.0
          %5013 = vmatpush.msra.mxu0 0.0
          %5014 = vmatpush.msra.mxu0 0.0
          %5015 = vmatpush.msra.mxu0 0.0
          %v5016 = vand.u32 %v4996, 4294901760
          %5017 = vmatpush.msra.mxu0 %v5016
          %v5018 = vand.u32 %v4995, 4294901760
          %5019 = vmatpush.msra.mxu0 %v5018
          %v5020 = vand.u32 %v4994, 4294901760
          %5021 = vmatpush.msra.mxu0 %v5020
          %v5022 = vand.u32 %v4998, 4294901760
          %v5023 = vsub.f32 %v4998, %v5022
          %v5024 = vand.u32 %v5023, 4294901760
          %v5025 = vsub.f32 %v5023, %v5024
          %v5026 = vand.u32 %v5025, 4294901760
          %5027 = vmatmul.f32.gmra.mxu0 %v5026
          %v5028 = vpop.f32.mrf.mxu0
          %v5029 = vadd.f32 0.0, %v5028
          %v5030 = vand.u32 %v5001, 4294901760
          %v5031 = vsub.f32 %v5001, %v5030
          %v5032 = vand.u32 %v5031, 4294901760
          %v5033 = vsub.f32 %v5031, %v5032
          %v5034 = vand.u32 %v5033, 4294901760
          %5035 = vmatmul.f32.gmra.mxu0 %v5034
          %v5036 = vpop.f32.mrf.mxu0
          %v5037 = vadd.f32 0.0, %v5036
          %5038 = vdwg.mxu0
          %5039 = vmatpush.msra.mxu0 0.0
          %5040 = vmatpush.msra.mxu0 0.0
          %5041 = vmatpush.msra.mxu0 0.0
          %5042 = vmatpush.msra.mxu0 0.0
          %5043 = vmatpush.msra.mxu0 0.0
          %5044 = vmatpush.msra.mxu0 0.0
          %5045 = vmatpush.msra.mxu0 0.0
          %5046 = vmatpush.msra.mxu0 0.0
          %5047 = vmatpush.msra.mxu0 0.0
          %5048 = vmatpush.msra.mxu0 0.0
          %5049 = vmatpush.msra.mxu0 0.0
          %5050 = vmatpush.msra.mxu0 0.0
          %5051 = vmatpush.msra.mxu0 0.0
          %v5052 = vand.u32 %v4996, 4294901760
          %v5053 = vsub.f32 %v4996, %v5052
          %v5054 = vand.u32 %v5053, 4294901760
          %v5055 = vsub.f32 %v5053, %v5054
          %v5056 = vand.u32 %v5055, 4294901760
          %5057 = vmatpush.msra.mxu0 %v5056
          %v5058 = vand.u32 %v4995, 4294901760
          %v5059 = vsub.f32 %v4995, %v5058
          %v5060 = vand.u32 %v5059, 4294901760
          %v5061 = vsub.f32 %v5059, %v5060
          %v5062 = vand.u32 %v5061, 4294901760
          %5063 = vmatpush.msra.mxu0 %v5062
          %v5064 = vand.u32 %v4994, 4294901760
          %v5065 = vsub.f32 %v4994, %v5064
          %v5066 = vand.u32 %v5065, 4294901760
          %v5067 = vsub.f32 %v5065, %v5066
          %v5068 = vand.u32 %v5067, 4294901760
          %5069 = vmatpush.msra.mxu0 %v5068
          %v5070 = vand.u32 %v4998, 4294901760
          %5071 = vmatmul.f32.gmra.mxu0 %v5070
          %v5072 = vpop.f32.mrf.mxu0
          %v5073 = vadd.f32 %v5029, %v5072
          %v5074 = vand.u32 %v5001, 4294901760
          %5075 = vmatmul.f32.gmra.mxu0 %v5074
          %v5076 = vpop.f32.mrf.mxu0
          %v5077 = vadd.f32 %v5037, %v5076
          %5078 = vdwg.mxu0
          %5079 = vmatpush.msra.mxu0 0.0
          %5080 = vmatpush.msra.mxu0 0.0
          %5081 = vmatpush.msra.mxu0 0.0
          %5082 = vmatpush.msra.mxu0 0.0
          %5083 = vmatpush.msra.mxu0 0.0
          %5084 = vmatpush.msra.mxu0 0.0
          %5085 = vmatpush.msra.mxu0 0.0
          %5086 = vmatpush.msra.mxu0 0.0
          %5087 = vmatpush.msra.mxu0 0.0
          %5088 = vmatpush.msra.mxu0 0.0
          %5089 = vmatpush.msra.mxu0 0.0
          %5090 = vmatpush.msra.mxu0 0.0
          %5091 = vmatpush.msra.mxu0 0.0
          %v5092 = vand.u32 %v4996, 4294901760
          %v5093 = vsub.f32 %v4996, %v5092
          %5094 = vmatpush.msra.mxu0 %v5093
          %v5095 = vand.u32 %v4995, 4294901760
          %v5096 = vsub.f32 %v4995, %v5095
          %5097 = vmatpush.msra.mxu0 %v5096
          %v5098 = vand.u32 %v4994, 4294901760
          %v5099 = vsub.f32 %v4994, %v5098
          %5100 = vmatpush.msra.mxu0 %v5099
          %v5101 = vand.u32 %v4998, 4294901760
          %v5102 = vsub.f32 %v4998, %v5101
          %5103 = vmatmul.f32.gmra.mxu0 %v5102
          %v5104 = vpop.f32.mrf.mxu0
          %v5105 = vadd.f32 %v5073, %v5104
          %v5106 = vand.u32 %v5001, 4294901760
          %v5107 = vsub.f32 %v5001, %v5106
          %5108 = vmatmul.f32.gmra.mxu0 %v5107
          %v5109 = vpop.f32.mrf.mxu0
          %v5110 = vadd.f32 %v5077, %v5109
          %5111 = vdwg.mxu0
          %5112 = vmatpush.msra.mxu0 0.0
          %5113 = vmatpush.msra.mxu0 0.0
          %5114 = vmatpush.msra.mxu0 0.0
          %5115 = vmatpush.msra.mxu0 0.0
          %5116 = vmatpush.msra.mxu0 0.0
          %5117 = vmatpush.msra.mxu0 0.0
          %5118 = vmatpush.msra.mxu0 0.0
          %5119 = vmatpush.msra.mxu0 0.0
          %5120 = vmatpush.msra.mxu0 0.0
          %5121 = vmatpush.msra.mxu0 0.0
          %5122 = vmatpush.msra.mxu0 0.0
          %5123 = vmatpush.msra.mxu0 0.0
          %5124 = vmatpush.msra.mxu0 0.0
          %v5125 = vand.u32 %v4996, 4294901760
          %5126 = vmatpush.msra.mxu0 %v5125
          %v5127 = vand.u32 %v4995, 4294901760
          %5128 = vmatpush.msra.mxu0 %v5127
          %v5129 = vand.u32 %v4994, 4294901760
          %5130 = vmatpush.msra.mxu0 %v5129
          %v5131 = vand.u32 %v4998, 4294901760
          %v5132 = vsub.f32 %v4998, %v5131
          %v5133 = vand.u32 %v5132, 4294901760
          %5134 = vmatmul.f32.gmra.mxu0 %v5133
          %v5135 = vpop.f32.mrf.mxu0
          %v5136 = vadd.f32 %v5105, %v5135
          %v5137 = vand.u32 %v5001, 4294901760
          %v5138 = vsub.f32 %v5001, %v5137
          %v5139 = vand.u32 %v5138, 4294901760
          %5140 = vmatmul.f32.gmra.mxu0 %v5139
          %v5141 = vpop.f32.mrf.mxu0
          %v5142 = vadd.f32 %v5110, %v5141
          %5143 = vdwg.mxu0
          %5144 = vmatpush.msra.mxu0 0.0
          %5145 = vmatpush.msra.mxu0 0.0
          %5146 = vmatpush.msra.mxu0 0.0
          %5147 = vmatpush.msra.mxu0 0.0
          %5148 = vmatpush.msra.mxu0 0.0
          %5149 = vmatpush.msra.mxu0 0.0
          %5150 = vmatpush.msra.mxu0 0.0
          %5151 = vmatpush.msra.mxu0 0.0
          %5152 = vmatpush.msra.mxu0 0.0
          %5153 = vmatpush.msra.mxu0 0.0
          %5154 = vmatpush.msra.mxu0 0.0
          %5155 = vmatpush.msra.mxu0 0.0
          %5156 = vmatpush.msra.mxu0 0.0
          %v5157 = vand.u32 %v4996, 4294901760
          %v5158 = vsub.f32 %v4996, %v5157
          %v5159 = vand.u32 %v5158, 4294901760
          %5160 = vmatpush.msra.mxu0 %v5159
          %v5161 = vand.u32 %v4995, 4294901760
          %v5162 = vsub.f32 %v4995, %v5161
          %v5163 = vand.u32 %v5162, 4294901760
          %5164 = vmatpush.msra.mxu0 %v5163
          %v5165 = vand.u32 %v4994, 4294901760
          %v5166 = vsub.f32 %v4994, %v5165
          %v5167 = vand.u32 %v5166, 4294901760
          %5168 = vmatpush.msra.mxu0 %v5167
          %v5169 = vand.u32 %v4998, 4294901760
          %5170 = vmatmul.f32.gmra.mxu0 %v5169
          %v5171 = vpop.f32.mrf.mxu0
          %v5172 = vadd.f32 %v5136, %v5171
          %v5173 = vand.u32 %v5001, 4294901760
          %5174 = vmatmul.f32.gmra.mxu0 %v5173
          %v5175 = vpop.f32.mrf.mxu0
          %v5176 = vadd.f32 %v5142, %v5175
          %5177 = vdwg.mxu0
          %5178 = vmatpush.msra.mxu0 0.0
          %5179 = vmatpush.msra.mxu0 0.0
          %5180 = vmatpush.msra.mxu0 0.0
          %5181 = vmatpush.msra.mxu0 0.0
          %5182 = vmatpush.msra.mxu0 0.0
          %5183 = vmatpush.msra.mxu0 0.0
          %5184 = vmatpush.msra.mxu0 0.0
          %5185 = vmatpush.msra.mxu0 0.0
          %5186 = vmatpush.msra.mxu0 0.0
          %5187 = vmatpush.msra.mxu0 0.0
          %5188 = vmatpush.msra.mxu0 0.0
          %5189 = vmatpush.msra.mxu0 0.0
          %5190 = vmatpush.msra.mxu0 0.0
          %v5191 = vand.u32 %v4996, 4294901760
          %5192 = vmatpush.msra.mxu0 %v5191
          %v5193 = vand.u32 %v4995, 4294901760
          %5194 = vmatpush.msra.mxu0 %v5193
          %v5195 = vand.u32 %v4994, 4294901760
          %5196 = vmatpush.msra.mxu0 %v5195
          %v5197 = vand.u32 %v4998, 4294901760
          %5198 = vmatmul.f32.gmra.mxu0 %v5197
          %v5199 = vpop.f32.mrf.mxu0
          %v5200 = vadd.f32 %v5172, %v5199
          %v5201 = vand.u32 %v5001, 4294901760
          %5202 = vmatmul.f32.gmra.mxu0 %v5201
          %v5203 = vpop.f32.mrf.mxu0
          %v5204 = vadd.f32 %v5176, %v5203
          %5205 = vdwg.mxu0
          %v5206 = vadd.f32 %v4989, %v5200
          %v5207 = vadd.f32 %v4990, %v5204
          %v5208 = vld [vmem:[%s4126 + $0x5] sm:$0xff]
          %v5209 = vld [vmem:[%s4126 + $0xd] sm:$0xff]
          %s5210 = scalar_lea.vmem %s175, 552
          %v5211 = vld [vmem:[%s5210] sm:$0xff]
          %v5212 = vld [vmem:[%s5210 + $0x8] sm:$0xff]
          %v5213 = vld [vmem:[%s5210 + $0x10] sm:$0xff]
          %v5215 = vsel %vm232, %v5208, 0
          %v5218 = vsel %vm232, %v5209, 0
          %5220 = vmatpush.msra.mxu0 0.0
          %5221 = vmatpush.msra.mxu0 0.0
          %5222 = vmatpush.msra.mxu0 0.0
          %5223 = vmatpush.msra.mxu0 0.0
          %5224 = vmatpush.msra.mxu0 0.0
          %5225 = vmatpush.msra.mxu0 0.0
          %5226 = vmatpush.msra.mxu0 0.0
          %5227 = vmatpush.msra.mxu0 0.0
          %5228 = vmatpush.msra.mxu0 0.0
          %5229 = vmatpush.msra.mxu0 0.0
          %5230 = vmatpush.msra.mxu0 0.0
          %5231 = vmatpush.msra.mxu0 0.0
          %5232 = vmatpush.msra.mxu0 0.0
          %v5233 = vand.u32 %v5213, 4294901760
          %5234 = vmatpush.msra.mxu0 %v5233
          %v5235 = vand.u32 %v5212, 4294901760
          %5236 = vmatpush.msra.mxu0 %v5235
          %v5237 = vand.u32 %v5211, 4294901760
          %5238 = vmatpush.msra.mxu0 %v5237
          %v5239 = vand.u32 %v5215, 4294901760
          %v5240 = vsub.f32 %v5215, %v5239
          %v5241 = vand.u32 %v5240, 4294901760
          %v5242 = vsub.f32 %v5240, %v5241
          %v5243 = vand.u32 %v5242, 4294901760
          %5244 = vmatmul.f32.gmra.mxu0 %v5243
          %v5245 = vpop.f32.mrf.mxu0
          %v5246 = vadd.f32 0.0, %v5245
          %v5247 = vand.u32 %v5218, 4294901760
          %v5248 = vsub.f32 %v5218, %v5247
          %v5249 = vand.u32 %v5248, 4294901760
          %v5250 = vsub.f32 %v5248, %v5249
          %v5251 = vand.u32 %v5250, 4294901760
          %5252 = vmatmul.f32.gmra.mxu0 %v5251
          %v5253 = vpop.f32.mrf.mxu0
          %v5254 = vadd.f32 0.0, %v5253
          %5255 = vdwg.mxu0
          %5256 = vmatpush.msra.mxu0 0.0
          %5257 = vmatpush.msra.mxu0 0.0
          %5258 = vmatpush.msra.mxu0 0.0
          %5259 = vmatpush.msra.mxu0 0.0
          %5260 = vmatpush.msra.mxu0 0.0
          %5261 = vmatpush.msra.mxu0 0.0
          %5262 = vmatpush.msra.mxu0 0.0
          %5263 = vmatpush.msra.mxu0 0.0
          %5264 = vmatpush.msra.mxu0 0.0
          %5265 = vmatpush.msra.mxu0 0.0
          %5266 = vmatpush.msra.mxu0 0.0
          %5267 = vmatpush.msra.mxu0 0.0
          %5268 = vmatpush.msra.mxu0 0.0
          %v5269 = vand.u32 %v5213, 4294901760
          %v5270 = vsub.f32 %v5213, %v5269
          %v5271 = vand.u32 %v5270, 4294901760
          %v5272 = vsub.f32 %v5270, %v5271
          %v5273 = vand.u32 %v5272, 4294901760
          %5274 = vmatpush.msra.mxu0 %v5273
          %v5275 = vand.u32 %v5212, 4294901760
          %v5276 = vsub.f32 %v5212, %v5275
          %v5277 = vand.u32 %v5276, 4294901760
          %v5278 = vsub.f32 %v5276, %v5277
          %v5279 = vand.u32 %v5278, 4294901760
          %5280 = vmatpush.msra.mxu0 %v5279
          %v5281 = vand.u32 %v5211, 4294901760
          %v5282 = vsub.f32 %v5211, %v5281
          %v5283 = vand.u32 %v5282, 4294901760
          %v5284 = vsub.f32 %v5282, %v5283
          %v5285 = vand.u32 %v5284, 4294901760
          %5286 = vmatpush.msra.mxu0 %v5285
          %v5287 = vand.u32 %v5215, 4294901760
          %5288 = vmatmul.f32.gmra.mxu0 %v5287
          %v5289 = vpop.f32.mrf.mxu0
          %v5290 = vadd.f32 %v5246, %v5289
          %v5291 = vand.u32 %v5218, 4294901760
          %5292 = vmatmul.f32.gmra.mxu0 %v5291
          %v5293 = vpop.f32.mrf.mxu0
          %v5294 = vadd.f32 %v5254, %v5293
          %5295 = vdwg.mxu0
          %5296 = vmatpush.msra.mxu0 0.0
          %5297 = vmatpush.msra.mxu0 0.0
          %5298 = vmatpush.msra.mxu0 0.0
          %5299 = vmatpush.msra.mxu0 0.0
          %5300 = vmatpush.msra.mxu0 0.0
          %5301 = vmatpush.msra.mxu0 0.0
          %5302 = vmatpush.msra.mxu0 0.0
          %5303 = vmatpush.msra.mxu0 0.0
          %5304 = vmatpush.msra.mxu0 0.0
          %5305 = vmatpush.msra.mxu0 0.0
          %5306 = vmatpush.msra.mxu0 0.0
          %5307 = vmatpush.msra.mxu0 0.0
          %5308 = vmatpush.msra.mxu0 0.0
          %v5309 = vand.u32 %v5213, 4294901760
          %v5310 = vsub.f32 %v5213, %v5309
          %5311 = vmatpush.msra.mxu0 %v5310
          %v5312 = vand.u32 %v5212, 4294901760
          %v5313 = vsub.f32 %v5212, %v5312
          %5314 = vmatpush.msra.mxu0 %v5313
          %v5315 = vand.u32 %v5211, 4294901760
          %v5316 = vsub.f32 %v5211, %v5315
          %5317 = vmatpush.msra.mxu0 %v5316
          %v5318 = vand.u32 %v5215, 4294901760
          %v5319 = vsub.f32 %v5215, %v5318
          %5320 = vmatmul.f32.gmra.mxu0 %v5319
          %v5321 = vpop.f32.mrf.mxu0
          %v5322 = vadd.f32 %v5290, %v5321
          %v5323 = vand.u32 %v5218, 4294901760
          %v5324 = vsub.f32 %v5218, %v5323
          %5325 = vmatmul.f32.gmra.mxu0 %v5324
          %v5326 = vpop.f32.mrf.mxu0
          %v5327 = vadd.f32 %v5294, %v5326
          %5328 = vdwg.mxu0
          %5329 = vmatpush.msra.mxu0 0.0
          %5330 = vmatpush.msra.mxu0 0.0
          %5331 = vmatpush.msra.mxu0 0.0
          %5332 = vmatpush.msra.mxu0 0.0
          %5333 = vmatpush.msra.mxu0 0.0
          %5334 = vmatpush.msra.mxu0 0.0
          %5335 = vmatpush.msra.mxu0 0.0
          %5336 = vmatpush.msra.mxu0 0.0
          %5337 = vmatpush.msra.mxu0 0.0
          %5338 = vmatpush.msra.mxu0 0.0
          %5339 = vmatpush.msra.mxu0 0.0
          %5340 = vmatpush.msra.mxu0 0.0
          %5341 = vmatpush.msra.mxu0 0.0
          %v5342 = vand.u32 %v5213, 4294901760
          %5343 = vmatpush.msra.mxu0 %v5342
          %v5344 = vand.u32 %v5212, 4294901760
          %5345 = vmatpush.msra.mxu0 %v5344
          %v5346 = vand.u32 %v5211, 4294901760
          %5347 = vmatpush.msra.mxu0 %v5346
          %v5348 = vand.u32 %v5215, 4294901760
          %v5349 = vsub.f32 %v5215, %v5348
          %v5350 = vand.u32 %v5349, 4294901760
          %5351 = vmatmul.f32.gmra.mxu0 %v5350
          %v5352 = vpop.f32.mrf.mxu0
          %v5353 = vadd.f32 %v5322, %v5352
          %v5354 = vand.u32 %v5218, 4294901760
          %v5355 = vsub.f32 %v5218, %v5354
          %v5356 = vand.u32 %v5355, 4294901760
          %5357 = vmatmul.f32.gmra.mxu0 %v5356
          %v5358 = vpop.f32.mrf.mxu0
          %v5359 = vadd.f32 %v5327, %v5358
          %5360 = vdwg.mxu0
          %5361 = vmatpush.msra.mxu0 0.0
          %5362 = vmatpush.msra.mxu0 0.0
          %5363 = vmatpush.msra.mxu0 0.0
          %5364 = vmatpush.msra.mxu0 0.0
          %5365 = vmatpush.msra.mxu0 0.0
          %5366 = vmatpush.msra.mxu0 0.0
          %5367 = vmatpush.msra.mxu0 0.0
          %5368 = vmatpush.msra.mxu0 0.0
          %5369 = vmatpush.msra.mxu0 0.0
          %5370 = vmatpush.msra.mxu0 0.0
          %5371 = vmatpush.msra.mxu0 0.0
          %5372 = vmatpush.msra.mxu0 0.0
          %5373 = vmatpush.msra.mxu0 0.0
          %v5374 = vand.u32 %v5213, 4294901760
          %v5375 = vsub.f32 %v5213, %v5374
          %v5376 = vand.u32 %v5375, 4294901760
          %5377 = vmatpush.msra.mxu0 %v5376
          %v5378 = vand.u32 %v5212, 4294901760
          %v5379 = vsub.f32 %v5212, %v5378
          %v5380 = vand.u32 %v5379, 4294901760
          %5381 = vmatpush.msra.mxu0 %v5380
          %v5382 = vand.u32 %v5211, 4294901760
          %v5383 = vsub.f32 %v5211, %v5382
          %v5384 = vand.u32 %v5383, 4294901760
          %5385 = vmatpush.msra.mxu0 %v5384
          %v5386 = vand.u32 %v5215, 4294901760
          %5387 = vmatmul.f32.gmra.mxu0 %v5386
          %v5388 = vpop.f32.mrf.mxu0
          %v5389 = vadd.f32 %v5353, %v5388
          %v5390 = vand.u32 %v5218, 4294901760
          %5391 = vmatmul.f32.gmra.mxu0 %v5390
          %v5392 = vpop.f32.mrf.mxu0
          %v5393 = vadd.f32 %v5359, %v5392
          %5394 = vdwg.mxu0
          %5395 = vmatpush.msra.mxu0 0.0
          %5396 = vmatpush.msra.mxu0 0.0
          %5397 = vmatpush.msra.mxu0 0.0
          %5398 = vmatpush.msra.mxu0 0.0
          %5399 = vmatpush.msra.mxu0 0.0
          %5400 = vmatpush.msra.mxu0 0.0
          %5401 = vmatpush.msra.mxu0 0.0
          %5402 = vmatpush.msra.mxu0 0.0
          %5403 = vmatpush.msra.mxu0 0.0
          %5404 = vmatpush.msra.mxu0 0.0
          %5405 = vmatpush.msra.mxu0 0.0
          %5406 = vmatpush.msra.mxu0 0.0
          %5407 = vmatpush.msra.mxu0 0.0
          %v5408 = vand.u32 %v5213, 4294901760
          %5409 = vmatpush.msra.mxu0 %v5408
          %v5410 = vand.u32 %v5212, 4294901760
          %5411 = vmatpush.msra.mxu0 %v5410
          %v5412 = vand.u32 %v5211, 4294901760
          %5413 = vmatpush.msra.mxu0 %v5412
          %v5414 = vand.u32 %v5215, 4294901760
          %5415 = vmatmul.f32.gmra.mxu0 %v5414
          %v5416 = vpop.f32.mrf.mxu0
          %v5417 = vadd.f32 %v5389, %v5416
          %v5418 = vand.u32 %v5218, 4294901760
          %5419 = vmatmul.f32.gmra.mxu0 %v5418
          %v5420 = vpop.f32.mrf.mxu0
          %v5421 = vadd.f32 %v5393, %v5420
          %5422 = vdwg.mxu0
          %v5423 = vadd.f32 %v5206, %v5417
          %v5424 = vadd.f32 %v5207, %v5421
          %v5425 = vld [vmem:[%s4126 + $0x6] sm:$0xff]
          %v5426 = vld [vmem:[%s4126 + $0xe] sm:$0xff]
          %s5427 = scalar_lea.vmem %s175, 576
          %v5428 = vld [vmem:[%s5427] sm:$0xff]
          %v5429 = vld [vmem:[%s5427 + $0x8] sm:$0xff]
          %v5430 = vld [vmem:[%s5427 + $0x10] sm:$0xff]
          %v5432 = vsel %vm232, %v5425, 0
          %v5435 = vsel %vm232, %v5426, 0
          %5437 = vmatpush.msra.mxu0 0.0
          %5438 = vmatpush.msra.mxu0 0.0
          %5439 = vmatpush.msra.mxu0 0.0
          %5440 = vmatpush.msra.mxu0 0.0
          %5441 = vmatpush.msra.mxu0 0.0
          %5442 = vmatpush.msra.mxu0 0.0
          %5443 = vmatpush.msra.mxu0 0.0
          %5444 = vmatpush.msra.mxu0 0.0
          %5445 = vmatpush.msra.mxu0 0.0
          %5446 = vmatpush.msra.mxu0 0.0
          %5447 = vmatpush.msra.mxu0 0.0
          %5448 = vmatpush.msra.mxu0 0.0
          %5449 = vmatpush.msra.mxu0 0.0
          %v5450 = vand.u32 %v5430, 4294901760
          %5451 = vmatpush.msra.mxu0 %v5450
          %v5452 = vand.u32 %v5429, 4294901760
          %5453 = vmatpush.msra.mxu0 %v5452
          %v5454 = vand.u32 %v5428, 4294901760
          %5455 = vmatpush.msra.mxu0 %v5454
          %v5456 = vand.u32 %v5432, 4294901760
          %v5457 = vsub.f32 %v5432, %v5456
          %v5458 = vand.u32 %v5457, 4294901760
          %v5459 = vsub.f32 %v5457, %v5458
          %v5460 = vand.u32 %v5459, 4294901760
          %5461 = vmatmul.f32.gmra.mxu0 %v5460
          %v5462 = vpop.f32.mrf.mxu0
          %v5463 = vadd.f32 0.0, %v5462
          %v5464 = vand.u32 %v5435, 4294901760
          %v5465 = vsub.f32 %v5435, %v5464
          %v5466 = vand.u32 %v5465, 4294901760
          %v5467 = vsub.f32 %v5465, %v5466
          %v5468 = vand.u32 %v5467, 4294901760
          %5469 = vmatmul.f32.gmra.mxu0 %v5468
          %v5470 = vpop.f32.mrf.mxu0
          %v5471 = vadd.f32 0.0, %v5470
          %5472 = vdwg.mxu0
          %5473 = vmatpush.msra.mxu0 0.0
          %5474 = vmatpush.msra.mxu0 0.0
          %5475 = vmatpush.msra.mxu0 0.0
          %5476 = vmatpush.msra.mxu0 0.0
          %5477 = vmatpush.msra.mxu0 0.0
          %5478 = vmatpush.msra.mxu0 0.0
          %5479 = vmatpush.msra.mxu0 0.0
          %5480 = vmatpush.msra.mxu0 0.0
          %5481 = vmatpush.msra.mxu0 0.0
          %5482 = vmatpush.msra.mxu0 0.0
          %5483 = vmatpush.msra.mxu0 0.0
          %5484 = vmatpush.msra.mxu0 0.0
          %5485 = vmatpush.msra.mxu0 0.0
          %v5486 = vand.u32 %v5430, 4294901760
          %v5487 = vsub.f32 %v5430, %v5486
          %v5488 = vand.u32 %v5487, 4294901760
          %v5489 = vsub.f32 %v5487, %v5488
          %v5490 = vand.u32 %v5489, 4294901760
          %5491 = vmatpush.msra.mxu0 %v5490
          %v5492 = vand.u32 %v5429, 4294901760
          %v5493 = vsub.f32 %v5429, %v5492
          %v5494 = vand.u32 %v5493, 4294901760
          %v5495 = vsub.f32 %v5493, %v5494
          %v5496 = vand.u32 %v5495, 4294901760
          %5497 = vmatpush.msra.mxu0 %v5496
          %v5498 = vand.u32 %v5428, 4294901760
          %v5499 = vsub.f32 %v5428, %v5498
          %v5500 = vand.u32 %v5499, 4294901760
          %v5501 = vsub.f32 %v5499, %v5500
          %v5502 = vand.u32 %v5501, 4294901760
          %5503 = vmatpush.msra.mxu0 %v5502
          %v5504 = vand.u32 %v5432, 4294901760
          %5505 = vmatmul.f32.gmra.mxu0 %v5504
          %v5506 = vpop.f32.mrf.mxu0
          %v5507 = vadd.f32 %v5463, %v5506
          %v5508 = vand.u32 %v5435, 4294901760
          %5509 = vmatmul.f32.gmra.mxu0 %v5508
          %v5510 = vpop.f32.mrf.mxu0
          %v5511 = vadd.f32 %v5471, %v5510
          %5512 = vdwg.mxu0
          %5513 = vmatpush.msra.mxu0 0.0
          %5514 = vmatpush.msra.mxu0 0.0
          %5515 = vmatpush.msra.mxu0 0.0
          %5516 = vmatpush.msra.mxu0 0.0
          %5517 = vmatpush.msra.mxu0 0.0
          %5518 = vmatpush.msra.mxu0 0.0
          %5519 = vmatpush.msra.mxu0 0.0
          %5520 = vmatpush.msra.mxu0 0.0
          %5521 = vmatpush.msra.mxu0 0.0
          %5522 = vmatpush.msra.mxu0 0.0
          %5523 = vmatpush.msra.mxu0 0.0
          %5524 = vmatpush.msra.mxu0 0.0
          %5525 = vmatpush.msra.mxu0 0.0
          %v5526 = vand.u32 %v5430, 4294901760
          %v5527 = vsub.f32 %v5430, %v5526
          %5528 = vmatpush.msra.mxu0 %v5527
          %v5529 = vand.u32 %v5429, 4294901760
          %v5530 = vsub.f32 %v5429, %v5529
          %5531 = vmatpush.msra.mxu0 %v5530
          %v5532 = vand.u32 %v5428, 4294901760
          %v5533 = vsub.f32 %v5428, %v5532
          %5534 = vmatpush.msra.mxu0 %v5533
          %v5535 = vand.u32 %v5432, 4294901760
          %v5536 = vsub.f32 %v5432, %v5535
          %5537 = vmatmul.f32.gmra.mxu0 %v5536
          %v5538 = vpop.f32.mrf.mxu0
          %v5539 = vadd.f32 %v5507, %v5538
          %v5540 = vand.u32 %v5435, 4294901760
          %v5541 = vsub.f32 %v5435, %v5540
          %5542 = vmatmul.f32.gmra.mxu0 %v5541
          %v5543 = vpop.f32.mrf.mxu0
          %v5544 = vadd.f32 %v5511, %v5543
          %5545 = vdwg.mxu0
          %5546 = vmatpush.msra.mxu0 0.0
          %5547 = vmatpush.msra.mxu0 0.0
          %5548 = vmatpush.msra.mxu0 0.0
          %5549 = vmatpush.msra.mxu0 0.0
          %5550 = vmatpush.msra.mxu0 0.0
          %5551 = vmatpush.msra.mxu0 0.0
          %5552 = vmatpush.msra.mxu0 0.0
          %5553 = vmatpush.msra.mxu0 0.0
          %5554 = vmatpush.msra.mxu0 0.0
          %5555 = vmatpush.msra.mxu0 0.0
          %5556 = vmatpush.msra.mxu0 0.0
          %5557 = vmatpush.msra.mxu0 0.0
          %5558 = vmatpush.msra.mxu0 0.0
          %v5559 = vand.u32 %v5430, 4294901760
          %5560 = vmatpush.msra.mxu0 %v5559
          %v5561 = vand.u32 %v5429, 4294901760
          %5562 = vmatpush.msra.mxu0 %v5561
          %v5563 = vand.u32 %v5428, 4294901760
          %5564 = vmatpush.msra.mxu0 %v5563
          %v5565 = vand.u32 %v5432, 4294901760
          %v5566 = vsub.f32 %v5432, %v5565
          %v5567 = vand.u32 %v5566, 4294901760
          %5568 = vmatmul.f32.gmra.mxu0 %v5567
          %v5569 = vpop.f32.mrf.mxu0
          %v5570 = vadd.f32 %v5539, %v5569
          %v5571 = vand.u32 %v5435, 4294901760
          %v5572 = vsub.f32 %v5435, %v5571
          %v5573 = vand.u32 %v5572, 4294901760
          %5574 = vmatmul.f32.gmra.mxu0 %v5573
          %v5575 = vpop.f32.mrf.mxu0
          %v5576 = vadd.f32 %v5544, %v5575
          %5577 = vdwg.mxu0
          %5578 = vmatpush.msra.mxu0 0.0
          %5579 = vmatpush.msra.mxu0 0.0
          %5580 = vmatpush.msra.mxu0 0.0
          %5581 = vmatpush.msra.mxu0 0.0
          %5582 = vmatpush.msra.mxu0 0.0
          %5583 = vmatpush.msra.mxu0 0.0
          %5584 = vmatpush.msra.mxu0 0.0
          %5585 = vmatpush.msra.mxu0 0.0
          %5586 = vmatpush.msra.mxu0 0.0
          %5587 = vmatpush.msra.mxu0 0.0
          %5588 = vmatpush.msra.mxu0 0.0
          %5589 = vmatpush.msra.mxu0 0.0
          %5590 = vmatpush.msra.mxu0 0.0
          %v5591 = vand.u32 %v5430, 4294901760
          %v5592 = vsub.f32 %v5430, %v5591
          %v5593 = vand.u32 %v5592, 4294901760
          %5594 = vmatpush.msra.mxu0 %v5593
          %v5595 = vand.u32 %v5429, 4294901760
          %v5596 = vsub.f32 %v5429, %v5595
          %v5597 = vand.u32 %v5596, 4294901760
          %5598 = vmatpush.msra.mxu0 %v5597
          %v5599 = vand.u32 %v5428, 4294901760
          %v5600 = vsub.f32 %v5428, %v5599
          %v5601 = vand.u32 %v5600, 4294901760
          %5602 = vmatpush.msra.mxu0 %v5601
          %v5603 = vand.u32 %v5432, 4294901760
          %5604 = vmatmul.f32.gmra.mxu0 %v5603
          %v5605 = vpop.f32.mrf.mxu0
          %v5606 = vadd.f32 %v5570, %v5605
          %v5607 = vand.u32 %v5435, 4294901760
          %5608 = vmatmul.f32.gmra.mxu0 %v5607
          %v5609 = vpop.f32.mrf.mxu0
          %v5610 = vadd.f32 %v5576, %v5609
          %5611 = vdwg.mxu0
          %5612 = vmatpush.msra.mxu0 0.0
          %5613 = vmatpush.msra.mxu0 0.0
          %5614 = vmatpush.msra.mxu0 0.0
          %5615 = vmatpush.msra.mxu0 0.0
          %5616 = vmatpush.msra.mxu0 0.0
          %5617 = vmatpush.msra.mxu0 0.0
          %5618 = vmatpush.msra.mxu0 0.0
          %5619 = vmatpush.msra.mxu0 0.0
          %5620 = vmatpush.msra.mxu0 0.0
          %5621 = vmatpush.msra.mxu0 0.0
          %5622 = vmatpush.msra.mxu0 0.0
          %5623 = vmatpush.msra.mxu0 0.0
          %5624 = vmatpush.msra.mxu0 0.0
          %v5625 = vand.u32 %v5430, 4294901760
          %5626 = vmatpush.msra.mxu0 %v5625
          %v5627 = vand.u32 %v5429, 4294901760
          %5628 = vmatpush.msra.mxu0 %v5627
          %v5629 = vand.u32 %v5428, 4294901760
          %5630 = vmatpush.msra.mxu0 %v5629
          %v5631 = vand.u32 %v5432, 4294901760
          %5632 = vmatmul.f32.gmra.mxu0 %v5631
          %v5633 = vpop.f32.mrf.mxu0
          %v5634 = vadd.f32 %v5606, %v5633
          %v5635 = vand.u32 %v5435, 4294901760
          %5636 = vmatmul.f32.gmra.mxu0 %v5635
          %v5637 = vpop.f32.mrf.mxu0
          %v5638 = vadd.f32 %v5610, %v5637
          %5639 = vdwg.mxu0
          %v5640 = vadd.f32 %v5423, %v5634
          %v5641 = vadd.f32 %v5424, %v5638
          %v5642 = vld [vmem:[%s4126 + $0x7] sm:$0xff]
          %v5643 = vld [vmem:[%s4126 + $0xf] sm:$0xff]
          %s5644 = scalar_lea.vmem %s175, 600
          %v5645 = vld [vmem:[%s5644] sm:$0xff]
          %v5646 = vld [vmem:[%s5644 + $0x8] sm:$0xff]
          %v5647 = vld [vmem:[%s5644 + $0x10] sm:$0xff]
          %v5649 = vsel %vm232, %v5642, 0
          %v5652 = vsel %vm232, %v5643, 0
          %5654 = vmatpush.msra.mxu0 0.0
          %5655 = vmatpush.msra.mxu0 0.0
          %5656 = vmatpush.msra.mxu0 0.0
          %5657 = vmatpush.msra.mxu0 0.0
          %5658 = vmatpush.msra.mxu0 0.0
          %5659 = vmatpush.msra.mxu0 0.0
          %5660 = vmatpush.msra.mxu0 0.0
          %5661 = vmatpush.msra.mxu0 0.0
          %5662 = vmatpush.msra.mxu0 0.0
          %5663 = vmatpush.msra.mxu0 0.0
          %5664 = vmatpush.msra.mxu0 0.0
          %5665 = vmatpush.msra.mxu0 0.0
          %5666 = vmatpush.msra.mxu0 0.0
          %v5667 = vand.u32 %v5647, 4294901760
          %5668 = vmatpush.msra.mxu0 %v5667
          %v5669 = vand.u32 %v5646, 4294901760
          %5670 = vmatpush.msra.mxu0 %v5669
          %v5671 = vand.u32 %v5645, 4294901760
          %5672 = vmatpush.msra.mxu0 %v5671
          %v5673 = vand.u32 %v5649, 4294901760
          %v5674 = vsub.f32 %v5649, %v5673
          %v5675 = vand.u32 %v5674, 4294901760
          %v5676 = vsub.f32 %v5674, %v5675
          %v5677 = vand.u32 %v5676, 4294901760
          %5678 = vmatmul.f32.gmra.mxu0 %v5677
          %v5679 = vpop.f32.mrf.mxu0
          %v5680 = vadd.f32 0.0, %v5679
          %v5681 = vand.u32 %v5652, 4294901760
          %v5682 = vsub.f32 %v5652, %v5681
          %v5683 = vand.u32 %v5682, 4294901760
          %v5684 = vsub.f32 %v5682, %v5683
          %v5685 = vand.u32 %v5684, 4294901760
          %5686 = vmatmul.f32.gmra.mxu0 %v5685
          %v5687 = vpop.f32.mrf.mxu0
          %v5688 = vadd.f32 0.0, %v5687
          %5689 = vdwg.mxu0
          %5690 = vmatpush.msra.mxu0 0.0
          %5691 = vmatpush.msra.mxu0 0.0
          %5692 = vmatpush.msra.mxu0 0.0
          %5693 = vmatpush.msra.mxu0 0.0
          %5694 = vmatpush.msra.mxu0 0.0
          %5695 = vmatpush.msra.mxu0 0.0
          %5696 = vmatpush.msra.mxu0 0.0
          %5697 = vmatpush.msra.mxu0 0.0
          %5698 = vmatpush.msra.mxu0 0.0
          %5699 = vmatpush.msra.mxu0 0.0
          %5700 = vmatpush.msra.mxu0 0.0
          %5701 = vmatpush.msra.mxu0 0.0
          %5702 = vmatpush.msra.mxu0 0.0
          %v5703 = vand.u32 %v5647, 4294901760
          %v5704 = vsub.f32 %v5647, %v5703
          %v5705 = vand.u32 %v5704, 4294901760
          %v5706 = vsub.f32 %v5704, %v5705
          %v5707 = vand.u32 %v5706, 4294901760
          %5708 = vmatpush.msra.mxu0 %v5707
          %v5709 = vand.u32 %v5646, 4294901760
          %v5710 = vsub.f32 %v5646, %v5709
          %v5711 = vand.u32 %v5710, 4294901760
          %v5712 = vsub.f32 %v5710, %v5711
          %v5713 = vand.u32 %v5712, 4294901760
          %5714 = vmatpush.msra.mxu0 %v5713
          %v5715 = vand.u32 %v5645, 4294901760
          %v5716 = vsub.f32 %v5645, %v5715
          %v5717 = vand.u32 %v5716, 4294901760
          %v5718 = vsub.f32 %v5716, %v5717
          %v5719 = vand.u32 %v5718, 4294901760
          %5720 = vmatpush.msra.mxu0 %v5719
          %v5721 = vand.u32 %v5649, 4294901760
          %5722 = vmatmul.f32.gmra.mxu0 %v5721
          %v5723 = vpop.f32.mrf.mxu0
          %v5724 = vadd.f32 %v5680, %v5723
          %v5725 = vand.u32 %v5652, 4294901760
          %5726 = vmatmul.f32.gmra.mxu0 %v5725
          %v5727 = vpop.f32.mrf.mxu0
          %v5728 = vadd.f32 %v5688, %v5727
          %5729 = vdwg.mxu0
          %5730 = vmatpush.msra.mxu0 0.0
          %5731 = vmatpush.msra.mxu0 0.0
          %5732 = vmatpush.msra.mxu0 0.0
          %5733 = vmatpush.msra.mxu0 0.0
          %5734 = vmatpush.msra.mxu0 0.0
          %5735 = vmatpush.msra.mxu0 0.0
          %5736 = vmatpush.msra.mxu0 0.0
          %5737 = vmatpush.msra.mxu0 0.0
          %5738 = vmatpush.msra.mxu0 0.0
          %5739 = vmatpush.msra.mxu0 0.0
          %5740 = vmatpush.msra.mxu0 0.0
          %5741 = vmatpush.msra.mxu0 0.0
          %5742 = vmatpush.msra.mxu0 0.0
          %v5743 = vand.u32 %v5647, 4294901760
          %v5744 = vsub.f32 %v5647, %v5743
          %5745 = vmatpush.msra.mxu0 %v5744
          %v5746 = vand.u32 %v5646, 4294901760
          %v5747 = vsub.f32 %v5646, %v5746
          %5748 = vmatpush.msra.mxu0 %v5747
          %v5749 = vand.u32 %v5645, 4294901760
          %v5750 = vsub.f32 %v5645, %v5749
          %5751 = vmatpush.msra.mxu0 %v5750
          %v5752 = vand.u32 %v5649, 4294901760
          %v5753 = vsub.f32 %v5649, %v5752
          %5754 = vmatmul.f32.gmra.mxu0 %v5753
          %v5755 = vpop.f32.mrf.mxu0
          %v5756 = vadd.f32 %v5724, %v5755
          %v5757 = vand.u32 %v5652, 4294901760
          %v5758 = vsub.f32 %v5652, %v5757
          %5759 = vmatmul.f32.gmra.mxu0 %v5758
          %v5760 = vpop.f32.mrf.mxu0
          %v5761 = vadd.f32 %v5728, %v5760
          %5762 = vdwg.mxu0
          %5763 = vmatpush.msra.mxu0 0.0
          %5764 = vmatpush.msra.mxu0 0.0
          %5765 = vmatpush.msra.mxu0 0.0
          %5766 = vmatpush.msra.mxu0 0.0
          %5767 = vmatpush.msra.mxu0 0.0
          %5768 = vmatpush.msra.mxu0 0.0
          %5769 = vmatpush.msra.mxu0 0.0
          %5770 = vmatpush.msra.mxu0 0.0
          %5771 = vmatpush.msra.mxu0 0.0
          %5772 = vmatpush.msra.mxu0 0.0
          %5773 = vmatpush.msra.mxu0 0.0
          %5774 = vmatpush.msra.mxu0 0.0
          %5775 = vmatpush.msra.mxu0 0.0
          %v5776 = vand.u32 %v5647, 4294901760
          %5777 = vmatpush.msra.mxu0 %v5776
          %v5778 = vand.u32 %v5646, 4294901760
          %5779 = vmatpush.msra.mxu0 %v5778
          %v5780 = vand.u32 %v5645, 4294901760
          %5781 = vmatpush.msra.mxu0 %v5780
          %v5782 = vand.u32 %v5649, 4294901760
          %v5783 = vsub.f32 %v5649, %v5782
          %v5784 = vand.u32 %v5783, 4294901760
          %5785 = vmatmul.f32.gmra.mxu0 %v5784
          %v5786 = vpop.f32.mrf.mxu0
          %v5787 = vadd.f32 %v5756, %v5786
          %v5788 = vand.u32 %v5652, 4294901760
          %v5789 = vsub.f32 %v5652, %v5788
          %v5790 = vand.u32 %v5789, 4294901760
          %5791 = vmatmul.f32.gmra.mxu0 %v5790
          %v5792 = vpop.f32.mrf.mxu0
          %v5793 = vadd.f32 %v5761, %v5792
          %5794 = vdwg.mxu0
          %5795 = vmatpush.msra.mxu0 0.0
          %5796 = vmatpush.msra.mxu0 0.0
          %5797 = vmatpush.msra.mxu0 0.0
          %5798 = vmatpush.msra.mxu0 0.0
          %5799 = vmatpush.msra.mxu0 0.0
          %5800 = vmatpush.msra.mxu0 0.0
          %5801 = vmatpush.msra.mxu0 0.0
          %5802 = vmatpush.msra.mxu0 0.0
          %5803 = vmatpush.msra.mxu0 0.0
          %5804 = vmatpush.msra.mxu0 0.0
          %5805 = vmatpush.msra.mxu0 0.0
          %5806 = vmatpush.msra.mxu0 0.0
          %5807 = vmatpush.msra.mxu0 0.0
          %v5808 = vand.u32 %v5647, 4294901760
          %v5809 = vsub.f32 %v5647, %v5808
          %v5810 = vand.u32 %v5809, 4294901760
          %5811 = vmatpush.msra.mxu0 %v5810
          %v5812 = vand.u32 %v5646, 4294901760
          %v5813 = vsub.f32 %v5646, %v5812
          %v5814 = vand.u32 %v5813, 4294901760
          %5815 = vmatpush.msra.mxu0 %v5814
          %v5816 = vand.u32 %v5645, 4294901760
          %v5817 = vsub.f32 %v5645, %v5816
          %v5818 = vand.u32 %v5817, 4294901760
          %5819 = vmatpush.msra.mxu0 %v5818
          %v5820 = vand.u32 %v5649, 4294901760
          %5821 = vmatmul.f32.gmra.mxu0 %v5820
          %v5822 = vpop.f32.mrf.mxu0
          %v5823 = vadd.f32 %v5787, %v5822
          %v5824 = vand.u32 %v5652, 4294901760
          %5825 = vmatmul.f32.gmra.mxu0 %v5824
          %v5826 = vpop.f32.mrf.mxu0
          %v5827 = vadd.f32 %v5793, %v5826
          %5828 = vdwg.mxu0
          %5829 = vmatpush.msra.mxu0 0.0
          %5830 = vmatpush.msra.mxu0 0.0
          %5831 = vmatpush.msra.mxu0 0.0
          %5832 = vmatpush.msra.mxu0 0.0
          %5833 = vmatpush.msra.mxu0 0.0
          %5834 = vmatpush.msra.mxu0 0.0
          %5835 = vmatpush.msra.mxu0 0.0
          %5836 = vmatpush.msra.mxu0 0.0
          %5837 = vmatpush.msra.mxu0 0.0
          %5838 = vmatpush.msra.mxu0 0.0
          %5839 = vmatpush.msra.mxu0 0.0
          %5840 = vmatpush.msra.mxu0 0.0
          %5841 = vmatpush.msra.mxu0 0.0
          %v5842 = vand.u32 %v5647, 4294901760
          %5843 = vmatpush.msra.mxu0 %v5842
          %v5844 = vand.u32 %v5646, 4294901760
          %5845 = vmatpush.msra.mxu0 %v5844
          %v5846 = vand.u32 %v5645, 4294901760
          %5847 = vmatpush.msra.mxu0 %v5846
          %v5848 = vand.u32 %v5649, 4294901760
          %5849 = vmatmul.f32.gmra.mxu0 %v5848
          %v5850 = vpop.f32.mrf.mxu0
          %v5851 = vadd.f32 %v5823, %v5850
          %v5852 = vand.u32 %v5652, 4294901760
          %5853 = vmatmul.f32.gmra.mxu0 %v5852
          %v5854 = vpop.f32.mrf.mxu0
          %v5855 = vadd.f32 %v5827, %v5854
          %5856 = vdwg.mxu0
          %v5857 = vadd.f32 %v5640, %v5851
          %v5858 = vadd.f32 %v5641, %v5855
          %v5859 = vld [vmem:[%s4126 + $0x8] sm:$0xff]
          %v5860 = vld [vmem:[%s4126 + $0x10] sm:$0xff]
          %s5861 = scalar_lea.vmem %s175, 624
          %v5862 = vld [vmem:[%s5861] sm:$0xff]
          %v5863 = vld [vmem:[%s5861 + $0x8] sm:$0xff]
          %v5864 = vld [vmem:[%s5861 + $0x10] sm:$0xff]
          %v5866 = vsel %vm232, %v5859, 0
          %v5869 = vsel %vm232, %v5860, 0
          %5871 = vmatpush.msra.mxu0 0.0
          %5872 = vmatpush.msra.mxu0 0.0
          %5873 = vmatpush.msra.mxu0 0.0
          %5874 = vmatpush.msra.mxu0 0.0
          %5875 = vmatpush.msra.mxu0 0.0
          %5876 = vmatpush.msra.mxu0 0.0
          %5877 = vmatpush.msra.mxu0 0.0
          %5878 = vmatpush.msra.mxu0 0.0
          %5879 = vmatpush.msra.mxu0 0.0
          %5880 = vmatpush.msra.mxu0 0.0
          %5881 = vmatpush.msra.mxu0 0.0
          %5882 = vmatpush.msra.mxu0 0.0
          %5883 = vmatpush.msra.mxu0 0.0
          %v5884 = vand.u32 %v5864, 4294901760
          %5885 = vmatpush.msra.mxu0 %v5884
          %v5886 = vand.u32 %v5863, 4294901760
          %5887 = vmatpush.msra.mxu0 %v5886
          %v5888 = vand.u32 %v5862, 4294901760
          %5889 = vmatpush.msra.mxu0 %v5888
          %v5890 = vand.u32 %v5866, 4294901760
          %v5891 = vsub.f32 %v5866, %v5890
          %v5892 = vand.u32 %v5891, 4294901760
          %v5893 = vsub.f32 %v5891, %v5892
          %v5894 = vand.u32 %v5893, 4294901760
          %5895 = vmatmul.f32.gmra.mxu0 %v5894
          %v5896 = vpop.f32.mrf.mxu0
          %v5897 = vadd.f32 0.0, %v5896
          %v5898 = vand.u32 %v5869, 4294901760
          %v5899 = vsub.f32 %v5869, %v5898
          %v5900 = vand.u32 %v5899, 4294901760
          %v5901 = vsub.f32 %v5899, %v5900
          %v5902 = vand.u32 %v5901, 4294901760
          %5903 = vmatmul.f32.gmra.mxu0 %v5902
          %v5904 = vpop.f32.mrf.mxu0
          %v5905 = vadd.f32 0.0, %v5904
          %5906 = vdwg.mxu0
          %5907 = vmatpush.msra.mxu0 0.0
          %5908 = vmatpush.msra.mxu0 0.0
          %5909 = vmatpush.msra.mxu0 0.0
          %5910 = vmatpush.msra.mxu0 0.0
          %5911 = vmatpush.msra.mxu0 0.0
          %5912 = vmatpush.msra.mxu0 0.0
          %5913 = vmatpush.msra.mxu0 0.0
          %5914 = vmatpush.msra.mxu0 0.0
          %5915 = vmatpush.msra.mxu0 0.0
          %5916 = vmatpush.msra.mxu0 0.0
          %5917 = vmatpush.msra.mxu0 0.0
          %5918 = vmatpush.msra.mxu0 0.0
          %5919 = vmatpush.msra.mxu0 0.0
          %v5920 = vand.u32 %v5864, 4294901760
          %v5921 = vsub.f32 %v5864, %v5920
          %v5922 = vand.u32 %v5921, 4294901760
          %v5923 = vsub.f32 %v5921, %v5922
          %v5924 = vand.u32 %v5923, 4294901760
          %5925 = vmatpush.msra.mxu0 %v5924
          %v5926 = vand.u32 %v5863, 4294901760
          %v5927 = vsub.f32 %v5863, %v5926
          %v5928 = vand.u32 %v5927, 4294901760
          %v5929 = vsub.f32 %v5927, %v5928
          %v5930 = vand.u32 %v5929, 4294901760
          %5931 = vmatpush.msra.mxu0 %v5930
          %v5932 = vand.u32 %v5862, 4294901760
          %v5933 = vsub.f32 %v5862, %v5932
          %v5934 = vand.u32 %v5933, 4294901760
          %v5935 = vsub.f32 %v5933, %v5934
          %v5936 = vand.u32 %v5935, 4294901760
          %5937 = vmatpush.msra.mxu0 %v5936
          %v5938 = vand.u32 %v5866, 4294901760
          %5939 = vmatmul.f32.gmra.mxu0 %v5938
          %v5940 = vpop.f32.mrf.mxu0
          %v5941 = vadd.f32 %v5897, %v5940
          %v5942 = vand.u32 %v5869, 4294901760
          %5943 = vmatmul.f32.gmra.mxu0 %v5942
          %v5944 = vpop.f32.mrf.mxu0
          %v5945 = vadd.f32 %v5905, %v5944
          %5946 = vdwg.mxu0
          %5947 = vmatpush.msra.mxu0 0.0
          %5948 = vmatpush.msra.mxu0 0.0
          %5949 = vmatpush.msra.mxu0 0.0
          %5950 = vmatpush.msra.mxu0 0.0
          %5951 = vmatpush.msra.mxu0 0.0
          %5952 = vmatpush.msra.mxu0 0.0
          %5953 = vmatpush.msra.mxu0 0.0
          %5954 = vmatpush.msra.mxu0 0.0
          %5955 = vmatpush.msra.mxu0 0.0
          %5956 = vmatpush.msra.mxu0 0.0
          %5957 = vmatpush.msra.mxu0 0.0
          %5958 = vmatpush.msra.mxu0 0.0
          %5959 = vmatpush.msra.mxu0 0.0
          %v5960 = vand.u32 %v5864, 4294901760
          %v5961 = vsub.f32 %v5864, %v5960
          %5962 = vmatpush.msra.mxu0 %v5961
          %v5963 = vand.u32 %v5863, 4294901760
          %v5964 = vsub.f32 %v5863, %v5963
          %5965 = vmatpush.msra.mxu0 %v5964
          %v5966 = vand.u32 %v5862, 4294901760
          %v5967 = vsub.f32 %v5862, %v5966
          %5968 = vmatpush.msra.mxu0 %v5967
          %v5969 = vand.u32 %v5866, 4294901760
          %v5970 = vsub.f32 %v5866, %v5969
          %5971 = vmatmul.f32.gmra.mxu0 %v5970
          %v5972 = vpop.f32.mrf.mxu0
          %v5973 = vadd.f32 %v5941, %v5972
          %v5974 = vand.u32 %v5869, 4294901760
          %v5975 = vsub.f32 %v5869, %v5974
          %5976 = vmatmul.f32.gmra.mxu0 %v5975
          %v5977 = vpop.f32.mrf.mxu0
          %v5978 = vadd.f32 %v5945, %v5977
          %5979 = vdwg.mxu0
          %5980 = vmatpush.msra.mxu0 0.0
          %5981 = vmatpush.msra.mxu0 0.0
          %5982 = vmatpush.msra.mxu0 0.0
          %5983 = vmatpush.msra.mxu0 0.0
          %5984 = vmatpush.msra.mxu0 0.0
          %5985 = vmatpush.msra.mxu0 0.0
          %5986 = vmatpush.msra.mxu0 0.0
          %5987 = vmatpush.msra.mxu0 0.0
          %5988 = vmatpush.msra.mxu0 0.0
          %5989 = vmatpush.msra.mxu0 0.0
          %5990 = vmatpush.msra.mxu0 0.0
          %5991 = vmatpush.msra.mxu0 0.0
          %5992 = vmatpush.msra.mxu0 0.0
          %v5993 = vand.u32 %v5864, 4294901760
          %5994 = vmatpush.msra.mxu0 %v5993
          %v5995 = vand.u32 %v5863, 4294901760
          %5996 = vmatpush.msra.mxu0 %v5995
          %v5997 = vand.u32 %v5862, 4294901760
          %5998 = vmatpush.msra.mxu0 %v5997
          %v5999 = vand.u32 %v5866, 4294901760
          %v6000 = vsub.f32 %v5866, %v5999
          %v6001 = vand.u32 %v6000, 4294901760
          %6002 = vmatmul.f32.gmra.mxu0 %v6001
          %v6003 = vpop.f32.mrf.mxu0
          %v6004 = vadd.f32 %v5973, %v6003
          %v6005 = vand.u32 %v5869, 4294901760
          %v6006 = vsub.f32 %v5869, %v6005
          %v6007 = vand.u32 %v6006, 4294901760
          %6008 = vmatmul.f32.gmra.mxu0 %v6007
          %v6009 = vpop.f32.mrf.mxu0
          %v6010 = vadd.f32 %v5978, %v6009
          %6011 = vdwg.mxu0
          %6012 = vmatpush.msra.mxu0 0.0
          %6013 = vmatpush.msra.mxu0 0.0
          %6014 = vmatpush.msra.mxu0 0.0
          %6015 = vmatpush.msra.mxu0 0.0
          %6016 = vmatpush.msra.mxu0 0.0
          %6017 = vmatpush.msra.mxu0 0.0
          %6018 = vmatpush.msra.mxu0 0.0
          %6019 = vmatpush.msra.mxu0 0.0
          %6020 = vmatpush.msra.mxu0 0.0
          %6021 = vmatpush.msra.mxu0 0.0
          %6022 = vmatpush.msra.mxu0 0.0
          %6023 = vmatpush.msra.mxu0 0.0
          %6024 = vmatpush.msra.mxu0 0.0
          %v6025 = vand.u32 %v5864, 4294901760
          %v6026 = vsub.f32 %v5864, %v6025
          %v6027 = vand.u32 %v6026, 4294901760
          %6028 = vmatpush.msra.mxu0 %v6027
          %v6029 = vand.u32 %v5863, 4294901760
          %v6030 = vsub.f32 %v5863, %v6029
          %v6031 = vand.u32 %v6030, 4294901760
          %6032 = vmatpush.msra.mxu0 %v6031
          %v6033 = vand.u32 %v5862, 4294901760
          %v6034 = vsub.f32 %v5862, %v6033
          %v6035 = vand.u32 %v6034, 4294901760
          %6036 = vmatpush.msra.mxu0 %v6035
          %v6037 = vand.u32 %v5866, 4294901760
          %6038 = vmatmul.f32.gmra.mxu0 %v6037
          %v6039 = vpop.f32.mrf.mxu0
          %v6040 = vadd.f32 %v6004, %v6039
          %v6041 = vand.u32 %v5869, 4294901760
          %6042 = vmatmul.f32.gmra.mxu0 %v6041
          %v6043 = vpop.f32.mrf.mxu0
          %v6044 = vadd.f32 %v6010, %v6043
          %6045 = vdwg.mxu0
          %6046 = vmatpush.msra.mxu0 0.0
          %6047 = vmatpush.msra.mxu0 0.0
          %6048 = vmatpush.msra.mxu0 0.0
          %6049 = vmatpush.msra.mxu0 0.0
          %6050 = vmatpush.msra.mxu0 0.0
          %6051 = vmatpush.msra.mxu0 0.0
          %6052 = vmatpush.msra.mxu0 0.0
          %6053 = vmatpush.msra.mxu0 0.0
          %6054 = vmatpush.msra.mxu0 0.0
          %6055 = vmatpush.msra.mxu0 0.0
          %6056 = vmatpush.msra.mxu0 0.0
          %6057 = vmatpush.msra.mxu0 0.0
          %6058 = vmatpush.msra.mxu0 0.0
          %v6059 = vand.u32 %v5864, 4294901760
          %6060 = vmatpush.msra.mxu0 %v6059
          %v6061 = vand.u32 %v5863, 4294901760
          %6062 = vmatpush.msra.mxu0 %v6061
          %v6063 = vand.u32 %v5862, 4294901760
          %6064 = vmatpush.msra.mxu0 %v6063
          %v6065 = vand.u32 %v5866, 4294901760
          %6066 = vmatmul.f32.gmra.mxu0 %v6065
          %v6067 = vpop.f32.mrf.mxu0
          %v6068 = vadd.f32 %v6040, %v6067
          %v6069 = vand.u32 %v5869, 4294901760
          %6070 = vmatmul.f32.gmra.mxu0 %v6069
          %v6071 = vpop.f32.mrf.mxu0
          %v6072 = vadd.f32 %v6044, %v6071
          %6073 = vdwg.mxu0
          %v6074 = vadd.f32 %v5857, %v6068
          %v6075 = vadd.f32 %v5858, %v6072
          %s6076 = scalar_lea.vmem %s165, 32 [#allocation2]
          %6077 = vst.msk [vmem:[%s6076] sm:$0xff] %vm2170, %v6074
          %6078 = vst.msk [vmem:[%s6076 + $0x8] sm:$0xff] %vm2170, %v6075
        $region36: #{non_separable_forward.1} parent=27 // pred_fallthru
          _
        %s6079 = sand.u32 %s90, 1
        %s6080 = scalar_lea.sflag [#allocation3], %s6079
        %s6081 = sand.u32 %s90, 1
        %s6082 = smul.addr %s6081, 48
        %s6083 = scalar_lea.vmem [#allocation2], %s6082
        // Predicated region
        $region37: #{non_separable_forward.1} parent=27 // pred_check
          %p6084 = pneg %p100
        $region38: #{non_separable_forward.1} parent=27 // pred_check_branch
          %6086 = sbr.rel (%p6084) target = $region40
        $region39: #{non_separable_forward.1} parent=27 // pred_region
          %6088 = vsyncadd %s6080, 0
          %s6089 = smul.addr %s21, 6
          %s6090 = smul.addr %s20, 30
          %s6091 = sadd.s32 %s6089, %s6090
          %s6092 = smul.addr %s6091, 8
          %s6093 = scalar_lea.hbm %s2, %s6092
          %s6094 = sshll.u32 %s6083, 4
          %s6095 = int_to_ptr.vmem [resolvable:$true] %s6094
          %s6096 = sshll.u32 %s6093, 4
          %s6097 = int_to_ptr.hbm [resolvable:$true] %s6096
          %6102 = dma.vmem_to_hbm [thread:$0]  %s6095, 768, %s6097, %s6080, 128, 128, 8
        $region40: #{non_separable_forward.1} parent=27 // pred_fallthru
          _
      $region28: #{non_separable_forward.1} parent=5 // pred_fallthru
        _
      %p6103 = scmp.le.s32.totalorder 2, %s11
      // Predicated region
      $region41: #{non_separable_forward.1} parent=5 // pred_check
        %p6104 = pneg %p6103
      $region42: #{non_separable_forward.1} parent=5 // pred_check_branch
        %6106 = sbr.rel (%p6104) target = $region44
      $region43: #{non_separable_forward.1} parent=5 // pred_region
        %s6107 = ssub.s32 %s11, 2
        // Predicated region
        $region45: #{non_separable_forward.1} parent=43 // pred_check
          %p6108 = pneg %p106
        $region46: #{non_separable_forward.1} parent=43 // pred_check_branch
          %6110 = sbr.rel (%p6108) target = $region48
        $region47: #{non_separable_forward.1} parent=43 // pred_region
          %s6111 = sand.u32 %s91, 1
          %s6112 = scalar_lea.sflag [#allocation3], %s6111
          %s6113 = sand.u32 %s91, 1
          %s6114 = smul.addr %s6113, 48
          %s6115 = scalar_lea.vmem [#allocation2], %s6114
          %6117 = dma.done %s6112, 768
        $region48: #{non_separable_forward.1} parent=43 // pred_fallthru
          _
      $region44: #{non_separable_forward.1} parent=5 // pred_fallthru
        _
    $region6: #{non_separable_forward.1} parent=1 // loop_footer
      %s15 = sadd.s32 1, %s11
    $region7: #{non_separable_forward.1} parent=1 // loop_footer_branch
      %10 = sbr.rel target = $region3
    $region8: #{non_separable_forward.1} parent=1 // loop_exit
      _
    %6118 = vsyncpa [#allocation3], 1
    %s6119 = scalar_lea.sflag [#allocation3], 1
    %6120 = vsyncpa %s6119, 1

</llo_original>
